<compile_context>
chip_gen: v7x
topology: tpu7x:2x2x1
jax: 0.10.0
libtpu: 0.0.40
codegen_flags: <defaults>
</compile_context>

<pallas_src>
import functools

import jax
import jax.numpy as jnp
from jax import lax
from jax.experimental import pallas as pl
from jax.experimental.pallas import tpu as pltpu

EPS = 1e-5          # nn.InstanceNorm2d default eps
FLAT_MARGIN = 8     # taps read up to Hp*Wp_r + 2; margin rows are zeroed and
                    # only ever land in masked junk accumulator rows.


def _round_up(v, m):
    return ((v + m - 1) // m) * m


def _conv3x3_wide(flat_ref, w_ref, HWr, Wpr, packed):
    """3x3 conv on the flattened padded image ('wide' result; junk cols masked later).

    flat_ref: (Hp*Wpr + margin, C) bf16 flattened reflect-padded image.
    Tap (dy, dx) is the contiguous slice starting at dy*Wpr + dx (static, and
    dy*Wpr is sublane-aligned because Wpr % 8 == 0).
      packed=True : taps concatenated along K -> single (HWr, 9C) @ (9C, C)
                    matmul (fills the MXU K dim when C < 128).
      packed=False: nine (HWr, C) @ (C, C) matmuls (K=C already >= 128).
    Returns a (H*Wpr, C) f32 accumulator.
    """
    if packed:
        taps = [flat_ref[pl.ds(dy * Wpr + dx, HWr), :]
                for dy in range(3) for dx in range(3)]
        lhs = jnp.concatenate(taps, axis=-1)                   # (HWr, 9C) bf16
        return jnp.dot(lhs, w_ref[...], preferred_element_type=jnp.float32)
    acc = None
    for t in range(9):
        dy, dx = divmod(t, 3)
        tap = flat_ref[pl.ds(dy * Wpr + dx, HWr), :]           # (HWr, C) bf16
        part = jnp.dot(tap, w_ref[t], preferred_element_type=jnp.float32)
        acc = part if acc is None else acc + part
    return acc


def resnet_block_kernel(x_ref, w1_ref, w2_ref, out_ref, pad3_ref, flat_ref,
                        *, H, W, C, packed):
    # x_ref   : (H, W, C) f32            one image, NHWC
    # w*_ref  : (9C, C) or (9, C, C) bf16 conv taps (tap-major)
    # out_ref : (H, W, C) f32
    # pad3_ref: (Hp, Wpr, C) bf16        reflect-padded image (rectangular builds)
    # flat_ref: (Hp*Wpr + 8, C) bf16     flat copy of pad3 for the 9 tap slices
    Hp, Wp = H + 2, W + 2
    Wpr = pad3_ref.shape[1]
    HWr = H * Wpr
    n_flat = Hp * Wpr
    margin = flat_ref.shape[0] - n_flat

    # ---- zero the junk regions (must be finite: they feed masked rows) -----
    if Wpr > Wp:
        pad3_ref[pl.ds(0, Hp), pl.ds(Wp, Wpr - Wp), :] = jnp.zeros(
            (Hp, Wpr - Wp, C), jnp.bfloat16)
    flat_ref[pl.ds(n_flat, margin), :] = jnp.zeros((margin, C), jnp.bfloat16)

    def reflect_ring():
        # left / right pad columns of the H interior rows, then top / bottom
        # padded rows (this order makes the corners reflect correctly).
        pad3_ref[pl.ds(1, H), pl.ds(0, 1), :] = pad3_ref[pl.ds(1, H), pl.ds(2, 1), :]
        pad3_ref[pl.ds(1, H), pl.ds(W + 1, 1), :] = pad3_ref[pl.ds(1, H), pl.ds(W - 1, 1), :]
        pad3_ref[pl.ds(0, 1), :, :] = pad3_ref[pl.ds(2, 1), :, :]
        pad3_ref[pl.ds(H + 1, 1), :, :] = pad3_ref[pl.ds(H - 1, 1), :, :]

    def flatten_pad():
        # (Hp, Wpr, C) -> (Hp*Wpr, C): merging leading dims, lane dim unchanged.
        flat_ref[pl.ds(0, n_flat), :] = pad3_ref[...].reshape(n_flat, C)

    # validity mask of wide rows (junk where the intra-row column >= W)
    col = lax.broadcasted_iota(jnp.int32, (HWr, 1), 0) % Wpr
    maskf = (col < W).astype(jnp.float32)
    inv_n = jnp.float32(1.0 / (H * W))

    def instance_norm(acc):
        # affine-free InstanceNorm over the valid rows, fused single pass.
        masked = acc * maskf
        s1 = jnp.sum(masked, axis=0, keepdims=True)            # (1, C)
        s2 = jnp.sum(masked * acc, axis=0, keepdims=True)       # (1, C)
        mean = s1 * inv_n
        var = jnp.maximum(s2 * inv_n - mean * mean, 0.0)
        return (acc - mean) * lax.rsqrt(var + EPS)

    # ---- conv1 -> IN -> ReLU (bias dropped: affine-free IN cancels it) -----
    pad3_ref[pl.ds(1, H), pl.ds(1, W), :] = x_ref[...].astype(jnp.bfloat16)
    reflect_ring()
    flatten_pad()
    y1 = jnp.maximum(
        instance_norm(_conv3x3_wide(flat_ref, w1_ref, HWr, Wpr, packed)), 0.0)

    # ---- conv2 -> IN (no ReLU) ----------------------------------------------
    y1v = y1.reshape(H, Wpr, C)[:, :W, :]                      # drop junk cols
    pad3_ref[pl.ds(1, H), pl.ds(1, W), :] = y1v.astype(jnp.bfloat16)
    reflect_ring()
    flatten_pad()
    y2 = instance_norm(_conv3x3_wide(flat_ref, w2_ref, HWr, Wpr, packed))

    # ---- skip connection ----------------------------------------------------
    out_ref[...] = x_ref[...] + y2.reshape(H, Wpr, C)[:, :W, :]


def resnet_block_forward(x_nchw, w1, b1, w2, b2):
    """ResnetBlock forward.  x_nchw: (N, C, H, W) f32; weights (Cout, Cin, 3, 3).

    b1/b2 are accepted for API parity with the PyTorch module but unused: the
    affine-free InstanceNorm directly after each conv exactly cancels a
    per-channel constant, i.e. IN(conv(x) + b) == IN(conv(x)).  This shortcut
    (and this kernel) is ONLY valid for the reflect-pad + InstanceNorm2d
    (affine=False) + no-dropout configuration of the module.
    """
    del b1, b2
    N, C, H, W = x_nchw.shape
    Hp, Wp = H + 2, W + 2
    Wpr = _round_up(Wp, 8)            # sublane-aligned padded row stride
    n_flat = Hp * Wpr
    packed = C < 128                  # pack taps along K only when K=C is small

    # NCHW -> NHWC f32 image; weights -> tap-major bf16 MXU operands.
    x = jnp.transpose(x_nchw, (0, 2, 3, 1)).astype(jnp.float32)

    def prep_w(w):
        wk = jnp.transpose(w, (2, 3, 1, 0)).reshape(9, C, C).astype(jnp.bfloat16)
        return wk.reshape(9 * C, C) if packed else wk

    w1k, w2k = prep_w(w1), prep_w(w2)
    if packed:
        w_specs = [pl.BlockSpec((9 * C, C), lambda n: (0, 0)) for _ in range(2)]
    else:
        w_specs = [pl.BlockSpec((9, C, C), lambda n: (0, 0, 0)) for _ in range(2)]

    kernel = functools.partial(resnet_block_kernel, H=H, W=W, C=C, packed=packed)

    # VMEM budget: double-buffered x/out blocks + weights + bf16 pad scratches
    # + headroom for the live f32 'wide' temporaries.  ~55 MiB at the
    # production 64x64x256 config -> fits v7x's 64 MiB physical VMEM.
    blk_bytes = H * W * C * 4
    w_bytes = 9 * C * C * 2
    scratch_bytes = (Hp * Wpr * C + (n_flat + FLAT_MARGIN) * C) * 2
    wide_bytes = H * Wpr * C * 4
    vmem_limit = int(min(max(4 * blk_bytes + 4 * w_bytes + scratch_bytes
                             + 6 * wide_bytes + (4 << 20), 16 << 20), 96 << 20))

    out = pl.pallas_call(
        kernel,
        out_shape=jax.ShapeDtypeStruct((N, H, W, C), jnp.float32),
        grid_spec=pltpu.PrefetchScalarGridSpec(
            num_scalar_prefetch=0,
            grid=(N,),
            in_specs=[
                pl.BlockSpec((None, H, W, C), lambda n: (n, 0, 0, 0)),
                w_specs[0],
                w_specs[1],
            ],
            out_specs=pl.BlockSpec((None, H, W, C), lambda n: (n, 0, 0, 0)),
            scratch_shapes=[
                pltpu.VMEM((Hp, Wpr, C), jnp.bfloat16),
                pltpu.VMEM((n_flat + FLAT_MARGIN, C), jnp.bfloat16),
            ],
        ),
        compiler_params=pltpu.CompilerParams(
            dimension_semantics=("parallel",),
            vmem_limit_bytes=vmem_limit,
        ),
        cost_estimate=pl.CostEstimate(
            flops=2 * N * 2 * (H * Wpr) * (9 * C) * C,
            transcendentals=0,
            bytes_accessed=2 * N * H * W * C * 4 + 2 * 9 * C * C * 2,
        ),
    )(x, w1k, w2k)

    return jnp.transpose(out, (0, 3, 1, 2))   # back to NCHW


def reference_forward(x, w1, b1, w2, b2):
    """Pure-JAX f32 reference (NCHW, reflect pad, conv+bias, instance norm)."""
    def conv(t, w, b):
        tp = jnp.pad(t, ((0, 0), (0, 0), (1, 1), (1, 1)), mode="reflect")
        y = lax.conv_general_dilated(tp, w, (1, 1), "VALID",
                                     dimension_numbers=("NCHW", "OIHW", "NCHW"))
        return y + b[None, :, None, None]

    def inorm(t):
        m = jnp.mean(t, axis=(2, 3), keepdims=True)
        v = jnp.mean((t - m) ** 2, axis=(2, 3), keepdims=True)
        return (t - m) * lax.rsqrt(v + EPS)

    y = jnp.maximum(inorm(conv(x, w1, b1)), 0.0)
    y = inorm(conv(y, w2, b2))
    return x + y


def _run_case(key, N, C, H, W):
    kx, kw1, kb1, kw2, kb2 = jax.random.split(key, 5)
    x = jax.random.normal(kx, (N, C, H, W), jnp.float32)
    # PyTorch Conv2d weight layout (Cout, Cin, kH, kW); deterministic init
    w1 = jax.random.normal(kw1, (C, C, 3, 3), jnp.float32) * 0.2
    b1 = jax.random.normal(kb1, (C,), jnp.float32) * 0.1
    w2 = jax.random.normal(kw2, (C, C, 3, 3), jnp.float32) * 0.2
    b2 = jax.random.normal(kb2, (C,), jnp.float32) * 0.1

    out = jax.block_until_ready(jax.jit(resnet_block_forward)(x, w1, b1, w2, b2))
    ref = reference_forward(x, w1, b1, w2, b2)
    assert out.shape == (N, C, H, W)
    # bf16 MXU operands -> ~1e-2 abs error after IN re-normalization.
    max_err = float(jnp.max(jnp.abs(out - ref)))
    assert jnp.allclose(out, ref, atol=5e-2, rtol=5e-2), \
        f"mismatch vs reference for {(N, C, H, W)}: max abs err {max_err}"


if __name__ == "__main__":
    key = jax.random.PRNGKey(0)
    k1, k2, k3 = jax.random.split(key, 3)
    # primary small config (packed-tap path, C < 128)
    _run_case(k1, N=2, C=4, H=16, W=16)
    # wide-channel config (unpacked 9-matmul path, C >= 128)
    _run_case(k2, N=1, C=128, H=8, W=8)
    # non-square / odd spatial dims (guards the reflect-pad / junk-row invariants)
    _run_case(k3, N=1, C=8, H=7, W=5)
    print("KERNEL_OK")
</pallas_src>

<mosaic_0001>
module attributes {stable_mosaic.version = 11 : i64} {
  func.func @resnet_block_kernel(%arg0: i32, %arg1: memref<1x16x16x4xf32, #tpu.memory_space<vmem>>, %arg2: memref<36x4xbf16, #tpu.memory_space<vmem>>, %arg3: memref<36x4xbf16, #tpu.memory_space<vmem>>, %arg4: memref<1x16x16x4xf32, #tpu.memory_space<vmem>>, %arg5: memref<18x24x4xbf16, #tpu.memory_space<vmem>>, %arg6: memref<440x4xbf16, #tpu.memory_space<vmem>>) attributes {dimension_semantics = [#tpu.dimension_semantics<parallel>], iteration_bounds = array<i64: 2>, scalar_prefetch = 0 : i64, scratch_operands = 2 : i64, tpu.core_type = #tpu.core_type<tc>, window_params = [{transform_indices = @transform_0, window_bounds = array<i64: 1, 16, 16, 4>}, {pipeline_mode = #tpu.pipeline_mode<synchronous>, transform_indices = @transform_1, window_bounds = array<i64: 36, 4>}, {pipeline_mode = #tpu.pipeline_mode<synchronous>, transform_indices = @transform_2, window_bounds = array<i64: 36, 4>}, {transform_indices = @transform_3, window_bounds = array<i64: 1, 16, 16, 4>}]} {
    %cst = arith.constant 0.000000e+00 : bf16
    %0 = vector.broadcast %cst : bf16 to vector<18x6x4xbf16>
    %c0 = arith.constant 0 : index
    %c18 = arith.constant 18 : index
    %c0_0 = arith.constant 0 : index
    %1 = vector.load %arg5[%c0, %c18, %c0_0] : memref<18x24x4xbf16, #tpu.memory_space<vmem>>, vector<18x6x4xbf16>
    tpu.vector_store %arg5[%c0, %c18, %c0_0], %0 {strides = array<i32>} : memref<18x24x4xbf16, #tpu.memory_space<vmem>>, vector<18x6x4xbf16>,
    %cst_1 = arith.constant 0.000000e+00 : bf16
    %2 = vector.broadcast %cst_1 : bf16 to vector<8x4xbf16>
    %c432 = arith.constant 432 : index
    %c0_2 = arith.constant 0 : index
    %3 = vector.load %arg6[%c432, %c0_2] : memref<440x4xbf16, #tpu.memory_space<vmem>>, vector<8x4xbf16>
    tpu.vector_store %arg6[%c432, %c0_2], %2 {strides = array<i32>} : memref<440x4xbf16, #tpu.memory_space<vmem>>, vector<8x4xbf16>,
    %4 = tpu.iota {dimensions = array<i32: 0>} : vector<384x1xi32>
    %c24_i32 = arith.constant 24 : i32
    %c0_i32 = arith.constant 0 : i32
    %5 = arith.cmpi eq, %c24_i32, %c0_i32 : i32
    %c1_i32 = arith.constant 1 : i32
    %6 = arith.select %5, %c1_i32, %c24_i32 : i32
    %7 = vector.broadcast %6 : i32 to vector<384x1xi32>
    %8 = arith.remsi %4, %7 : vector<384x1xi32>
    %c0_i32_3 = arith.constant 0 : i32
    %9 = vector.broadcast %c0_i32_3 : i32 to vector<384x1xi32>
    %10 = arith.cmpi ne, %8, %9 : vector<384x1xi32>
    %c0_i32_4 = arith.constant 0 : i32
    %11 = vector.broadcast %c0_i32_4 : i32 to vector<384x1xi32>
    %12 = arith.cmpi slt, %8, %11 : vector<384x1xi32>
    %c0_i32_5 = arith.constant 0 : i32
    %13 = arith.cmpi slt, %6, %c0_i32_5 : i32
    %14 = vector.broadcast %13 : i1 to vector<384x1xi1>
    %15 = vector.broadcast %14 : vector<384x1xi1> to vector<384x1xi1>
    %16 = arith.xori %12, %15 : vector<384x1xi1>
    %17 = arith.andi %16, %10 : vector<384x1xi1>
    %18 = vector.broadcast %6 : i32 to vector<384x1xi32>
    %19 = arith.addi %8, %18 : vector<384x1xi32>
    %20 = arith.select %17, %19, %8 : vector<384x1xi1>, vector<384x1xi32>
    %c16_i32 = arith.constant 16 : i32
    %21 = vector.broadcast %c16_i32 : i32 to vector<384x1xi32>
    %22 = arith.cmpi slt, %20, %21 : vector<384x1xi32>
    %23 = arith.extui %22 : vector<384x1xi1> to vector<384x1xi32>
    %24 = arith.sitofp %23 : vector<384x1xi32> to vector<384x1xf32>
    %c0_6 = arith.constant 0 : index
    %c0_7 = arith.constant 0 : index
    %c0_8 = arith.constant 0 : index
    %c0_9 = arith.constant 0 : index
    %25 = vector.load %arg1[%c0_6, %c0_7, %c0_8, %c0_9] : memref<1x16x16x4xf32, #tpu.memory_space<vmem>>, vector<1x16x16x4xf32>
    %26 = vector.shape_cast %25 : vector<1x16x16x4xf32> to vector<16x16x4xf32>
    %27 = arith.truncf %26 : vector<16x16x4xf32> to vector<16x16x4xbf16>
    %c1 = arith.constant 1 : index
    %c1_10 = arith.constant 1 : index
    %c0_11 = arith.constant 0 : index
    %28 = vector.load %arg5[%c1, %c1_10, %c0_11] : memref<18x24x4xbf16, #tpu.memory_space<vmem>>, vector<16x16x4xbf16>
    tpu.vector_store %arg5[%c1, %c1_10, %c0_11], %27 {strides = array<i32>} : memref<18x24x4xbf16, #tpu.memory_space<vmem>>, vector<16x16x4xbf16>,
    %c1_12 = arith.constant 1 : index
    %c2 = arith.constant 2 : index
    %c0_13 = arith.constant 0 : index
    %29 = vector.load %arg5[%c1_12, %c2, %c0_13] : memref<18x24x4xbf16, #tpu.memory_space<vmem>>, vector<16x1x4xbf16>
    %c1_14 = arith.constant 1 : index
    %c0_15 = arith.constant 0 : index
    %c0_16 = arith.constant 0 : index
    %30 = vector.load %arg5[%c1_14, %c0_15, %c0_16] : memref<18x24x4xbf16, #tpu.memory_space<vmem>>, vector<16x1x4xbf16>
    tpu.vector_store %arg5[%c1_14, %c0_15, %c0_16], %29 {strides = array<i32>} : memref<18x24x4xbf16, #tpu.memory_space<vmem>>, vector<16x1x4xbf16>,
    %c1_17 = arith.constant 1 : index
    %c15 = arith.constant 15 : index
    %c0_18 = arith.constant 0 : index
    %31 = vector.load %arg5[%c1_17, %c15, %c0_18] : memref<18x24x4xbf16, #tpu.memory_space<vmem>>, vector<16x1x4xbf16>
    %c1_19 = arith.constant 1 : index
    %c17 = arith.constant 17 : index
    %c0_20 = arith.constant 0 : index
    %32 = vector.load %arg5[%c1_19, %c17, %c0_20] : memref<18x24x4xbf16, #tpu.memory_space<vmem>>, vector<16x1x4xbf16>
    tpu.vector_store %arg5[%c1_19, %c17, %c0_20], %31 {strides = array<i32>} : memref<18x24x4xbf16, #tpu.memory_space<vmem>>, vector<16x1x4xbf16>,
    %c2_21 = arith.constant 2 : index
    %c0_22 = arith.constant 0 : index
    %c0_23 = arith.constant 0 : index
    %33 = vector.load %arg5[%c2_21, %c0_22, %c0_23] : memref<18x24x4xbf16, #tpu.memory_space<vmem>>, vector<1x24x4xbf16>
    %c0_24 = arith.constant 0 : index
    %c0_25 = arith.constant 0 : index
    %c0_26 = arith.constant 0 : index
    %34 = vector.load %arg5[%c0_24, %c0_25, %c0_26] : memref<18x24x4xbf16, #tpu.memory_space<vmem>>, vector<1x24x4xbf16>
    tpu.vector_store %arg5[%c0_24, %c0_25, %c0_26], %33 {strides = array<i32>} : memref<18x24x4xbf16, #tpu.memory_space<vmem>>, vector<1x24x4xbf16>,
    %c15_27 = arith.constant 15 : index
    %c0_28 = arith.constant 0 : index
    %c0_29 = arith.constant 0 : index
    %35 = vector.load %arg5[%c15_27, %c0_28, %c0_29] : memref<18x24x4xbf16, #tpu.memory_space<vmem>>, vector<1x24x4xbf16>
    %c17_30 = arith.constant 17 : index
    %c0_31 = arith.constant 0 : index
    %c0_32 = arith.constant 0 : index
    %36 = vector.load %arg5[%c17_30, %c0_31, %c0_32] : memref<18x24x4xbf16, #tpu.memory_space<vmem>>, vector<1x24x4xbf16>
    tpu.vector_store %arg5[%c17_30, %c0_31, %c0_32], %35 {strides = array<i32>} : memref<18x24x4xbf16, #tpu.memory_space<vmem>>, vector<1x24x4xbf16>,
    %c0_33 = arith.constant 0 : index
    %c0_34 = arith.constant 0 : index
    %c0_35 = arith.constant 0 : index
    %37 = vector.load %arg5[%c0_33, %c0_34, %c0_35] : memref<18x24x4xbf16, #tpu.memory_space<vmem>>, vector<18x24x4xbf16>
    %38 = vector.shape_cast %37 : vector<18x24x4xbf16> to vector<432x4xbf16>
    %c0_36 = arith.constant 0 : index
    %c0_37 = arith.constant 0 : index
    %39 = vector.load %arg6[%c0_36, %c0_37] : memref<440x4xbf16, #tpu.memory_space<vmem>>, vector<432x4xbf16>
    tpu.vector_store %arg6[%c0_36, %c0_37], %38 {strides = array<i32>} : memref<440x4xbf16, #tpu.memory_space<vmem>>, vector<432x4xbf16>,
    %c0_38 = arith.constant 0 : index
    %c0_39 = arith.constant 0 : index
    %40 = vector.load %arg6[%c0_38, %c0_39] : memref<440x4xbf16, #tpu.memory_space<vmem>>, vector<384x4xbf16>
    %c1_40 = arith.constant 1 : index
    %c0_41 = arith.constant 0 : index
    %41 = vector.load %arg6[%c1_40, %c0_41] : memref<440x4xbf16, #tpu.memory_space<vmem>>, vector<384x4xbf16>
    %c2_42 = arith.constant 2 : index
    %c0_43 = arith.constant 0 : index
    %42 = vector.load %arg6[%c2_42, %c0_43] : memref<440x4xbf16, #tpu.memory_space<vmem>>, vector<384x4xbf16>
    %c24 = arith.constant 24 : index
    %c0_44 = arith.constant 0 : index
    %43 = vector.load %arg6[%c24, %c0_44] : memref<440x4xbf16, #tpu.memory_space<vmem>>, vector<384x4xbf16>
    %c25 = arith.constant 25 : index
    %c0_45 = arith.constant 0 : index
    %44 = vector.load %arg6[%c25, %c0_45] : memref<440x4xbf16, #tpu.memory_space<vmem>>, vector<384x4xbf16>
    %c26 = arith.constant 26 : index
    %c0_46 = arith.constant 0 : index
    %45 = vector.load %arg6[%c26, %c0_46] : memref<440x4xbf16, #tpu.memory_space<vmem>>, vector<384x4xbf16>
    %c48 = arith.constant 48 : index
    %c0_47 = arith.constant 0 : index
    %46 = vector.load %arg6[%c48, %c0_47] : memref<440x4xbf16, #tpu.memory_space<vmem>>, vector<384x4xbf16>
    %c49 = arith.constant 49 : index
    %c0_48 = arith.constant 0 : index
    %47 = vector.load %arg6[%c49, %c0_48] : memref<440x4xbf16, #tpu.memory_space<vmem>>, vector<384x4xbf16>
    %c50 = arith.constant 50 : index
    %c0_49 = arith.constant 0 : index
    %48 = vector.load %arg6[%c50, %c0_49] : memref<440x4xbf16, #tpu.memory_space<vmem>>, vector<384x4xbf16>
    %49 = tpu.concatenate %40, %41, %42, %43, %44, %45, %46, %47, %48 in 1 : vector<384x4xbf16>, vector<384x4xbf16>, vector<384x4xbf16>, vector<384x4xbf16>, vector<384x4xbf16>, vector<384x4xbf16>, vector<384x4xbf16>, vector<384x4xbf16>, vector<384x4xbf16> -> vector<384x36xbf16>
    %c0_50 = arith.constant 0 : index
    %c0_51 = arith.constant 0 : index
    %50 = vector.load %arg2[%c0_50, %c0_51] : memref<36x4xbf16, #tpu.memory_space<vmem>>, vector<36x4xbf16>
    %cst_52 = arith.constant dense<0.000000e+00> : vector<384x4xf32>
    %51 = tpu.matmul %49, %50, %cst_52 {dimension_numbers = #tpu.dot_dimension_numbers<[1], [0], [0], [1], [0, 0, 1, 1], [], []>} : vector<384x36xbf16>, vector<36x4xbf16>, vector<384x4xf32> -> vector<384x4xf32>
    %52 = vector.broadcast %24 : vector<384x1xf32> to vector<384x4xf32>
    %53 = arith.mulf %51, %52 : vector<384x4xf32>
    %cst_53 = arith.constant dense<0.000000e+00> : vector<4xf32>
    %54 = vector.multi_reduction <add>, %53, %cst_53 [0] : vector<384x4xf32> to vector<4xf32>
    %55 = vector.shape_cast %54 : vector<4xf32> to vector<1x4xf32>
    %56 = arith.mulf %53, %51 : vector<384x4xf32>
    %cst_54 = arith.constant dense<0.000000e+00> : vector<4xf32>
    %57 = vector.multi_reduction <add>, %56, %cst_54 [0] : vector<384x4xf32> to vector<4xf32>
    %58 = vector.shape_cast %57 : vector<4xf32> to vector<1x4xf32>
    %cst_55 = arith.constant 3.906250e-03 : f32
    %59 = vector.broadcast %cst_55 : f32 to vector<1x4xf32>
    %60 = arith.mulf %55, %59 : vector<1x4xf32>
    %cst_56 = arith.constant 3.906250e-03 : f32
    %61 = vector.broadcast %cst_56 : f32 to vector<1x4xf32>
    %62 = arith.mulf %58, %61 : vector<1x4xf32>
    %63 = arith.mulf %60, %60 : vector<1x4xf32>
    %64 = arith.subf %62, %63 : vector<1x4xf32>
    %cst_57 = arith.constant 0.000000e+00 : f32
    %65 = vector.broadcast %cst_57 : f32 to vector<1x4xf32>
    %66 = arith.maximumf %64, %65 : vector<1x4xf32>
    %67 = vector.broadcast %60 : vector<1x4xf32> to vector<384x4xf32>
    %68 = arith.subf %51, %67 : vector<384x4xf32>
    %cst_58 = arith.constant 9.99999974E-6 : f32
    %69 = vector.broadcast %cst_58 : f32 to vector<1x4xf32>
    %70 = arith.addf %66, %69 : vector<1x4xf32>
    %71 = math.rsqrt %70 : vector<1x4xf32>
    %72 = vector.broadcast %71 : vector<1x4xf32> to vector<384x4xf32>
    %73 = arith.mulf %68, %72 : vector<384x4xf32>
    %cst_59 = arith.constant 0.000000e+00 : f32
    %74 = vector.broadcast %cst_59 : f32 to vector<384x4xf32>
    %75 = arith.maximumf %73, %74 : vector<384x4xf32>
    %76 = vector.shape_cast %75 : vector<384x4xf32> to vector<16x24x4xf32>
    %77 = vector.extract_strided_slice %76 {offsets = [0, 0, 0], sizes = [16, 16, 4], strides = [1, 1, 1]} : vector<16x24x4xf32> to vector<16x16x4xf32>
    %78 = arith.truncf %77 : vector<16x16x4xf32> to vector<16x16x4xbf16>
    %c1_60 = arith.constant 1 : index
    %c1_61 = arith.constant 1 : index
    %c0_62 = arith.constant 0 : index
    %79 = vector.load %arg5[%c1_60, %c1_61, %c0_62] : memref<18x24x4xbf16, #tpu.memory_space<vmem>>, vector<16x16x4xbf16>
    tpu.vector_store %arg5[%c1_60, %c1_61, %c0_62], %78 {strides = array<i32>} : memref<18x24x4xbf16, #tpu.memory_space<vmem>>, vector<16x16x4xbf16>,
    %c1_63 = arith.constant 1 : index
    %c2_64 = arith.constant 2 : index
    %c0_65 = arith.constant 0 : index
    %80 = vector.load %arg5[%c1_63, %c2_64, %c0_65] : memref<18x24x4xbf16, #tpu.memory_space<vmem>>, vector<16x1x4xbf16>
    %c1_66 = arith.constant 1 : index
    %c0_67 = arith.constant 0 : index
    %c0_68 = arith.constant 0 : index
    %81 = vector.load %arg5[%c1_66, %c0_67, %c0_68] : memref<18x24x4xbf16, #tpu.memory_space<vmem>>, vector<16x1x4xbf16>
    tpu.vector_store %arg5[%c1_66, %c0_67, %c0_68], %80 {strides = array<i32>} : memref<18x24x4xbf16, #tpu.memory_space<vmem>>, vector<16x1x4xbf16>,
    %c1_69 = arith.constant 1 : index
    %c15_70 = arith.constant 15 : index
    %c0_71 = arith.constant 0 : index
    %82 = vector.load %arg5[%c1_69, %c15_70, %c0_71] : memref<18x24x4xbf16, #tpu.memory_space<vmem>>, vector<16x1x4xbf16>
    %c1_72 = arith.constant 1 : index
    %c17_73 = arith.constant 17 : index
    %c0_74 = arith.constant 0 : index
    %83 = vector.load %arg5[%c1_72, %c17_73, %c0_74] : memref<18x24x4xbf16, #tpu.memory_space<vmem>>, vector<16x1x4xbf16>
    tpu.vector_store %arg5[%c1_72, %c17_73, %c0_74], %82 {strides = array<i32>} : memref<18x24x4xbf16, #tpu.memory_space<vmem>>, vector<16x1x4xbf16>,
    %c2_75 = arith.constant 2 : index
    %c0_76 = arith.constant 0 : index
    %c0_77 = arith.constant 0 : index
    %84 = vector.load %arg5[%c2_75, %c0_76, %c0_77] : memref<18x24x4xbf16, #tpu.memory_space<vmem>>, vector<1x24x4xbf16>
    %c0_78 = arith.constant 0 : index
    %c0_79 = arith.constant 0 : index
    %c0_80 = arith.constant 0 : index
    %85 = vector.load %arg5[%c0_78, %c0_79, %c0_80] : memref<18x24x4xbf16, #tpu.memory_space<vmem>>, vector<1x24x4xbf16>
    tpu.vector_store %arg5[%c0_78, %c0_79, %c0_80], %84 {strides = array<i32>} : memref<18x24x4xbf16, #tpu.memory_space<vmem>>, vector<1x24x4xbf16>,
    %c15_81 = arith.constant 15 : index
    %c0_82 = arith.constant 0 : index
    %c0_83 = arith.constant 0 : index
    %86 = vector.load %arg5[%c15_81, %c0_82, %c0_83] : memref<18x24x4xbf16, #tpu.memory_space<vmem>>, vector<1x24x4xbf16>
    %c17_84 = arith.constant 17 : index
    %c0_85 = arith.constant 0 : index
    %c0_86 = arith.constant 0 : index
    %87 = vector.load %arg5[%c17_84, %c0_85, %c0_86] : memref<18x24x4xbf16, #tpu.memory_space<vmem>>, vector<1x24x4xbf16>
    tpu.vector_store %arg5[%c17_84, %c0_85, %c0_86], %86 {strides = array<i32>} : memref<18x24x4xbf16, #tpu.memory_space<vmem>>, vector<1x24x4xbf16>,
    %c0_87 = arith.constant 0 : index
    %c0_88 = arith.constant 0 : index
    %c0_89 = arith.constant 0 : index
    %88 = vector.load %arg5[%c0_87, %c0_88, %c0_89] : memref<18x24x4xbf16, #tpu.memory_space<vmem>>, vector<18x24x4xbf16>
    %89 = vector.shape_cast %88 : vector<18x24x4xbf16> to vector<432x4xbf16>
    %c0_90 = arith.constant 0 : index
    %c0_91 = arith.constant 0 : index
    %90 = vector.load %arg6[%c0_90, %c0_91] : memref<440x4xbf16, #tpu.memory_space<vmem>>, vector<432x4xbf16>
    tpu.vector_store %arg6[%c0_90, %c0_91], %89 {strides = array<i32>} : memref<440x4xbf16, #tpu.memory_space<vmem>>, vector<432x4xbf16>,
    %c0_92 = arith.constant 0 : index
    %c0_93 = arith.constant 0 : index
    %91 = vector.load %arg6[%c0_92, %c0_93] : memref<440x4xbf16, #tpu.memory_space<vmem>>, vector<384x4xbf16>
    %c1_94 = arith.constant 1 : index
    %c0_95 = arith.constant 0 : index
    %92 = vector.load %arg6[%c1_94, %c0_95] : memref<440x4xbf16, #tpu.memory_space<vmem>>, vector<384x4xbf16>
    %c2_96 = arith.constant 2 : index
    %c0_97 = arith.constant 0 : index
    %93 = vector.load %arg6[%c2_96, %c0_97] : memref<440x4xbf16, #tpu.memory_space<vmem>>, vector<384x4xbf16>
    %c24_98 = arith.constant 24 : index
    %c0_99 = arith.constant 0 : index
    %94 = vector.load %arg6[%c24_98, %c0_99] : memref<440x4xbf16, #tpu.memory_space<vmem>>, vector<384x4xbf16>
    %c25_100 = arith.constant 25 : index
    %c0_101 = arith.constant 0 : index
    %95 = vector.load %arg6[%c25_100, %c0_101] : memref<440x4xbf16, #tpu.memory_space<vmem>>, vector<384x4xbf16>
    %c26_102 = arith.constant 26 : index
    %c0_103 = arith.constant 0 : index
    %96 = vector.load %arg6[%c26_102, %c0_103] : memref<440x4xbf16, #tpu.memory_space<vmem>>, vector<384x4xbf16>
    %c48_104 = arith.constant 48 : index
    %c0_105 = arith.constant 0 : index
    %97 = vector.load %arg6[%c48_104, %c0_105] : memref<440x4xbf16, #tpu.memory_space<vmem>>, vector<384x4xbf16>
    %c49_106 = arith.constant 49 : index
    %c0_107 = arith.constant 0 : index
    %98 = vector.load %arg6[%c49_106, %c0_107] : memref<440x4xbf16, #tpu.memory_space<vmem>>, vector<384x4xbf16>
    %c50_108 = arith.constant 50 : index
    %c0_109 = arith.constant 0 : index
    %99 = vector.load %arg6[%c50_108, %c0_109] : memref<440x4xbf16, #tpu.memory_space<vmem>>, vector<384x4xbf16>
    %100 = tpu.concatenate %91, %92, %93, %94, %95, %96, %97, %98, %99 in 1 : vector<384x4xbf16>, vector<384x4xbf16>, vector<384x4xbf16>, vector<384x4xbf16>, vector<384x4xbf16>, vector<384x4xbf16>, vector<384x4xbf16>, vector<384x4xbf16>, vector<384x4xbf16> -> vector<384x36xbf16>
    %c0_110 = arith.constant 0 : index
    %c0_111 = arith.constant 0 : index
    %101 = vector.load %arg3[%c0_110, %c0_111] : memref<36x4xbf16, #tpu.memory_space<vmem>>, vector<36x4xbf16>
    %cst_112 = arith.constant dense<0.000000e+00> : vector<384x4xf32>
    %102 = tpu.matmul %100, %101, %cst_112 {dimension_numbers = #tpu.dot_dimension_numbers<[1], [0], [0], [1], [0, 0, 1, 1], [], []>} : vector<384x36xbf16>, vector<36x4xbf16>, vector<384x4xf32> -> vector<384x4xf32>
    %103 = vector.broadcast %24 : vector<384x1xf32> to vector<384x4xf32>
    %104 = arith.mulf %102, %103 : vector<384x4xf32>
    %cst_113 = arith.constant dense<0.000000e+00> : vector<4xf32>
    %105 = vector.multi_reduction <add>, %104, %cst_113 [0] : vector<384x4xf32> to vector<4xf32>
    %106 = vector.shape_cast %105 : vector<4xf32> to vector<1x4xf32>
    %107 = arith.mulf %104, %102 : vector<384x4xf32>
    %cst_114 = arith.constant dense<0.000000e+00> : vector<4xf32>
    %108 = vector.multi_reduction <add>, %107, %cst_114 [0] : vector<384x4xf32> to vector<4xf32>
    %109 = vector.shape_cast %108 : vector<4xf32> to vector<1x4xf32>
    %cst_115 = arith.constant 3.906250e-03 : f32
    %110 = vector.broadcast %cst_115 : f32 to vector<1x4xf32>
    %111 = arith.mulf %106, %110 : vector<1x4xf32>
    %cst_116 = arith.constant 3.906250e-03 : f32
    %112 = vector.broadcast %cst_116 : f32 to vector<1x4xf32>
    %113 = arith.mulf %109, %112 : vector<1x4xf32>
    %114 = arith.mulf %111, %111 : vector<1x4xf32>
    %115 = arith.subf %113, %114 : vector<1x4xf32>
    %cst_117 = arith.constant 0.000000e+00 : f32
    %116 = vector.broadcast %cst_117 : f32 to vector<1x4xf32>
    %117 = arith.maximumf %115, %116 : vector<1x4xf32>
    %118 = vector.broadcast %111 : vector<1x4xf32> to vector<384x4xf32>
    %119 = arith.subf %102, %118 : vector<384x4xf32>
    %cst_118 = arith.constant 9.99999974E-6 : f32
    %120 = vector.broadcast %cst_118 : f32 to vector<1x4xf32>
    %121 = arith.addf %117, %120 : vector<1x4xf32>
    %122 = math.rsqrt %121 : vector<1x4xf32>
    %123 = vector.broadcast %122 : vector<1x4xf32> to vector<384x4xf32>
    %124 = arith.mulf %119, %123 : vector<384x4xf32>
    %c0_119 = arith.constant 0 : index
    %c0_120 = arith.constant 0 : index
    %c0_121 = arith.constant 0 : index
    %c0_122 = arith.constant 0 : index
    %125 = vector.load %arg1[%c0_119, %c0_120, %c0_121, %c0_122] : memref<1x16x16x4xf32, #tpu.memory_space<vmem>>, vector<1x16x16x4xf32>
    %126 = vector.shape_cast %125 : vector<1x16x16x4xf32> to vector<16x16x4xf32>
    %127 = vector.shape_cast %124 : vector<384x4xf32> to vector<16x24x4xf32>
    %128 = vector.extract_strided_slice %127 {offsets = [0, 0, 0], sizes = [16, 16, 4], strides = [1, 1, 1]} : vector<16x24x4xf32> to vector<16x16x4xf32>
    %129 = arith.addf %126, %128 : vector<16x16x4xf32>
    %c0_123 = arith.constant 0 : index
    %c0_124 = arith.constant 0 : index
    %c0_125 = arith.constant 0 : index
    %c0_126 = arith.constant 0 : index
    %130 = vector.load %arg4[%c0_123, %c0_124, %c0_125, %c0_126] : memref<1x16x16x4xf32, #tpu.memory_space<vmem>>, vector<1x16x16x4xf32>
    %131 = vector.shape_cast %130 : vector<1x16x16x4xf32> to vector<16x16x4xf32>
    %132 = vector.shape_cast %129 : vector<16x16x4xf32> to vector<1x16x16x4xf32>
    tpu.vector_store %arg4[%c0_123, %c0_124, %c0_125, %c0_126], %132 {strides = array<i32>} : memref<1x16x16x4xf32, #tpu.memory_space<vmem>>, vector<1x16x16x4xf32>,
    return
  }
  func.func @transform_0(%arg0: i32) -> (i32, i32, i32, i32) {
    %c0_i32 = arith.constant 0 : i32
    %c0_i32_0 = arith.constant 0 : i32
    %c0_i32_1 = arith.constant 0 : i32
    %c0_i32_2 = arith.constant 0 : i32
    return %arg0, %c0_i32, %c0_i32_0, %c0_i32_1 : i32, i32, i32, i32
  }
  func.func @transform_1(%arg0: i32) -> (i32, i32) {
    %c0_i32 = arith.constant 0 : i32
    %c0_i32_0 = arith.constant 0 : i32
    %c0_i32_1 = arith.constant 0 : i32
    return %c0_i32, %c0_i32_0 : i32, i32
  }
  func.func @transform_2(%arg0: i32) -> (i32, i32) {
    %c0_i32 = arith.constant 0 : i32
    %c0_i32_0 = arith.constant 0 : i32
    %c0_i32_1 = arith.constant 0 : i32
    return %c0_i32, %c0_i32_0 : i32, i32
  }
  func.func @transform_3(%arg0: i32) -> (i32, i32, i32, i32) {
    %c0_i32 = arith.constant 0 : i32
    %c0_i32_0 = arith.constant 0 : i32
    %c0_i32_1 = arith.constant 0 : i32
    %c0_i32_2 = arith.constant 0 : i32
    return %arg0, %c0_i32, %c0_i32_0, %c0_i32_1 : i32, i32, i32, i32
  }
}

</mosaic_0001>

<llo_original>
// kernel: resnet_block_forward.1
$region0: #{resnet_block_forward.1}
  #allocation0 [shape = 'u32[]', space=smem, size = 0x4, offset = 0x4, fixed_abs, tag = 'smem constant byte address 0x4 - core index']
  #allocation1 [shape = 'u32[144,128]{1,0:T(1,128)}', space=vmem, size = 0x12000, scoped, tag = 'internal scratch']
  #allocation2 [shape = 'bf16[18,24,4]{2,1,0:T(8,128)(2,1)}', space=vmem, size = 0x1b000, scoped, tag = 'scratch operand']
  #allocation3 [shape = 'bf16[440,4]{1,0:T(8,128)(2,1)}', space=vmem, size = 0x1b800, scoped, tag = 'scratch operand']
  %s0 = inlined_call_operand.vmem [shape: f32[2,16,16,4], index: 0, kind: input, shape index: {}]
  %s1 = inlined_call_operand.vmem [shape: bf16[36,4], index: 1, kind: input, shape index: {}]
  %s2 = inlined_call_operand.vmem [shape: bf16[36,4], index: 2, kind: input, shape index: {}]
  %s3 = inlined_call_operand.vmem [shape: f32[2,16,16,4], index: 3, kind: output, shape index: {}]
  %s4 = sld [smem:[#allocation0]]
  $region45: #{resnet_block_forward.1} parent=0
    _
  %s6 = ssub.s32 1, %s4
  %s7 = scalar_select 0, %s6, %s4
  loop: start=0, step=1, limit=4
  $region2: #{resnet_block_forward.1} parent=0 // loop_pre_header
    _
  $region3: #{resnet_block_forward.1} parent=0 // loop_header
    %s9 = sphi 0, %s13
    %p10 = scmp.ge.s32.totalorder %s9, 4
    %s19 = sphi 0, %s21
    %s22 = sphi 0, %s19
    %s23 = sphi 0, %s22
    %s39 = sphi 0, %s23
    %s43 = sphi 0, %s43
    %s45 = sphi 0, %s43
    %s46 = sphi 0, %s45
    %s60 = sphi 0, %s46
    %s64 = sphi 0, %s64
    %s66 = sphi 0, %s64
    %s67 = sphi 0, %s66
    %s81 = sphi 0, %s67
    %s87 = sphi 0, %s89
    %s90 = sphi 0, %s87
    %s91 = sphi 0, %s90
    %s107 = sphi 0, %s91
  $region4: #{resnet_block_forward.1} parent=0 // loop_header_branch
    %12 = sbr.rel (%p10) target = $region8
  $region5: #{resnet_block_forward.1} parent=0 // loop_body
    %s14 = ssub.s32 %s9, 1
    %s15 = ssub.s32 %s9, 2
    %s16 = sadd.s32 %s9, 1
    %s17 = ssub.s32 %s9, %s16
    %p18 = scmp.eq.s32.totalorder %s17, 0
    %s20 = sadd.s32 %s19, 1
    %s21 = scalar_select %p18, %s19, %s20
    %p24 = pneg %p18
    %p25 = scmp.eq.s32.totalorder %s9, 1
    %p26 = por %p24, %p25
    %p27 = scmp.ne.s32.totalorder %s19, %s22
    %p28 = scmp.eq.s32.totalorder %s9, 0
    %p29 = por %p27, %p28
    %p30 = scmp.ne.s32.totalorder %s19, %s22
    %p31 = scmp.eq.s32.totalorder %s14, 1
    %p32 = por %p30, %p31
    %p33 = scmp.ne.s32.totalorder %s22, %s23
    %p34 = scmp.eq.s32.totalorder %s14, 0
    %p35 = por %p33, %p34
    %p36 = scmp.ne.s32.totalorder %s22, %s23
    %p37 = scmp.eq.s32.totalorder %s15, 1
    %p38 = por %p36, %p37
    %p40 = scmp.ne.s32.totalorder %s23, %s39
    %p41 = scmp.eq.s32.totalorder %s15, 0
    %p42 = por %p40, %p41
    %s44 = sadd.s32 %s43, 1
    %p47 = scmp.eq.s32.totalorder %s9, 1
    %p48 = scmp.ne.s32.totalorder %s43, %s45
    %p49 = scmp.eq.s32.totalorder %s9, 0
    %p50 = por %p48, %p49
    %p51 = scmp.ne.s32.totalorder %s43, %s45
    %p52 = scmp.eq.s32.totalorder %s14, 1
    %p53 = por %p51, %p52
    %p54 = scmp.ne.s32.totalorder %s45, %s46
    %p55 = scmp.eq.s32.totalorder %s14, 0
    %p56 = por %p54, %p55
    %p57 = scmp.ne.s32.totalorder %s45, %s46
    %p58 = scmp.eq.s32.totalorder %s15, 1
    %p59 = por %p57, %p58
    %p61 = scmp.ne.s32.totalorder %s46, %s60
    %p62 = scmp.eq.s32.totalorder %s15, 0
    %p63 = por %p61, %p62
    %s65 = sadd.s32 %s64, 1
    %p68 = scmp.eq.s32.totalorder %s9, 1
    %p69 = scmp.ne.s32.totalorder %s64, %s66
    %p70 = scmp.eq.s32.totalorder %s9, 0
    %p71 = por %p69, %p70
    %p72 = scmp.ne.s32.totalorder %s64, %s66
    %p73 = scmp.eq.s32.totalorder %s14, 1
    %p74 = por %p72, %p73
    %p75 = scmp.ne.s32.totalorder %s66, %s67
    %p76 = scmp.eq.s32.totalorder %s14, 0
    %p77 = por %p75, %p76
    %p78 = scmp.ne.s32.totalorder %s66, %s67
    %p79 = scmp.eq.s32.totalorder %s15, 1
    %p80 = por %p78, %p79
    %p82 = scmp.ne.s32.totalorder %s67, %s81
    %p83 = scmp.eq.s32.totalorder %s15, 0
    %p84 = por %p82, %p83
    %s85 = ssub.s32 %s9, %s16
    %p86 = scmp.eq.s32.totalorder %s85, 0
    %s88 = sadd.s32 %s87, 1
    %s89 = scalar_select %p86, %s87, %s88
    %p92 = pneg %p86
    %p93 = scmp.eq.s32.totalorder %s9, 1
    %p94 = por %p92, %p93
    %p95 = scmp.ne.s32.totalorder %s87, %s90
    %p96 = scmp.eq.s32.totalorder %s9, 0
    %p97 = por %p95, %p96
    %p98 = scmp.ne.s32.totalorder %s87, %s90
    %p99 = scmp.eq.s32.totalorder %s14, 1
    %p100 = por %p98, %p99
    %p101 = scmp.ne.s32.totalorder %s90, %s91
    %p102 = scmp.eq.s32.totalorder %s14, 0
    %p103 = por %p101, %p102
    %p104 = scmp.ne.s32.totalorder %s90, %s91
    %p105 = scmp.eq.s32.totalorder %s15, 1
    %p106 = por %p104, %p105
    %p108 = scmp.ne.s32.totalorder %s91, %s107
    %p109 = scmp.eq.s32.totalorder %s15, 0
    %p110 = por %p108, %p109
    %p111 = scmp.le.s32.totalorder 1, %s9
    %p112 = scmp.lt.s32.totalorder %s9, 3
    %p113 = pnand %p111, %p112
    %p114 = pneg %p113
    // Predicated region
    $region9: #{resnet_block_forward.1} parent=5 // pred_check
      _
    $region10: #{resnet_block_forward.1} parent=5 // pred_check_branch
      %116 = sbr.rel (%p113) target = $region12
    $region11: #{resnet_block_forward.1} parent=5 // pred_region
      %s117 = ssub.s32 %s9, 1
      // Predicated region
      $region13: #{resnet_block_forward.1} parent=11 // pred_check
        %p118 = pneg %p56
      $region14: #{resnet_block_forward.1} parent=11 // pred_check_branch
        %120 = sbr.rel (%p118) target = $region16
      $region15: #{resnet_block_forward.1} parent=11 // pred_region
        _
      $region16: #{resnet_block_forward.1} parent=11 // pred_fallthru
        _
      // Predicated region
      $region17: #{resnet_block_forward.1} parent=11 // pred_check
        %p121 = pneg %p77
      $region18: #{resnet_block_forward.1} parent=11 // pred_check_branch
        %123 = sbr.rel (%p121) target = $region20
      $region19: #{resnet_block_forward.1} parent=11 // pred_region
        _
      $region20: #{resnet_block_forward.1} parent=11 // pred_fallthru
        _
    $region12: #{resnet_block_forward.1} parent=5 // pred_fallthru
      _
    %p124 = scmp.lt.s32.totalorder %s9, 2
    // Predicated region
    $region21: #{resnet_block_forward.1} parent=5 // pred_check
      %p125 = pneg %p124
    $region22: #{resnet_block_forward.1} parent=5 // pred_check_branch
      %127 = sbr.rel (%p125) target = $region24
    $region23: #{resnet_block_forward.1} parent=5 // pred_region
      // Predicated region
      $region25: #{resnet_block_forward.1} parent=23 // pred_check
        %p128 = pneg %p29
      $region26: #{resnet_block_forward.1} parent=23 // pred_check_branch
        %130 = sbr.rel (%p128) target = $region28
      $region27: #{resnet_block_forward.1} parent=23 // pred_region
        %p131 = scmp.lt.s32.totalorder %s9, 1
        %s132 = scalar_select %p131, %s9, 1
        %s133 = smul.addr %s132, 32
        %s134 = smul.addr %s133, 8
        %s135 = scalar_lea.vmem %s0, %s134
      $region28: #{resnet_block_forward.1} parent=23 // pred_fallthru
        _
    $region24: #{resnet_block_forward.1} parent=5 // pred_fallthru
      _
    %p136 = scmp.le.s32.totalorder 1, %s9
    %p137 = scmp.lt.s32.totalorder %s9, 3
    %p138 = pnand %p136, %p137
    %p139 = pneg %p138
    // Predicated region
    $region29: #{resnet_block_forward.1} parent=5 // pred_check
      _
    $region30: #{resnet_block_forward.1} parent=5 // pred_check_branch
      %141 = sbr.rel (%p138) target = $region32
    $region31: #{resnet_block_forward.1} parent=5 // pred_region
      %s142 = ssub.s32 %s9, 1
      %p143 = scmp.lt.s32.totalorder %s14, 1
      %s144 = scalar_select %p143, %s14, 1
      %s145 = smul.addr %s144, 32
      %s146 = smul.addr %s145, 8
      %s147 = scalar_lea.vmem %s0, %s146
      %p148 = pneg %p35
      %p149 = pneg %p32
      %p150 = pneg %p56
      %p151 = pneg %p53
      %p152 = pneg %p77
      %p153 = pneg %p74
      %p154 = pneg %p103
      %p155 = pneg %p100
      %p156 = scmp.lt.s32.totalorder %s14, 1
      %s157 = scalar_select %p156, %s14, 1
      %s158 = smul.addr %s157, 32
      %s159 = smul.addr %s158, 8
      %s160 = scalar_lea.vmem %s3, %s159
      %p161 = scmp.lt.s32.totalorder %s14, 1
      %s162 = scalar_select %p161, %s14, 1
      %s163 = smul.addr %s162, 32
      %s164 = smul.addr %s163, 8
      %s165 = scalar_lea.vmem %s0, %s164
      %p166 = scmp.lt.s32.totalorder %s14, 1
      %s167 = scalar_select %p166, %s14, 1
      %s168 = smul.addr %s167, 32
      %s169 = smul.addr %s168, 8
      %s170 = scalar_lea.vmem %s3, %s169
      %vm172 = vcmask 27649
      %173 = vst.msk [vmem:[#allocation2 + $0x8] sm:$0xe] %vm172, 0
      %174 = vst.msk [vmem:[#allocation2 + $0x14] sm:$0xe] %vm172, 0
      %175 = vst.msk [vmem:[#allocation2 + $0x20] sm:$0xe] %vm172, 0
      %176 = vst.msk [vmem:[#allocation2 + $0x2c] sm:$0xe] %vm172, 0
      %177 = vst.msk [vmem:[#allocation2 + $0x38] sm:$0xe] %vm172, 0
      %178 = vst.msk [vmem:[#allocation2 + $0x44] sm:$0xe] %vm172, 0
      %179 = vst.msk [vmem:[#allocation2 + $0x50] sm:$0xe] %vm172, 0
      %180 = vst.msk [vmem:[#allocation2 + $0x5c] sm:$0xe] %vm172, 0
      %181 = vst.msk [vmem:[#allocation2 + $0x68] sm:$0xe] %vm172, 0
      %182 = vst.msk [vmem:[#allocation2 + $0x74] sm:$0xe] %vm172, 0
      %183 = vst.msk [vmem:[#allocation2 + $0x80] sm:$0xe] %vm172, 0
      %184 = vst.msk [vmem:[#allocation2 + $0x8c] sm:$0xe] %vm172, 0
      %185 = vst.msk [vmem:[#allocation2 + $0x98] sm:$0xe] %vm172, 0
      %186 = vst.msk [vmem:[#allocation2 + $0xa4] sm:$0xe] %vm172, 0
      %187 = vst.msk [vmem:[#allocation2 + $0xb0] sm:$0xe] %vm172, 0
      %188 = vst.msk [vmem:[#allocation2 + $0xbc] sm:$0xe] %vm172, 0
      %189 = vst.msk [vmem:[#allocation2 + $0xc8] sm:$0xe] %vm172, 0
      %190 = vst.msk [vmem:[#allocation2 + $0xd4] sm:$0xe] %vm172, 0
      %vm191 = vcmask 27648
      %192 = vst.msk [vmem:[#allocation3 + $0xd8] sm:$0xf] %vm191, 0
      %v193 = vlaneseq
      %v194 = vshrl.u32 %v193, 7
      %v195 = vadd.s32 %v194, 8
      %v196 = vadd.s32 %v194, 16
      %v197 = vadd.s32 %v194, 24
      %v198 = vadd.s32 %v194, 32
      %v199 = vadd.s32 %v194, 40
      %v200 = vadd.s32 %v194, 48
      %v201 = vadd.s32 %v194, 56
      %v202 = vadd.s32 %v194, 64
      %v203 = vadd.s32 %v194, 72
      %v204 = vadd.s32 %v194, 80
      %v205 = vadd.s32 %v194, 88
      %v206 = vadd.s32 %v194, 96
      %v207 = vadd.s32 %v194, 104
      %v208 = vadd.s32 %v194, 112
      %v209 = vadd.s32 %v194, 120
      %v210 = vadd.s32 %v194, 128
      %v211 = vadd.s32 %v194, 136
      %v212 = vadd.s32 %v194, 144
      %v213 = vadd.s32 %v194, 152
      %v214 = vadd.s32 %v194, 160
      %v215 = vadd.s32 %v194, 168
      %v216 = vadd.s32 %v194, 176
      %v217 = vadd.s32 %v194, 184
      %v218 = vadd.s32 %v194, 192
      %v219 = vadd.s32 %v194, 200
      %v220 = vadd.s32 %v194, 208
      %v221 = vadd.s32 %v194, 216
      %v222 = vadd.s32 %v194, 224
      %v223 = vadd.s32 %v194, 232
      %v224 = vadd.s32 %v194, 240
      %v225 = vadd.s32 %v194, 248
      %v226 = vadd.s32 %v194, 256
      %v227 = vadd.s32 %v194, 264
      %v228 = vadd.s32 %v194, 272
      %v229 = vadd.s32 %v194, 280
      %v230 = vadd.s32 %v194, 288
      %v231 = vadd.s32 %v194, 296
      %v232 = vadd.s32 %v194, 304
      %v233 = vadd.s32 %v194, 312
      %v234 = vadd.s32 %v194, 320
      %v235 = vadd.s32 %v194, 328
      %v236 = vadd.s32 %v194, 336
      %v237 = vadd.s32 %v194, 344
      %v238 = vadd.s32 %v194, 352
      %v239 = vadd.s32 %v194, 360
      %v240 = vadd.s32 %v194, 368
      %v241 = vadd.s32 %v194, 376
      %vm242 = vcmp.lt.s32.totalorder %v194, 0
      %v243 = vsub.s32 0, %v194
      %v244 = vsel %vm242, %v243, %v194
      %v245 = vmul.u32.u64.compose %v244, 2863311531
      %v246 = vextract.low.u32 %v245
      %v247 = vextract.high.u32 %v245
      %v248 = vshrl.u32 %v247, 4
      %v249 = vmul.u32 %v248, 24
      %v250 = vsub.s32 %v244, %v249
      %v251 = vsub.s32 0, %v250
      %v252 = vsel %vm242, %v251, %v250
      %vm253 = vcmp.lt.s32.totalorder %v195, 0
      %v254 = vsub.s32 0, %v195
      %v255 = vsel %vm253, %v254, %v195
      %v256 = vmul.u32.u64.compose %v255, 2863311531
      %v257 = vextract.low.u32 %v256
      %v258 = vextract.high.u32 %v256
      %v259 = vshrl.u32 %v258, 4
      %v260 = vmul.u32 %v259, 24
      %v261 = vsub.s32 %v255, %v260
      %v262 = vsub.s32 0, %v261
      %v263 = vsel %vm253, %v262, %v261
      %vm264 = vcmp.lt.s32.totalorder %v196, 0
      %v265 = vsub.s32 0, %v196
      %v266 = vsel %vm264, %v265, %v196
      %v267 = vmul.u32.u64.compose %v266, 2863311531
      %v268 = vextract.low.u32 %v267
      %v269 = vextract.high.u32 %v267
      %v270 = vshrl.u32 %v269, 4
      %v271 = vmul.u32 %v270, 24
      %v272 = vsub.s32 %v266, %v271
      %v273 = vsub.s32 0, %v272
      %v274 = vsel %vm264, %v273, %v272
      %vm275 = vcmp.lt.s32.totalorder %v197, 0
      %v276 = vsub.s32 0, %v197
      %v277 = vsel %vm275, %v276, %v197
      %v278 = vmul.u32.u64.compose %v277, 2863311531
      %v279 = vextract.low.u32 %v278
      %v280 = vextract.high.u32 %v278
      %v281 = vshrl.u32 %v280, 4
      %v282 = vmul.u32 %v281, 24
      %v283 = vsub.s32 %v277, %v282
      %v284 = vsub.s32 0, %v283
      %v285 = vsel %vm275, %v284, %v283
      %vm286 = vcmp.lt.s32.totalorder %v198, 0
      %v287 = vsub.s32 0, %v198
      %v288 = vsel %vm286, %v287, %v198
      %v289 = vmul.u32.u64.compose %v288, 2863311531
      %v290 = vextract.low.u32 %v289
      %v291 = vextract.high.u32 %v289
      %v292 = vshrl.u32 %v291, 4
      %v293 = vmul.u32 %v292, 24
      %v294 = vsub.s32 %v288, %v293
      %v295 = vsub.s32 0, %v294
      %v296 = vsel %vm286, %v295, %v294
      %vm297 = vcmp.lt.s32.totalorder %v199, 0
      %v298 = vsub.s32 0, %v199
      %v299 = vsel %vm297, %v298, %v199
      %v300 = vmul.u32.u64.compose %v299, 2863311531
      %v301 = vextract.low.u32 %v300
      %v302 = vextract.high.u32 %v300
      %v303 = vshrl.u32 %v302, 4
      %v304 = vmul.u32 %v303, 24
      %v305 = vsub.s32 %v299, %v304
      %v306 = vsub.s32 0, %v305
      %v307 = vsel %vm297, %v306, %v305
      %vm308 = vcmp.lt.s32.totalorder %v200, 0
      %v309 = vsub.s32 0, %v200
      %v310 = vsel %vm308, %v309, %v200
      %v311 = vmul.u32.u64.compose %v310, 2863311531
      %v312 = vextract.low.u32 %v311
      %v313 = vextract.high.u32 %v311
      %v314 = vshrl.u32 %v313, 4
      %v315 = vmul.u32 %v314, 24
      %v316 = vsub.s32 %v310, %v315
      %v317 = vsub.s32 0, %v316
      %v318 = vsel %vm308, %v317, %v316
      %vm319 = vcmp.lt.s32.totalorder %v201, 0
      %v320 = vsub.s32 0, %v201
      %v321 = vsel %vm319, %v320, %v201
      %v322 = vmul.u32.u64.compose %v321, 2863311531
      %v323 = vextract.low.u32 %v322
      %v324 = vextract.high.u32 %v322
      %v325 = vshrl.u32 %v324, 4
      %v326 = vmul.u32 %v325, 24
      %v327 = vsub.s32 %v321, %v326
      %v328 = vsub.s32 0, %v327
      %v329 = vsel %vm319, %v328, %v327
      %vm330 = vcmp.lt.s32.totalorder %v202, 0
      %v331 = vsub.s32 0, %v202
      %v332 = vsel %vm330, %v331, %v202
      %v333 = vmul.u32.u64.compose %v332, 2863311531
      %v334 = vextract.low.u32 %v333
      %v335 = vextract.high.u32 %v333
      %v336 = vshrl.u32 %v335, 4
      %v337 = vmul.u32 %v336, 24
      %v338 = vsub.s32 %v332, %v337
      %v339 = vsub.s32 0, %v338
      %v340 = vsel %vm330, %v339, %v338
      %vm341 = vcmp.lt.s32.totalorder %v203, 0
      %v342 = vsub.s32 0, %v203
      %v343 = vsel %vm341, %v342, %v203
      %v344 = vmul.u32.u64.compose %v343, 2863311531
      %v345 = vextract.low.u32 %v344
      %v346 = vextract.high.u32 %v344
      %v347 = vshrl.u32 %v346, 4
      %v348 = vmul.u32 %v347, 24
      %v349 = vsub.s32 %v343, %v348
      %v350 = vsub.s32 0, %v349
      %v351 = vsel %vm341, %v350, %v349
      %vm352 = vcmp.lt.s32.totalorder %v204, 0
      %v353 = vsub.s32 0, %v204
      %v354 = vsel %vm352, %v353, %v204
      %v355 = vmul.u32.u64.compose %v354, 2863311531
      %v356 = vextract.low.u32 %v355
      %v357 = vextract.high.u32 %v355
      %v358 = vshrl.u32 %v357, 4
      %v359 = vmul.u32 %v358, 24
      %v360 = vsub.s32 %v354, %v359
      %v361 = vsub.s32 0, %v360
      %v362 = vsel %vm352, %v361, %v360
      %vm363 = vcmp.lt.s32.totalorder %v205, 0
      %v364 = vsub.s32 0, %v205
      %v365 = vsel %vm363, %v364, %v205
      %v366 = vmul.u32.u64.compose %v365, 2863311531
      %v367 = vextract.low.u32 %v366
      %v368 = vextract.high.u32 %v366
      %v369 = vshrl.u32 %v368, 4
      %v370 = vmul.u32 %v369, 24
      %v371 = vsub.s32 %v365, %v370
      %v372 = vsub.s32 0, %v371
      %v373 = vsel %vm363, %v372, %v371
      %vm374 = vcmp.lt.s32.totalorder %v206, 0
      %v375 = vsub.s32 0, %v206
      %v376 = vsel %vm374, %v375, %v206
      %v377 = vmul.u32.u64.compose %v376, 2863311531
      %v378 = vextract.low.u32 %v377
      %v379 = vextract.high.u32 %v377
      %v380 = vshrl.u32 %v379, 4
      %v381 = vmul.u32 %v380, 24
      %v382 = vsub.s32 %v376, %v381
      %v383 = vsub.s32 0, %v382
      %v384 = vsel %vm374, %v383, %v382
      %vm385 = vcmp.lt.s32.totalorder %v207, 0
      %v386 = vsub.s32 0, %v207
      %v387 = vsel %vm385, %v386, %v207
      %v388 = vmul.u32.u64.compose %v387, 2863311531
      %v389 = vextract.low.u32 %v388
      %v390 = vextract.high.u32 %v388
      %v391 = vshrl.u32 %v390, 4
      %v392 = vmul.u32 %v391, 24
      %v393 = vsub.s32 %v387, %v392
      %v394 = vsub.s32 0, %v393
      %v395 = vsel %vm385, %v394, %v393
      %vm396 = vcmp.lt.s32.totalorder %v208, 0
      %v397 = vsub.s32 0, %v208
      %v398 = vsel %vm396, %v397, %v208
      %v399 = vmul.u32.u64.compose %v398, 2863311531
      %v400 = vextract.low.u32 %v399
      %v401 = vextract.high.u32 %v399
      %v402 = vshrl.u32 %v401, 4
      %v403 = vmul.u32 %v402, 24
      %v404 = vsub.s32 %v398, %v403
      %v405 = vsub.s32 0, %v404
      %v406 = vsel %vm396, %v405, %v404
      %vm407 = vcmp.lt.s32.totalorder %v209, 0
      %v408 = vsub.s32 0, %v209
      %v409 = vsel %vm407, %v408, %v209
      %v410 = vmul.u32.u64.compose %v409, 2863311531
      %v411 = vextract.low.u32 %v410
      %v412 = vextract.high.u32 %v410
      %v413 = vshrl.u32 %v412, 4
      %v414 = vmul.u32 %v413, 24
      %v415 = vsub.s32 %v409, %v414
      %v416 = vsub.s32 0, %v415
      %v417 = vsel %vm407, %v416, %v415
      %vm418 = vcmp.lt.s32.totalorder %v210, 0
      %v419 = vsub.s32 0, %v210
      %v420 = vsel %vm418, %v419, %v210
      %v421 = vmul.u32.u64.compose %v420, 2863311531
      %v422 = vextract.low.u32 %v421
      %v423 = vextract.high.u32 %v421
      %v424 = vshrl.u32 %v423, 4
      %v425 = vmul.u32 %v424, 24
      %v426 = vsub.s32 %v420, %v425
      %v427 = vsub.s32 0, %v426
      %v428 = vsel %vm418, %v427, %v426
      %vm429 = vcmp.lt.s32.totalorder %v211, 0
      %v430 = vsub.s32 0, %v211
      %v431 = vsel %vm429, %v430, %v211
      %v432 = vmul.u32.u64.compose %v431, 2863311531
      %v433 = vextract.low.u32 %v432
      %v434 = vextract.high.u32 %v432
      %v435 = vshrl.u32 %v434, 4
      %v436 = vmul.u32 %v435, 24
      %v437 = vsub.s32 %v431, %v436
      %v438 = vsub.s32 0, %v437
      %v439 = vsel %vm429, %v438, %v437
      %vm440 = vcmp.lt.s32.totalorder %v212, 0
      %v441 = vsub.s32 0, %v212
      %v442 = vsel %vm440, %v441, %v212
      %v443 = vmul.u32.u64.compose %v442, 2863311531
      %v444 = vextract.low.u32 %v443
      %v445 = vextract.high.u32 %v443
      %v446 = vshrl.u32 %v445, 4
      %v447 = vmul.u32 %v446, 24
      %v448 = vsub.s32 %v442, %v447
      %v449 = vsub.s32 0, %v448
      %v450 = vsel %vm440, %v449, %v448
      %vm451 = vcmp.lt.s32.totalorder %v213, 0
      %v452 = vsub.s32 0, %v213
      %v453 = vsel %vm451, %v452, %v213
      %v454 = vmul.u32.u64.compose %v453, 2863311531
      %v455 = vextract.low.u32 %v454
      %v456 = vextract.high.u32 %v454
      %v457 = vshrl.u32 %v456, 4
      %v458 = vmul.u32 %v457, 24
      %v459 = vsub.s32 %v453, %v458
      %v460 = vsub.s32 0, %v459
      %v461 = vsel %vm451, %v460, %v459
      %vm462 = vcmp.lt.s32.totalorder %v214, 0
      %v463 = vsub.s32 0, %v214
      %v464 = vsel %vm462, %v463, %v214
      %v465 = vmul.u32.u64.compose %v464, 2863311531
      %v466 = vextract.low.u32 %v465
      %v467 = vextract.high.u32 %v465
      %v468 = vshrl.u32 %v467, 4
      %v469 = vmul.u32 %v468, 24
      %v470 = vsub.s32 %v464, %v469
      %v471 = vsub.s32 0, %v470
      %v472 = vsel %vm462, %v471, %v470
      %vm473 = vcmp.lt.s32.totalorder %v215, 0
      %v474 = vsub.s32 0, %v215
      %v475 = vsel %vm473, %v474, %v215
      %v476 = vmul.u32.u64.compose %v475, 2863311531
      %v477 = vextract.low.u32 %v476
      %v478 = vextract.high.u32 %v476
      %v479 = vshrl.u32 %v478, 4
      %v480 = vmul.u32 %v479, 24
      %v481 = vsub.s32 %v475, %v480
      %v482 = vsub.s32 0, %v481
      %v483 = vsel %vm473, %v482, %v481
      %vm484 = vcmp.lt.s32.totalorder %v216, 0
      %v485 = vsub.s32 0, %v216
      %v486 = vsel %vm484, %v485, %v216
      %v487 = vmul.u32.u64.compose %v486, 2863311531
      %v488 = vextract.low.u32 %v487
      %v489 = vextract.high.u32 %v487
      %v490 = vshrl.u32 %v489, 4
      %v491 = vmul.u32 %v490, 24
      %v492 = vsub.s32 %v486, %v491
      %v493 = vsub.s32 0, %v492
      %v494 = vsel %vm484, %v493, %v492
      %vm495 = vcmp.lt.s32.totalorder %v217, 0
      %v496 = vsub.s32 0, %v217
      %v497 = vsel %vm495, %v496, %v217
      %v498 = vmul.u32.u64.compose %v497, 2863311531
      %v499 = vextract.low.u32 %v498
      %v500 = vextract.high.u32 %v498
      %v501 = vshrl.u32 %v500, 4
      %v502 = vmul.u32 %v501, 24
      %v503 = vsub.s32 %v497, %v502
      %v504 = vsub.s32 0, %v503
      %v505 = vsel %vm495, %v504, %v503
      %vm506 = vcmp.lt.s32.totalorder %v218, 0
      %v507 = vsub.s32 0, %v218
      %v508 = vsel %vm506, %v507, %v218
      %v509 = vmul.u32.u64.compose %v508, 2863311531
      %v510 = vextract.low.u32 %v509
      %v511 = vextract.high.u32 %v509
      %v512 = vshrl.u32 %v511, 4
      %v513 = vmul.u32 %v512, 24
      %v514 = vsub.s32 %v508, %v513
      %v515 = vsub.s32 0, %v514
      %v516 = vsel %vm506, %v515, %v514
      %vm517 = vcmp.lt.s32.totalorder %v219, 0
      %v518 = vsub.s32 0, %v219
      %v519 = vsel %vm517, %v518, %v219
      %v520 = vmul.u32.u64.compose %v519, 2863311531
      %v521 = vextract.low.u32 %v520
      %v522 = vextract.high.u32 %v520
      %v523 = vshrl.u32 %v522, 4
      %v524 = vmul.u32 %v523, 24
      %v525 = vsub.s32 %v519, %v524
      %v526 = vsub.s32 0, %v525
      %v527 = vsel %vm517, %v526, %v525
      %vm528 = vcmp.lt.s32.totalorder %v220, 0
      %v529 = vsub.s32 0, %v220
      %v530 = vsel %vm528, %v529, %v220
      %v531 = vmul.u32.u64.compose %v530, 2863311531
      %v532 = vextract.low.u32 %v531
      %v533 = vextract.high.u32 %v531
      %v534 = vshrl.u32 %v533, 4
      %v535 = vmul.u32 %v534, 24
      %v536 = vsub.s32 %v530, %v535
      %v537 = vsub.s32 0, %v536
      %v538 = vsel %vm528, %v537, %v536
      %vm539 = vcmp.lt.s32.totalorder %v221, 0
      %v540 = vsub.s32 0, %v221
      %v541 = vsel %vm539, %v540, %v221
      %v542 = vmul.u32.u64.compose %v541, 2863311531
      %v543 = vextract.low.u32 %v542
      %v544 = vextract.high.u32 %v542
      %v545 = vshrl.u32 %v544, 4
      %v546 = vmul.u32 %v545, 24
      %v547 = vsub.s32 %v541, %v546
      %v548 = vsub.s32 0, %v547
      %v549 = vsel %vm539, %v548, %v547
      %vm550 = vcmp.lt.s32.totalorder %v222, 0
      %v551 = vsub.s32 0, %v222
      %v552 = vsel %vm550, %v551, %v222
      %v553 = vmul.u32.u64.compose %v552, 2863311531
      %v554 = vextract.low.u32 %v553
      %v555 = vextract.high.u32 %v553
      %v556 = vshrl.u32 %v555, 4
      %v557 = vmul.u32 %v556, 24
      %v558 = vsub.s32 %v552, %v557
      %v559 = vsub.s32 0, %v558
      %v560 = vsel %vm550, %v559, %v558
      %vm561 = vcmp.lt.s32.totalorder %v223, 0
      %v562 = vsub.s32 0, %v223
      %v563 = vsel %vm561, %v562, %v223
      %v564 = vmul.u32.u64.compose %v563, 2863311531
      %v565 = vextract.low.u32 %v564
      %v566 = vextract.high.u32 %v564
      %v567 = vshrl.u32 %v566, 4
      %v568 = vmul.u32 %v567, 24
      %v569 = vsub.s32 %v563, %v568
      %v570 = vsub.s32 0, %v569
      %v571 = vsel %vm561, %v570, %v569
      %vm572 = vcmp.lt.s32.totalorder %v224, 0
      %v573 = vsub.s32 0, %v224
      %v574 = vsel %vm572, %v573, %v224
      %v575 = vmul.u32.u64.compose %v574, 2863311531
      %v576 = vextract.low.u32 %v575
      %v577 = vextract.high.u32 %v575
      %v578 = vshrl.u32 %v577, 4
      %v579 = vmul.u32 %v578, 24
      %v580 = vsub.s32 %v574, %v579
      %v581 = vsub.s32 0, %v580
      %v582 = vsel %vm572, %v581, %v580
      %vm583 = vcmp.lt.s32.totalorder %v225, 0
      %v584 = vsub.s32 0, %v225
      %v585 = vsel %vm583, %v584, %v225
      %v586 = vmul.u32.u64.compose %v585, 2863311531
      %v587 = vextract.low.u32 %v586
      %v588 = vextract.high.u32 %v586
      %v589 = vshrl.u32 %v588, 4
      %v590 = vmul.u32 %v589, 24
      %v591 = vsub.s32 %v585, %v590
      %v592 = vsub.s32 0, %v591
      %v593 = vsel %vm583, %v592, %v591
      %vm594 = vcmp.lt.s32.totalorder %v226, 0
      %v595 = vsub.s32 0, %v226
      %v596 = vsel %vm594, %v595, %v226
      %v597 = vmul.u32.u64.compose %v596, 2863311531
      %v598 = vextract.low.u32 %v597
      %v599 = vextract.high.u32 %v597
      %v600 = vshrl.u32 %v599, 4
      %v601 = vmul.u32 %v600, 24
      %v602 = vsub.s32 %v596, %v601
      %v603 = vsub.s32 0, %v602
      %v604 = vsel %vm594, %v603, %v602
      %vm605 = vcmp.lt.s32.totalorder %v227, 0
      %v606 = vsub.s32 0, %v227
      %v607 = vsel %vm605, %v606, %v227
      %v608 = vmul.u32.u64.compose %v607, 2863311531
      %v609 = vextract.low.u32 %v608
      %v610 = vextract.high.u32 %v608
      %v611 = vshrl.u32 %v610, 4
      %v612 = vmul.u32 %v611, 24
      %v613 = vsub.s32 %v607, %v612
      %v614 = vsub.s32 0, %v613
      %v615 = vsel %vm605, %v614, %v613
      %vm616 = vcmp.lt.s32.totalorder %v228, 0
      %v617 = vsub.s32 0, %v228
      %v618 = vsel %vm616, %v617, %v228
      %v619 = vmul.u32.u64.compose %v618, 2863311531
      %v620 = vextract.low.u32 %v619
      %v621 = vextract.high.u32 %v619
      %v622 = vshrl.u32 %v621, 4
      %v623 = vmul.u32 %v622, 24
      %v624 = vsub.s32 %v618, %v623
      %v625 = vsub.s32 0, %v624
      %v626 = vsel %vm616, %v625, %v624
      %vm627 = vcmp.lt.s32.totalorder %v229, 0
      %v628 = vsub.s32 0, %v229
      %v629 = vsel %vm627, %v628, %v229
      %v630 = vmul.u32.u64.compose %v629, 2863311531
      %v631 = vextract.low.u32 %v630
      %v632 = vextract.high.u32 %v630
      %v633 = vshrl.u32 %v632, 4
      %v634 = vmul.u32 %v633, 24
      %v635 = vsub.s32 %v629, %v634
      %v636 = vsub.s32 0, %v635
      %v637 = vsel %vm627, %v636, %v635
      %vm638 = vcmp.lt.s32.totalorder %v230, 0
      %v639 = vsub.s32 0, %v230
      %v640 = vsel %vm638, %v639, %v230
      %v641 = vmul.u32.u64.compose %v640, 2863311531
      %v642 = vextract.low.u32 %v641
      %v643 = vextract.high.u32 %v641
      %v644 = vshrl.u32 %v643, 4
      %v645 = vmul.u32 %v644, 24
      %v646 = vsub.s32 %v640, %v645
      %v647 = vsub.s32 0, %v646
      %v648 = vsel %vm638, %v647, %v646
      %vm649 = vcmp.lt.s32.totalorder %v231, 0
      %v650 = vsub.s32 0, %v231
      %v651 = vsel %vm649, %v650, %v231
      %v652 = vmul.u32.u64.compose %v651, 2863311531
      %v653 = vextract.low.u32 %v652
      %v654 = vextract.high.u32 %v652
      %v655 = vshrl.u32 %v654, 4
      %v656 = vmul.u32 %v655, 24
      %v657 = vsub.s32 %v651, %v656
      %v658 = vsub.s32 0, %v657
      %v659 = vsel %vm649, %v658, %v657
      %vm660 = vcmp.lt.s32.totalorder %v232, 0
      %v661 = vsub.s32 0, %v232
      %v662 = vsel %vm660, %v661, %v232
      %v663 = vmul.u32.u64.compose %v662, 2863311531
      %v664 = vextract.low.u32 %v663
      %v665 = vextract.high.u32 %v663
      %v666 = vshrl.u32 %v665, 4
      %v667 = vmul.u32 %v666, 24
      %v668 = vsub.s32 %v662, %v667
      %v669 = vsub.s32 0, %v668
      %v670 = vsel %vm660, %v669, %v668
      %vm671 = vcmp.lt.s32.totalorder %v233, 0
      %v672 = vsub.s32 0, %v233
      %v673 = vsel %vm671, %v672, %v233
      %v674 = vmul.u32.u64.compose %v673, 2863311531
      %v675 = vextract.low.u32 %v674
      %v676 = vextract.high.u32 %v674
      %v677 = vshrl.u32 %v676, 4
      %v678 = vmul.u32 %v677, 24
      %v679 = vsub.s32 %v673, %v678
      %v680 = vsub.s32 0, %v679
      %v681 = vsel %vm671, %v680, %v679
      %vm682 = vcmp.lt.s32.totalorder %v234, 0
      %v683 = vsub.s32 0, %v234
      %v684 = vsel %vm682, %v683, %v234
      %v685 = vmul.u32.u64.compose %v684, 2863311531
      %v686 = vextract.low.u32 %v685
      %v687 = vextract.high.u32 %v685
      %v688 = vshrl.u32 %v687, 4
      %v689 = vmul.u32 %v688, 24
      %v690 = vsub.s32 %v684, %v689
      %v691 = vsub.s32 0, %v690
      %v692 = vsel %vm682, %v691, %v690
      %vm693 = vcmp.lt.s32.totalorder %v235, 0
      %v694 = vsub.s32 0, %v235
      %v695 = vsel %vm693, %v694, %v235
      %v696 = vmul.u32.u64.compose %v695, 2863311531
      %v697 = vextract.low.u32 %v696
      %v698 = vextract.high.u32 %v696
      %v699 = vshrl.u32 %v698, 4
      %v700 = vmul.u32 %v699, 24
      %v701 = vsub.s32 %v695, %v700
      %v702 = vsub.s32 0, %v701
      %v703 = vsel %vm693, %v702, %v701
      %vm704 = vcmp.lt.s32.totalorder %v236, 0
      %v705 = vsub.s32 0, %v236
      %v706 = vsel %vm704, %v705, %v236
      %v707 = vmul.u32.u64.compose %v706, 2863311531
      %v708 = vextract.low.u32 %v707
      %v709 = vextract.high.u32 %v707
      %v710 = vshrl.u32 %v709, 4
      %v711 = vmul.u32 %v710, 24
      %v712 = vsub.s32 %v706, %v711
      %v713 = vsub.s32 0, %v712
      %v714 = vsel %vm704, %v713, %v712
      %vm715 = vcmp.lt.s32.totalorder %v237, 0
      %v716 = vsub.s32 0, %v237
      %v717 = vsel %vm715, %v716, %v237
      %v718 = vmul.u32.u64.compose %v717, 2863311531
      %v719 = vextract.low.u32 %v718
      %v720 = vextract.high.u32 %v718
      %v721 = vshrl.u32 %v720, 4
      %v722 = vmul.u32 %v721, 24
      %v723 = vsub.s32 %v717, %v722
      %v724 = vsub.s32 0, %v723
      %v725 = vsel %vm715, %v724, %v723
      %vm726 = vcmp.lt.s32.totalorder %v238, 0
      %v727 = vsub.s32 0, %v238
      %v728 = vsel %vm726, %v727, %v238
      %v729 = vmul.u32.u64.compose %v728, 2863311531
      %v730 = vextract.low.u32 %v729
      %v731 = vextract.high.u32 %v729
      %v732 = vshrl.u32 %v731, 4
      %v733 = vmul.u32 %v732, 24
      %v734 = vsub.s32 %v728, %v733
      %v735 = vsub.s32 0, %v734
      %v736 = vsel %vm726, %v735, %v734
      %vm737 = vcmp.lt.s32.totalorder %v239, 0
      %v738 = vsub.s32 0, %v239
      %v739 = vsel %vm737, %v738, %v239
      %v740 = vmul.u32.u64.compose %v739, 2863311531
      %v741 = vextract.low.u32 %v740
      %v742 = vextract.high.u32 %v740
      %v743 = vshrl.u32 %v742, 4
      %v744 = vmul.u32 %v743, 24
      %v745 = vsub.s32 %v739, %v744
      %v746 = vsub.s32 0, %v745
      %v747 = vsel %vm737, %v746, %v745
      %vm748 = vcmp.lt.s32.totalorder %v240, 0
      %v749 = vsub.s32 0, %v240
      %v750 = vsel %vm748, %v749, %v240
      %v751 = vmul.u32.u64.compose %v750, 2863311531
      %v752 = vextract.low.u32 %v751
      %v753 = vextract.high.u32 %v751
      %v754 = vshrl.u32 %v753, 4
      %v755 = vmul.u32 %v754, 24
      %v756 = vsub.s32 %v750, %v755
      %v757 = vsub.s32 0, %v756
      %v758 = vsel %vm748, %v757, %v756
      %vm759 = vcmp.lt.s32.totalorder %v241, 0
      %v760 = vsub.s32 0, %v241
      %v761 = vsel %vm759, %v760, %v241
      %v762 = vmul.u32.u64.compose %v761, 2863311531
      %v763 = vextract.low.u32 %v762
      %v764 = vextract.high.u32 %v762
      %v765 = vshrl.u32 %v764, 4
      %v766 = vmul.u32 %v765, 24
      %v767 = vsub.s32 %v761, %v766
      %v768 = vsub.s32 0, %v767
      %v769 = vsel %vm759, %v768, %v767
      %vm770 = vcmp.ne.s32.totalorder %v252, 0
      %vm771 = vcmp.ne.s32.totalorder %v263, 0
      %vm772 = vcmp.ne.s32.totalorder %v274, 0
      %vm773 = vcmp.ne.s32.totalorder %v285, 0
      %vm774 = vcmp.ne.s32.totalorder %v296, 0
      %vm775 = vcmp.ne.s32.totalorder %v307, 0
      %vm776 = vcmp.ne.s32.totalorder %v318, 0
      %vm777 = vcmp.ne.s32.totalorder %v329, 0
      %vm778 = vcmp.ne.s32.totalorder %v340, 0
      %vm779 = vcmp.ne.s32.totalorder %v351, 0
      %vm780 = vcmp.ne.s32.totalorder %v362, 0
      %vm781 = vcmp.ne.s32.totalorder %v373, 0
      %vm782 = vcmp.ne.s32.totalorder %v384, 0
      %vm783 = vcmp.ne.s32.totalorder %v395, 0
      %vm784 = vcmp.ne.s32.totalorder %v406, 0
      %vm785 = vcmp.ne.s32.totalorder %v417, 0
      %vm786 = vcmp.ne.s32.totalorder %v428, 0
      %vm787 = vcmp.ne.s32.totalorder %v439, 0
      %vm788 = vcmp.ne.s32.totalorder %v450, 0
      %vm789 = vcmp.ne.s32.totalorder %v461, 0
      %vm790 = vcmp.ne.s32.totalorder %v472, 0
      %vm791 = vcmp.ne.s32.totalorder %v483, 0
      %vm792 = vcmp.ne.s32.totalorder %v494, 0
      %vm793 = vcmp.ne.s32.totalorder %v505, 0
      %vm794 = vcmp.ne.s32.totalorder %v516, 0
      %vm795 = vcmp.ne.s32.totalorder %v527, 0
      %vm796 = vcmp.ne.s32.totalorder %v538, 0
      %vm797 = vcmp.ne.s32.totalorder %v549, 0
      %vm798 = vcmp.ne.s32.totalorder %v560, 0
      %vm799 = vcmp.ne.s32.totalorder %v571, 0
      %vm800 = vcmp.ne.s32.totalorder %v582, 0
      %vm801 = vcmp.ne.s32.totalorder %v593, 0
      %vm802 = vcmp.ne.s32.totalorder %v604, 0
      %vm803 = vcmp.ne.s32.totalorder %v615, 0
      %vm804 = vcmp.ne.s32.totalorder %v626, 0
      %vm805 = vcmp.ne.s32.totalorder %v637, 0
      %vm806 = vcmp.ne.s32.totalorder %v648, 0
      %vm807 = vcmp.ne.s32.totalorder %v659, 0
      %vm808 = vcmp.ne.s32.totalorder %v670, 0
      %vm809 = vcmp.ne.s32.totalorder %v681, 0
      %vm810 = vcmp.ne.s32.totalorder %v692, 0
      %vm811 = vcmp.ne.s32.totalorder %v703, 0
      %vm812 = vcmp.ne.s32.totalorder %v714, 0
      %vm813 = vcmp.ne.s32.totalorder %v725, 0
      %vm814 = vcmp.ne.s32.totalorder %v736, 0
      %vm815 = vcmp.ne.s32.totalorder %v747, 0
      %vm816 = vcmp.ne.s32.totalorder %v758, 0
      %vm817 = vcmp.ne.s32.totalorder %v769, 0
      %vm818 = vcmp.lt.s32.totalorder %v252, 0
      %vm819 = vcmp.lt.s32.totalorder %v263, 0
      %vm820 = vcmp.lt.s32.totalorder %v274, 0
      %vm821 = vcmp.lt.s32.totalorder %v285, 0
      %vm822 = vcmp.lt.s32.totalorder %v296, 0
      %vm823 = vcmp.lt.s32.totalorder %v307, 0
      %vm824 = vcmp.lt.s32.totalorder %v318, 0
      %vm825 = vcmp.lt.s32.totalorder %v329, 0
      %vm826 = vcmp.lt.s32.totalorder %v340, 0
      %vm827 = vcmp.lt.s32.totalorder %v351, 0
      %vm828 = vcmp.lt.s32.totalorder %v362, 0
      %vm829 = vcmp.lt.s32.totalorder %v373, 0
      %vm830 = vcmp.lt.s32.totalorder %v384, 0
      %vm831 = vcmp.lt.s32.totalorder %v395, 0
      %vm832 = vcmp.lt.s32.totalorder %v406, 0
      %vm833 = vcmp.lt.s32.totalorder %v417, 0
      %vm834 = vcmp.lt.s32.totalorder %v428, 0
      %vm835 = vcmp.lt.s32.totalorder %v439, 0
      %vm836 = vcmp.lt.s32.totalorder %v450, 0
      %vm837 = vcmp.lt.s32.totalorder %v461, 0
      %vm838 = vcmp.lt.s32.totalorder %v472, 0
      %vm839 = vcmp.lt.s32.totalorder %v483, 0
      %vm840 = vcmp.lt.s32.totalorder %v494, 0
      %vm841 = vcmp.lt.s32.totalorder %v505, 0
      %vm842 = vcmp.lt.s32.totalorder %v516, 0
      %vm843 = vcmp.lt.s32.totalorder %v527, 0
      %vm844 = vcmp.lt.s32.totalorder %v538, 0
      %vm845 = vcmp.lt.s32.totalorder %v549, 0
      %vm846 = vcmp.lt.s32.totalorder %v560, 0
      %vm847 = vcmp.lt.s32.totalorder %v571, 0
      %vm848 = vcmp.lt.s32.totalorder %v582, 0
      %vm849 = vcmp.lt.s32.totalorder %v593, 0
      %vm850 = vcmp.lt.s32.totalorder %v604, 0
      %vm851 = vcmp.lt.s32.totalorder %v615, 0
      %vm852 = vcmp.lt.s32.totalorder %v626, 0
      %vm853 = vcmp.lt.s32.totalorder %v637, 0
      %vm854 = vcmp.lt.s32.totalorder %v648, 0
      %vm855 = vcmp.lt.s32.totalorder %v659, 0
      %vm856 = vcmp.lt.s32.totalorder %v670, 0
      %vm857 = vcmp.lt.s32.totalorder %v681, 0
      %vm858 = vcmp.lt.s32.totalorder %v692, 0
      %vm859 = vcmp.lt.s32.totalorder %v703, 0
      %vm860 = vcmp.lt.s32.totalorder %v714, 0
      %vm861 = vcmp.lt.s32.totalorder %v725, 0
      %vm862 = vcmp.lt.s32.totalorder %v736, 0
      %vm863 = vcmp.lt.s32.totalorder %v747, 0
      %vm864 = vcmp.lt.s32.totalorder %v758, 0
      %vm865 = vcmp.lt.s32.totalorder %v769, 0
      %vm866 = vmand %vm818, %vm770
      %vm867 = vmand %vm819, %vm771
      %vm868 = vmand %vm820, %vm772
      %vm869 = vmand %vm821, %vm773
      %vm870 = vmand %vm822, %vm774
      %vm871 = vmand %vm823, %vm775
      %vm872 = vmand %vm824, %vm776
      %vm873 = vmand %vm825, %vm777
      %vm874 = vmand %vm826, %vm778
      %vm875 = vmand %vm827, %vm779
      %vm876 = vmand %vm828, %vm780
      %vm877 = vmand %vm829, %vm781
      %vm878 = vmand %vm830, %vm782
      %vm879 = vmand %vm831, %vm783
      %vm880 = vmand %vm832, %vm784
      %vm881 = vmand %vm833, %vm785
      %vm882 = vmand %vm834, %vm786
      %vm883 = vmand %vm835, %vm787
      %vm884 = vmand %vm836, %vm788
      %vm885 = vmand %vm837, %vm789
      %vm886 = vmand %vm838, %vm790
      %vm887 = vmand %vm839, %vm791
      %vm888 = vmand %vm840, %vm792
      %vm889 = vmand %vm841, %vm793
      %vm890 = vmand %vm842, %vm794
      %vm891 = vmand %vm843, %vm795
      %vm892 = vmand %vm844, %vm796
      %vm893 = vmand %vm845, %vm797
      %vm894 = vmand %vm846, %vm798
      %vm895 = vmand %vm847, %vm799
      %vm896 = vmand %vm848, %vm800
      %vm897 = vmand %vm849, %vm801
      %vm898 = vmand %vm850, %vm802
      %vm899 = vmand %vm851, %vm803
      %vm900 = vmand %vm852, %vm804
      %vm901 = vmand %vm853, %vm805
      %vm902 = vmand %vm854, %vm806
      %vm903 = vmand %vm855, %vm807
      %vm904 = vmand %vm856, %vm808
      %vm905 = vmand %vm857, %vm809
      %vm906 = vmand %vm858, %vm810
      %vm907 = vmand %vm859, %vm811
      %vm908 = vmand %vm860, %vm812
      %vm909 = vmand %vm861, %vm813
      %vm910 = vmand %vm862, %vm814
      %vm911 = vmand %vm863, %vm815
      %vm912 = vmand %vm864, %vm816
      %vm913 = vmand %vm865, %vm817
      %v914 = vadd.s32 %v252, 24
      %v915 = vadd.s32 %v263, 24
      %v916 = vadd.s32 %v274, 24
      %v917 = vadd.s32 %v285, 24
      %v918 = vadd.s32 %v296, 24
      %v919 = vadd.s32 %v307, 24
      %v920 = vadd.s32 %v318, 24
      %v921 = vadd.s32 %v329, 24
      %v922 = vadd.s32 %v340, 24
      %v923 = vadd.s32 %v351, 24
      %v924 = vadd.s32 %v362, 24
      %v925 = vadd.s32 %v373, 24
      %v926 = vadd.s32 %v384, 24
      %v927 = vadd.s32 %v395, 24
      %v928 = vadd.s32 %v406, 24
      %v929 = vadd.s32 %v417, 24
      %v930 = vadd.s32 %v428, 24
      %v931 = vadd.s32 %v439, 24
      %v932 = vadd.s32 %v450, 24
      %v933 = vadd.s32 %v461, 24
      %v934 = vadd.s32 %v472, 24
      %v935 = vadd.s32 %v483, 24
      %v936 = vadd.s32 %v494, 24
      %v937 = vadd.s32 %v505, 24
      %v938 = vadd.s32 %v516, 24
      %v939 = vadd.s32 %v527, 24
      %v940 = vadd.s32 %v538, 24
      %v941 = vadd.s32 %v549, 24
      %v942 = vadd.s32 %v560, 24
      %v943 = vadd.s32 %v571, 24
      %v944 = vadd.s32 %v582, 24
      %v945 = vadd.s32 %v593, 24
      %v946 = vadd.s32 %v604, 24
      %v947 = vadd.s32 %v615, 24
      %v948 = vadd.s32 %v626, 24
      %v949 = vadd.s32 %v637, 24
      %v950 = vadd.s32 %v648, 24
      %v951 = vadd.s32 %v659, 24
      %v952 = vadd.s32 %v670, 24
      %v953 = vadd.s32 %v681, 24
      %v954 = vadd.s32 %v692, 24
      %v955 = vadd.s32 %v703, 24
      %v956 = vadd.s32 %v714, 24
      %v957 = vadd.s32 %v725, 24
      %v958 = vadd.s32 %v736, 24
      %v959 = vadd.s32 %v747, 24
      %v960 = vadd.s32 %v758, 24
      %v961 = vadd.s32 %v769, 24
      %v962 = vsel %vm866, %v914, %v252
      %v963 = vsel %vm867, %v915, %v263
      %v964 = vsel %vm868, %v916, %v274
      %v965 = vsel %vm869, %v917, %v285
      %v966 = vsel %vm870, %v918, %v296
      %v967 = vsel %vm871, %v919, %v307
      %v968 = vsel %vm872, %v920, %v318
      %v969 = vsel %vm873, %v921, %v329
      %v970 = vsel %vm874, %v922, %v340
      %v971 = vsel %vm875, %v923, %v351
      %v972 = vsel %vm876, %v924, %v362
      %v973 = vsel %vm877, %v925, %v373
      %v974 = vsel %vm878, %v926, %v384
      %v975 = vsel %vm879, %v927, %v395
      %v976 = vsel %vm880, %v928, %v406
      %v977 = vsel %vm881, %v929, %v417
      %v978 = vsel %vm882, %v930, %v428
      %v979 = vsel %vm883, %v931, %v439
      %v980 = vsel %vm884, %v932, %v450
      %v981 = vsel %vm885, %v933, %v461
      %v982 = vsel %vm886, %v934, %v472
      %v983 = vsel %vm887, %v935, %v483
      %v984 = vsel %vm888, %v936, %v494
      %v985 = vsel %vm889, %v937, %v505
      %v986 = vsel %vm890, %v938, %v516
      %v987 = vsel %vm891, %v939, %v527
      %v988 = vsel %vm892, %v940, %v538
      %v989 = vsel %vm893, %v941, %v549
      %v990 = vsel %vm894, %v942, %v560
      %v991 = vsel %vm895, %v943, %v571
      %v992 = vsel %vm896, %v944, %v582
      %v993 = vsel %vm897, %v945, %v593
      %v994 = vsel %vm898, %v946, %v604
      %v995 = vsel %vm899, %v947, %v615
      %v996 = vsel %vm900, %v948, %v626
      %v997 = vsel %vm901, %v949, %v637
      %v998 = vsel %vm902, %v950, %v648
      %v999 = vsel %vm903, %v951, %v659
      %v1000 = vsel %vm904, %v952, %v670
      %v1001 = vsel %vm905, %v953, %v681
      %v1002 = vsel %vm906, %v954, %v692
      %v1003 = vsel %vm907, %v955, %v703
      %v1004 = vsel %vm908, %v956, %v714
      %v1005 = vsel %vm909, %v957, %v725
      %v1006 = vsel %vm910, %v958, %v736
      %v1007 = vsel %vm911, %v959, %v747
      %v1008 = vsel %vm912, %v960, %v758
      %v1009 = vsel %vm913, %v961, %v769
      %vm1010 = vcmp.lt.s32.totalorder %v962, 16
      %vm1011 = vcmp.lt.s32.totalorder %v963, 16
      %vm1012 = vcmp.lt.s32.totalorder %v964, 16
      %vm1013 = vcmp.lt.s32.totalorder %v965, 16
      %vm1014 = vcmp.lt.s32.totalorder %v966, 16
      %vm1015 = vcmp.lt.s32.totalorder %v967, 16
      %vm1016 = vcmp.lt.s32.totalorder %v968, 16
      %vm1017 = vcmp.lt.s32.totalorder %v969, 16
      %vm1018 = vcmp.lt.s32.totalorder %v970, 16
      %vm1019 = vcmp.lt.s32.totalorder %v971, 16
      %vm1020 = vcmp.lt.s32.totalorder %v972, 16
      %vm1021 = vcmp.lt.s32.totalorder %v973, 16
      %vm1022 = vcmp.lt.s32.totalorder %v974, 16
      %vm1023 = vcmp.lt.s32.totalorder %v975, 16
      %vm1024 = vcmp.lt.s32.totalorder %v976, 16
      %vm1025 = vcmp.lt.s32.totalorder %v977, 16
      %vm1026 = vcmp.lt.s32.totalorder %v978, 16
      %vm1027 = vcmp.lt.s32.totalorder %v979, 16
      %vm1028 = vcmp.lt.s32.totalorder %v980, 16
      %vm1029 = vcmp.lt.s32.totalorder %v981, 16
      %vm1030 = vcmp.lt.s32.totalorder %v982, 16
      %vm1031 = vcmp.lt.s32.totalorder %v983, 16
      %vm1032 = vcmp.lt.s32.totalorder %v984, 16
      %vm1033 = vcmp.lt.s32.totalorder %v985, 16
      %vm1034 = vcmp.lt.s32.totalorder %v986, 16
      %vm1035 = vcmp.lt.s32.totalorder %v987, 16
      %vm1036 = vcmp.lt.s32.totalorder %v988, 16
      %vm1037 = vcmp.lt.s32.totalorder %v989, 16
      %vm1038 = vcmp.lt.s32.totalorder %v990, 16
      %vm1039 = vcmp.lt.s32.totalorder %v991, 16
      %vm1040 = vcmp.lt.s32.totalorder %v992, 16
      %vm1041 = vcmp.lt.s32.totalorder %v993, 16
      %vm1042 = vcmp.lt.s32.totalorder %v994, 16
      %vm1043 = vcmp.lt.s32.totalorder %v995, 16
      %vm1044 = vcmp.lt.s32.totalorder %v996, 16
      %vm1045 = vcmp.lt.s32.totalorder %v997, 16
      %vm1046 = vcmp.lt.s32.totalorder %v998, 16
      %vm1047 = vcmp.lt.s32.totalorder %v999, 16
      %vm1048 = vcmp.lt.s32.totalorder %v1000, 16
      %vm1049 = vcmp.lt.s32.totalorder %v1001, 16
      %vm1050 = vcmp.lt.s32.totalorder %v1002, 16
      %vm1051 = vcmp.lt.s32.totalorder %v1003, 16
      %vm1052 = vcmp.lt.s32.totalorder %v1004, 16
      %vm1053 = vcmp.lt.s32.totalorder %v1005, 16
      %vm1054 = vcmp.lt.s32.totalorder %v1006, 16
      %vm1055 = vcmp.lt.s32.totalorder %v1007, 16
      %vm1056 = vcmp.lt.s32.totalorder %v1008, 16
      %vm1057 = vcmp.lt.s32.totalorder %v1009, 16
      %v1058 = vsel %vm1010, 1, 0
      %v1059 = vsel %vm1011, 1, 0
      %v1060 = vsel %vm1012, 1, 0
      %v1061 = vsel %vm1013, 1, 0
      %v1062 = vsel %vm1014, 1, 0
      %v1063 = vsel %vm1015, 1, 0
      %v1064 = vsel %vm1016, 1, 0
      %v1065 = vsel %vm1017, 1, 0
      %v1066 = vsel %vm1018, 1, 0
      %v1067 = vsel %vm1019, 1, 0
      %v1068 = vsel %vm1020, 1, 0
      %v1069 = vsel %vm1021, 1, 0
      %v1070 = vsel %vm1022, 1, 0
      %v1071 = vsel %vm1023, 1, 0
      %v1072 = vsel %vm1024, 1, 0
      %v1073 = vsel %vm1025, 1, 0
      %v1074 = vsel %vm1026, 1, 0
      %v1075 = vsel %vm1027, 1, 0
      %v1076 = vsel %vm1028, 1, 0
      %v1077 = vsel %vm1029, 1, 0
      %v1078 = vsel %vm1030, 1, 0
      %v1079 = vsel %vm1031, 1, 0
      %v1080 = vsel %vm1032, 1, 0
      %v1081 = vsel %vm1033, 1, 0
      %v1082 = vsel %vm1034, 1, 0
      %v1083 = vsel %vm1035, 1, 0
      %v1084 = vsel %vm1036, 1, 0
      %v1085 = vsel %vm1037, 1, 0
      %v1086 = vsel %vm1038, 1, 0
      %v1087 = vsel %vm1039, 1, 0
      %v1088 = vsel %vm1040, 1, 0
      %v1089 = vsel %vm1041, 1, 0
      %v1090 = vsel %vm1042, 1, 0
      %v1091 = vsel %vm1043, 1, 0
      %v1092 = vsel %vm1044, 1, 0
      %v1093 = vsel %vm1045, 1, 0
      %v1094 = vsel %vm1046, 1, 0
      %v1095 = vsel %vm1047, 1, 0
      %v1096 = vsel %vm1048, 1, 0
      %v1097 = vsel %vm1049, 1, 0
      %v1098 = vsel %vm1050, 1, 0
      %v1099 = vsel %vm1051, 1, 0
      %v1100 = vsel %vm1052, 1, 0
      %v1101 = vsel %vm1053, 1, 0
      %v1102 = vsel %vm1054, 1, 0
      %v1103 = vsel %vm1055, 1, 0
      %v1104 = vsel %vm1056, 1, 0
      %v1105 = vsel %vm1057, 1, 0
      %v1106 = vcvt.s32.f32 %v1058
      %v1107 = vcvt.s32.f32 %v1059
      %v1108 = vcvt.s32.f32 %v1060
      %v1109 = vcvt.s32.f32 %v1061
      %v1110 = vcvt.s32.f32 %v1062
      %v1111 = vcvt.s32.f32 %v1063
      %v1112 = vcvt.s32.f32 %v1064
      %v1113 = vcvt.s32.f32 %v1065
      %v1114 = vcvt.s32.f32 %v1066
      %v1115 = vcvt.s32.f32 %v1067
      %v1116 = vcvt.s32.f32 %v1068
      %v1117 = vcvt.s32.f32 %v1069
      %v1118 = vcvt.s32.f32 %v1070
      %v1119 = vcvt.s32.f32 %v1071
      %v1120 = vcvt.s32.f32 %v1072
      %v1121 = vcvt.s32.f32 %v1073
      %v1122 = vcvt.s32.f32 %v1074
      %v1123 = vcvt.s32.f32 %v1075
      %v1124 = vcvt.s32.f32 %v1076
      %v1125 = vcvt.s32.f32 %v1077
      %v1126 = vcvt.s32.f32 %v1078
      %v1127 = vcvt.s32.f32 %v1079
      %v1128 = vcvt.s32.f32 %v1080
      %v1129 = vcvt.s32.f32 %v1081
      %v1130 = vcvt.s32.f32 %v1082
      %v1131 = vcvt.s32.f32 %v1083
      %v1132 = vcvt.s32.f32 %v1084
      %v1133 = vcvt.s32.f32 %v1085
      %v1134 = vcvt.s32.f32 %v1086
      %v1135 = vcvt.s32.f32 %v1087
      %v1136 = vcvt.s32.f32 %v1088
      %v1137 = vcvt.s32.f32 %v1089
      %v1138 = vcvt.s32.f32 %v1090
      %v1139 = vcvt.s32.f32 %v1091
      %v1140 = vcvt.s32.f32 %v1092
      %v1141 = vcvt.s32.f32 %v1093
      %v1142 = vcvt.s32.f32 %v1094
      %v1143 = vcvt.s32.f32 %v1095
      %v1144 = vcvt.s32.f32 %v1096
      %v1145 = vcvt.s32.f32 %v1097
      %v1146 = vcvt.s32.f32 %v1098
      %v1147 = vcvt.s32.f32 %v1099
      %v1148 = vcvt.s32.f32 %v1100
      %v1149 = vcvt.s32.f32 %v1101
      %v1150 = vcvt.s32.f32 %v1102
      %v1151 = vcvt.s32.f32 %v1103
      %v1152 = vcvt.s32.f32 %v1104
      %v1153 = vcvt.s32.f32 %v1105
      %v1154 = vld [vmem:[%s165] sm:$0xff]
      %v1155 = vld [vmem:[%s165 + $0x8] sm:$0xff]
      %v1156 = vld [vmem:[%s165 + $0x10] sm:$0xff]
      %v1157 = vld [vmem:[%s165 + $0x18] sm:$0xff]
      %v1158 = vld [vmem:[%s165 + $0x20] sm:$0xff]
      %v1159 = vld [vmem:[%s165 + $0x28] sm:$0xff]
      %v1160 = vld [vmem:[%s165 + $0x30] sm:$0xff]
      %v1161 = vld [vmem:[%s165 + $0x38] sm:$0xff]
      %v1162 = vld [vmem:[%s165 + $0x40] sm:$0xff]
      %v1163 = vld [vmem:[%s165 + $0x48] sm:$0xff]
      %v1164 = vld [vmem:[%s165 + $0x50] sm:$0xff]
      %v1165 = vld [vmem:[%s165 + $0x58] sm:$0xff]
      %v1166 = vld [vmem:[%s165 + $0x60] sm:$0xff]
      %v1167 = vld [vmem:[%s165 + $0x68] sm:$0xff]
      %v1168 = vld [vmem:[%s165 + $0x70] sm:$0xff]
      %v1169 = vld [vmem:[%s165 + $0x78] sm:$0xff]
      %v1170 = vld [vmem:[%s165 + $0x80] sm:$0xff]
      %v1171 = vld [vmem:[%s165 + $0x88] sm:$0xff]
      %v1172 = vld [vmem:[%s165 + $0x90] sm:$0xff]
      %v1173 = vld [vmem:[%s165 + $0x98] sm:$0xff]
      %v1174 = vld [vmem:[%s165 + $0xa0] sm:$0xff]
      %v1175 = vld [vmem:[%s165 + $0xa8] sm:$0xff]
      %v1176 = vld [vmem:[%s165 + $0xb0] sm:$0xff]
      %v1177 = vld [vmem:[%s165 + $0xb8] sm:$0xff]
      %v1178 = vld [vmem:[%s165 + $0xc0] sm:$0xff]
      %v1179 = vld [vmem:[%s165 + $0xc8] sm:$0xff]
      %v1180 = vld [vmem:[%s165 + $0xd0] sm:$0xff]
      %v1181 = vld [vmem:[%s165 + $0xd8] sm:$0xff]
      %v1182 = vld [vmem:[%s165 + $0xe0] sm:$0xff]
      %v1183 = vld [vmem:[%s165 + $0xe8] sm:$0xff]
      %v1184 = vld [vmem:[%s165 + $0xf0] sm:$0xff]
      %v1185 = vld [vmem:[%s165 + $0xf8] sm:$0xff]
      %v1186 = vpack.c.bf16 %v1155, %v1154
      %v1187 = vpack.c.bf16 %v1157, %v1156
      %v1188 = vpack.c.bf16 %v1159, %v1158
      %v1189 = vpack.c.bf16 %v1161, %v1160
      %v1190 = vpack.c.bf16 %v1163, %v1162
      %v1191 = vpack.c.bf16 %v1165, %v1164
      %v1192 = vpack.c.bf16 %v1167, %v1166
      %v1193 = vpack.c.bf16 %v1169, %v1168
      %v1194 = vpack.c.bf16 %v1171, %v1170
      %v1195 = vpack.c.bf16 %v1173, %v1172
      %v1196 = vpack.c.bf16 %v1175, %v1174
      %v1197 = vpack.c.bf16 %v1177, %v1176
      %v1198 = vpack.c.bf16 %v1179, %v1178
      %v1199 = vpack.c.bf16 %v1181, %v1180
      %v1200 = vpack.c.bf16 %v1183, %v1182
      %v1201 = vpack.c.bf16 %v1185, %v1184
      %v1218 = vunpack.c.l.b16 %v1186
      %v1219 = vunpack.c.h.b16 %v1186
      %v1220 = vunpack.c.l.b16 %v1187
      %v1221 = vunpack.c.h.b16 %v1187
      %v1222 = vunpack.c.l.b16 %v1188
      %v1223 = vunpack.c.h.b16 %v1188
      %v1224 = vunpack.c.l.b16 %v1189
      %v1225 = vunpack.c.h.b16 %v1189
      %v1226 = vunpack.c.l.b16 %v1190
      %v1227 = vunpack.c.h.b16 %v1190
      %v1228 = vunpack.c.l.b16 %v1191
      %v1229 = vunpack.c.h.b16 %v1191
      %v1230 = vunpack.c.l.b16 %v1192
      %v1231 = vunpack.c.h.b16 %v1192
      %v1232 = vunpack.c.l.b16 %v1193
      %v1233 = vunpack.c.h.b16 %v1193
      %v1234 = vunpack.c.l.b16 %v1194
      %v1235 = vunpack.c.h.b16 %v1194
      %v1236 = vunpack.c.l.b16 %v1195
      %v1237 = vunpack.c.h.b16 %v1195
      %v1238 = vunpack.c.l.b16 %v1196
      %v1239 = vunpack.c.h.b16 %v1196
      %v1240 = vunpack.c.l.b16 %v1197
      %v1241 = vunpack.c.h.b16 %v1197
      %v1242 = vunpack.c.l.b16 %v1198
      %v1243 = vunpack.c.h.b16 %v1198
      %v1244 = vunpack.c.l.b16 %v1199
      %v1245 = vunpack.c.h.b16 %v1199
      %v1246 = vunpack.c.l.b16 %v1200
      %v1247 = vunpack.c.h.b16 %v1200
      %v1248 = vunpack.c.l.b16 %v1201
      %v1249 = vunpack.c.h.b16 %v1201
      %v1250 = vpack.c.b16 %v1218, %v1218
      %v1251 = vpack.c.b16 %v1219, %v1219
      %v1252 = vpack.c.b16 %v1220, %v1220
      %v1253 = vpack.c.b16 %v1221, %v1221
      %v1254 = vpack.c.b16 %v1222, %v1222
      %v1255 = vpack.c.b16 %v1223, %v1223
      %v1256 = vpack.c.b16 %v1224, %v1224
      %v1257 = vpack.c.b16 %v1225, %v1225
      %v1258 = vpack.c.b16 %v1226, %v1226
      %v1259 = vpack.c.b16 %v1227, %v1227
      %v1260 = vpack.c.b16 %v1228, %v1228
      %v1261 = vpack.c.b16 %v1229, %v1229
      %v1262 = vpack.c.b16 %v1230, %v1230
      %v1263 = vpack.c.b16 %v1231, %v1231
      %v1264 = vpack.c.b16 %v1232, %v1232
      %v1265 = vpack.c.b16 %v1233, %v1233
      %v1266 = vpack.c.b16 %v1234, %v1234
      %v1267 = vpack.c.b16 %v1235, %v1235
      %v1268 = vpack.c.b16 %v1236, %v1236
      %v1269 = vpack.c.b16 %v1237, %v1237
      %v1270 = vpack.c.b16 %v1238, %v1238
      %v1271 = vpack.c.b16 %v1239, %v1239
      %v1272 = vpack.c.b16 %v1240, %v1240
      %v1273 = vpack.c.b16 %v1241, %v1241
      %v1274 = vpack.c.b16 %v1242, %v1242
      %v1275 = vpack.c.b16 %v1243, %v1243
      %v1276 = vpack.c.b16 %v1244, %v1244
      %v1277 = vpack.c.b16 %v1245, %v1245
      %v1278 = vpack.c.b16 %v1246, %v1246
      %v1279 = vpack.c.b16 %v1247, %v1247
      %v1280 = vpack.c.b16 %v1248, %v1248
      %v1281 = vpack.c.b16 %v1249, %v1249
      %vm1282 = vsmask.f32 256
      %vm1283 = vsmask.f32 4368
      %vm1284 = vmor %vm1282, %vm1283
      %v1286 = vshrl.u32 %v1250, 16
      %v1288 = vrot.slane %v1286, 7
      %v1289 = vshll.u32 %v1250, 16
      %v1291 = vor.u32 %v1288, %v1289
      %v1292 = vrot.slane %v1288, 4
      %v1294 = vshrl.u32 %v1251, 16
      %v1296 = vrot.slane %v1294, 7
      %v1297 = vshll.u32 %v1251, 16
      %v1299 = vor.u32 %v1296, %v1297
      %v1300 = vsel %vm1284, %v1292, %v1299
      %v1301 = vrot.slane %v1296, 4
      %v1303 = vshrl.u32 %v1252, 16
      %v1305 = vrot.slane %v1303, 7
      %v1306 = vshll.u32 %v1252, 16
      %v1308 = vor.u32 %v1305, %v1306
      %v1309 = vrot.slane %v1305, 4
      %v1311 = vshrl.u32 %v1253, 16
      %v1313 = vrot.slane %v1311, 7
      %v1314 = vshll.u32 %v1253, 16
      %v1316 = vor.u32 %v1313, %v1314
      %v1317 = vsel %vm1284, %v1309, %v1316
      %v1318 = vrot.slane %v1313, 4
      %v1320 = vshrl.u32 %v1254, 16
      %v1322 = vrot.slane %v1320, 7
      %v1323 = vshll.u32 %v1254, 16
      %v1325 = vor.u32 %v1322, %v1323
      %v1326 = vrot.slane %v1322, 4
      %v1328 = vshrl.u32 %v1255, 16
      %v1330 = vrot.slane %v1328, 7
      %v1331 = vshll.u32 %v1255, 16
      %v1333 = vor.u32 %v1330, %v1331
      %v1334 = vsel %vm1284, %v1326, %v1333
      %v1335 = vrot.slane %v1330, 4
      %v1337 = vshrl.u32 %v1256, 16
      %v1339 = vrot.slane %v1337, 7
      %v1340 = vshll.u32 %v1256, 16
      %v1342 = vor.u32 %v1339, %v1340
      %v1343 = vrot.slane %v1339, 4
      %v1345 = vshrl.u32 %v1257, 16
      %v1347 = vrot.slane %v1345, 7
      %v1348 = vshll.u32 %v1257, 16
      %v1350 = vor.u32 %v1347, %v1348
      %v1351 = vsel %vm1284, %v1343, %v1350
      %v1352 = vrot.slane %v1347, 4
      %v1354 = vshrl.u32 %v1258, 16
      %v1356 = vrot.slane %v1354, 7
      %v1357 = vshll.u32 %v1258, 16
      %v1359 = vor.u32 %v1356, %v1357
      %v1360 = vrot.slane %v1356, 4
      %v1362 = vshrl.u32 %v1259, 16
      %v1364 = vrot.slane %v1362, 7
      %v1365 = vshll.u32 %v1259, 16
      %v1367 = vor.u32 %v1364, %v1365
      %v1368 = vsel %vm1284, %v1360, %v1367
      %v1369 = vrot.slane %v1364, 4
      %v1371 = vshrl.u32 %v1260, 16
      %v1373 = vrot.slane %v1371, 7
      %v1374 = vshll.u32 %v1260, 16
      %v1376 = vor.u32 %v1373, %v1374
      %v1377 = vrot.slane %v1373, 4
      %v1379 = vshrl.u32 %v1261, 16
      %v1381 = vrot.slane %v1379, 7
      %v1382 = vshll.u32 %v1261, 16
      %v1384 = vor.u32 %v1381, %v1382
      %v1385 = vsel %vm1284, %v1377, %v1384
      %v1386 = vrot.slane %v1381, 4
      %v1388 = vshrl.u32 %v1262, 16
      %v1390 = vrot.slane %v1388, 7
      %v1391 = vshll.u32 %v1262, 16
      %v1393 = vor.u32 %v1390, %v1391
      %v1394 = vrot.slane %v1390, 4
      %v1396 = vshrl.u32 %v1263, 16
      %v1398 = vrot.slane %v1396, 7
      %v1399 = vshll.u32 %v1263, 16
      %v1401 = vor.u32 %v1398, %v1399
      %v1402 = vsel %vm1284, %v1394, %v1401
      %v1403 = vrot.slane %v1398, 4
      %v1405 = vshrl.u32 %v1264, 16
      %v1407 = vrot.slane %v1405, 7
      %v1408 = vshll.u32 %v1264, 16
      %v1410 = vor.u32 %v1407, %v1408
      %v1411 = vrot.slane %v1407, 4
      %v1413 = vshrl.u32 %v1265, 16
      %v1415 = vrot.slane %v1413, 7
      %v1416 = vshll.u32 %v1265, 16
      %v1418 = vor.u32 %v1415, %v1416
      %v1419 = vsel %vm1284, %v1411, %v1418
      %v1420 = vrot.slane %v1415, 4
      %v1422 = vshrl.u32 %v1266, 16
      %v1424 = vrot.slane %v1422, 7
      %v1425 = vshll.u32 %v1266, 16
      %v1427 = vor.u32 %v1424, %v1425
      %v1428 = vrot.slane %v1424, 4
      %v1430 = vshrl.u32 %v1267, 16
      %v1432 = vrot.slane %v1430, 7
      %v1433 = vshll.u32 %v1267, 16
      %v1435 = vor.u32 %v1432, %v1433
      %v1436 = vsel %vm1284, %v1428, %v1435
      %v1437 = vrot.slane %v1432, 4
      %v1439 = vshrl.u32 %v1268, 16
      %v1441 = vrot.slane %v1439, 7
      %v1442 = vshll.u32 %v1268, 16
      %v1444 = vor.u32 %v1441, %v1442
      %v1445 = vrot.slane %v1441, 4
      %v1447 = vshrl.u32 %v1269, 16
      %v1449 = vrot.slane %v1447, 7
      %v1450 = vshll.u32 %v1269, 16
      %v1452 = vor.u32 %v1449, %v1450
      %v1453 = vsel %vm1284, %v1445, %v1452
      %v1454 = vrot.slane %v1449, 4
      %v1456 = vshrl.u32 %v1270, 16
      %v1458 = vrot.slane %v1456, 7
      %v1459 = vshll.u32 %v1270, 16
      %v1461 = vor.u32 %v1458, %v1459
      %v1462 = vrot.slane %v1458, 4
      %v1464 = vshrl.u32 %v1271, 16
      %v1466 = vrot.slane %v1464, 7
      %v1467 = vshll.u32 %v1271, 16
      %v1469 = vor.u32 %v1466, %v1467
      %v1470 = vsel %vm1284, %v1462, %v1469
      %v1471 = vrot.slane %v1466, 4
      %v1473 = vshrl.u32 %v1272, 16
      %v1475 = vrot.slane %v1473, 7
      %v1476 = vshll.u32 %v1272, 16
      %v1478 = vor.u32 %v1475, %v1476
      %v1479 = vrot.slane %v1475, 4
      %v1481 = vshrl.u32 %v1273, 16
      %v1483 = vrot.slane %v1481, 7
      %v1484 = vshll.u32 %v1273, 16
      %v1486 = vor.u32 %v1483, %v1484
      %v1487 = vsel %vm1284, %v1479, %v1486
      %v1488 = vrot.slane %v1483, 4
      %v1490 = vshrl.u32 %v1274, 16
      %v1492 = vrot.slane %v1490, 7
      %v1493 = vshll.u32 %v1274, 16
      %v1495 = vor.u32 %v1492, %v1493
      %v1496 = vrot.slane %v1492, 4
      %v1498 = vshrl.u32 %v1275, 16
      %v1500 = vrot.slane %v1498, 7
      %v1501 = vshll.u32 %v1275, 16
      %v1503 = vor.u32 %v1500, %v1501
      %v1504 = vsel %vm1284, %v1496, %v1503
      %v1505 = vrot.slane %v1500, 4
      %v1507 = vshrl.u32 %v1276, 16
      %v1509 = vrot.slane %v1507, 7
      %v1510 = vshll.u32 %v1276, 16
      %v1512 = vor.u32 %v1509, %v1510
      %v1513 = vrot.slane %v1509, 4
      %v1515 = vshrl.u32 %v1277, 16
      %v1517 = vrot.slane %v1515, 7
      %v1518 = vshll.u32 %v1277, 16
      %v1520 = vor.u32 %v1517, %v1518
      %v1521 = vsel %vm1284, %v1513, %v1520
      %v1522 = vrot.slane %v1517, 4
      %v1524 = vshrl.u32 %v1278, 16
      %v1526 = vrot.slane %v1524, 7
      %v1527 = vshll.u32 %v1278, 16
      %v1529 = vor.u32 %v1526, %v1527
      %v1530 = vrot.slane %v1526, 4
      %v1532 = vshrl.u32 %v1279, 16
      %v1534 = vrot.slane %v1532, 7
      %v1535 = vshll.u32 %v1279, 16
      %v1537 = vor.u32 %v1534, %v1535
      %v1538 = vsel %vm1284, %v1530, %v1537
      %v1539 = vrot.slane %v1534, 4
      %v1541 = vshrl.u32 %v1280, 16
      %v1543 = vrot.slane %v1541, 7
      %v1544 = vshll.u32 %v1280, 16
      %v1546 = vor.u32 %v1543, %v1544
      %v1547 = vrot.slane %v1543, 4
      %v1549 = vshrl.u32 %v1281, 16
      %v1551 = vrot.slane %v1549, 7
      %v1552 = vshll.u32 %v1281, 16
      %v1554 = vor.u32 %v1551, %v1552
      %v1555 = vsel %vm1284, %v1547, %v1554
      %v1556 = vrot.slane %v1551, 4
      %s1605 = scalar_lea.vmem [#allocation2], 12
      %vm1606 = vcmask 27648
      %vm1607 = vsmask.f32 7938
      %vm1608 = vmand %vm1606, %vm1607
      %v1609 = vld [vmem:[%s1605] sm:$0xf]
      %v1610 = vsel %vm1608, %v1291, %v1609
      %1611 = vst [vmem:[%s1605] sm:$0xf] %v1610
      %1612 = vst.msk [vmem:[%s1605 + $0x4] sm:$0xf] %vm191, %v1300
      %vm1613 = vcmask 24576
      %vm1614 = vmand %vm1613, %vm1282
      %v1615 = vld [vmem:[%s1605 + $0x8] sm:$0x1]
      %v1616 = vsel %vm1614, %v1301, %v1615
      %1617 = vst [vmem:[%s1605 + $0x8] sm:$0x1] %v1616
      %v1618 = vld [vmem:[%s1605 + $0xc] sm:$0xf]
      %v1619 = vsel %vm1608, %v1308, %v1618
      %1620 = vst [vmem:[%s1605 + $0xc] sm:$0xf] %v1619
      %1621 = vst.msk [vmem:[%s1605 + $0x10] sm:$0xf] %vm191, %v1317
      %v1622 = vld [vmem:[%s1605 + $0x14] sm:$0x1]
      %v1623 = vsel %vm1614, %v1318, %v1622
      %1624 = vst [vmem:[%s1605 + $0x14] sm:$0x1] %v1623
      %v1625 = vld [vmem:[%s1605 + $0x18] sm:$0xf]
      %v1626 = vsel %vm1608, %v1325, %v1625
      %1627 = vst [vmem:[%s1605 + $0x18] sm:$0xf] %v1626
      %1628 = vst.msk [vmem:[%s1605 + $0x1c] sm:$0xf] %vm191, %v1334
      %v1629 = vld [vmem:[%s1605 + $0x20] sm:$0x1]
      %v1630 = vsel %vm1614, %v1335, %v1629
      %1631 = vst [vmem:[%s1605 + $0x20] sm:$0x1] %v1630
      %v1632 = vld [vmem:[%s1605 + $0x24] sm:$0xf]
      %v1633 = vsel %vm1608, %v1342, %v1632
      %1634 = vst [vmem:[%s1605 + $0x24] sm:$0xf] %v1633
      %1635 = vst.msk [vmem:[%s1605 + $0x28] sm:$0xf] %vm191, %v1351
      %v1636 = vld [vmem:[%s1605 + $0x2c] sm:$0x1]
      %v1637 = vsel %vm1614, %v1352, %v1636
      %1638 = vst [vmem:[%s1605 + $0x2c] sm:$0x1] %v1637
      %v1639 = vld [vmem:[%s1605 + $0x30] sm:$0xf]
      %v1640 = vsel %vm1608, %v1359, %v1639
      %1641 = vst [vmem:[%s1605 + $0x30] sm:$0xf] %v1640
      %1642 = vst.msk [vmem:[%s1605 + $0x34] sm:$0xf] %vm191, %v1368
      %v1643 = vld [vmem:[%s1605 + $0x38] sm:$0x1]
      %v1644 = vsel %vm1614, %v1369, %v1643
      %1645 = vst [vmem:[%s1605 + $0x38] sm:$0x1] %v1644
      %v1646 = vld [vmem:[%s1605 + $0x3c] sm:$0xf]
      %v1647 = vsel %vm1608, %v1376, %v1646
      %1648 = vst [vmem:[%s1605 + $0x3c] sm:$0xf] %v1647
      %1649 = vst.msk [vmem:[%s1605 + $0x40] sm:$0xf] %vm191, %v1385
      %v1650 = vld [vmem:[%s1605 + $0x44] sm:$0x1]
      %v1651 = vsel %vm1614, %v1386, %v1650
      %1652 = vst [vmem:[%s1605 + $0x44] sm:$0x1] %v1651
      %v1653 = vld [vmem:[%s1605 + $0x48] sm:$0xf]
      %v1654 = vsel %vm1608, %v1393, %v1653
      %1655 = vst [vmem:[%s1605 + $0x48] sm:$0xf] %v1654
      %1656 = vst.msk [vmem:[%s1605 + $0x4c] sm:$0xf] %vm191, %v1402
      %v1657 = vld [vmem:[%s1605 + $0x50] sm:$0x1]
      %v1658 = vsel %vm1614, %v1403, %v1657
      %1659 = vst [vmem:[%s1605 + $0x50] sm:$0x1] %v1658
      %v1660 = vld [vmem:[%s1605 + $0x54] sm:$0xf]
      %v1661 = vsel %vm1608, %v1410, %v1660
      %1662 = vst [vmem:[%s1605 + $0x54] sm:$0xf] %v1661
      %1663 = vst.msk [vmem:[%s1605 + $0x58] sm:$0xf] %vm191, %v1419
      %v1664 = vld [vmem:[%s1605 + $0x5c] sm:$0x1]
      %v1665 = vsel %vm1614, %v1420, %v1664
      %1666 = vst [vmem:[%s1605 + $0x5c] sm:$0x1] %v1665
      %v1667 = vld [vmem:[%s1605 + $0x60] sm:$0xf]
      %v1668 = vsel %vm1608, %v1427, %v1667
      %1669 = vst [vmem:[%s1605 + $0x60] sm:$0xf] %v1668
      %1670 = vst.msk [vmem:[%s1605 + $0x64] sm:$0xf] %vm191, %v1436
      %v1671 = vld [vmem:[%s1605 + $0x68] sm:$0x1]
      %v1672 = vsel %vm1614, %v1437, %v1671
      %1673 = vst [vmem:[%s1605 + $0x68] sm:$0x1] %v1672
      %v1674 = vld [vmem:[%s1605 + $0x6c] sm:$0xf]
      %v1675 = vsel %vm1608, %v1444, %v1674
      %1676 = vst [vmem:[%s1605 + $0x6c] sm:$0xf] %v1675
      %1677 = vst.msk [vmem:[%s1605 + $0x70] sm:$0xf] %vm191, %v1453
      %v1678 = vld [vmem:[%s1605 + $0x74] sm:$0x1]
      %v1679 = vsel %vm1614, %v1454, %v1678
      %1680 = vst [vmem:[%s1605 + $0x74] sm:$0x1] %v1679
      %v1681 = vld [vmem:[%s1605 + $0x78] sm:$0xf]
      %v1682 = vsel %vm1608, %v1461, %v1681
      %1683 = vst [vmem:[%s1605 + $0x78] sm:$0xf] %v1682
      %1684 = vst.msk [vmem:[%s1605 + $0x7c] sm:$0xf] %vm191, %v1470
      %v1685 = vld [vmem:[%s1605 + $0x80] sm:$0x1]
      %v1686 = vsel %vm1614, %v1471, %v1685
      %1687 = vst [vmem:[%s1605 + $0x80] sm:$0x1] %v1686
      %v1688 = vld [vmem:[%s1605 + $0x84] sm:$0xf]
      %v1689 = vsel %vm1608, %v1478, %v1688
      %1690 = vst [vmem:[%s1605 + $0x84] sm:$0xf] %v1689
      %1691 = vst.msk [vmem:[%s1605 + $0x88] sm:$0xf] %vm191, %v1487
      %v1692 = vld [vmem:[%s1605 + $0x8c] sm:$0x1]
      %v1693 = vsel %vm1614, %v1488, %v1692
      %1694 = vst [vmem:[%s1605 + $0x8c] sm:$0x1] %v1693
      %v1695 = vld [vmem:[%s1605 + $0x90] sm:$0xf]
      %v1696 = vsel %vm1608, %v1495, %v1695
      %1697 = vst [vmem:[%s1605 + $0x90] sm:$0xf] %v1696
      %1698 = vst.msk [vmem:[%s1605 + $0x94] sm:$0xf] %vm191, %v1504
      %v1699 = vld [vmem:[%s1605 + $0x98] sm:$0x1]
      %v1700 = vsel %vm1614, %v1505, %v1699
      %1701 = vst [vmem:[%s1605 + $0x98] sm:$0x1] %v1700
      %v1702 = vld [vmem:[%s1605 + $0x9c] sm:$0xf]
      %v1703 = vsel %vm1608, %v1512, %v1702
      %1704 = vst [vmem:[%s1605 + $0x9c] sm:$0xf] %v1703
      %1705 = vst.msk [vmem:[%s1605 + $0xa0] sm:$0xf] %vm191, %v1521
      %v1706 = vld [vmem:[%s1605 + $0xa4] sm:$0x1]
      %v1707 = vsel %vm1614, %v1522, %v1706
      %1708 = vst [vmem:[%s1605 + $0xa4] sm:$0x1] %v1707
      %v1709 = vld [vmem:[%s1605 + $0xa8] sm:$0xf]
      %v1710 = vsel %vm1608, %v1529, %v1709
      %1711 = vst [vmem:[%s1605 + $0xa8] sm:$0xf] %v1710
      %1712 = vst.msk [vmem:[%s1605 + $0xac] sm:$0xf] %vm191, %v1538
      %v1713 = vld [vmem:[%s1605 + $0xb0] sm:$0x1]
      %v1714 = vsel %vm1614, %v1539, %v1713
      %1715 = vst [vmem:[%s1605 + $0xb0] sm:$0x1] %v1714
      %v1716 = vld [vmem:[%s1605 + $0xb4] sm:$0xf]
      %v1717 = vsel %vm1608, %v1546, %v1716
      %1718 = vst [vmem:[%s1605 + $0xb4] sm:$0xf] %v1717
      %1719 = vst.msk [vmem:[%s1605 + $0xb8] sm:$0xf] %vm191, %v1555
      %v1720 = vld [vmem:[%s1605 + $0xbc] sm:$0x1]
      %v1721 = vsel %vm1614, %v1556, %v1720
      %1722 = vst [vmem:[%s1605 + $0xbc] sm:$0x1] %v1721
      %v1723 = vld [vmem:[%s1605] sm:$0x2]
      %v1724 = vld [vmem:[%s1605 + $0xc] sm:$0x2]
      %v1725 = vld [vmem:[%s1605 + $0x18] sm:$0x2]
      %v1726 = vld [vmem:[%s1605 + $0x24] sm:$0x2]
      %v1727 = vld [vmem:[%s1605 + $0x30] sm:$0x2]
      %v1728 = vld [vmem:[%s1605 + $0x3c] sm:$0x2]
      %v1729 = vld [vmem:[%s1605 + $0x48] sm:$0x2]
      %v1730 = vld [vmem:[%s1605 + $0x54] sm:$0x2]
      %v1731 = vld [vmem:[%s1605 + $0x60] sm:$0x2]
      %v1732 = vld [vmem:[%s1605 + $0x6c] sm:$0x2]
      %v1733 = vld [vmem:[%s1605 + $0x78] sm:$0x2]
      %v1734 = vld [vmem:[%s1605 + $0x84] sm:$0x2]
      %v1735 = vld [vmem:[%s1605 + $0x90] sm:$0x2]
      %v1736 = vld [vmem:[%s1605 + $0x9c] sm:$0x2]
      %v1737 = vld [vmem:[%s1605 + $0xa8] sm:$0x2]
      %v1738 = vld [vmem:[%s1605 + $0xb4] sm:$0x2]
      %v1755 = vrot.slane %v1723, 5
      %v1756 = vrot.slane %v1755, 4
      %v1757 = vrot.slane %v1724, 5
      %v1758 = vrot.slane %v1757, 4
      %v1759 = vrot.slane %v1725, 5
      %v1760 = vrot.slane %v1759, 4
      %v1761 = vrot.slane %v1726, 5
      %v1762 = vrot.slane %v1761, 4
      %v1763 = vrot.slane %v1727, 5
      %v1764 = vrot.slane %v1763, 4
      %v1765 = vrot.slane %v1728, 5
      %v1766 = vrot.slane %v1765, 4
      %v1767 = vrot.slane %v1729, 5
      %v1768 = vrot.slane %v1767, 4
      %v1769 = vrot.slane %v1730, 5
      %v1770 = vrot.slane %v1769, 4
      %v1771 = vrot.slane %v1731, 5
      %v1772 = vrot.slane %v1771, 4
      %v1773 = vrot.slane %v1732, 5
      %v1774 = vrot.slane %v1773, 4
      %v1775 = vrot.slane %v1733, 5
      %v1776 = vrot.slane %v1775, 4
      %v1777 = vrot.slane %v1734, 5
      %v1778 = vrot.slane %v1777, 4
      %v1779 = vrot.slane %v1735, 5
      %v1780 = vrot.slane %v1779, 4
      %v1781 = vrot.slane %v1736, 5
      %v1782 = vrot.slane %v1781, 4
      %v1783 = vrot.slane %v1737, 5
      %v1784 = vrot.slane %v1783, 4
      %v1785 = vrot.slane %v1738, 5
      %v1786 = vrot.slane %v1785, 4
      %v1803 = vld [vmem:[%s1605] sm:$0x1]
      %v1804 = vsel %vm1614, %v1756, %v1803
      %1805 = vst [vmem:[%s1605] sm:$0x1] %v1804
      %v1806 = vld [vmem:[%s1605 + $0xc] sm:$0x1]
      %v1807 = vsel %vm1614, %v1758, %v1806
      %1808 = vst [vmem:[%s1605 + $0xc] sm:$0x1] %v1807
      %v1809 = vld [vmem:[%s1605 + $0x18] sm:$0x1]
      %v1810 = vsel %vm1614, %v1760, %v1809
      %1811 = vst [vmem:[%s1605 + $0x18] sm:$0x1] %v1810
      %v1812 = vld [vmem:[%s1605 + $0x24] sm:$0x1]
      %v1813 = vsel %vm1614, %v1762, %v1812
      %1814 = vst [vmem:[%s1605 + $0x24] sm:$0x1] %v1813
      %v1815 = vld [vmem:[%s1605 + $0x30] sm:$0x1]
      %v1816 = vsel %vm1614, %v1764, %v1815
      %1817 = vst [vmem:[%s1605 + $0x30] sm:$0x1] %v1816
      %v1818 = vld [vmem:[%s1605 + $0x3c] sm:$0x1]
      %v1819 = vsel %vm1614, %v1766, %v1818
      %1820 = vst [vmem:[%s1605 + $0x3c] sm:$0x1] %v1819
      %v1821 = vld [vmem:[%s1605 + $0x48] sm:$0x1]
      %v1822 = vsel %vm1614, %v1768, %v1821
      %1823 = vst [vmem:[%s1605 + $0x48] sm:$0x1] %v1822
      %v1824 = vld [vmem:[%s1605 + $0x54] sm:$0x1]
      %v1825 = vsel %vm1614, %v1770, %v1824
      %1826 = vst [vmem:[%s1605 + $0x54] sm:$0x1] %v1825
      %v1827 = vld [vmem:[%s1605 + $0x60] sm:$0x1]
      %v1828 = vsel %vm1614, %v1772, %v1827
      %1829 = vst [vmem:[%s1605 + $0x60] sm:$0x1] %v1828
      %v1830 = vld [vmem:[%s1605 + $0x6c] sm:$0x1]
      %v1831 = vsel %vm1614, %v1774, %v1830
      %1832 = vst [vmem:[%s1605 + $0x6c] sm:$0x1] %v1831
      %v1833 = vld [vmem:[%s1605 + $0x78] sm:$0x1]
      %v1834 = vsel %vm1614, %v1776, %v1833
      %1835 = vst [vmem:[%s1605 + $0x78] sm:$0x1] %v1834
      %v1836 = vld [vmem:[%s1605 + $0x84] sm:$0x1]
      %v1837 = vsel %vm1614, %v1778, %v1836
      %1838 = vst [vmem:[%s1605 + $0x84] sm:$0x1] %v1837
      %v1839 = vld [vmem:[%s1605 + $0x90] sm:$0x1]
      %v1840 = vsel %vm1614, %v1780, %v1839
      %1841 = vst [vmem:[%s1605 + $0x90] sm:$0x1] %v1840
      %v1842 = vld [vmem:[%s1605 + $0x9c] sm:$0x1]
      %v1843 = vsel %vm1614, %v1782, %v1842
      %1844 = vst [vmem:[%s1605 + $0x9c] sm:$0x1] %v1843
      %v1845 = vld [vmem:[%s1605 + $0xa8] sm:$0x1]
      %v1846 = vsel %vm1614, %v1784, %v1845
      %1847 = vst [vmem:[%s1605 + $0xa8] sm:$0x1] %v1846
      %v1848 = vld [vmem:[%s1605 + $0xb4] sm:$0x1]
      %v1849 = vsel %vm1614, %v1786, %v1848
      %1850 = vst [vmem:[%s1605 + $0xb4] sm:$0x1] %v1849
      %v1851 = vld [vmem:[%s1605 + $0x4] sm:$0x8]
      %v1852 = vld [vmem:[%s1605 + $0x10] sm:$0x8]
      %v1853 = vld [vmem:[%s1605 + $0x1c] sm:$0x8]
      %v1854 = vld [vmem:[%s1605 + $0x28] sm:$0x8]
      %v1855 = vld [vmem:[%s1605 + $0x34] sm:$0x8]
      %v1856 = vld [vmem:[%s1605 + $0x40] sm:$0x8]
      %v1857 = vld [vmem:[%s1605 + $0x4c] sm:$0x8]
      %v1858 = vld [vmem:[%s1605 + $0x58] sm:$0x8]
      %v1859 = vld [vmem:[%s1605 + $0x64] sm:$0x8]
      %v1860 = vld [vmem:[%s1605 + $0x70] sm:$0x8]
      %v1861 = vld [vmem:[%s1605 + $0x7c] sm:$0x8]
      %v1862 = vld [vmem:[%s1605 + $0x88] sm:$0x8]
      %v1863 = vld [vmem:[%s1605 + $0x94] sm:$0x8]
      %v1864 = vld [vmem:[%s1605 + $0xa0] sm:$0x8]
      %v1865 = vld [vmem:[%s1605 + $0xac] sm:$0x8]
      %v1866 = vld [vmem:[%s1605 + $0xb8] sm:$0x8]
      %v1883 = vrot.slane %v1851, 7
      %v1884 = vrot.slane %v1883, 4
      %v1885 = vrot.slane %v1852, 7
      %v1886 = vrot.slane %v1885, 4
      %v1887 = vrot.slane %v1853, 7
      %v1888 = vrot.slane %v1887, 4
      %v1889 = vrot.slane %v1854, 7
      %v1890 = vrot.slane %v1889, 4
      %v1891 = vrot.slane %v1855, 7
      %v1892 = vrot.slane %v1891, 4
      %v1893 = vrot.slane %v1856, 7
      %v1894 = vrot.slane %v1893, 4
      %v1895 = vrot.slane %v1857, 7
      %v1896 = vrot.slane %v1895, 4
      %v1897 = vrot.slane %v1858, 7
      %v1898 = vrot.slane %v1897, 4
      %v1899 = vrot.slane %v1859, 7
      %v1900 = vrot.slane %v1899, 4
      %v1901 = vrot.slane %v1860, 7
      %v1902 = vrot.slane %v1901, 4
      %v1903 = vrot.slane %v1861, 7
      %v1904 = vrot.slane %v1903, 4
      %v1905 = vrot.slane %v1862, 7
      %v1906 = vrot.slane %v1905, 4
      %v1907 = vrot.slane %v1863, 7
      %v1908 = vrot.slane %v1907, 4
      %v1909 = vrot.slane %v1864, 7
      %v1910 = vrot.slane %v1909, 4
      %v1911 = vrot.slane %v1865, 7
      %v1912 = vrot.slane %v1911, 4
      %v1913 = vrot.slane %v1866, 7
      %v1914 = vrot.slane %v1913, 4
      %vm1931 = vmand %vm1613, %vm1607
      %v1932 = vld [vmem:[%s1605 + $0x8] sm:$0x1]
      %v1933 = vsel %vm1931, %v1884, %v1932
      %1934 = vst [vmem:[%s1605 + $0x8] sm:$0x1] %v1933
      %v1935 = vld [vmem:[%s1605 + $0x14] sm:$0x1]
      %v1936 = vsel %vm1931, %v1886, %v1935
      %1937 = vst [vmem:[%s1605 + $0x14] sm:$0x1] %v1936
      %v1938 = vld [vmem:[%s1605 + $0x20] sm:$0x1]
      %v1939 = vsel %vm1931, %v1888, %v1938
      %1940 = vst [vmem:[%s1605 + $0x20] sm:$0x1] %v1939
      %v1941 = vld [vmem:[%s1605 + $0x2c] sm:$0x1]
      %v1942 = vsel %vm1931, %v1890, %v1941
      %1943 = vst [vmem:[%s1605 + $0x2c] sm:$0x1] %v1942
      %v1944 = vld [vmem:[%s1605 + $0x38] sm:$0x1]
      %v1945 = vsel %vm1931, %v1892, %v1944
      %1946 = vst [vmem:[%s1605 + $0x38] sm:$0x1] %v1945
      %v1947 = vld [vmem:[%s1605 + $0x44] sm:$0x1]
      %v1948 = vsel %vm1931, %v1894, %v1947
      %1949 = vst [vmem:[%s1605 + $0x44] sm:$0x1] %v1948
      %v1950 = vld [vmem:[%s1605 + $0x50] sm:$0x1]
      %v1951 = vsel %vm1931, %v1896, %v1950
      %1952 = vst [vmem:[%s1605 + $0x50] sm:$0x1] %v1951
      %v1953 = vld [vmem:[%s1605 + $0x5c] sm:$0x1]
      %v1954 = vsel %vm1931, %v1898, %v1953
      %1955 = vst [vmem:[%s1605 + $0x5c] sm:$0x1] %v1954
      %v1956 = vld [vmem:[%s1605 + $0x68] sm:$0x1]
      %v1957 = vsel %vm1931, %v1900, %v1956
      %1958 = vst [vmem:[%s1605 + $0x68] sm:$0x1] %v1957
      %v1959 = vld [vmem:[%s1605 + $0x74] sm:$0x1]
      %v1960 = vsel %vm1931, %v1902, %v1959
      %1961 = vst [vmem:[%s1605 + $0x74] sm:$0x1] %v1960
      %v1962 = vld [vmem:[%s1605 + $0x80] sm:$0x1]
      %v1963 = vsel %vm1931, %v1904, %v1962
      %1964 = vst [vmem:[%s1605 + $0x80] sm:$0x1] %v1963
      %v1965 = vld [vmem:[%s1605 + $0x8c] sm:$0x1]
      %v1966 = vsel %vm1931, %v1906, %v1965
      %1967 = vst [vmem:[%s1605 + $0x8c] sm:$0x1] %v1966
      %v1968 = vld [vmem:[%s1605 + $0x98] sm:$0x1]
      %v1969 = vsel %vm1931, %v1908, %v1968
      %1970 = vst [vmem:[%s1605 + $0x98] sm:$0x1] %v1969
      %v1971 = vld [vmem:[%s1605 + $0xa4] sm:$0x1]
      %v1972 = vsel %vm1931, %v1910, %v1971
      %1973 = vst [vmem:[%s1605 + $0xa4] sm:$0x1] %v1972
      %v1974 = vld [vmem:[%s1605 + $0xb0] sm:$0x1]
      %v1975 = vsel %vm1931, %v1912, %v1974
      %1976 = vst [vmem:[%s1605 + $0xb0] sm:$0x1] %v1975
      %v1977 = vld [vmem:[%s1605 + $0xbc] sm:$0x1]
      %v1978 = vsel %vm1931, %v1914, %v1977
      %1979 = vst [vmem:[%s1605 + $0xbc] sm:$0x1] %v1978
      %s1980 = scalar_lea.vmem [#allocation2], 24
      %v1981 = vld [vmem:[%s1980] sm:$0xf]
      %v1982 = vld [vmem:[%s1980 + $0x4] sm:$0xf]
      %v1983 = vld [vmem:[%s1980 + $0x8] sm:$0xf]
      %1984 = vst.msk [vmem:[#allocation2] sm:$0xf] %vm191, %v1981
      %1985 = vst.msk [vmem:[#allocation2 + $0x4] sm:$0xf] %vm191, %v1982
      %1986 = vst.msk [vmem:[#allocation2 + $0x8] sm:$0xf] %vm191, %v1983
      %s1987 = scalar_lea.vmem [#allocation2], 180
      %v1988 = vld [vmem:[%s1987] sm:$0xf]
      %v1989 = vld [vmem:[%s1987 + $0x4] sm:$0xf]
      %v1990 = vld [vmem:[%s1987 + $0x8] sm:$0xf]
      %s1991 = scalar_lea.vmem [#allocation2], 204
      %1992 = vst.msk [vmem:[%s1991] sm:$0xf] %vm191, %v1988
      %1993 = vst.msk [vmem:[%s1991 + $0x4] sm:$0xf] %vm191, %v1989
      %1994 = vst.msk [vmem:[%s1991 + $0x8] sm:$0xf] %vm191, %v1990
      %v1995 = vld [vmem:[#allocation2] sm:$0xf]
      %v1996 = vld [vmem:[#allocation2 + $0x4] sm:$0xf]
      %v1997 = vld [vmem:[#allocation2 + $0x8] sm:$0xf]
      %v1998 = vld [vmem:[#allocation2 + $0xc] sm:$0xf]
      %v1999 = vld [vmem:[#allocation2 + $0x10] sm:$0xf]
      %v2000 = vld [vmem:[#allocation2 + $0x14] sm:$0xf]
      %v2001 = vld [vmem:[#allocation2 + $0x18] sm:$0xf]
      %v2002 = vld [vmem:[#allocation2 + $0x1c] sm:$0xf]
      %v2003 = vld [vmem:[#allocation2 + $0x20] sm:$0xf]
      %v2004 = vld [vmem:[#allocation2 + $0x24] sm:$0xf]
      %v2005 = vld [vmem:[#allocation2 + $0x28] sm:$0xf]
      %v2006 = vld [vmem:[#allocation2 + $0x2c] sm:$0xf]
      %v2007 = vld [vmem:[#allocation2 + $0x30] sm:$0xf]
      %v2008 = vld [vmem:[#allocation2 + $0x34] sm:$0xf]
      %v2009 = vld [vmem:[#allocation2 + $0x38] sm:$0xf]
      %v2010 = vld [vmem:[#allocation2 + $0x3c] sm:$0xf]
      %v2011 = vld [vmem:[#allocation2 + $0x40] sm:$0xf]
      %v2012 = vld [vmem:[#allocation2 + $0x44] sm:$0xf]
      %v2013 = vld [vmem:[#allocation2 + $0x48] sm:$0xf]
      %v2014 = vld [vmem:[#allocation2 + $0x4c] sm:$0xf]
      %v2015 = vld [vmem:[#allocation2 + $0x50] sm:$0xf]
      %v2016 = vld [vmem:[#allocation2 + $0x54] sm:$0xf]
      %v2017 = vld [vmem:[#allocation2 + $0x58] sm:$0xf]
      %v2018 = vld [vmem:[#allocation2 + $0x5c] sm:$0xf]
      %v2019 = vld [vmem:[#allocation2 + $0x60] sm:$0xf]
      %v2020 = vld [vmem:[#allocation2 + $0x64] sm:$0xf]
      %v2021 = vld [vmem:[#allocation2 + $0x68] sm:$0xf]
      %v2022 = vld [vmem:[#allocation2 + $0x6c] sm:$0xf]
      %v2023 = vld [vmem:[#allocation2 + $0x70] sm:$0xf]
      %v2024 = vld [vmem:[#allocation2 + $0x74] sm:$0xf]
      %v2025 = vld [vmem:[#allocation2 + $0x78] sm:$0xf]
      %v2026 = vld [vmem:[#allocation2 + $0x7c] sm:$0xf]
      %v2027 = vld [vmem:[#allocation2 + $0x80] sm:$0xf]
      %v2028 = vld [vmem:[#allocation2 + $0x84] sm:$0xf]
      %v2029 = vld [vmem:[#allocation2 + $0x88] sm:$0xf]
      %v2030 = vld [vmem:[#allocation2 + $0x8c] sm:$0xf]
      %v2031 = vld [vmem:[#allocation2 + $0x90] sm:$0xf]
      %v2032 = vld [vmem:[#allocation2 + $0x94] sm:$0xf]
      %v2033 = vld [vmem:[#allocation2 + $0x98] sm:$0xf]
      %v2034 = vld [vmem:[#allocation2 + $0x9c] sm:$0xf]
      %v2035 = vld [vmem:[#allocation2 + $0xa0] sm:$0xf]
      %v2036 = vld [vmem:[#allocation2 + $0xa4] sm:$0xf]
      %v2037 = vld [vmem:[#allocation2 + $0xa8] sm:$0xf]
      %v2038 = vld [vmem:[#allocation2 + $0xac] sm:$0xf]
      %v2039 = vld [vmem:[#allocation2 + $0xb0] sm:$0xf]
      %v2040 = vld [vmem:[#allocation2 + $0xb4] sm:$0xf]
      %v2041 = vld [vmem:[#allocation2 + $0xb8] sm:$0xf]
      %v2042 = vld [vmem:[#allocation2 + $0xbc] sm:$0xf]
      %v2043 = vld [vmem:[#allocation2 + $0xc0] sm:$0xf]
      %v2044 = vld [vmem:[#allocation2 + $0xc4] sm:$0xf]
      %v2045 = vld [vmem:[#allocation2 + $0xc8] sm:$0xf]
      %v2046 = vld [vmem:[#allocation2 + $0xcc] sm:$0xf]
      %v2047 = vld [vmem:[#allocation2 + $0xd0] sm:$0xf]
      %v2048 = vld [vmem:[#allocation2 + $0xd4] sm:$0xf]
      %2049 = vst.msk [vmem:[#allocation3] sm:$0xf] %vm191, %v1995
      %2050 = vst.msk [vmem:[#allocation3 + $0x4] sm:$0xf] %vm191, %v1996
      %2051 = vst.msk [vmem:[#allocation3 + $0x8] sm:$0xf] %vm191, %v1997
      %2052 = vst.msk [vmem:[#allocation3 + $0xc] sm:$0xf] %vm191, %v1998
      %2053 = vst.msk [vmem:[#allocation3 + $0x10] sm:$0xf] %vm191, %v1999
      %2054 = vst.msk [vmem:[#allocation3 + $0x14] sm:$0xf] %vm191, %v2000
      %2055 = vst.msk [vmem:[#allocation3 + $0x18] sm:$0xf] %vm191, %v2001
      %2056 = vst.msk [vmem:[#allocation3 + $0x1c] sm:$0xf] %vm191, %v2002
      %2057 = vst.msk [vmem:[#allocation3 + $0x20] sm:$0xf] %vm191, %v2003
      %2058 = vst.msk [vmem:[#allocation3 + $0x24] sm:$0xf] %vm191, %v2004
      %2059 = vst.msk [vmem:[#allocation3 + $0x28] sm:$0xf] %vm191, %v2005
      %2060 = vst.msk [vmem:[#allocation3 + $0x2c] sm:$0xf] %vm191, %v2006
      %2061 = vst.msk [vmem:[#allocation3 + $0x30] sm:$0xf] %vm191, %v2007
      %2062 = vst.msk [vmem:[#allocation3 + $0x34] sm:$0xf] %vm191, %v2008
      %2063 = vst.msk [vmem:[#allocation3 + $0x38] sm:$0xf] %vm191, %v2009
      %2064 = vst.msk [vmem:[#allocation3 + $0x3c] sm:$0xf] %vm191, %v2010
      %2065 = vst.msk [vmem:[#allocation3 + $0x40] sm:$0xf] %vm191, %v2011
      %2066 = vst.msk [vmem:[#allocation3 + $0x44] sm:$0xf] %vm191, %v2012
      %2067 = vst.msk [vmem:[#allocation3 + $0x48] sm:$0xf] %vm191, %v2013
      %2068 = vst.msk [vmem:[#allocation3 + $0x4c] sm:$0xf] %vm191, %v2014
      %2069 = vst.msk [vmem:[#allocation3 + $0x50] sm:$0xf] %vm191, %v2015
      %2070 = vst.msk [vmem:[#allocation3 + $0x54] sm:$0xf] %vm191, %v2016
      %2071 = vst.msk [vmem:[#allocation3 + $0x58] sm:$0xf] %vm191, %v2017
      %2072 = vst.msk [vmem:[#allocation3 + $0x5c] sm:$0xf] %vm191, %v2018
      %2073 = vst.msk [vmem:[#allocation3 + $0x60] sm:$0xf] %vm191, %v2019
      %2074 = vst.msk [vmem:[#allocation3 + $0x64] sm:$0xf] %vm191, %v2020
      %2075 = vst.msk [vmem:[#allocation3 + $0x68] sm:$0xf] %vm191, %v2021
      %2076 = vst.msk [vmem:[#allocation3 + $0x6c] sm:$0xf] %vm191, %v2022
      %2077 = vst.msk [vmem:[#allocation3 + $0x70] sm:$0xf] %vm191, %v2023
      %2078 = vst.msk [vmem:[#allocation3 + $0x74] sm:$0xf] %vm191, %v2024
      %2079 = vst.msk [vmem:[#allocation3 + $0x78] sm:$0xf] %vm191, %v2025
      %2080 = vst.msk [vmem:[#allocation3 + $0x7c] sm:$0xf] %vm191, %v2026
      %2081 = vst.msk [vmem:[#allocation3 + $0x80] sm:$0xf] %vm191, %v2027
      %2082 = vst.msk [vmem:[#allocation3 + $0x84] sm:$0xf] %vm191, %v2028
      %2083 = vst.msk [vmem:[#allocation3 + $0x88] sm:$0xf] %vm191, %v2029
      %2084 = vst.msk [vmem:[#allocation3 + $0x8c] sm:$0xf] %vm191, %v2030
      %2085 = vst.msk [vmem:[#allocation3 + $0x90] sm:$0xf] %vm191, %v2031
      %2086 = vst.msk [vmem:[#allocation3 + $0x94] sm:$0xf] %vm191, %v2032
      %2087 = vst.msk [vmem:[#allocation3 + $0x98] sm:$0xf] %vm191, %v2033
      %2088 = vst.msk [vmem:[#allocation3 + $0x9c] sm:$0xf] %vm191, %v2034
      %2089 = vst.msk [vmem:[#allocation3 + $0xa0] sm:$0xf] %vm191, %v2035
      %2090 = vst.msk [vmem:[#allocation3 + $0xa4] sm:$0xf] %vm191, %v2036
      %2091 = vst.msk [vmem:[#allocation3 + $0xa8] sm:$0xf] %vm191, %v2037
      %2092 = vst.msk [vmem:[#allocation3 + $0xac] sm:$0xf] %vm191, %v2038
      %2093 = vst.msk [vmem:[#allocation3 + $0xb0] sm:$0xf] %vm191, %v2039
      %2094 = vst.msk [vmem:[#allocation3 + $0xb4] sm:$0xf] %vm191, %v2040
      %2095 = vst.msk [vmem:[#allocation3 + $0xb8] sm:$0xf] %vm191, %v2041
      %2096 = vst.msk [vmem:[#allocation3 + $0xbc] sm:$0xf] %vm191, %v2042
      %2097 = vst.msk [vmem:[#allocation3 + $0xc0] sm:$0xf] %vm191, %v2043
      %2098 = vst.msk [vmem:[#allocation3 + $0xc4] sm:$0xf] %vm191, %v2044
      %2099 = vst.msk [vmem:[#allocation3 + $0xc8] sm:$0xf] %vm191, %v2045
      %2100 = vst.msk [vmem:[#allocation3 + $0xcc] sm:$0xf] %vm191, %v2046
      %2101 = vst.msk [vmem:[#allocation3 + $0xd0] sm:$0xf] %vm191, %v2047
      %2102 = vst.msk [vmem:[#allocation3 + $0xd4] sm:$0xf] %vm191, %v2048
      %v2103 = vld [vmem:[#allocation3] sm:$0xf]
      %v2104 = vld [vmem:[#allocation3 + $0x4] sm:$0xf]
      %v2105 = vld [vmem:[#allocation3 + $0x8] sm:$0xf]
      %v2106 = vld [vmem:[#allocation3 + $0xc] sm:$0xf]
      %v2107 = vld [vmem:[#allocation3 + $0x10] sm:$0xf]
      %v2108 = vld [vmem:[#allocation3 + $0x14] sm:$0xf]
      %v2109 = vld [vmem:[#allocation3 + $0x18] sm:$0xf]
      %v2110 = vld [vmem:[#allocation3 + $0x1c] sm:$0xf]
      %v2111 = vld [vmem:[#allocation3 + $0x20] sm:$0xf]
      %v2112 = vld [vmem:[#allocation3 + $0x24] sm:$0xf]
      %v2113 = vld [vmem:[#allocation3 + $0x28] sm:$0xf]
      %v2114 = vld [vmem:[#allocation3 + $0x2c] sm:$0xf]
      %v2115 = vld [vmem:[#allocation3 + $0x30] sm:$0xf]
      %v2116 = vld [vmem:[#allocation3 + $0x34] sm:$0xf]
      %v2117 = vld [vmem:[#allocation3 + $0x38] sm:$0xf]
      %v2118 = vld [vmem:[#allocation3 + $0x3c] sm:$0xf]
      %v2119 = vld [vmem:[#allocation3 + $0x40] sm:$0xf]
      %v2120 = vld [vmem:[#allocation3 + $0x44] sm:$0xf]
      %v2121 = vld [vmem:[#allocation3 + $0x48] sm:$0xf]
      %v2122 = vld [vmem:[#allocation3 + $0x4c] sm:$0xf]
      %v2123 = vld [vmem:[#allocation3 + $0x50] sm:$0xf]
      %v2124 = vld [vmem:[#allocation3 + $0x54] sm:$0xf]
      %v2125 = vld [vmem:[#allocation3 + $0x58] sm:$0xf]
      %v2126 = vld [vmem:[#allocation3 + $0x5c] sm:$0xf]
      %v2127 = vld [vmem:[#allocation3 + $0x60] sm:$0xf]
      %v2128 = vld [vmem:[#allocation3 + $0x64] sm:$0xf]
      %v2129 = vld [vmem:[#allocation3 + $0x68] sm:$0xf]
      %v2130 = vld [vmem:[#allocation3 + $0x6c] sm:$0xf]
      %v2131 = vld [vmem:[#allocation3 + $0x70] sm:$0xf]
      %v2132 = vld [vmem:[#allocation3 + $0x74] sm:$0xf]
      %v2133 = vld [vmem:[#allocation3 + $0x78] sm:$0xf]
      %v2134 = vld [vmem:[#allocation3 + $0x7c] sm:$0xf]
      %v2135 = vld [vmem:[#allocation3 + $0x80] sm:$0xf]
      %v2136 = vld [vmem:[#allocation3 + $0x84] sm:$0xf]
      %v2137 = vld [vmem:[#allocation3 + $0x88] sm:$0xf]
      %v2138 = vld [vmem:[#allocation3 + $0x8c] sm:$0xf]
      %v2139 = vld [vmem:[#allocation3 + $0x90] sm:$0xf]
      %v2140 = vld [vmem:[#allocation3 + $0x94] sm:$0xf]
      %v2141 = vld [vmem:[#allocation3 + $0x98] sm:$0xf]
      %v2142 = vld [vmem:[#allocation3 + $0x9c] sm:$0xf]
      %v2143 = vld [vmem:[#allocation3 + $0xa0] sm:$0xf]
      %v2144 = vld [vmem:[#allocation3 + $0xa4] sm:$0xf]
      %v2145 = vld [vmem:[#allocation3 + $0xa8] sm:$0xf]
      %v2146 = vld [vmem:[#allocation3 + $0xac] sm:$0xf]
      %v2147 = vld [vmem:[#allocation3 + $0xb0] sm:$0xf]
      %v2148 = vld [vmem:[#allocation3 + $0xb4] sm:$0xf]
      %v2149 = vld [vmem:[#allocation3 + $0xb8] sm:$0xf]
      %v2150 = vld [vmem:[#allocation3 + $0xbc] sm:$0xf]
      %v2151 = vld [vmem:[#allocation3 + $0xc0] sm:$0x1]
      %v2152 = vld [vmem:[#allocation3] sm:$0xe]
      %v2153 = vld [vmem:[#allocation3 + $0xc0] sm:$0xf]
      %v2154 = vld [vmem:[#allocation3 + $0xc4] sm:$0xf]
      %v2155 = vld [vmem:[#allocation3 + $0xc8] sm:$0xf]
      %v2156 = vld [vmem:[#allocation3 + $0xcc] sm:$0x1]
      %v2157 = vld [vmem:[#allocation3 + $0xc] sm:$0xe]
      %v2158 = vld [vmem:[#allocation3 + $0xcc] sm:$0xf]
      %v2159 = vld [vmem:[#allocation3 + $0xd0] sm:$0xf]
      %v2160 = vld [vmem:[#allocation3 + $0xd4] sm:$0xf]
      %v2161 = vld [vmem:[#allocation3 + $0xd8] sm:$0x1]
      %v2162 = vld [vmem:[#allocation3 + $0x18] sm:$0xe]
      %v2211 = vunpack.c.l.b16 %v2103
      %v2212 = vunpack.c.l.b16 %v2104
      %v2213 = vunpack.c.l.b16 %v2105
      %v2214 = vunpack.c.l.b16 %v2106
      %v2215 = vunpack.c.l.b16 %v2107
      %v2216 = vunpack.c.l.b16 %v2108
      %v2217 = vunpack.c.l.b16 %v2109
      %v2218 = vunpack.c.l.b16 %v2110
      %v2219 = vunpack.c.l.b16 %v2111
      %v2220 = vunpack.c.l.b16 %v2112
      %v2221 = vunpack.c.l.b16 %v2113
      %v2222 = vunpack.c.l.b16 %v2114
      %v2223 = vunpack.c.l.b16 %v2115
      %v2224 = vunpack.c.l.b16 %v2116
      %v2225 = vunpack.c.l.b16 %v2117
      %v2226 = vunpack.c.l.b16 %v2118
      %v2227 = vunpack.c.l.b16 %v2119
      %v2228 = vunpack.c.l.b16 %v2120
      %v2229 = vunpack.c.l.b16 %v2121
      %v2230 = vunpack.c.l.b16 %v2122
      %v2231 = vunpack.c.l.b16 %v2123
      %v2232 = vunpack.c.l.b16 %v2124
      %v2233 = vunpack.c.l.b16 %v2125
      %v2234 = vunpack.c.l.b16 %v2126
      %v2235 = vunpack.c.l.b16 %v2127
      %v2236 = vunpack.c.l.b16 %v2128
      %v2237 = vunpack.c.l.b16 %v2129
      %v2238 = vunpack.c.l.b16 %v2130
      %v2239 = vunpack.c.l.b16 %v2131
      %v2240 = vunpack.c.l.b16 %v2132
      %v2241 = vunpack.c.l.b16 %v2133
      %v2242 = vunpack.c.l.b16 %v2134
      %v2243 = vunpack.c.l.b16 %v2135
      %v2244 = vunpack.c.l.b16 %v2136
      %v2245 = vunpack.c.l.b16 %v2137
      %v2246 = vunpack.c.l.b16 %v2138
      %v2247 = vunpack.c.l.b16 %v2139
      %v2248 = vunpack.c.l.b16 %v2140
      %v2249 = vunpack.c.l.b16 %v2141
      %v2250 = vunpack.c.l.b16 %v2142
      %v2251 = vunpack.c.l.b16 %v2143
      %v2252 = vunpack.c.l.b16 %v2144
      %v2253 = vunpack.c.l.b16 %v2145
      %v2254 = vunpack.c.l.b16 %v2146
      %v2255 = vunpack.c.l.b16 %v2147
      %v2256 = vunpack.c.l.b16 %v2148
      %v2257 = vunpack.c.l.b16 %v2149
      %v2258 = vunpack.c.l.b16 %v2150
      %v2259 = vpack.c.b16 %v2212, %v2211
      %v2260 = vpack.c.b16 %v2214, %v2213
      %v2261 = vpack.c.b16 %v2216, %v2215
      %v2262 = vpack.c.b16 %v2218, %v2217
      %v2263 = vpack.c.b16 %v2220, %v2219
      %v2264 = vpack.c.b16 %v2222, %v2221
      %v2265 = vpack.c.b16 %v2224, %v2223
      %v2266 = vpack.c.b16 %v2226, %v2225
      %v2267 = vpack.c.b16 %v2228, %v2227
      %v2268 = vpack.c.b16 %v2230, %v2229
      %v2269 = vpack.c.b16 %v2232, %v2231
      %v2270 = vpack.c.b16 %v2234, %v2233
      %v2271 = vpack.c.b16 %v2236, %v2235
      %v2272 = vpack.c.b16 %v2238, %v2237
      %v2273 = vpack.c.b16 %v2240, %v2239
      %v2274 = vpack.c.b16 %v2242, %v2241
      %v2275 = vpack.c.b16 %v2244, %v2243
      %v2276 = vpack.c.b16 %v2246, %v2245
      %v2277 = vpack.c.b16 %v2248, %v2247
      %v2278 = vpack.c.b16 %v2250, %v2249
      %v2279 = vpack.c.b16 %v2252, %v2251
      %v2280 = vpack.c.b16 %v2254, %v2253
      %v2281 = vpack.c.b16 %v2256, %v2255
      %v2282 = vpack.c.b16 %v2258, %v2257
      %v2284 = vunpack.c.l.b16 %v2151
      %v2285 = vpack.c.b16 %v2284, %v2284
      %vm2286 = vsmask.f32 7424
      %v2288 = vshrl.u32 %v2259, 16
      %v2290 = vshll.u32 %v2259, 16
      %v2292 = vrot.slane %v2290, 1
      %v2293 = vor.u32 %v2288, %v2292
      %v2295 = vshll.u32 %v2260, 16
      %v2297 = vrot.slane %v2295, 1
      %v2298 = vsel %vm2286, %v2293, %v2297
      %v2299 = vshrl.u32 %v2260, 16
      %v2301 = vor.u32 %v2299, %v2297
      %v2303 = vshll.u32 %v2261, 16
      %v2305 = vrot.slane %v2303, 1
      %v2306 = vsel %vm2286, %v2301, %v2305
      %v2307 = vshrl.u32 %v2261, 16
      %v2309 = vor.u32 %v2307, %v2305
      %v2311 = vshll.u32 %v2262, 16
      %v2313 = vrot.slane %v2311, 1
      %v2314 = vsel %vm2286, %v2309, %v2313
      %v2315 = vshrl.u32 %v2262, 16
      %v2317 = vor.u32 %v2315, %v2313
      %v2319 = vshll.u32 %v2263, 16
      %v2321 = vrot.slane %v2319, 1
      %v2322 = vsel %vm2286, %v2317, %v2321
      %v2323 = vshrl.u32 %v2263, 16
      %v2325 = vor.u32 %v2323, %v2321
      %v2327 = vshll.u32 %v2264, 16
      %v2329 = vrot.slane %v2327, 1
      %v2330 = vsel %vm2286, %v2325, %v2329
      %v2331 = vshrl.u32 %v2264, 16
      %v2333 = vor.u32 %v2331, %v2329
      %v2335 = vshll.u32 %v2265, 16
      %v2337 = vrot.slane %v2335, 1
      %v2338 = vsel %vm2286, %v2333, %v2337
      %v2339 = vshrl.u32 %v2265, 16
      %v2341 = vor.u32 %v2339, %v2337
      %v2343 = vshll.u32 %v2266, 16
      %v2345 = vrot.slane %v2343, 1
      %v2346 = vsel %vm2286, %v2341, %v2345
      %v2347 = vshrl.u32 %v2266, 16
      %v2349 = vor.u32 %v2347, %v2345
      %v2351 = vshll.u32 %v2267, 16
      %v2353 = vrot.slane %v2351, 1
      %v2354 = vsel %vm2286, %v2349, %v2353
      %v2355 = vshrl.u32 %v2267, 16
      %v2357 = vor.u32 %v2355, %v2353
      %v2359 = vshll.u32 %v2268, 16
      %v2361 = vrot.slane %v2359, 1
      %v2362 = vsel %vm2286, %v2357, %v2361
      %v2363 = vshrl.u32 %v2268, 16
      %v2365 = vor.u32 %v2363, %v2361
      %v2367 = vshll.u32 %v2269, 16
      %v2369 = vrot.slane %v2367, 1
      %v2370 = vsel %vm2286, %v2365, %v2369
      %v2371 = vshrl.u32 %v2269, 16
      %v2373 = vor.u32 %v2371, %v2369
      %v2375 = vshll.u32 %v2270, 16
      %v2377 = vrot.slane %v2375, 1
      %v2378 = vsel %vm2286, %v2373, %v2377
      %v2379 = vshrl.u32 %v2270, 16
      %v2381 = vor.u32 %v2379, %v2377
      %v2383 = vshll.u32 %v2271, 16
      %v2385 = vrot.slane %v2383, 1
      %v2386 = vsel %vm2286, %v2381, %v2385
      %v2387 = vshrl.u32 %v2271, 16
      %v2389 = vor.u32 %v2387, %v2385
      %v2391 = vshll.u32 %v2272, 16
      %v2393 = vrot.slane %v2391, 1
      %v2394 = vsel %vm2286, %v2389, %v2393
      %v2395 = vshrl.u32 %v2272, 16
      %v2397 = vor.u32 %v2395, %v2393
      %v2399 = vshll.u32 %v2273, 16
      %v2401 = vrot.slane %v2399, 1
      %v2402 = vsel %vm2286, %v2397, %v2401
      %v2403 = vshrl.u32 %v2273, 16
      %v2405 = vor.u32 %v2403, %v2401
      %v2407 = vshll.u32 %v2274, 16
      %v2409 = vrot.slane %v2407, 1
      %v2410 = vsel %vm2286, %v2405, %v2409
      %v2411 = vshrl.u32 %v2274, 16
      %v2413 = vor.u32 %v2411, %v2409
      %v2415 = vshll.u32 %v2275, 16
      %v2417 = vrot.slane %v2415, 1
      %v2418 = vsel %vm2286, %v2413, %v2417
      %v2419 = vshrl.u32 %v2275, 16
      %v2421 = vor.u32 %v2419, %v2417
      %v2423 = vshll.u32 %v2276, 16
      %v2425 = vrot.slane %v2423, 1
      %v2426 = vsel %vm2286, %v2421, %v2425
      %v2427 = vshrl.u32 %v2276, 16
      %v2429 = vor.u32 %v2427, %v2425
      %v2431 = vshll.u32 %v2277, 16
      %v2433 = vrot.slane %v2431, 1
      %v2434 = vsel %vm2286, %v2429, %v2433
      %v2435 = vshrl.u32 %v2277, 16
      %v2437 = vor.u32 %v2435, %v2433
      %v2439 = vshll.u32 %v2278, 16
      %v2441 = vrot.slane %v2439, 1
      %v2442 = vsel %vm2286, %v2437, %v2441
      %v2443 = vshrl.u32 %v2278, 16
      %v2445 = vor.u32 %v2443, %v2441
      %v2447 = vshll.u32 %v2279, 16
      %v2449 = vrot.slane %v2447, 1
      %v2450 = vsel %vm2286, %v2445, %v2449
      %v2451 = vshrl.u32 %v2279, 16
      %v2453 = vor.u32 %v2451, %v2449
      %v2455 = vshll.u32 %v2280, 16
      %v2457 = vrot.slane %v2455, 1
      %v2458 = vsel %vm2286, %v2453, %v2457
      %v2459 = vshrl.u32 %v2280, 16
      %v2461 = vor.u32 %v2459, %v2457
      %v2463 = vshll.u32 %v2281, 16
      %v2465 = vrot.slane %v2463, 1
      %v2466 = vsel %vm2286, %v2461, %v2465
      %v2467 = vshrl.u32 %v2281, 16
      %v2469 = vor.u32 %v2467, %v2465
      %v2471 = vshll.u32 %v2282, 16
      %v2473 = vrot.slane %v2471, 1
      %v2474 = vsel %vm2286, %v2469, %v2473
      %v2475 = vshrl.u32 %v2282, 16
      %v2477 = vor.u32 %v2475, %v2473
      %v2479 = vshll.u32 %v2285, 16
      %v2481 = vrot.slane %v2479, 1
      %v2482 = vsel %vm2286, %v2477, %v2481
      %2483 = vrot.lane.b32.xlu0 %v2298, 4
      %v2484 = vpop.permute.xlu0 %2483
      %2485 = vrot.lane.b32.xlu0 %v2306, 4
      %v2486 = vpop.permute.xlu0 %2485
      %2487 = vrot.lane.b32.xlu0 %v2314, 4
      %v2488 = vpop.permute.xlu0 %2487
      %2489 = vrot.lane.b32.xlu0 %v2322, 4
      %v2490 = vpop.permute.xlu0 %2489
      %2491 = vrot.lane.b32.xlu0 %v2330, 4
      %v2492 = vpop.permute.xlu0 %2491
      %2493 = vrot.lane.b32.xlu0 %v2338, 4
      %v2494 = vpop.permute.xlu0 %2493
      %2495 = vrot.lane.b32.xlu0 %v2346, 4
      %v2496 = vpop.permute.xlu0 %2495
      %2497 = vrot.lane.b32.xlu0 %v2354, 4
      %v2498 = vpop.permute.xlu0 %2497
      %2499 = vrot.lane.b32.xlu0 %v2362, 4
      %v2500 = vpop.permute.xlu0 %2499
      %2501 = vrot.lane.b32.xlu0 %v2370, 4
      %v2502 = vpop.permute.xlu0 %2501
      %2503 = vrot.lane.b32.xlu0 %v2378, 4
      %v2504 = vpop.permute.xlu0 %2503
      %2505 = vrot.lane.b32.xlu0 %v2386, 4
      %v2506 = vpop.permute.xlu0 %2505
      %2507 = vrot.lane.b32.xlu0 %v2394, 4
      %v2508 = vpop.permute.xlu0 %2507
      %2509 = vrot.lane.b32.xlu0 %v2402, 4
      %v2510 = vpop.permute.xlu0 %2509
      %2511 = vrot.lane.b32.xlu0 %v2410, 4
      %v2512 = vpop.permute.xlu0 %2511
      %2513 = vrot.lane.b32.xlu0 %v2418, 4
      %v2514 = vpop.permute.xlu0 %2513
      %2515 = vrot.lane.b32.xlu0 %v2426, 4
      %v2516 = vpop.permute.xlu0 %2515
      %2517 = vrot.lane.b32.xlu0 %v2434, 4
      %v2518 = vpop.permute.xlu0 %2517
      %2519 = vrot.lane.b32.xlu0 %v2442, 4
      %v2520 = vpop.permute.xlu0 %2519
      %2521 = vrot.lane.b32.xlu0 %v2450, 4
      %v2522 = vpop.permute.xlu0 %2521
      %2523 = vrot.lane.b32.xlu0 %v2458, 4
      %v2524 = vpop.permute.xlu0 %2523
      %2525 = vrot.lane.b32.xlu0 %v2466, 4
      %v2526 = vpop.permute.xlu0 %2525
      %2527 = vrot.lane.b32.xlu0 %v2474, 4
      %v2528 = vpop.permute.xlu0 %2527
      %2529 = vrot.lane.b32.xlu0 %v2482, 4
      %v2530 = vpop.permute.xlu0 %2529
      %v2532 = vunpack.c.l.b16 %v2152
      %v2533 = vpack.c.b16 %v2212, %v2532
      %vm2534 = vcmask 1046528
      %v2535 = vrot.slane %v2533, 1
      %v2536 = vrot.slane %v2260, 1
      %v2537 = vsel %vm2534, %v2535, %v2536
      %v2538 = vrot.slane %v2261, 1
      %v2539 = vsel %vm2534, %v2536, %v2538
      %v2540 = vrot.slane %v2262, 1
      %v2541 = vsel %vm2534, %v2538, %v2540
      %v2542 = vrot.slane %v2263, 1
      %v2543 = vsel %vm2534, %v2540, %v2542
      %v2544 = vrot.slane %v2264, 1
      %v2545 = vsel %vm2534, %v2542, %v2544
      %v2546 = vrot.slane %v2265, 1
      %v2547 = vsel %vm2534, %v2544, %v2546
      %v2548 = vrot.slane %v2266, 1
      %v2549 = vsel %vm2534, %v2546, %v2548
      %v2550 = vrot.slane %v2267, 1
      %v2551 = vsel %vm2534, %v2548, %v2550
      %v2552 = vrot.slane %v2268, 1
      %v2553 = vsel %vm2534, %v2550, %v2552
      %v2554 = vrot.slane %v2269, 1
      %v2555 = vsel %vm2534, %v2552, %v2554
      %v2556 = vrot.slane %v2270, 1
      %v2557 = vsel %vm2534, %v2554, %v2556
      %v2558 = vrot.slane %v2271, 1
      %v2559 = vsel %vm2534, %v2556, %v2558
      %v2560 = vrot.slane %v2272, 1
      %v2561 = vsel %vm2534, %v2558, %v2560
      %v2562 = vrot.slane %v2273, 1
      %v2563 = vsel %vm2534, %v2560, %v2562
      %v2564 = vrot.slane %v2274, 1
      %v2565 = vsel %vm2534, %v2562, %v2564
      %v2566 = vrot.slane %v2275, 1
      %v2567 = vsel %vm2534, %v2564, %v2566
      %v2568 = vrot.slane %v2276, 1
      %v2569 = vsel %vm2534, %v2566, %v2568
      %v2570 = vrot.slane %v2277, 1
      %v2571 = vsel %vm2534, %v2568, %v2570
      %v2572 = vrot.slane %v2278, 1
      %v2573 = vsel %vm2534, %v2570, %v2572
      %v2574 = vrot.slane %v2279, 1
      %v2575 = vsel %vm2534, %v2572, %v2574
      %v2576 = vrot.slane %v2280, 1
      %v2577 = vsel %vm2534, %v2574, %v2576
      %v2578 = vrot.slane %v2281, 1
      %v2579 = vsel %vm2534, %v2576, %v2578
      %v2580 = vrot.slane %v2282, 1
      %v2581 = vsel %vm2534, %v2578, %v2580
      %v2582 = vrot.slane %v2285, 1
      %v2583 = vsel %vm2534, %v2580, %v2582
      %2584 = vrot.lane.b32.xlu0 %v2537, 8
      %v2585 = vpop.permute.xlu0 %2584
      %2586 = vrot.lane.b32.xlu0 %v2539, 8
      %v2587 = vpop.permute.xlu0 %2586
      %2588 = vrot.lane.b32.xlu0 %v2541, 8
      %v2589 = vpop.permute.xlu0 %2588
      %2590 = vrot.lane.b32.xlu0 %v2543, 8
      %v2591 = vpop.permute.xlu0 %2590
      %2592 = vrot.lane.b32.xlu0 %v2545, 8
      %v2593 = vpop.permute.xlu0 %2592
      %2594 = vrot.lane.b32.xlu0 %v2547, 8
      %v2595 = vpop.permute.xlu0 %2594
      %2596 = vrot.lane.b32.xlu0 %v2549, 8
      %v2597 = vpop.permute.xlu0 %2596
      %2598 = vrot.lane.b32.xlu0 %v2551, 8
      %v2599 = vpop.permute.xlu0 %2598
      %2600 = vrot.lane.b32.xlu0 %v2553, 8
      %v2601 = vpop.permute.xlu0 %2600
      %2602 = vrot.lane.b32.xlu0 %v2555, 8
      %v2603 = vpop.permute.xlu0 %2602
      %2604 = vrot.lane.b32.xlu0 %v2557, 8
      %v2605 = vpop.permute.xlu0 %2604
      %2606 = vrot.lane.b32.xlu0 %v2559, 8
      %v2607 = vpop.permute.xlu0 %2606
      %2608 = vrot.lane.b32.xlu0 %v2561, 8
      %v2609 = vpop.permute.xlu0 %2608
      %2610 = vrot.lane.b32.xlu0 %v2563, 8
      %v2611 = vpop.permute.xlu0 %2610
      %2612 = vrot.lane.b32.xlu0 %v2565, 8
      %v2613 = vpop.permute.xlu0 %2612
      %2614 = vrot.lane.b32.xlu0 %v2567, 8
      %v2615 = vpop.permute.xlu0 %2614
      %2616 = vrot.lane.b32.xlu0 %v2569, 8
      %v2617 = vpop.permute.xlu0 %2616
      %2618 = vrot.lane.b32.xlu0 %v2571, 8
      %v2619 = vpop.permute.xlu0 %2618
      %2620 = vrot.lane.b32.xlu0 %v2573, 8
      %v2621 = vpop.permute.xlu0 %2620
      %2622 = vrot.lane.b32.xlu0 %v2575, 8
      %v2623 = vpop.permute.xlu0 %2622
      %2624 = vrot.lane.b32.xlu0 %v2577, 8
      %v2625 = vpop.permute.xlu0 %2624
      %2626 = vrot.lane.b32.xlu0 %v2579, 8
      %v2627 = vpop.permute.xlu0 %2626
      %2628 = vrot.lane.b32.xlu0 %v2581, 8
      %v2629 = vpop.permute.xlu0 %2628
      %2630 = vrot.lane.b32.xlu0 %v2583, 8
      %v2631 = vpop.permute.xlu0 %2630
      %v2635 = vunpack.c.l.b16 %v2153
      %v2636 = vunpack.c.l.b16 %v2154
      %v2637 = vunpack.c.l.b16 %v2155
      %v2638 = vpack.c.b16 %v2215, %v2214
      %v2639 = vpack.c.b16 %v2217, %v2216
      %v2640 = vpack.c.b16 %v2219, %v2218
      %v2641 = vpack.c.b16 %v2221, %v2220
      %v2642 = vpack.c.b16 %v2223, %v2222
      %v2643 = vpack.c.b16 %v2225, %v2224
      %v2644 = vpack.c.b16 %v2227, %v2226
      %v2645 = vpack.c.b16 %v2229, %v2228
      %v2646 = vpack.c.b16 %v2231, %v2230
      %v2647 = vpack.c.b16 %v2233, %v2232
      %v2648 = vpack.c.b16 %v2235, %v2234
      %v2649 = vpack.c.b16 %v2237, %v2236
      %v2650 = vpack.c.b16 %v2239, %v2238
      %v2651 = vpack.c.b16 %v2241, %v2240
      %v2652 = vpack.c.b16 %v2243, %v2242
      %v2653 = vpack.c.b16 %v2245, %v2244
      %v2654 = vpack.c.b16 %v2247, %v2246
      %v2655 = vpack.c.b16 %v2249, %v2248
      %v2656 = vpack.c.b16 %v2251, %v2250
      %v2657 = vpack.c.b16 %v2253, %v2252
      %v2658 = vpack.c.b16 %v2255, %v2254
      %v2659 = vpack.c.b16 %v2257, %v2256
      %v2660 = vpack.c.b16 %v2635, %v2258
      %v2661 = vpack.c.b16 %v2637, %v2636
      %2662 = vrot.lane.b32.xlu0 %v2638, 12
      %v2663 = vpop.permute.xlu0 %2662
      %2664 = vrot.lane.b32.xlu0 %v2639, 12
      %v2665 = vpop.permute.xlu0 %2664
      %2666 = vrot.lane.b32.xlu0 %v2640, 12
      %v2667 = vpop.permute.xlu0 %2666
      %2668 = vrot.lane.b32.xlu0 %v2641, 12
      %v2669 = vpop.permute.xlu0 %2668
      %2670 = vrot.lane.b32.xlu0 %v2642, 12
      %v2671 = vpop.permute.xlu0 %2670
      %2672 = vrot.lane.b32.xlu0 %v2643, 12
      %v2673 = vpop.permute.xlu0 %2672
      %2674 = vrot.lane.b32.xlu0 %v2644, 12
      %v2675 = vpop.permute.xlu0 %2674
      %2676 = vrot.lane.b32.xlu0 %v2645, 12
      %v2677 = vpop.permute.xlu0 %2676
      %2678 = vrot.lane.b32.xlu0 %v2646, 12
      %v2679 = vpop.permute.xlu0 %2678
      %2680 = vrot.lane.b32.xlu0 %v2647, 12
      %v2681 = vpop.permute.xlu0 %2680
      %2682 = vrot.lane.b32.xlu0 %v2648, 12
      %v2683 = vpop.permute.xlu0 %2682
      %2684 = vrot.lane.b32.xlu0 %v2649, 12
      %v2685 = vpop.permute.xlu0 %2684
      %2686 = vrot.lane.b32.xlu0 %v2650, 12
      %v2687 = vpop.permute.xlu0 %2686
      %2688 = vrot.lane.b32.xlu0 %v2651, 12
      %v2689 = vpop.permute.xlu0 %2688
      %2690 = vrot.lane.b32.xlu0 %v2652, 12
      %v2691 = vpop.permute.xlu0 %2690
      %2692 = vrot.lane.b32.xlu0 %v2653, 12
      %v2693 = vpop.permute.xlu0 %2692
      %2694 = vrot.lane.b32.xlu0 %v2654, 12
      %v2695 = vpop.permute.xlu0 %2694
      %2696 = vrot.lane.b32.xlu0 %v2655, 12
      %v2697 = vpop.permute.xlu0 %2696
      %2698 = vrot.lane.b32.xlu0 %v2656, 12
      %v2699 = vpop.permute.xlu0 %2698
      %2700 = vrot.lane.b32.xlu0 %v2657, 12
      %v2701 = vpop.permute.xlu0 %2700
      %2702 = vrot.lane.b32.xlu0 %v2658, 12
      %v2703 = vpop.permute.xlu0 %2702
      %2704 = vrot.lane.b32.xlu0 %v2659, 12
      %v2705 = vpop.permute.xlu0 %2704
      %2706 = vrot.lane.b32.xlu0 %v2660, 12
      %v2707 = vpop.permute.xlu0 %2706
      %2708 = vrot.lane.b32.xlu0 %v2661, 12
      %v2709 = vpop.permute.xlu0 %2708
      %v2711 = vunpack.c.l.b16 %v2156
      %v2712 = vpack.c.b16 %v2711, %v2711
      %v2714 = vshrl.u32 %v2638, 16
      %v2716 = vshll.u32 %v2638, 16
      %v2718 = vrot.slane %v2716, 1
      %v2719 = vor.u32 %v2714, %v2718
      %v2721 = vshll.u32 %v2639, 16
      %v2723 = vrot.slane %v2721, 1
      %v2724 = vsel %vm2286, %v2719, %v2723
      %v2725 = vshrl.u32 %v2639, 16
      %v2727 = vor.u32 %v2725, %v2723
      %v2729 = vshll.u32 %v2640, 16
      %v2731 = vrot.slane %v2729, 1
      %v2732 = vsel %vm2286, %v2727, %v2731
      %v2733 = vshrl.u32 %v2640, 16
      %v2735 = vor.u32 %v2733, %v2731
      %v2737 = vshll.u32 %v2641, 16
      %v2739 = vrot.slane %v2737, 1
      %v2740 = vsel %vm2286, %v2735, %v2739
      %v2741 = vshrl.u32 %v2641, 16
      %v2743 = vor.u32 %v2741, %v2739
      %v2745 = vshll.u32 %v2642, 16
      %v2747 = vrot.slane %v2745, 1
      %v2748 = vsel %vm2286, %v2743, %v2747
      %v2749 = vshrl.u32 %v2642, 16
      %v2751 = vor.u32 %v2749, %v2747
      %v2753 = vshll.u32 %v2643, 16
      %v2755 = vrot.slane %v2753, 1
      %v2756 = vsel %vm2286, %v2751, %v2755
      %v2757 = vshrl.u32 %v2643, 16
      %v2759 = vor.u32 %v2757, %v2755
      %v2761 = vshll.u32 %v2644, 16
      %v2763 = vrot.slane %v2761, 1
      %v2764 = vsel %vm2286, %v2759, %v2763
      %v2765 = vshrl.u32 %v2644, 16
      %v2767 = vor.u32 %v2765, %v2763
      %v2769 = vshll.u32 %v2645, 16
      %v2771 = vrot.slane %v2769, 1
      %v2772 = vsel %vm2286, %v2767, %v2771
      %v2773 = vshrl.u32 %v2645, 16
      %v2775 = vor.u32 %v2773, %v2771
      %v2777 = vshll.u32 %v2646, 16
      %v2779 = vrot.slane %v2777, 1
      %v2780 = vsel %vm2286, %v2775, %v2779
      %v2781 = vshrl.u32 %v2646, 16
      %v2783 = vor.u32 %v2781, %v2779
      %v2785 = vshll.u32 %v2647, 16
      %v2787 = vrot.slane %v2785, 1
      %v2788 = vsel %vm2286, %v2783, %v2787
      %v2789 = vshrl.u32 %v2647, 16
      %v2791 = vor.u32 %v2789, %v2787
      %v2793 = vshll.u32 %v2648, 16
      %v2795 = vrot.slane %v2793, 1
      %v2796 = vsel %vm2286, %v2791, %v2795
      %v2797 = vshrl.u32 %v2648, 16
      %v2799 = vor.u32 %v2797, %v2795
      %v2801 = vshll.u32 %v2649, 16
      %v2803 = vrot.slane %v2801, 1
      %v2804 = vsel %vm2286, %v2799, %v2803
      %v2805 = vshrl.u32 %v2649, 16
      %v2807 = vor.u32 %v2805, %v2803
      %v2809 = vshll.u32 %v2650, 16
      %v2811 = vrot.slane %v2809, 1
      %v2812 = vsel %vm2286, %v2807, %v2811
      %v2813 = vshrl.u32 %v2650, 16
      %v2815 = vor.u32 %v2813, %v2811
      %v2817 = vshll.u32 %v2651, 16
      %v2819 = vrot.slane %v2817, 1
      %v2820 = vsel %vm2286, %v2815, %v2819
      %v2821 = vshrl.u32 %v2651, 16
      %v2823 = vor.u32 %v2821, %v2819
      %v2825 = vshll.u32 %v2652, 16
      %v2827 = vrot.slane %v2825, 1
      %v2828 = vsel %vm2286, %v2823, %v2827
      %v2829 = vshrl.u32 %v2652, 16
      %v2831 = vor.u32 %v2829, %v2827
      %v2833 = vshll.u32 %v2653, 16
      %v2835 = vrot.slane %v2833, 1
      %v2836 = vsel %vm2286, %v2831, %v2835
      %v2837 = vshrl.u32 %v2653, 16
      %v2839 = vor.u32 %v2837, %v2835
      %v2841 = vshll.u32 %v2654, 16
      %v2843 = vrot.slane %v2841, 1
      %v2844 = vsel %vm2286, %v2839, %v2843
      %v2845 = vshrl.u32 %v2654, 16
      %v2847 = vor.u32 %v2845, %v2843
      %v2849 = vshll.u32 %v2655, 16
      %v2851 = vrot.slane %v2849, 1
      %v2852 = vsel %vm2286, %v2847, %v2851
      %v2853 = vshrl.u32 %v2655, 16
      %v2855 = vor.u32 %v2853, %v2851
      %v2857 = vshll.u32 %v2656, 16
      %v2859 = vrot.slane %v2857, 1
      %v2860 = vsel %vm2286, %v2855, %v2859
      %v2861 = vshrl.u32 %v2656, 16
      %v2863 = vor.u32 %v2861, %v2859
      %v2865 = vshll.u32 %v2657, 16
      %v2867 = vrot.slane %v2865, 1
      %v2868 = vsel %vm2286, %v2863, %v2867
      %v2869 = vshrl.u32 %v2657, 16
      %v2871 = vor.u32 %v2869, %v2867
      %v2873 = vshll.u32 %v2658, 16
      %v2875 = vrot.slane %v2873, 1
      %v2876 = vsel %vm2286, %v2871, %v2875
      %v2877 = vshrl.u32 %v2658, 16
      %v2879 = vor.u32 %v2877, %v2875
      %v2881 = vshll.u32 %v2659, 16
      %v2883 = vrot.slane %v2881, 1
      %v2884 = vsel %vm2286, %v2879, %v2883
      %v2885 = vshrl.u32 %v2659, 16
      %v2887 = vor.u32 %v2885, %v2883
      %v2889 = vshll.u32 %v2660, 16
      %v2891 = vrot.slane %v2889, 1
      %v2892 = vsel %vm2286, %v2887, %v2891
      %v2893 = vshrl.u32 %v2660, 16
      %v2895 = vor.u32 %v2893, %v2891
      %v2897 = vshll.u32 %v2661, 16
      %v2899 = vrot.slane %v2897, 1
      %v2900 = vsel %vm2286, %v2895, %v2899
      %v2901 = vshrl.u32 %v2661, 16
      %v2903 = vor.u32 %v2901, %v2899
      %v2905 = vshll.u32 %v2712, 16
      %v2907 = vrot.slane %v2905, 1
      %v2908 = vsel %vm2286, %v2903, %v2907
      %2909 = vrot.lane.b32.xlu0 %v2724, 16
      %v2910 = vpop.permute.xlu0 %2909
      %2911 = vrot.lane.b32.xlu0 %v2732, 16
      %v2912 = vpop.permute.xlu0 %2911
      %2913 = vrot.lane.b32.xlu0 %v2740, 16
      %v2914 = vpop.permute.xlu0 %2913
      %2915 = vrot.lane.b32.xlu0 %v2748, 16
      %v2916 = vpop.permute.xlu0 %2915
      %2917 = vrot.lane.b32.xlu0 %v2756, 16
      %v2918 = vpop.permute.xlu0 %2917
      %2919 = vrot.lane.b32.xlu0 %v2764, 16
      %v2920 = vpop.permute.xlu0 %2919
      %2921 = vrot.lane.b32.xlu0 %v2772, 16
      %v2922 = vpop.permute.xlu0 %2921
      %2923 = vrot.lane.b32.xlu0 %v2780, 16
      %v2924 = vpop.permute.xlu0 %2923
      %2925 = vrot.lane.b32.xlu0 %v2788, 16
      %v2926 = vpop.permute.xlu0 %2925
      %2927 = vrot.lane.b32.xlu0 %v2796, 16
      %v2928 = vpop.permute.xlu0 %2927
      %2929 = vrot.lane.b32.xlu0 %v2804, 16
      %v2930 = vpop.permute.xlu0 %2929
      %2931 = vrot.lane.b32.xlu0 %v2812, 16
      %v2932 = vpop.permute.xlu0 %2931
      %2933 = vrot.lane.b32.xlu0 %v2820, 16
      %v2934 = vpop.permute.xlu0 %2933
      %2935 = vrot.lane.b32.xlu0 %v2828, 16
      %v2936 = vpop.permute.xlu0 %2935
      %2937 = vrot.lane.b32.xlu0 %v2836, 16
      %v2938 = vpop.permute.xlu0 %2937
      %2939 = vrot.lane.b32.xlu0 %v2844, 16
      %v2940 = vpop.permute.xlu0 %2939
      %2941 = vrot.lane.b32.xlu0 %v2852, 16
      %v2942 = vpop.permute.xlu0 %2941
      %2943 = vrot.lane.b32.xlu0 %v2860, 16
      %v2944 = vpop.permute.xlu0 %2943
      %2945 = vrot.lane.b32.xlu0 %v2868, 16
      %v2946 = vpop.permute.xlu0 %2945
      %2947 = vrot.lane.b32.xlu0 %v2876, 16
      %v2948 = vpop.permute.xlu0 %2947
      %2949 = vrot.lane.b32.xlu0 %v2884, 16
      %v2950 = vpop.permute.xlu0 %2949
      %2951 = vrot.lane.b32.xlu0 %v2892, 16
      %v2952 = vpop.permute.xlu0 %2951
      %2953 = vrot.lane.b32.xlu0 %v2900, 16
      %v2954 = vpop.permute.xlu0 %2953
      %2955 = vrot.lane.b32.xlu0 %v2908, 16
      %v2956 = vpop.permute.xlu0 %2955
      %v2958 = vunpack.c.l.b16 %v2157
      %v2959 = vpack.c.b16 %v2215, %v2958
      %v2960 = vrot.slane %v2959, 1
      %v2961 = vrot.slane %v2639, 1
      %v2962 = vsel %vm2534, %v2960, %v2961
      %v2963 = vrot.slane %v2640, 1
      %v2964 = vsel %vm2534, %v2961, %v2963
      %v2965 = vrot.slane %v2641, 1
      %v2966 = vsel %vm2534, %v2963, %v2965
      %v2967 = vrot.slane %v2642, 1
      %v2968 = vsel %vm2534, %v2965, %v2967
      %v2969 = vrot.slane %v2643, 1
      %v2970 = vsel %vm2534, %v2967, %v2969
      %v2971 = vrot.slane %v2644, 1
      %v2972 = vsel %vm2534, %v2969, %v2971
      %v2973 = vrot.slane %v2645, 1
      %v2974 = vsel %vm2534, %v2971, %v2973
      %v2975 = vrot.slane %v2646, 1
      %v2976 = vsel %vm2534, %v2973, %v2975
      %v2977 = vrot.slane %v2647, 1
      %v2978 = vsel %vm2534, %v2975, %v2977
      %v2979 = vrot.slane %v2648, 1
      %v2980 = vsel %vm2534, %v2977, %v2979
      %v2981 = vrot.slane %v2649, 1
      %v2982 = vsel %vm2534, %v2979, %v2981
      %v2983 = vrot.slane %v2650, 1
      %v2984 = vsel %vm2534, %v2981, %v2983
      %v2985 = vrot.slane %v2651, 1
      %v2986 = vsel %vm2534, %v2983, %v2985
      %v2987 = vrot.slane %v2652, 1
      %v2988 = vsel %vm2534, %v2985, %v2987
      %v2989 = vrot.slane %v2653, 1
      %v2990 = vsel %vm2534, %v2987, %v2989
      %v2991 = vrot.slane %v2654, 1
      %v2992 = vsel %vm2534, %v2989, %v2991
      %v2993 = vrot.slane %v2655, 1
      %v2994 = vsel %vm2534, %v2991, %v2993
      %v2995 = vrot.slane %v2656, 1
      %v2996 = vsel %vm2534, %v2993, %v2995
      %v2997 = vrot.slane %v2657, 1
      %v2998 = vsel %vm2534, %v2995, %v2997
      %v2999 = vrot.slane %v2658, 1
      %v3000 = vsel %vm2534, %v2997, %v2999
      %v3001 = vrot.slane %v2659, 1
      %v3002 = vsel %vm2534, %v2999, %v3001
      %v3003 = vrot.slane %v2660, 1
      %v3004 = vsel %vm2534, %v3001, %v3003
      %v3005 = vrot.slane %v2661, 1
      %v3006 = vsel %vm2534, %v3003, %v3005
      %v3007 = vrot.slane %v2712, 1
      %v3008 = vsel %vm2534, %v3005, %v3007
      %3009 = vrot.lane.b32.xlu0 %v2962, 20
      %v3010 = vpop.permute.xlu0 %3009
      %3011 = vrot.lane.b32.xlu0 %v2964, 20
      %v3012 = vpop.permute.xlu0 %3011
      %3013 = vrot.lane.b32.xlu0 %v2966, 20
      %v3014 = vpop.permute.xlu0 %3013
      %3015 = vrot.lane.b32.xlu0 %v2968, 20
      %v3016 = vpop.permute.xlu0 %3015
      %3017 = vrot.lane.b32.xlu0 %v2970, 20
      %v3018 = vpop.permute.xlu0 %3017
      %3019 = vrot.lane.b32.xlu0 %v2972, 20
      %v3020 = vpop.permute.xlu0 %3019
      %3021 = vrot.lane.b32.xlu0 %v2974, 20
      %v3022 = vpop.permute.xlu0 %3021
      %3023 = vrot.lane.b32.xlu0 %v2976, 20
      %v3024 = vpop.permute.xlu0 %3023
      %3025 = vrot.lane.b32.xlu0 %v2978, 20
      %v3026 = vpop.permute.xlu0 %3025
      %3027 = vrot.lane.b32.xlu0 %v2980, 20
      %v3028 = vpop.permute.xlu0 %3027
      %3029 = vrot.lane.b32.xlu0 %v2982, 20
      %v3030 = vpop.permute.xlu0 %3029
      %3031 = vrot.lane.b32.xlu0 %v2984, 20
      %v3032 = vpop.permute.xlu0 %3031
      %3033 = vrot.lane.b32.xlu0 %v2986, 20
      %v3034 = vpop.permute.xlu0 %3033
      %3035 = vrot.lane.b32.xlu0 %v2988, 20
      %v3036 = vpop.permute.xlu0 %3035
      %3037 = vrot.lane.b32.xlu0 %v2990, 20
      %v3038 = vpop.permute.xlu0 %3037
      %3039 = vrot.lane.b32.xlu0 %v2992, 20
      %v3040 = vpop.permute.xlu0 %3039
      %3041 = vrot.lane.b32.xlu0 %v2994, 20
      %v3042 = vpop.permute.xlu0 %3041
      %3043 = vrot.lane.b32.xlu0 %v2996, 20
      %v3044 = vpop.permute.xlu0 %3043
      %3045 = vrot.lane.b32.xlu0 %v2998, 20
      %v3046 = vpop.permute.xlu0 %3045
      %3047 = vrot.lane.b32.xlu0 %v3000, 20
      %v3048 = vpop.permute.xlu0 %3047
      %3049 = vrot.lane.b32.xlu0 %v3002, 20
      %v3050 = vpop.permute.xlu0 %3049
      %3051 = vrot.lane.b32.xlu0 %v3004, 20
      %v3052 = vpop.permute.xlu0 %3051
      %3053 = vrot.lane.b32.xlu0 %v3006, 20
      %v3054 = vpop.permute.xlu0 %3053
      %3055 = vrot.lane.b32.xlu0 %v3008, 20
      %v3056 = vpop.permute.xlu0 %3055
      %v3060 = vunpack.c.l.b16 %v2158
      %v3061 = vunpack.c.l.b16 %v2159
      %v3062 = vunpack.c.l.b16 %v2160
      %v3063 = vpack.c.b16 %v2636, %v2635
      %v3064 = vpack.c.b16 %v3060, %v2637
      %v3065 = vpack.c.b16 %v3062, %v3061
      %3066 = vrot.lane.b32.xlu0 %v2262, 24
      %v3067 = vpop.permute.xlu0 %3066
      %3068 = vrot.lane.b32.xlu0 %v2263, 24
      %v3069 = vpop.permute.xlu0 %3068
      %3070 = vrot.lane.b32.xlu0 %v2264, 24
      %v3071 = vpop.permute.xlu0 %3070
      %3072 = vrot.lane.b32.xlu0 %v2265, 24
      %v3073 = vpop.permute.xlu0 %3072
      %3074 = vrot.lane.b32.xlu0 %v2266, 24
      %v3075 = vpop.permute.xlu0 %3074
      %3076 = vrot.lane.b32.xlu0 %v2267, 24
      %v3077 = vpop.permute.xlu0 %3076
      %3078 = vrot.lane.b32.xlu0 %v2268, 24
      %v3079 = vpop.permute.xlu0 %3078
      %3080 = vrot.lane.b32.xlu0 %v2269, 24
      %v3081 = vpop.permute.xlu0 %3080
      %3082 = vrot.lane.b32.xlu0 %v2270, 24
      %v3083 = vpop.permute.xlu0 %3082
      %3084 = vrot.lane.b32.xlu0 %v2271, 24
      %v3085 = vpop.permute.xlu0 %3084
      %3086 = vrot.lane.b32.xlu0 %v2272, 24
      %v3087 = vpop.permute.xlu0 %3086
      %3088 = vrot.lane.b32.xlu0 %v2273, 24
      %v3089 = vpop.permute.xlu0 %3088
      %3090 = vrot.lane.b32.xlu0 %v2274, 24
      %v3091 = vpop.permute.xlu0 %3090
      %3092 = vrot.lane.b32.xlu0 %v2275, 24
      %v3093 = vpop.permute.xlu0 %3092
      %3094 = vrot.lane.b32.xlu0 %v2276, 24
      %v3095 = vpop.permute.xlu0 %3094
      %3096 = vrot.lane.b32.xlu0 %v2277, 24
      %v3097 = vpop.permute.xlu0 %3096
      %3098 = vrot.lane.b32.xlu0 %v2278, 24
      %v3099 = vpop.permute.xlu0 %3098
      %3100 = vrot.lane.b32.xlu0 %v2279, 24
      %v3101 = vpop.permute.xlu0 %3100
      %3102 = vrot.lane.b32.xlu0 %v2280, 24
      %v3103 = vpop.permute.xlu0 %3102
      %3104 = vrot.lane.b32.xlu0 %v2281, 24
      %v3105 = vpop.permute.xlu0 %3104
      %3106 = vrot.lane.b32.xlu0 %v2282, 24
      %v3107 = vpop.permute.xlu0 %3106
      %3108 = vrot.lane.b32.xlu0 %v3063, 24
      %v3109 = vpop.permute.xlu0 %3108
      %3110 = vrot.lane.b32.xlu0 %v3064, 24
      %v3111 = vpop.permute.xlu0 %3110
      %3112 = vrot.lane.b32.xlu0 %v3065, 24
      %v3113 = vpop.permute.xlu0 %3112
      %v3115 = vunpack.c.l.b16 %v2161
      %v3116 = vpack.c.b16 %v3115, %v3115
      %v3118 = vshll.u32 %v3063, 16
      %v3120 = vrot.slane %v3118, 1
      %v3121 = vsel %vm2286, %v2477, %v3120
      %v3122 = vshrl.u32 %v3063, 16
      %v3124 = vor.u32 %v3122, %v3120
      %v3126 = vshll.u32 %v3064, 16
      %v3128 = vrot.slane %v3126, 1
      %v3129 = vsel %vm2286, %v3124, %v3128
      %v3130 = vshrl.u32 %v3064, 16
      %v3132 = vor.u32 %v3130, %v3128
      %v3134 = vshll.u32 %v3065, 16
      %v3136 = vrot.slane %v3134, 1
      %v3137 = vsel %vm2286, %v3132, %v3136
      %v3138 = vshrl.u32 %v3065, 16
      %v3140 = vor.u32 %v3138, %v3136
      %v3142 = vshll.u32 %v3116, 16
      %v3144 = vrot.slane %v3142, 1
      %v3145 = vsel %vm2286, %v3140, %v3144
      %3146 = vrot.lane.b32.xlu0 %v2322, 28
      %v3147 = vpop.permute.xlu0 %3146
      %3148 = vrot.lane.b32.xlu0 %v2330, 28
      %v3149 = vpop.permute.xlu0 %3148
      %3150 = vrot.lane.b32.xlu0 %v2338, 28
      %v3151 = vpop.permute.xlu0 %3150
      %3152 = vrot.lane.b32.xlu0 %v2346, 28
      %v3153 = vpop.permute.xlu0 %3152
      %3154 = vrot.lane.b32.xlu0 %v2354, 28
      %v3155 = vpop.permute.xlu0 %3154
      %3156 = vrot.lane.b32.xlu0 %v2362, 28
      %v3157 = vpop.permute.xlu0 %3156
      %3158 = vrot.lane.b32.xlu0 %v2370, 28
      %v3159 = vpop.permute.xlu0 %3158
      %3160 = vrot.lane.b32.xlu0 %v2378, 28
      %v3161 = vpop.permute.xlu0 %3160
      %3162 = vrot.lane.b32.xlu0 %v2386, 28
      %v3163 = vpop.permute.xlu0 %3162
      %3164 = vrot.lane.b32.xlu0 %v2394, 28
      %v3165 = vpop.permute.xlu0 %3164
      %3166 = vrot.lane.b32.xlu0 %v2402, 28
      %v3167 = vpop.permute.xlu0 %3166
      %3168 = vrot.lane.b32.xlu0 %v2410, 28
      %v3169 = vpop.permute.xlu0 %3168
      %3170 = vrot.lane.b32.xlu0 %v2418, 28
      %v3171 = vpop.permute.xlu0 %3170
      %3172 = vrot.lane.b32.xlu0 %v2426, 28
      %v3173 = vpop.permute.xlu0 %3172
      %3174 = vrot.lane.b32.xlu0 %v2434, 28
      %v3175 = vpop.permute.xlu0 %3174
      %3176 = vrot.lane.b32.xlu0 %v2442, 28
      %v3177 = vpop.permute.xlu0 %3176
      %3178 = vrot.lane.b32.xlu0 %v2450, 28
      %v3179 = vpop.permute.xlu0 %3178
      %3180 = vrot.lane.b32.xlu0 %v2458, 28
      %v3181 = vpop.permute.xlu0 %3180
      %3182 = vrot.lane.b32.xlu0 %v2466, 28
      %v3183 = vpop.permute.xlu0 %3182
      %3184 = vrot.lane.b32.xlu0 %v2474, 28
      %v3185 = vpop.permute.xlu0 %3184
      %3186 = vrot.lane.b32.xlu0 %v3121, 28
      %v3187 = vpop.permute.xlu0 %3186
      %3188 = vrot.lane.b32.xlu0 %v3129, 28
      %v3189 = vpop.permute.xlu0 %3188
      %3190 = vrot.lane.b32.xlu0 %v3137, 28
      %v3191 = vpop.permute.xlu0 %3190
      %3192 = vrot.lane.b32.xlu0 %v3145, 28
      %v3193 = vpop.permute.xlu0 %3192
      %v3195 = vunpack.c.l.b16 %v2162
      %v3196 = vpack.c.b16 %v2218, %v3195
      %v3197 = vrot.slane %v3196, 1
      %v3198 = vsel %vm2534, %v3197, %v2542
      %v3199 = vrot.slane %v3063, 1
      %v3200 = vsel %vm2534, %v2580, %v3199
      %v3201 = vrot.slane %v3064, 1
      %v3202 = vsel %vm2534, %v3199, %v3201
      %v3203 = vrot.slane %v3065, 1
      %v3204 = vsel %vm2534, %v3201, %v3203
      %v3205 = vrot.slane %v3116, 1
      %v3206 = vsel %vm2534, %v3203, %v3205
      %3207 = vrot.lane.b32.xlu0 %v3198, 32
      %v3208 = vpop.permute.xlu0 %3207
      %3209 = vrot.lane.b32.xlu0 %v2545, 32
      %v3210 = vpop.permute.xlu0 %3209
      %3211 = vrot.lane.b32.xlu0 %v2547, 32
      %v3212 = vpop.permute.xlu0 %3211
      %3213 = vrot.lane.b32.xlu0 %v2549, 32
      %v3214 = vpop.permute.xlu0 %3213
      %3215 = vrot.lane.b32.xlu0 %v2551, 32
      %v3216 = vpop.permute.xlu0 %3215
      %3217 = vrot.lane.b32.xlu0 %v2553, 32
      %v3218 = vpop.permute.xlu0 %3217
      %3219 = vrot.lane.b32.xlu0 %v2555, 32
      %v3220 = vpop.permute.xlu0 %3219
      %3221 = vrot.lane.b32.xlu0 %v2557, 32
      %v3222 = vpop.permute.xlu0 %3221
      %3223 = vrot.lane.b32.xlu0 %v2559, 32
      %v3224 = vpop.permute.xlu0 %3223
      %3225 = vrot.lane.b32.xlu0 %v2561, 32
      %v3226 = vpop.permute.xlu0 %3225
      %3227 = vrot.lane.b32.xlu0 %v2563, 32
      %v3228 = vpop.permute.xlu0 %3227
      %3229 = vrot.lane.b32.xlu0 %v2565, 32
      %v3230 = vpop.permute.xlu0 %3229
      %3231 = vrot.lane.b32.xlu0 %v2567, 32
      %v3232 = vpop.permute.xlu0 %3231
      %3233 = vrot.lane.b32.xlu0 %v2569, 32
      %v3234 = vpop.permute.xlu0 %3233
      %3235 = vrot.lane.b32.xlu0 %v2571, 32
      %v3236 = vpop.permute.xlu0 %3235
      %3237 = vrot.lane.b32.xlu0 %v2573, 32
      %v3238 = vpop.permute.xlu0 %3237
      %3239 = vrot.lane.b32.xlu0 %v2575, 32
      %v3240 = vpop.permute.xlu0 %3239
      %3241 = vrot.lane.b32.xlu0 %v2577, 32
      %v3242 = vpop.permute.xlu0 %3241
      %3243 = vrot.lane.b32.xlu0 %v2579, 32
      %v3244 = vpop.permute.xlu0 %3243
      %3245 = vrot.lane.b32.xlu0 %v2581, 32
      %v3246 = vpop.permute.xlu0 %3245
      %3247 = vrot.lane.b32.xlu0 %v3200, 32
      %v3248 = vpop.permute.xlu0 %3247
      %3249 = vrot.lane.b32.xlu0 %v3202, 32
      %v3250 = vpop.permute.xlu0 %3249
      %3251 = vrot.lane.b32.xlu0 %v3204, 32
      %v3252 = vpop.permute.xlu0 %3251
      %3253 = vrot.lane.b32.xlu0 %v3206, 32
      %v3254 = vpop.permute.xlu0 %3253
      %vm3255 = vcmask 31744
      %v3257 = vsel %vm3255, %v2259, %v2484
      %v3259 = vsel %vm3255, %v2260, %v2486
      %v3261 = vsel %vm3255, %v2261, %v2488
      %v3263 = vsel %vm3255, %v2262, %v2490
      %v3265 = vsel %vm3255, %v2263, %v2492
      %v3267 = vsel %vm3255, %v2264, %v2494
      %v3269 = vsel %vm3255, %v2265, %v2496
      %v3271 = vsel %vm3255, %v2266, %v2498
      %v3273 = vsel %vm3255, %v2267, %v2500
      %v3275 = vsel %vm3255, %v2268, %v2502
      %v3277 = vsel %vm3255, %v2269, %v2504
      %v3279 = vsel %vm3255, %v2270, %v2506
      %v3281 = vsel %vm3255, %v2271, %v2508
      %v3283 = vsel %vm3255, %v2272, %v2510
      %v3285 = vsel %vm3255, %v2273, %v2512
      %v3287 = vsel %vm3255, %v2274, %v2514
      %v3289 = vsel %vm3255, %v2275, %v2516
      %v3291 = vsel %vm3255, %v2276, %v2518
      %v3293 = vsel %vm3255, %v2277, %v2520
      %v3295 = vsel %vm3255, %v2278, %v2522
      %v3297 = vsel %vm3255, %v2279, %v2524
      %v3299 = vsel %vm3255, %v2280, %v2526
      %v3301 = vsel %vm3255, %v2281, %v2528
      %v3303 = vsel %vm3255, %v2282, %v2530
      %vm3304 = vcmask 64512
      %v3306 = vsel %vm3304, %v3257, %v2585
      %v3308 = vsel %vm3304, %v3259, %v2587
      %v3310 = vsel %vm3304, %v3261, %v2589
      %v3312 = vsel %vm3304, %v3263, %v2591
      %v3314 = vsel %vm3304, %v3265, %v2593
      %v3316 = vsel %vm3304, %v3267, %v2595
      %v3318 = vsel %vm3304, %v3269, %v2597
      %v3320 = vsel %vm3304, %v3271, %v2599
      %v3322 = vsel %vm3304, %v3273, %v2601
      %v3324 = vsel %vm3304, %v3275, %v2603
      %v3326 = vsel %vm3304, %v3277, %v2605
      %v3328 = vsel %vm3304, %v3279, %v2607
      %v3330 = vsel %vm3304, %v3281, %v2609
      %v3332 = vsel %vm3304, %v3283, %v2611
      %v3334 = vsel %vm3304, %v3285, %v2613
      %v3336 = vsel %vm3304, %v3287, %v2615
      %v3338 = vsel %vm3304, %v3289, %v2617
      %v3340 = vsel %vm3304, %v3291, %v2619
      %v3342 = vsel %vm3304, %v3293, %v2621
      %v3344 = vsel %vm3304, %v3295, %v2623
      %v3346 = vsel %vm3304, %v3297, %v2625
      %v3348 = vsel %vm3304, %v3299, %v2627
      %v3350 = vsel %vm3304, %v3301, %v2629
      %v3352 = vsel %vm3304, %v3303, %v2631
      %vm3353 = vcmask 97280
      %v3355 = vsel %vm3353, %v3306, %v2663
      %v3357 = vsel %vm3353, %v3308, %v2665
      %v3359 = vsel %vm3353, %v3310, %v2667
      %v3361 = vsel %vm3353, %v3312, %v2669
      %v3363 = vsel %vm3353, %v3314, %v2671
      %v3365 = vsel %vm3353, %v3316, %v2673
      %v3367 = vsel %vm3353, %v3318, %v2675
      %v3369 = vsel %vm3353, %v3320, %v2677
      %v3371 = vsel %vm3353, %v3322, %v2679
      %v3373 = vsel %vm3353, %v3324, %v2681
      %v3375 = vsel %vm3353, %v3326, %v2683
      %v3377 = vsel %vm3353, %v3328, %v2685
      %v3379 = vsel %vm3353, %v3330, %v2687
      %v3381 = vsel %vm3353, %v3332, %v2689
      %v3383 = vsel %vm3353, %v3334, %v2691
      %v3385 = vsel %vm3353, %v3336, %v2693
      %v3387 = vsel %vm3353, %v3338, %v2695
      %v3389 = vsel %vm3353, %v3340, %v2697
      %v3391 = vsel %vm3353, %v3342, %v2699
      %v3393 = vsel %vm3353, %v3344, %v2701
      %v3395 = vsel %vm3353, %v3346, %v2703
      %v3397 = vsel %vm3353, %v3348, %v2705
      %v3399 = vsel %vm3353, %v3350, %v2707
      %v3401 = vsel %vm3353, %v3352, %v2709
      %vm3402 = vcmask 130048
      %v3404 = vsel %vm3402, %v3355, %v2910
      %v3406 = vsel %vm3402, %v3357, %v2912
      %v3408 = vsel %vm3402, %v3359, %v2914
      %v3410 = vsel %vm3402, %v3361, %v2916
      %v3412 = vsel %vm3402, %v3363, %v2918
      %v3414 = vsel %vm3402, %v3365, %v2920
      %v3416 = vsel %vm3402, %v3367, %v2922
      %v3418 = vsel %vm3402, %v3369, %v2924
      %v3420 = vsel %vm3402, %v3371, %v2926
      %v3422 = vsel %vm3402, %v3373, %v2928
      %v3424 = vsel %vm3402, %v3375, %v2930
      %v3426 = vsel %vm3402, %v3377, %v2932
      %v3428 = vsel %vm3402, %v3379, %v2934
      %v3430 = vsel %vm3402, %v3381, %v2936
      %v3432 = vsel %vm3402, %v3383, %v2938
      %v3434 = vsel %vm3402, %v3385, %v2940
      %v3436 = vsel %vm3402, %v3387, %v2942
      %v3438 = vsel %vm3402, %v3389, %v2944
      %v3440 = vsel %vm3402, %v3391, %v2946
      %v3442 = vsel %vm3402, %v3393, %v2948
      %v3444 = vsel %vm3402, %v3395, %v2950
      %v3446 = vsel %vm3402, %v3397, %v2952
      %v3448 = vsel %vm3402, %v3399, %v2954
      %v3450 = vsel %vm3402, %v3401, %v2956
      %vm3451 = vcmask 162816
      %v3453 = vsel %vm3451, %v3404, %v3010
      %v3455 = vsel %vm3451, %v3406, %v3012
      %v3457 = vsel %vm3451, %v3408, %v3014
      %v3459 = vsel %vm3451, %v3410, %v3016
      %v3461 = vsel %vm3451, %v3412, %v3018
      %v3463 = vsel %vm3451, %v3414, %v3020
      %v3465 = vsel %vm3451, %v3416, %v3022
      %v3467 = vsel %vm3451, %v3418, %v3024
      %v3469 = vsel %vm3451, %v3420, %v3026
      %v3471 = vsel %vm3451, %v3422, %v3028
      %v3473 = vsel %vm3451, %v3424, %v3030
      %v3475 = vsel %vm3451, %v3426, %v3032
      %v3477 = vsel %vm3451, %v3428, %v3034
      %v3479 = vsel %vm3451, %v3430, %v3036
      %v3481 = vsel %vm3451, %v3432, %v3038
      %v3483 = vsel %vm3451, %v3434, %v3040
      %v3485 = vsel %vm3451, %v3436, %v3042
      %v3487 = vsel %vm3451, %v3438, %v3044
      %v3489 = vsel %vm3451, %v3440, %v3046
      %v3491 = vsel %vm3451, %v3442, %v3048
      %v3493 = vsel %vm3451, %v3444, %v3050
      %v3495 = vsel %vm3451, %v3446, %v3052
      %v3497 = vsel %vm3451, %v3448, %v3054
      %v3499 = vsel %vm3451, %v3450, %v3056
      %vm3500 = vcmask 195584
      %v3502 = vsel %vm3500, %v3453, %v3067
      %v3504 = vsel %vm3500, %v3455, %v3069
      %v3506 = vsel %vm3500, %v3457, %v3071
      %v3508 = vsel %vm3500, %v3459, %v3073
      %v3510 = vsel %vm3500, %v3461, %v3075
      %v3512 = vsel %vm3500, %v3463, %v3077
      %v3514 = vsel %vm3500, %v3465, %v3079
      %v3516 = vsel %vm3500, %v3467, %v3081
      %v3518 = vsel %vm3500, %v3469, %v3083
      %v3520 = vsel %vm3500, %v3471, %v3085
      %v3522 = vsel %vm3500, %v3473, %v3087
      %v3524 = vsel %vm3500, %v3475, %v3089
      %v3526 = vsel %vm3500, %v3477, %v3091
      %v3528 = vsel %vm3500, %v3479, %v3093
      %v3530 = vsel %vm3500, %v3481, %v3095
      %v3532 = vsel %vm3500, %v3483, %v3097
      %v3534 = vsel %vm3500, %v3485, %v3099
      %v3536 = vsel %vm3500, %v3487, %v3101
      %v3538 = vsel %vm3500, %v3489, %v3103
      %v3540 = vsel %vm3500, %v3491, %v3105
      %v3542 = vsel %vm3500, %v3493, %v3107
      %v3544 = vsel %vm3500, %v3495, %v3109
      %v3546 = vsel %vm3500, %v3497, %v3111
      %v3548 = vsel %vm3500, %v3499, %v3113
      %vm3549 = vcmask 228352
      %v3551 = vsel %vm3549, %v3502, %v3147
      %v3553 = vsel %vm3549, %v3504, %v3149
      %v3555 = vsel %vm3549, %v3506, %v3151
      %v3557 = vsel %vm3549, %v3508, %v3153
      %v3559 = vsel %vm3549, %v3510, %v3155
      %v3561 = vsel %vm3549, %v3512, %v3157
      %v3563 = vsel %vm3549, %v3514, %v3159
      %v3565 = vsel %vm3549, %v3516, %v3161
      %v3567 = vsel %vm3549, %v3518, %v3163
      %v3569 = vsel %vm3549, %v3520, %v3165
      %v3571 = vsel %vm3549, %v3522, %v3167
      %v3573 = vsel %vm3549, %v3524, %v3169
      %v3575 = vsel %vm3549, %v3526, %v3171
      %v3577 = vsel %vm3549, %v3528, %v3173
      %v3579 = vsel %vm3549, %v3530, %v3175
      %v3581 = vsel %vm3549, %v3532, %v3177
      %v3583 = vsel %vm3549, %v3534, %v3179
      %v3585 = vsel %vm3549, %v3536, %v3181
      %v3587 = vsel %vm3549, %v3538, %v3183
      %v3589 = vsel %vm3549, %v3540, %v3185
      %v3591 = vsel %vm3549, %v3542, %v3187
      %v3593 = vsel %vm3549, %v3544, %v3189
      %v3595 = vsel %vm3549, %v3546, %v3191
      %v3597 = vsel %vm3549, %v3548, %v3193
      %vm3598 = vcmask 261120
      %v3600 = vsel %vm3598, %v3551, %v3208
      %v3602 = vsel %vm3598, %v3553, %v3210
      %v3604 = vsel %vm3598, %v3555, %v3212
      %v3606 = vsel %vm3598, %v3557, %v3214
      %v3608 = vsel %vm3598, %v3559, %v3216
      %v3610 = vsel %vm3598, %v3561, %v3218
      %v3612 = vsel %vm3598, %v3563, %v3220
      %v3614 = vsel %vm3598, %v3565, %v3222
      %v3616 = vsel %vm3598, %v3567, %v3224
      %v3618 = vsel %vm3598, %v3569, %v3226
      %v3620 = vsel %vm3598, %v3571, %v3228
      %v3622 = vsel %vm3598, %v3573, %v3230
      %v3624 = vsel %vm3598, %v3575, %v3232
      %v3626 = vsel %vm3598, %v3577, %v3234
      %v3628 = vsel %vm3598, %v3579, %v3236
      %v3630 = vsel %vm3598, %v3581, %v3238
      %v3632 = vsel %vm3598, %v3583, %v3240
      %v3634 = vsel %vm3598, %v3585, %v3242
      %v3636 = vsel %vm3598, %v3587, %v3244
      %v3638 = vsel %vm3598, %v3589, %v3246
      %v3640 = vsel %vm3598, %v3591, %v3248
      %v3642 = vsel %vm3598, %v3593, %v3250
      %v3644 = vsel %vm3598, %v3595, %v3252
      %v3646 = vsel %vm3598, %v3597, %v3254
      %v3647 = vld [vmem:[%s1] sm:$0xf]
      %v3648 = vld [vmem:[%s1 + $0x4] sm:$0xf]
      %v3649 = vld [vmem:[%s1 + $0x8] sm:$0xf]
      %v3650 = vld [vmem:[%s1 + $0xc] sm:$0xf]
      %v3651 = vld [vmem:[%s1 + $0x10] sm:$0x3]
      %v3657 = vunpack.c.l.b16 %v3647
      %v3658 = vunpack.c.l.b16 %v3648
      %v3659 = vunpack.c.l.b16 %v3649
      %v3660 = vunpack.c.l.b16 %v3650
      %v3661 = vunpack.c.l.b16 %v3651
      %v3662 = vpack.c.b16 %v3658, %v3657
      %v3663 = vpack.c.b16 %v3660, %v3659
      %v3664 = vpack.c.b16 %v3661, %v3661
      %vm3667 = vcmask 293888
      %v3668 = vsel %vm3667, %v3600, 0
      %v3670 = vsel %vm3667, %v3602, 0
      %v3672 = vsel %vm3667, %v3604, 0
      %v3674 = vsel %vm3667, %v3606, 0
      %v3676 = vsel %vm3667, %v3608, 0
      %v3678 = vsel %vm3667, %v3610, 0
      %v3680 = vsel %vm3667, %v3612, 0
      %v3682 = vsel %vm3667, %v3614, 0
      %v3684 = vsel %vm3667, %v3616, 0
      %v3686 = vsel %vm3667, %v3618, 0
      %v3688 = vsel %vm3667, %v3620, 0
      %v3690 = vsel %vm3667, %v3622, 0
      %v3692 = vsel %vm3667, %v3624, 0
      %v3694 = vsel %vm3667, %v3626, 0
      %v3696 = vsel %vm3667, %v3628, 0
      %v3698 = vsel %vm3667, %v3630, 0
      %v3700 = vsel %vm3667, %v3632, 0
      %v3702 = vsel %vm3667, %v3634, 0
      %v3704 = vsel %vm3667, %v3636, 0
      %v3706 = vsel %vm3667, %v3638, 0
      %v3708 = vsel %vm3667, %v3640, 0
      %v3710 = vsel %vm3667, %v3642, 0
      %v3712 = vsel %vm3667, %v3644, 0
      %v3714 = vsel %vm3667, %v3646, 0
      %vm3716 = vcmask 1041408
      %v3718 = vsel %vm3716, %v3664, 0
      %3720 = vmatprep.subr.bf16.mxu0 0
      %3721 = vmatpush1.bf16.msra.mxu0 %v3662
      %3722 = vmatprep.subr.bf16.mxu0 0
      %3723 = vmatpush1.bf16.msra.mxu0 %v3663
      %3724 = vmatprep.subr.bf16.mxu0 0
      %3725 = vmatpush1.bf16.msra.mxu0 %v3718
      %3726 = vmatprep.subr.bf16.mxu0 0
      %3727 = vmatpush1.bf16.msra.mxu0 0
      %3728 = vmatprep.subr.bf16.mxu0 0
      %3729 = vmatpush1.bf16.msra.mxu0 0
      %3730 = vmatprep.subr.bf16.mxu0 0
      %3731 = vmatpush1.bf16.msra.mxu0 0
      %3732 = vmatprep.subr.bf16.mxu0 0
      %3733 = vmatpush1.bf16.msra.mxu0 0
      %3734 = vmatprep.subr.bf16.mxu0 0
      %3735 = vmatpush1.bf16.msra.mxu0 0
      %3736 = vmatprep.subr.bf16.mxu0 0
      %3737 = vmatpush1.bf16.msra.mxu0 0
      %3738 = vmatprep.subr.bf16.mxu0 0
      %3739 = vmatpush1.bf16.msra.mxu0 0
      %3740 = vmatprep.subr.bf16.mxu0 0
      %3741 = vmatpush1.bf16.msra.mxu0 0
      %3742 = vmatprep.subr.bf16.mxu0 0
      %3743 = vmatpush1.bf16.msra.mxu0 0
      %3744 = vmatprep.subr.bf16.mxu0 0
      %3745 = vmatpush1.bf16.msra.mxu0 0
      %3746 = vmatprep.subr.bf16.mxu0 0
      %3747 = vmatpush1.bf16.msra.mxu0 0
      %3748 = vmatprep.subr.bf16.mxu0 0
      %3749 = vmatpush1.bf16.msra.mxu0 0
      %3750 = vmatprep.subr.bf16.mxu0 0
      %3751 = vmatpush1.bf16.msra.mxu0 0
      %3752 = vmatprep.mubr.bf16.mxu0 0
      %3753 = vmatmul.mubr.bf16.gmra.mrb[0].mxu0 %v3668
      %v3754 = vpop.f32.mrb[0].mxu0
      %v3755 = vadd.f32 0.0, %v3754
      %v3756 = vpop.f32.mrb[0].mxu0
      %v3757 = vpop.f32.mrb[0].mxu0
      %v3758 = vadd.f32 0.0, %v3757
      %v3759 = vpop.f32.mrb[0].mxu0
      %3760 = vmatprep.mubr.bf16.mxu0 0
      %3761 = vmatmul.mubr.bf16.gmra.mrb[0].mxu0 %v3670
      %v3762 = vpop.f32.mrb[0].mxu0
      %v3763 = vadd.f32 0.0, %v3762
      %v3764 = vpop.f32.mrb[0].mxu0
      %v3765 = vpop.f32.mrb[0].mxu0
      %v3766 = vadd.f32 0.0, %v3765
      %v3767 = vpop.f32.mrb[0].mxu0
      %3768 = vmatprep.mubr.bf16.mxu0 0
      %3769 = vmatmul.mubr.bf16.gmra.mrb[0].mxu0 %v3672
      %v3770 = vpop.f32.mrb[0].mxu0
      %v3771 = vadd.f32 0.0, %v3770
      %v3772 = vpop.f32.mrb[0].mxu0
      %v3773 = vpop.f32.mrb[0].mxu0
      %v3774 = vadd.f32 0.0, %v3773
      %v3775 = vpop.f32.mrb[0].mxu0
      %3776 = vmatprep.mubr.bf16.mxu0 0
      %3777 = vmatmul.mubr.bf16.gmra.mrb[0].mxu0 %v3674
      %v3778 = vpop.f32.mrb[0].mxu0
      %v3779 = vadd.f32 0.0, %v3778
      %v3780 = vpop.f32.mrb[0].mxu0
      %v3781 = vpop.f32.mrb[0].mxu0
      %v3782 = vadd.f32 0.0, %v3781
      %v3783 = vpop.f32.mrb[0].mxu0
      %3784 = vmatprep.mubr.bf16.mxu0 0
      %3785 = vmatmul.mubr.bf16.gmra.mrb[0].mxu0 %v3676
      %v3786 = vpop.f32.mrb[0].mxu0
      %v3787 = vadd.f32 0.0, %v3786
      %v3788 = vpop.f32.mrb[0].mxu0
      %v3789 = vpop.f32.mrb[0].mxu0
      %v3790 = vadd.f32 0.0, %v3789
      %v3791 = vpop.f32.mrb[0].mxu0
      %3792 = vmatprep.mubr.bf16.mxu0 0
      %3793 = vmatmul.mubr.bf16.gmra.mrb[0].mxu0 %v3678
      %v3794 = vpop.f32.mrb[0].mxu0
      %v3795 = vadd.f32 0.0, %v3794
      %v3796 = vpop.f32.mrb[0].mxu0
      %v3797 = vpop.f32.mrb[0].mxu0
      %v3798 = vadd.f32 0.0, %v3797
      %v3799 = vpop.f32.mrb[0].mxu0
      %3800 = vmatprep.mubr.bf16.mxu0 0
      %3801 = vmatmul.mubr.bf16.gmra.mrb[0].mxu0 %v3680
      %v3802 = vpop.f32.mrb[0].mxu0
      %v3803 = vadd.f32 0.0, %v3802
      %v3804 = vpop.f32.mrb[0].mxu0
      %v3805 = vpop.f32.mrb[0].mxu0
      %v3806 = vadd.f32 0.0, %v3805
      %v3807 = vpop.f32.mrb[0].mxu0
      %3808 = vmatprep.mubr.bf16.mxu0 0
      %3809 = vmatmul.mubr.bf16.gmra.mrb[0].mxu0 %v3682
      %v3810 = vpop.f32.mrb[0].mxu0
      %v3811 = vadd.f32 0.0, %v3810
      %v3812 = vpop.f32.mrb[0].mxu0
      %v3813 = vpop.f32.mrb[0].mxu0
      %v3814 = vadd.f32 0.0, %v3813
      %v3815 = vpop.f32.mrb[0].mxu0
      %3816 = vmatprep.mubr.bf16.mxu0 0
      %3817 = vmatmul.mubr.bf16.gmra.mrb[0].mxu0 %v3684
      %v3818 = vpop.f32.mrb[0].mxu0
      %v3819 = vadd.f32 0.0, %v3818
      %v3820 = vpop.f32.mrb[0].mxu0
      %v3821 = vpop.f32.mrb[0].mxu0
      %v3822 = vadd.f32 0.0, %v3821
      %v3823 = vpop.f32.mrb[0].mxu0
      %3824 = vmatprep.mubr.bf16.mxu0 0
      %3825 = vmatmul.mubr.bf16.gmra.mrb[0].mxu0 %v3686
      %v3826 = vpop.f32.mrb[0].mxu0
      %v3827 = vadd.f32 0.0, %v3826
      %v3828 = vpop.f32.mrb[0].mxu0
      %v3829 = vpop.f32.mrb[0].mxu0
      %v3830 = vadd.f32 0.0, %v3829
      %v3831 = vpop.f32.mrb[0].mxu0
      %3832 = vmatprep.mubr.bf16.mxu0 0
      %3833 = vmatmul.mubr.bf16.gmra.mrb[0].mxu0 %v3688
      %v3834 = vpop.f32.mrb[0].mxu0
      %v3835 = vadd.f32 0.0, %v3834
      %v3836 = vpop.f32.mrb[0].mxu0
      %v3837 = vpop.f32.mrb[0].mxu0
      %v3838 = vadd.f32 0.0, %v3837
      %v3839 = vpop.f32.mrb[0].mxu0
      %3840 = vmatprep.mubr.bf16.mxu0 0
      %3841 = vmatmul.mubr.bf16.gmra.mrb[0].mxu0 %v3690
      %v3842 = vpop.f32.mrb[0].mxu0
      %v3843 = vadd.f32 0.0, %v3842
      %v3844 = vpop.f32.mrb[0].mxu0
      %v3845 = vpop.f32.mrb[0].mxu0
      %v3846 = vadd.f32 0.0, %v3845
      %v3847 = vpop.f32.mrb[0].mxu0
      %3848 = vmatprep.mubr.bf16.mxu0 0
      %3849 = vmatmul.mubr.bf16.gmra.mrb[0].mxu0 %v3692
      %v3850 = vpop.f32.mrb[0].mxu0
      %v3851 = vadd.f32 0.0, %v3850
      %v3852 = vpop.f32.mrb[0].mxu0
      %v3853 = vpop.f32.mrb[0].mxu0
      %v3854 = vadd.f32 0.0, %v3853
      %v3855 = vpop.f32.mrb[0].mxu0
      %3856 = vmatprep.mubr.bf16.mxu0 0
      %3857 = vmatmul.mubr.bf16.gmra.mrb[0].mxu0 %v3694
      %v3858 = vpop.f32.mrb[0].mxu0
      %v3859 = vadd.f32 0.0, %v3858
      %v3860 = vpop.f32.mrb[0].mxu0
      %v3861 = vpop.f32.mrb[0].mxu0
      %v3862 = vadd.f32 0.0, %v3861
      %v3863 = vpop.f32.mrb[0].mxu0
      %3864 = vmatprep.mubr.bf16.mxu0 0
      %3865 = vmatmul.mubr.bf16.gmra.mrb[0].mxu0 %v3696
      %v3866 = vpop.f32.mrb[0].mxu0
      %v3867 = vadd.f32 0.0, %v3866
      %v3868 = vpop.f32.mrb[0].mxu0
      %v3869 = vpop.f32.mrb[0].mxu0
      %v3870 = vadd.f32 0.0, %v3869
      %v3871 = vpop.f32.mrb[0].mxu0
      %3872 = vmatprep.mubr.bf16.mxu0 0
      %3873 = vmatmul.mubr.bf16.gmra.mrb[0].mxu0 %v3698
      %v3874 = vpop.f32.mrb[0].mxu0
      %v3875 = vadd.f32 0.0, %v3874
      %v3876 = vpop.f32.mrb[0].mxu0
      %v3877 = vpop.f32.mrb[0].mxu0
      %v3878 = vadd.f32 0.0, %v3877
      %v3879 = vpop.f32.mrb[0].mxu0
      %3880 = vmatprep.mubr.bf16.mxu0 0
      %3881 = vmatmul.mubr.bf16.gmra.mrb[0].mxu0 %v3700
      %v3882 = vpop.f32.mrb[0].mxu0
      %v3883 = vadd.f32 0.0, %v3882
      %v3884 = vpop.f32.mrb[0].mxu0
      %v3885 = vpop.f32.mrb[0].mxu0
      %v3886 = vadd.f32 0.0, %v3885
      %v3887 = vpop.f32.mrb[0].mxu0
      %3888 = vmatprep.mubr.bf16.mxu0 0
      %3889 = vmatmul.mubr.bf16.gmra.mrb[0].mxu0 %v3702
      %v3890 = vpop.f32.mrb[0].mxu0
      %v3891 = vadd.f32 0.0, %v3890
      %v3892 = vpop.f32.mrb[0].mxu0
      %v3893 = vpop.f32.mrb[0].mxu0
      %v3894 = vadd.f32 0.0, %v3893
      %v3895 = vpop.f32.mrb[0].mxu0
      %3896 = vmatprep.mubr.bf16.mxu0 0
      %3897 = vmatmul.mubr.bf16.gmra.mrb[0].mxu0 %v3704
      %v3898 = vpop.f32.mrb[0].mxu0
      %v3899 = vadd.f32 0.0, %v3898
      %v3900 = vpop.f32.mrb[0].mxu0
      %v3901 = vpop.f32.mrb[0].mxu0
      %v3902 = vadd.f32 0.0, %v3901
      %v3903 = vpop.f32.mrb[0].mxu0
      %3904 = vmatprep.mubr.bf16.mxu0 0
      %3905 = vmatmul.mubr.bf16.gmra.mrb[0].mxu0 %v3706
      %v3906 = vpop.f32.mrb[0].mxu0
      %v3907 = vadd.f32 0.0, %v3906
      %v3908 = vpop.f32.mrb[0].mxu0
      %v3909 = vpop.f32.mrb[0].mxu0
      %v3910 = vadd.f32 0.0, %v3909
      %v3911 = vpop.f32.mrb[0].mxu0
      %3912 = vmatprep.mubr.bf16.mxu0 0
      %3913 = vmatmul.mubr.bf16.gmra.mrb[0].mxu0 %v3708
      %v3914 = vpop.f32.mrb[0].mxu0
      %v3915 = vadd.f32 0.0, %v3914
      %v3916 = vpop.f32.mrb[0].mxu0
      %v3917 = vpop.f32.mrb[0].mxu0
      %v3918 = vadd.f32 0.0, %v3917
      %v3919 = vpop.f32.mrb[0].mxu0
      %3920 = vmatprep.mubr.bf16.mxu0 0
      %3921 = vmatmul.mubr.bf16.gmra.mrb[0].mxu0 %v3710
      %v3922 = vpop.f32.mrb[0].mxu0
      %v3923 = vadd.f32 0.0, %v3922
      %v3924 = vpop.f32.mrb[0].mxu0
      %v3925 = vpop.f32.mrb[0].mxu0
      %v3926 = vadd.f32 0.0, %v3925
      %v3927 = vpop.f32.mrb[0].mxu0
      %3928 = vmatprep.mubr.bf16.mxu0 0
      %3929 = vmatmul.mubr.bf16.gmra.mrb[0].mxu0 %v3712
      %v3930 = vpop.f32.mrb[0].mxu0
      %v3931 = vadd.f32 0.0, %v3930
      %v3932 = vpop.f32.mrb[0].mxu0
      %v3933 = vpop.f32.mrb[0].mxu0
      %v3934 = vadd.f32 0.0, %v3933
      %v3935 = vpop.f32.mrb[0].mxu0
      %3936 = vmatprep.mubr.bf16.mxu0 0
      %3937 = vmatmul.mubr.bf16.gmra.mrb[0].mxu0 %v3714
      %v3938 = vpop.f32.mrb[0].mxu0
      %v3939 = vadd.f32 0.0, %v3938
      %v3940 = vpop.f32.mrb[0].mxu0
      %v3941 = vpop.f32.mrb[0].mxu0
      %v3942 = vadd.f32 0.0, %v3941
      %v3943 = vpop.f32.mrb[0].mxu0
      %3944 = vdwg.mxu0
      %v3945 = vmul.f32 %v3755, %v1106
      %v3946 = vmul.f32 %v3758, %v1107
      %v3947 = vmul.f32 %v3763, %v1108
      %v3948 = vmul.f32 %v3766, %v1109
      %v3949 = vmul.f32 %v3771, %v1110
      %v3950 = vmul.f32 %v3774, %v1111
      %v3951 = vmul.f32 %v3779, %v1112
      %v3952 = vmul.f32 %v3782, %v1113
      %v3953 = vmul.f32 %v3787, %v1114
      %v3954 = vmul.f32 %v3790, %v1115
      %v3955 = vmul.f32 %v3795, %v1116
      %v3956 = vmul.f32 %v3798, %v1117
      %v3957 = vmul.f32 %v3803, %v1118
      %v3958 = vmul.f32 %v3806, %v1119
      %v3959 = vmul.f32 %v3811, %v1120
      %v3960 = vmul.f32 %v3814, %v1121
      %v3961 = vmul.f32 %v3819, %v1122
      %v3962 = vmul.f32 %v3822, %v1123
      %v3963 = vmul.f32 %v3827, %v1124
      %v3964 = vmul.f32 %v3830, %v1125
      %v3965 = vmul.f32 %v3835, %v1126
      %v3966 = vmul.f32 %v3838, %v1127
      %v3967 = vmul.f32 %v3843, %v1128
      %v3968 = vmul.f32 %v3846, %v1129
      %v3969 = vmul.f32 %v3851, %v1130
      %v3970 = vmul.f32 %v3854, %v1131
      %v3971 = vmul.f32 %v3859, %v1132
      %v3972 = vmul.f32 %v3862, %v1133
      %v3973 = vmul.f32 %v3867, %v1134
      %v3974 = vmul.f32 %v3870, %v1135
      %v3975 = vmul.f32 %v3875, %v1136
      %v3976 = vmul.f32 %v3878, %v1137
      %v3977 = vmul.f32 %v3883, %v1138
      %v3978 = vmul.f32 %v3886, %v1139
      %v3979 = vmul.f32 %v3891, %v1140
      %v3980 = vmul.f32 %v3894, %v1141
      %v3981 = vmul.f32 %v3899, %v1142
      %v3982 = vmul.f32 %v3902, %v1143
      %v3983 = vmul.f32 %v3907, %v1144
      %v3984 = vmul.f32 %v3910, %v1145
      %v3985 = vmul.f32 %v3915, %v1146
      %v3986 = vmul.f32 %v3918, %v1147
      %v3987 = vmul.f32 %v3923, %v1148
      %v3988 = vmul.f32 %v3926, %v1149
      %v3989 = vmul.f32 %v3931, %v1150
      %v3990 = vmul.f32 %v3934, %v1151
      %v3991 = vmul.f32 %v3939, %v1152
      %v3992 = vmul.f32 %v3942, %v1153
      %v3993 = vsel %vm3255, %v3945, 0.0
      %v3994 = vsel %vm3255, %v3946, 0.0
      %v3995 = vadd.f32 %v3993, %v3994
      %v3996 = vsel %vm3255, %v3947, 0.0
      %v3997 = vadd.f32 %v3995, %v3996
      %v3998 = vsel %vm3255, %v3948, 0.0
      %v3999 = vadd.f32 %v3997, %v3998
      %v4000 = vsel %vm3255, %v3949, 0.0
      %v4001 = vadd.f32 %v3999, %v4000
      %v4002 = vsel %vm3255, %v3950, 0.0
      %v4003 = vadd.f32 %v4001, %v4002
      %v4004 = vsel %vm3255, %v3951, 0.0
      %v4005 = vadd.f32 %v4003, %v4004
      %v4006 = vsel %vm3255, %v3952, 0.0
      %v4007 = vadd.f32 %v4005, %v4006
      %v4008 = vsel %vm3255, %v3953, 0.0
      %v4009 = vadd.f32 %v4007, %v4008
      %v4010 = vsel %vm3255, %v3954, 0.0
      %v4011 = vadd.f32 %v4009, %v4010
      %v4012 = vsel %vm3255, %v3955, 0.0
      %v4013 = vadd.f32 %v4011, %v4012
      %v4014 = vsel %vm3255, %v3956, 0.0
      %v4015 = vadd.f32 %v4013, %v4014
      %v4016 = vsel %vm3255, %v3957, 0.0
      %v4017 = vadd.f32 %v4015, %v4016
      %v4018 = vsel %vm3255, %v3958, 0.0
      %v4019 = vadd.f32 %v4017, %v4018
      %v4020 = vsel %vm3255, %v3959, 0.0
      %v4021 = vadd.f32 %v4019, %v4020
      %v4022 = vsel %vm3255, %v3960, 0.0
      %v4023 = vadd.f32 %v4021, %v4022
      %v4024 = vsel %vm3255, %v3961, 0.0
      %v4025 = vadd.f32 %v4023, %v4024
      %v4026 = vsel %vm3255, %v3962, 0.0
      %v4027 = vadd.f32 %v4025, %v4026
      %v4028 = vsel %vm3255, %v3963, 0.0
      %v4029 = vadd.f32 %v4027, %v4028
      %v4030 = vsel %vm3255, %v3964, 0.0
      %v4031 = vadd.f32 %v4029, %v4030
      %v4032 = vsel %vm3255, %v3965, 0.0
      %v4033 = vadd.f32 %v4031, %v4032
      %v4034 = vsel %vm3255, %v3966, 0.0
      %v4035 = vadd.f32 %v4033, %v4034
      %v4036 = vsel %vm3255, %v3967, 0.0
      %v4037 = vadd.f32 %v4035, %v4036
      %v4038 = vsel %vm3255, %v3968, 0.0
      %v4039 = vadd.f32 %v4037, %v4038
      %v4040 = vsel %vm3255, %v3969, 0.0
      %v4041 = vadd.f32 %v4039, %v4040
      %v4042 = vsel %vm3255, %v3970, 0.0
      %v4043 = vadd.f32 %v4041, %v4042
      %v4044 = vsel %vm3255, %v3971, 0.0
      %v4045 = vadd.f32 %v4043, %v4044
      %v4046 = vsel %vm3255, %v3972, 0.0
      %v4047 = vadd.f32 %v4045, %v4046
      %v4048 = vsel %vm3255, %v3973, 0.0
      %v4049 = vadd.f32 %v4047, %v4048
      %v4050 = vsel %vm3255, %v3974, 0.0
      %v4051 = vadd.f32 %v4049, %v4050
      %v4052 = vsel %vm3255, %v3975, 0.0
      %v4053 = vadd.f32 %v4051, %v4052
      %v4054 = vsel %vm3255, %v3976, 0.0
      %v4055 = vadd.f32 %v4053, %v4054
      %v4056 = vsel %vm3255, %v3977, 0.0
      %v4057 = vadd.f32 %v4055, %v4056
      %v4058 = vsel %vm3255, %v3978, 0.0
      %v4059 = vadd.f32 %v4057, %v4058
      %v4060 = vsel %vm3255, %v3979, 0.0
      %v4061 = vadd.f32 %v4059, %v4060
      %v4062 = vsel %vm3255, %v3980, 0.0
      %v4063 = vadd.f32 %v4061, %v4062
      %v4064 = vsel %vm3255, %v3981, 0.0
      %v4065 = vadd.f32 %v4063, %v4064
      %v4066 = vsel %vm3255, %v3982, 0.0
      %v4067 = vadd.f32 %v4065, %v4066
      %v4068 = vsel %vm3255, %v3983, 0.0
      %v4069 = vadd.f32 %v4067, %v4068
      %v4070 = vsel %vm3255, %v3984, 0.0
      %v4071 = vadd.f32 %v4069, %v4070
      %v4072 = vsel %vm3255, %v3985, 0.0
      %v4073 = vadd.f32 %v4071, %v4072
      %v4074 = vsel %vm3255, %v3986, 0.0
      %v4075 = vadd.f32 %v4073, %v4074
      %v4076 = vsel %vm3255, %v3987, 0.0
      %v4077 = vadd.f32 %v4075, %v4076
      %v4078 = vsel %vm3255, %v3988, 0.0
      %v4079 = vadd.f32 %v4077, %v4078
      %v4080 = vsel %vm3255, %v3989, 0.0
      %v4081 = vadd.f32 %v4079, %v4080
      %v4082 = vsel %vm3255, %v3990, 0.0
      %v4083 = vadd.f32 %v4081, %v4082
      %v4084 = vsel %vm3255, %v3991, 0.0
      %v4085 = vadd.f32 %v4083, %v4084
      %v4086 = vsel %vm3255, %v3992, 0.0
      %v4087 = vadd.f32 %v4085, %v4086
      %v4088 = vrot.slane %v4087, 4
      %v4089 = vadd.f32 %v4087, %v4088
      %v4090 = vrot.slane %v4089, 2
      %v4091 = vadd.f32 %v4089, %v4090
      %v4092 = vrot.slane %v4091, 1
      %v4093 = vadd.f32 %v4091, %v4092
      %v4094 = vmul.f32 %v3945, %v3755
      %v4095 = vmul.f32 %v3946, %v3758
      %v4096 = vmul.f32 %v3947, %v3763
      %v4097 = vmul.f32 %v3948, %v3766
      %v4098 = vmul.f32 %v3949, %v3771
      %v4099 = vmul.f32 %v3950, %v3774
      %v4100 = vmul.f32 %v3951, %v3779
      %v4101 = vmul.f32 %v3952, %v3782
      %v4102 = vmul.f32 %v3953, %v3787
      %v4103 = vmul.f32 %v3954, %v3790
      %v4104 = vmul.f32 %v3955, %v3795
      %v4105 = vmul.f32 %v3956, %v3798
      %v4106 = vmul.f32 %v3957, %v3803
      %v4107 = vmul.f32 %v3958, %v3806
      %v4108 = vmul.f32 %v3959, %v3811
      %v4109 = vmul.f32 %v3960, %v3814
      %v4110 = vmul.f32 %v3961, %v3819
      %v4111 = vmul.f32 %v3962, %v3822
      %v4112 = vmul.f32 %v3963, %v3827
      %v4113 = vmul.f32 %v3964, %v3830
      %v4114 = vmul.f32 %v3965, %v3835
      %v4115 = vmul.f32 %v3966, %v3838
      %v4116 = vmul.f32 %v3967, %v3843
      %v4117 = vmul.f32 %v3968, %v3846
      %v4118 = vmul.f32 %v3969, %v3851
      %v4119 = vmul.f32 %v3970, %v3854
      %v4120 = vmul.f32 %v3971, %v3859
      %v4121 = vmul.f32 %v3972, %v3862
      %v4122 = vmul.f32 %v3973, %v3867
      %v4123 = vmul.f32 %v3974, %v3870
      %v4124 = vmul.f32 %v3975, %v3875
      %v4125 = vmul.f32 %v3976, %v3878
      %v4126 = vmul.f32 %v3977, %v3883
      %v4127 = vmul.f32 %v3978, %v3886
      %v4128 = vmul.f32 %v3979, %v3891
      %v4129 = vmul.f32 %v3980, %v3894
      %v4130 = vmul.f32 %v3981, %v3899
      %v4131 = vmul.f32 %v3982, %v3902
      %v4132 = vmul.f32 %v3983, %v3907
      %v4133 = vmul.f32 %v3984, %v3910
      %v4134 = vmul.f32 %v3985, %v3915
      %v4135 = vmul.f32 %v3986, %v3918
      %v4136 = vmul.f32 %v3987, %v3923
      %v4137 = vmul.f32 %v3988, %v3926
      %v4138 = vmul.f32 %v3989, %v3931
      %v4139 = vmul.f32 %v3990, %v3934
      %v4140 = vmul.f32 %v3991, %v3939
      %v4141 = vmul.f32 %v3992, %v3942
      %v4142 = vsel %vm3255, %v4094, 0.0
      %v4143 = vsel %vm3255, %v4095, 0.0
      %v4144 = vadd.f32 %v4142, %v4143
      %v4145 = vsel %vm3255, %v4096, 0.0
      %v4146 = vadd.f32 %v4144, %v4145
      %v4147 = vsel %vm3255, %v4097, 0.0
      %v4148 = vadd.f32 %v4146, %v4147
      %v4149 = vsel %vm3255, %v4098, 0.0
      %v4150 = vadd.f32 %v4148, %v4149
      %v4151 = vsel %vm3255, %v4099, 0.0
      %v4152 = vadd.f32 %v4150, %v4151
      %v4153 = vsel %vm3255, %v4100, 0.0
      %v4154 = vadd.f32 %v4152, %v4153
      %v4155 = vsel %vm3255, %v4101, 0.0
      %v4156 = vadd.f32 %v4154, %v4155
      %v4157 = vsel %vm3255, %v4102, 0.0
      %v4158 = vadd.f32 %v4156, %v4157
      %v4159 = vsel %vm3255, %v4103, 0.0
      %v4160 = vadd.f32 %v4158, %v4159
      %v4161 = vsel %vm3255, %v4104, 0.0
      %v4162 = vadd.f32 %v4160, %v4161
      %v4163 = vsel %vm3255, %v4105, 0.0
      %v4164 = vadd.f32 %v4162, %v4163
      %v4165 = vsel %vm3255, %v4106, 0.0
      %v4166 = vadd.f32 %v4164, %v4165
      %v4167 = vsel %vm3255, %v4107, 0.0
      %v4168 = vadd.f32 %v4166, %v4167
      %v4169 = vsel %vm3255, %v4108, 0.0
      %v4170 = vadd.f32 %v4168, %v4169
      %v4171 = vsel %vm3255, %v4109, 0.0
      %v4172 = vadd.f32 %v4170, %v4171
      %v4173 = vsel %vm3255, %v4110, 0.0
      %v4174 = vadd.f32 %v4172, %v4173
      %v4175 = vsel %vm3255, %v4111, 0.0
      %v4176 = vadd.f32 %v4174, %v4175
      %v4177 = vsel %vm3255, %v4112, 0.0
      %v4178 = vadd.f32 %v4176, %v4177
      %v4179 = vsel %vm3255, %v4113, 0.0
      %v4180 = vadd.f32 %v4178, %v4179
      %v4181 = vsel %vm3255, %v4114, 0.0
      %v4182 = vadd.f32 %v4180, %v4181
      %v4183 = vsel %vm3255, %v4115, 0.0
      %v4184 = vadd.f32 %v4182, %v4183
      %v4185 = vsel %vm3255, %v4116, 0.0
      %v4186 = vadd.f32 %v4184, %v4185
      %v4187 = vsel %vm3255, %v4117, 0.0
      %v4188 = vadd.f32 %v4186, %v4187
      %v4189 = vsel %vm3255, %v4118, 0.0
      %v4190 = vadd.f32 %v4188, %v4189
      %v4191 = vsel %vm3255, %v4119, 0.0
      %v4192 = vadd.f32 %v4190, %v4191
      %v4193 = vsel %vm3255, %v4120, 0.0
      %v4194 = vadd.f32 %v4192, %v4193
      %v4195 = vsel %vm3255, %v4121, 0.0
      %v4196 = vadd.f32 %v4194, %v4195
      %v4197 = vsel %vm3255, %v4122, 0.0
      %v4198 = vadd.f32 %v4196, %v4197
      %v4199 = vsel %vm3255, %v4123, 0.0
      %v4200 = vadd.f32 %v4198, %v4199
      %v4201 = vsel %vm3255, %v4124, 0.0
      %v4202 = vadd.f32 %v4200, %v4201
      %v4203 = vsel %vm3255, %v4125, 0.0
      %v4204 = vadd.f32 %v4202, %v4203
      %v4205 = vsel %vm3255, %v4126, 0.0
      %v4206 = vadd.f32 %v4204, %v4205
      %v4207 = vsel %vm3255, %v4127, 0.0
      %v4208 = vadd.f32 %v4206, %v4207
      %v4209 = vsel %vm3255, %v4128, 0.0
      %v4210 = vadd.f32 %v4208, %v4209
      %v4211 = vsel %vm3255, %v4129, 0.0
      %v4212 = vadd.f32 %v4210, %v4211
      %v4213 = vsel %vm3255, %v4130, 0.0
      %v4214 = vadd.f32 %v4212, %v4213
      %v4215 = vsel %vm3255, %v4131, 0.0
      %v4216 = vadd.f32 %v4214, %v4215
      %v4217 = vsel %vm3255, %v4132, 0.0
      %v4218 = vadd.f32 %v4216, %v4217
      %v4219 = vsel %vm3255, %v4133, 0.0
      %v4220 = vadd.f32 %v4218, %v4219
      %v4221 = vsel %vm3255, %v4134, 0.0
      %v4222 = vadd.f32 %v4220, %v4221
      %v4223 = vsel %vm3255, %v4135, 0.0
      %v4224 = vadd.f32 %v4222, %v4223
      %v4225 = vsel %vm3255, %v4136, 0.0
      %v4226 = vadd.f32 %v4224, %v4225
      %v4227 = vsel %vm3255, %v4137, 0.0
      %v4228 = vadd.f32 %v4226, %v4227
      %v4229 = vsel %vm3255, %v4138, 0.0
      %v4230 = vadd.f32 %v4228, %v4229
      %v4231 = vsel %vm3255, %v4139, 0.0
      %v4232 = vadd.f32 %v4230, %v4231
      %v4233 = vsel %vm3255, %v4140, 0.0
      %v4234 = vadd.f32 %v4232, %v4233
      %v4235 = vsel %vm3255, %v4141, 0.0
      %v4236 = vadd.f32 %v4234, %v4235
      %v4237 = vrot.slane %v4236, 4
      %v4238 = vadd.f32 %v4236, %v4237
      %v4239 = vrot.slane %v4238, 2
      %v4240 = vadd.f32 %v4238, %v4239
      %v4241 = vrot.slane %v4240, 1
      %v4242 = vadd.f32 %v4240, %v4241
      %v4243 = vmul.f32 %v4093, 0.00390625
      %v4244 = vmul.f32 %v4242, 0.00390625
      %v4245 = vmul.f32 %v4243, %v4243
      %v4246 = vsub.f32 %v4244, %v4245
      %v4247 = vmax.f32 %v4246, 0.0
      %v4248 = vsub.f32 %v3755, %v4243
      %v4249 = vsub.f32 %v3758, %v4243
      %v4250 = vsub.f32 %v3766, %v4243
      %v4251 = vsub.f32 %v3771, %v4243
      %v4252 = vsub.f32 %v3779, %v4243
      %v4253 = vsub.f32 %v3782, %v4243
      %v4254 = vsub.f32 %v3790, %v4243
      %v4255 = vsub.f32 %v3795, %v4243
      %v4256 = vsub.f32 %v3803, %v4243
      %v4257 = vsub.f32 %v3806, %v4243
      %v4258 = vsub.f32 %v3814, %v4243
      %v4259 = vsub.f32 %v3819, %v4243
      %v4260 = vsub.f32 %v3827, %v4243
      %v4261 = vsub.f32 %v3830, %v4243
      %v4262 = vsub.f32 %v3838, %v4243
      %v4263 = vsub.f32 %v3843, %v4243
      %v4264 = vsub.f32 %v3851, %v4243
      %v4265 = vsub.f32 %v3854, %v4243
      %v4266 = vsub.f32 %v3862, %v4243
      %v4267 = vsub.f32 %v3867, %v4243
      %v4268 = vsub.f32 %v3875, %v4243
      %v4269 = vsub.f32 %v3878, %v4243
      %v4270 = vsub.f32 %v3886, %v4243
      %v4271 = vsub.f32 %v3891, %v4243
      %v4272 = vsub.f32 %v3899, %v4243
      %v4273 = vsub.f32 %v3902, %v4243
      %v4274 = vsub.f32 %v3910, %v4243
      %v4275 = vsub.f32 %v3915, %v4243
      %v4276 = vsub.f32 %v3923, %v4243
      %v4277 = vsub.f32 %v3926, %v4243
      %v4278 = vsub.f32 %v3934, %v4243
      %v4279 = vsub.f32 %v3939, %v4243
      %v4280 = vadd.f32 %v4247, 1e-05
      %v4281 = vrsqrt.pop %v4280
      %v4282 = vmul.f32 %v4248, %v4281
      %v4283 = vmul.f32 %v4249, %v4281
      %v4284 = vmul.f32 %v4250, %v4281
      %v4285 = vmul.f32 %v4251, %v4281
      %v4286 = vmul.f32 %v4252, %v4281
      %v4287 = vmul.f32 %v4253, %v4281
      %v4288 = vmul.f32 %v4254, %v4281
      %v4289 = vmul.f32 %v4255, %v4281
      %v4290 = vmul.f32 %v4256, %v4281
      %v4291 = vmul.f32 %v4257, %v4281
      %v4292 = vmul.f32 %v4258, %v4281
      %v4293 = vmul.f32 %v4259, %v4281
      %v4294 = vmul.f32 %v4260, %v4281
      %v4295 = vmul.f32 %v4261, %v4281
      %v4296 = vmul.f32 %v4262, %v4281
      %v4297 = vmul.f32 %v4263, %v4281
      %v4298 = vmul.f32 %v4264, %v4281
      %v4299 = vmul.f32 %v4265, %v4281
      %v4300 = vmul.f32 %v4266, %v4281
      %v4301 = vmul.f32 %v4267, %v4281
      %v4302 = vmul.f32 %v4268, %v4281
      %v4303 = vmul.f32 %v4269, %v4281
      %v4304 = vmul.f32 %v4270, %v4281
      %v4305 = vmul.f32 %v4271, %v4281
      %v4306 = vmul.f32 %v4272, %v4281
      %v4307 = vmul.f32 %v4273, %v4281
      %v4308 = vmul.f32 %v4274, %v4281
      %v4309 = vmul.f32 %v4275, %v4281
      %v4310 = vmul.f32 %v4276, %v4281
      %v4311 = vmul.f32 %v4277, %v4281
      %v4312 = vmul.f32 %v4278, %v4281
      %v4313 = vmul.f32 %v4279, %v4281
      %v4314 = vmax.f32 %v4282, 0.0
      %v4315 = vmax.f32 %v4283, 0.0
      %v4316 = vmax.f32 %v4284, 0.0
      %v4317 = vmax.f32 %v4285, 0.0
      %v4318 = vmax.f32 %v4286, 0.0
      %v4319 = vmax.f32 %v4287, 0.0
      %v4320 = vmax.f32 %v4288, 0.0
      %v4321 = vmax.f32 %v4289, 0.0
      %v4322 = vmax.f32 %v4290, 0.0
      %v4323 = vmax.f32 %v4291, 0.0
      %v4324 = vmax.f32 %v4292, 0.0
      %v4325 = vmax.f32 %v4293, 0.0
      %v4326 = vmax.f32 %v4294, 0.0
      %v4327 = vmax.f32 %v4295, 0.0
      %v4328 = vmax.f32 %v4296, 0.0
      %v4329 = vmax.f32 %v4297, 0.0
      %v4330 = vmax.f32 %v4298, 0.0
      %v4331 = vmax.f32 %v4299, 0.0
      %v4332 = vmax.f32 %v4300, 0.0
      %v4333 = vmax.f32 %v4301, 0.0
      %v4334 = vmax.f32 %v4302, 0.0
      %v4335 = vmax.f32 %v4303, 0.0
      %v4336 = vmax.f32 %v4304, 0.0
      %v4337 = vmax.f32 %v4305, 0.0
      %v4338 = vmax.f32 %v4306, 0.0
      %v4339 = vmax.f32 %v4307, 0.0
      %v4340 = vmax.f32 %v4308, 0.0
      %v4341 = vmax.f32 %v4309, 0.0
      %v4342 = vmax.f32 %v4310, 0.0
      %v4343 = vmax.f32 %v4311, 0.0
      %v4344 = vmax.f32 %v4312, 0.0
      %v4345 = vmax.f32 %v4313, 0.0
      %v4346 = vpack.c.bf16 %v4315, %v4314
      %v4347 = vpack.c.bf16 %v4317, %v4316
      %v4348 = vpack.c.bf16 %v4319, %v4318
      %v4349 = vpack.c.bf16 %v4321, %v4320
      %v4350 = vpack.c.bf16 %v4323, %v4322
      %v4351 = vpack.c.bf16 %v4325, %v4324
      %v4352 = vpack.c.bf16 %v4327, %v4326
      %v4353 = vpack.c.bf16 %v4329, %v4328
      %v4354 = vpack.c.bf16 %v4331, %v4330
      %v4355 = vpack.c.bf16 %v4333, %v4332
      %v4356 = vpack.c.bf16 %v4335, %v4334
      %v4357 = vpack.c.bf16 %v4337, %v4336
      %v4358 = vpack.c.bf16 %v4339, %v4338
      %v4359 = vpack.c.bf16 %v4341, %v4340
      %v4360 = vpack.c.bf16 %v4343, %v4342
      %v4361 = vpack.c.bf16 %v4345, %v4344
      %v4378 = vunpack.c.l.b16 %v4346
      %v4379 = vunpack.c.h.b16 %v4346
      %v4380 = vunpack.c.l.b16 %v4347
      %v4381 = vunpack.c.h.b16 %v4347
      %v4382 = vunpack.c.l.b16 %v4348
      %v4383 = vunpack.c.h.b16 %v4348
      %v4384 = vunpack.c.l.b16 %v4349
      %v4385 = vunpack.c.h.b16 %v4349
      %v4386 = vunpack.c.l.b16 %v4350
      %v4387 = vunpack.c.h.b16 %v4350
      %v4388 = vunpack.c.l.b16 %v4351
      %v4389 = vunpack.c.h.b16 %v4351
      %v4390 = vunpack.c.l.b16 %v4352
      %v4391 = vunpack.c.h.b16 %v4352
      %v4392 = vunpack.c.l.b16 %v4353
      %v4393 = vunpack.c.h.b16 %v4353
      %v4394 = vunpack.c.l.b16 %v4354
      %v4395 = vunpack.c.h.b16 %v4354
      %v4396 = vunpack.c.l.b16 %v4355
      %v4397 = vunpack.c.h.b16 %v4355
      %v4398 = vunpack.c.l.b16 %v4356
      %v4399 = vunpack.c.h.b16 %v4356
      %v4400 = vunpack.c.l.b16 %v4357
      %v4401 = vunpack.c.h.b16 %v4357
      %v4402 = vunpack.c.l.b16 %v4358
      %v4403 = vunpack.c.h.b16 %v4358
      %v4404 = vunpack.c.l.b16 %v4359
      %v4405 = vunpack.c.h.b16 %v4359
      %v4406 = vunpack.c.l.b16 %v4360
      %v4407 = vunpack.c.h.b16 %v4360
      %v4408 = vunpack.c.l.b16 %v4361
      %v4409 = vunpack.c.h.b16 %v4361
      %v4410 = vpack.c.b16 %v4378, %v4378
      %v4411 = vpack.c.b16 %v4379, %v4379
      %v4412 = vpack.c.b16 %v4380, %v4380
      %v4413 = vpack.c.b16 %v4381, %v4381
      %v4414 = vpack.c.b16 %v4382, %v4382
      %v4415 = vpack.c.b16 %v4383, %v4383
      %v4416 = vpack.c.b16 %v4384, %v4384
      %v4417 = vpack.c.b16 %v4385, %v4385
      %v4418 = vpack.c.b16 %v4386, %v4386
      %v4419 = vpack.c.b16 %v4387, %v4387
      %v4420 = vpack.c.b16 %v4388, %v4388
      %v4421 = vpack.c.b16 %v4389, %v4389
      %v4422 = vpack.c.b16 %v4390, %v4390
      %v4423 = vpack.c.b16 %v4391, %v4391
      %v4424 = vpack.c.b16 %v4392, %v4392
      %v4425 = vpack.c.b16 %v4393, %v4393
      %v4426 = vpack.c.b16 %v4394, %v4394
      %v4427 = vpack.c.b16 %v4395, %v4395
      %v4428 = vpack.c.b16 %v4396, %v4396
      %v4429 = vpack.c.b16 %v4397, %v4397
      %v4430 = vpack.c.b16 %v4398, %v4398
      %v4431 = vpack.c.b16 %v4399, %v4399
      %v4432 = vpack.c.b16 %v4400, %v4400
      %v4433 = vpack.c.b16 %v4401, %v4401
      %v4434 = vpack.c.b16 %v4402, %v4402
      %v4435 = vpack.c.b16 %v4403, %v4403
      %v4436 = vpack.c.b16 %v4404, %v4404
      %v4437 = vpack.c.b16 %v4405, %v4405
      %v4438 = vpack.c.b16 %v4406, %v4406
      %v4439 = vpack.c.b16 %v4407, %v4407
      %v4440 = vpack.c.b16 %v4408, %v4408
      %v4441 = vpack.c.b16 %v4409, %v4409
      %v4443 = vshrl.u32 %v4410, 16
      %v4445 = vrot.slane %v4443, 7
      %v4446 = vshll.u32 %v4410, 16
      %v4448 = vor.u32 %v4445, %v4446
      %v4449 = vrot.slane %v4445, 4
      %v4451 = vshrl.u32 %v4411, 16
      %v4453 = vrot.slane %v4451, 7
      %v4454 = vshll.u32 %v4411, 16
      %v4456 = vor.u32 %v4453, %v4454
      %v4457 = vsel %vm1284, %v4449, %v4456
      %v4458 = vrot.slane %v4453, 4
      %v4460 = vshrl.u32 %v4412, 16
      %v4462 = vrot.slane %v4460, 7
      %v4463 = vshll.u32 %v4412, 16
      %v4465 = vor.u32 %v4462, %v4463
      %v4466 = vrot.slane %v4462, 4
      %v4468 = vshrl.u32 %v4413, 16
      %v4470 = vrot.slane %v4468, 7
      %v4471 = vshll.u32 %v4413, 16
      %v4473 = vor.u32 %v4470, %v4471
      %v4474 = vsel %vm1284, %v4466, %v4473
      %v4475 = vrot.slane %v4470, 4
      %v4477 = vshrl.u32 %v4414, 16
      %v4479 = vrot.slane %v4477, 7
      %v4480 = vshll.u32 %v4414, 16
      %v4482 = vor.u32 %v4479, %v4480
      %v4483 = vrot.slane %v4479, 4
      %v4485 = vshrl.u32 %v4415, 16
      %v4487 = vrot.slane %v4485, 7
      %v4488 = vshll.u32 %v4415, 16
      %v4490 = vor.u32 %v4487, %v4488
      %v4491 = vsel %vm1284, %v4483, %v4490
      %v4492 = vrot.slane %v4487, 4
      %v4494 = vshrl.u32 %v4416, 16
      %v4496 = vrot.slane %v4494, 7
      %v4497 = vshll.u32 %v4416, 16
      %v4499 = vor.u32 %v4496, %v4497
      %v4500 = vrot.slane %v4496, 4
      %v4502 = vshrl.u32 %v4417, 16
      %v4504 = vrot.slane %v4502, 7
      %v4505 = vshll.u32 %v4417, 16
      %v4507 = vor.u32 %v4504, %v4505
      %v4508 = vsel %vm1284, %v4500, %v4507
      %v4509 = vrot.slane %v4504, 4
      %v4511 = vshrl.u32 %v4418, 16
      %v4513 = vrot.slane %v4511, 7
      %v4514 = vshll.u32 %v4418, 16
      %v4516 = vor.u32 %v4513, %v4514
      %v4517 = vrot.slane %v4513, 4
      %v4519 = vshrl.u32 %v4419, 16
      %v4521 = vrot.slane %v4519, 7
      %v4522 = vshll.u32 %v4419, 16
      %v4524 = vor.u32 %v4521, %v4522
      %v4525 = vsel %vm1284, %v4517, %v4524
      %v4526 = vrot.slane %v4521, 4
      %v4528 = vshrl.u32 %v4420, 16
      %v4530 = vrot.slane %v4528, 7
      %v4531 = vshll.u32 %v4420, 16
      %v4533 = vor.u32 %v4530, %v4531
      %v4534 = vrot.slane %v4530, 4
      %v4536 = vshrl.u32 %v4421, 16
      %v4538 = vrot.slane %v4536, 7
      %v4539 = vshll.u32 %v4421, 16
      %v4541 = vor.u32 %v4538, %v4539
      %v4542 = vsel %vm1284, %v4534, %v4541
      %v4543 = vrot.slane %v4538, 4
      %v4545 = vshrl.u32 %v4422, 16
      %v4547 = vrot.slane %v4545, 7
      %v4548 = vshll.u32 %v4422, 16
      %v4550 = vor.u32 %v4547, %v4548
      %v4551 = vrot.slane %v4547, 4
      %v4553 = vshrl.u32 %v4423, 16
      %v4555 = vrot.slane %v4553, 7
      %v4556 = vshll.u32 %v4423, 16
      %v4558 = vor.u32 %v4555, %v4556
      %v4559 = vsel %vm1284, %v4551, %v4558
      %v4560 = vrot.slane %v4555, 4
      %v4562 = vshrl.u32 %v4424, 16
      %v4564 = vrot.slane %v4562, 7
      %v4565 = vshll.u32 %v4424, 16
      %v4567 = vor.u32 %v4564, %v4565
      %v4568 = vrot.slane %v4564, 4
      %v4570 = vshrl.u32 %v4425, 16
      %v4572 = vrot.slane %v4570, 7
      %v4573 = vshll.u32 %v4425, 16
      %v4575 = vor.u32 %v4572, %v4573
      %v4576 = vsel %vm1284, %v4568, %v4575
      %v4577 = vrot.slane %v4572, 4
      %v4579 = vshrl.u32 %v4426, 16
      %v4581 = vrot.slane %v4579, 7
      %v4582 = vshll.u32 %v4426, 16
      %v4584 = vor.u32 %v4581, %v4582
      %v4585 = vrot.slane %v4581, 4
      %v4587 = vshrl.u32 %v4427, 16
      %v4589 = vrot.slane %v4587, 7
      %v4590 = vshll.u32 %v4427, 16
      %v4592 = vor.u32 %v4589, %v4590
      %v4593 = vsel %vm1284, %v4585, %v4592
      %v4594 = vrot.slane %v4589, 4
      %v4596 = vshrl.u32 %v4428, 16
      %v4598 = vrot.slane %v4596, 7
      %v4599 = vshll.u32 %v4428, 16
      %v4601 = vor.u32 %v4598, %v4599
      %v4602 = vrot.slane %v4598, 4
      %v4604 = vshrl.u32 %v4429, 16
      %v4606 = vrot.slane %v4604, 7
      %v4607 = vshll.u32 %v4429, 16
      %v4609 = vor.u32 %v4606, %v4607
      %v4610 = vsel %vm1284, %v4602, %v4609
      %v4611 = vrot.slane %v4606, 4
      %v4613 = vshrl.u32 %v4430, 16
      %v4615 = vrot.slane %v4613, 7
      %v4616 = vshll.u32 %v4430, 16
      %v4618 = vor.u32 %v4615, %v4616
      %v4619 = vrot.slane %v4615, 4
      %v4621 = vshrl.u32 %v4431, 16
      %v4623 = vrot.slane %v4621, 7
      %v4624 = vshll.u32 %v4431, 16
      %v4626 = vor.u32 %v4623, %v4624
      %v4627 = vsel %vm1284, %v4619, %v4626
      %v4628 = vrot.slane %v4623, 4
      %v4630 = vshrl.u32 %v4432, 16
      %v4632 = vrot.slane %v4630, 7
      %v4633 = vshll.u32 %v4432, 16
      %v4635 = vor.u32 %v4632, %v4633
      %v4636 = vrot.slane %v4632, 4
      %v4638 = vshrl.u32 %v4433, 16
      %v4640 = vrot.slane %v4638, 7
      %v4641 = vshll.u32 %v4433, 16
      %v4643 = vor.u32 %v4640, %v4641
      %v4644 = vsel %vm1284, %v4636, %v4643
      %v4645 = vrot.slane %v4640, 4
      %v4647 = vshrl.u32 %v4434, 16
      %v4649 = vrot.slane %v4647, 7
      %v4650 = vshll.u32 %v4434, 16
      %v4652 = vor.u32 %v4649, %v4650
      %v4653 = vrot.slane %v4649, 4
      %v4655 = vshrl.u32 %v4435, 16
      %v4657 = vrot.slane %v4655, 7
      %v4658 = vshll.u32 %v4435, 16
      %v4660 = vor.u32 %v4657, %v4658
      %v4661 = vsel %vm1284, %v4653, %v4660
      %v4662 = vrot.slane %v4657, 4
      %v4664 = vshrl.u32 %v4436, 16
      %v4666 = vrot.slane %v4664, 7
      %v4667 = vshll.u32 %v4436, 16
      %v4669 = vor.u32 %v4666, %v4667
      %v4670 = vrot.slane %v4666, 4
      %v4672 = vshrl.u32 %v4437, 16
      %v4674 = vrot.slane %v4672, 7
      %v4675 = vshll.u32 %v4437, 16
      %v4677 = vor.u32 %v4674, %v4675
      %v4678 = vsel %vm1284, %v4670, %v4677
      %v4679 = vrot.slane %v4674, 4
      %v4681 = vshrl.u32 %v4438, 16
      %v4683 = vrot.slane %v4681, 7
      %v4684 = vshll.u32 %v4438, 16
      %v4686 = vor.u32 %v4683, %v4684
      %v4687 = vrot.slane %v4683, 4
      %v4689 = vshrl.u32 %v4439, 16
      %v4691 = vrot.slane %v4689, 7
      %v4692 = vshll.u32 %v4439, 16
      %v4694 = vor.u32 %v4691, %v4692
      %v4695 = vsel %vm1284, %v4687, %v4694
      %v4696 = vrot.slane %v4691, 4
      %v4698 = vshrl.u32 %v4440, 16
      %v4700 = vrot.slane %v4698, 7
      %v4701 = vshll.u32 %v4440, 16
      %v4703 = vor.u32 %v4700, %v4701
      %v4704 = vrot.slane %v4700, 4
      %v4706 = vshrl.u32 %v4441, 16
      %v4708 = vrot.slane %v4706, 7
      %v4709 = vshll.u32 %v4441, 16
      %v4711 = vor.u32 %v4708, %v4709
      %v4712 = vsel %vm1284, %v4704, %v4711
      %v4713 = vrot.slane %v4708, 4
      %v4762 = vld [vmem:[%s1605] sm:$0xf]
      %v4763 = vsel %vm1608, %v4448, %v4762
      %4764 = vst [vmem:[%s1605] sm:$0xf] %v4763
      %4765 = vst.msk [vmem:[%s1605 + $0x4] sm:$0xf] %vm191, %v4457
      %v4766 = vld [vmem:[%s1605 + $0x8] sm:$0x1]
      %v4767 = vsel %vm1614, %v4458, %v4766
      %4768 = vst [vmem:[%s1605 + $0x8] sm:$0x1] %v4767
      %v4769 = vld [vmem:[%s1605 + $0xc] sm:$0xf]
      %v4770 = vsel %vm1608, %v4465, %v4769
      %4771 = vst [vmem:[%s1605 + $0xc] sm:$0xf] %v4770
      %4772 = vst.msk [vmem:[%s1605 + $0x10] sm:$0xf] %vm191, %v4474
      %v4773 = vld [vmem:[%s1605 + $0x14] sm:$0x1]
      %v4774 = vsel %vm1614, %v4475, %v4773
      %4775 = vst [vmem:[%s1605 + $0x14] sm:$0x1] %v4774
      %v4776 = vld [vmem:[%s1605 + $0x18] sm:$0xf]
      %v4777 = vsel %vm1608, %v4482, %v4776
      %4778 = vst [vmem:[%s1605 + $0x18] sm:$0xf] %v4777
      %4779 = vst.msk [vmem:[%s1605 + $0x1c] sm:$0xf] %vm191, %v4491
      %v4780 = vld [vmem:[%s1605 + $0x20] sm:$0x1]
      %v4781 = vsel %vm1614, %v4492, %v4780
      %4782 = vst [vmem:[%s1605 + $0x20] sm:$0x1] %v4781
      %v4783 = vld [vmem:[%s1605 + $0x24] sm:$0xf]
      %v4784 = vsel %vm1608, %v4499, %v4783
      %4785 = vst [vmem:[%s1605 + $0x24] sm:$0xf] %v4784
      %4786 = vst.msk [vmem:[%s1605 + $0x28] sm:$0xf] %vm191, %v4508
      %v4787 = vld [vmem:[%s1605 + $0x2c] sm:$0x1]
      %v4788 = vsel %vm1614, %v4509, %v4787
      %4789 = vst [vmem:[%s1605 + $0x2c] sm:$0x1] %v4788
      %v4790 = vld [vmem:[%s1605 + $0x30] sm:$0xf]
      %v4791 = vsel %vm1608, %v4516, %v4790
      %4792 = vst [vmem:[%s1605 + $0x30] sm:$0xf] %v4791
      %4793 = vst.msk [vmem:[%s1605 + $0x34] sm:$0xf] %vm191, %v4525
      %v4794 = vld [vmem:[%s1605 + $0x38] sm:$0x1]
      %v4795 = vsel %vm1614, %v4526, %v4794
      %4796 = vst [vmem:[%s1605 + $0x38] sm:$0x1] %v4795
      %v4797 = vld [vmem:[%s1605 + $0x3c] sm:$0xf]
      %v4798 = vsel %vm1608, %v4533, %v4797
      %4799 = vst [vmem:[%s1605 + $0x3c] sm:$0xf] %v4798
      %4800 = vst.msk [vmem:[%s1605 + $0x40] sm:$0xf] %vm191, %v4542
      %v4801 = vld [vmem:[%s1605 + $0x44] sm:$0x1]
      %v4802 = vsel %vm1614, %v4543, %v4801
      %4803 = vst [vmem:[%s1605 + $0x44] sm:$0x1] %v4802
      %v4804 = vld [vmem:[%s1605 + $0x48] sm:$0xf]
      %v4805 = vsel %vm1608, %v4550, %v4804
      %4806 = vst [vmem:[%s1605 + $0x48] sm:$0xf] %v4805
      %4807 = vst.msk [vmem:[%s1605 + $0x4c] sm:$0xf] %vm191, %v4559
      %v4808 = vld [vmem:[%s1605 + $0x50] sm:$0x1]
      %v4809 = vsel %vm1614, %v4560, %v4808
      %4810 = vst [vmem:[%s1605 + $0x50] sm:$0x1] %v4809
      %v4811 = vld [vmem:[%s1605 + $0x54] sm:$0xf]
      %v4812 = vsel %vm1608, %v4567, %v4811
      %4813 = vst [vmem:[%s1605 + $0x54] sm:$0xf] %v4812
      %4814 = vst.msk [vmem:[%s1605 + $0x58] sm:$0xf] %vm191, %v4576
      %v4815 = vld [vmem:[%s1605 + $0x5c] sm:$0x1]
      %v4816 = vsel %vm1614, %v4577, %v4815
      %4817 = vst [vmem:[%s1605 + $0x5c] sm:$0x1] %v4816
      %v4818 = vld [vmem:[%s1605 + $0x60] sm:$0xf]
      %v4819 = vsel %vm1608, %v4584, %v4818
      %4820 = vst [vmem:[%s1605 + $0x60] sm:$0xf] %v4819
      %4821 = vst.msk [vmem:[%s1605 + $0x64] sm:$0xf] %vm191, %v4593
      %v4822 = vld [vmem:[%s1605 + $0x68] sm:$0x1]
      %v4823 = vsel %vm1614, %v4594, %v4822
      %4824 = vst [vmem:[%s1605 + $0x68] sm:$0x1] %v4823
      %v4825 = vld [vmem:[%s1605 + $0x6c] sm:$0xf]
      %v4826 = vsel %vm1608, %v4601, %v4825
      %4827 = vst [vmem:[%s1605 + $0x6c] sm:$0xf] %v4826
      %4828 = vst.msk [vmem:[%s1605 + $0x70] sm:$0xf] %vm191, %v4610
      %v4829 = vld [vmem:[%s1605 + $0x74] sm:$0x1]
      %v4830 = vsel %vm1614, %v4611, %v4829
      %4831 = vst [vmem:[%s1605 + $0x74] sm:$0x1] %v4830
      %v4832 = vld [vmem:[%s1605 + $0x78] sm:$0xf]
      %v4833 = vsel %vm1608, %v4618, %v4832
      %4834 = vst [vmem:[%s1605 + $0x78] sm:$0xf] %v4833
      %4835 = vst.msk [vmem:[%s1605 + $0x7c] sm:$0xf] %vm191, %v4627
      %v4836 = vld [vmem:[%s1605 + $0x80] sm:$0x1]
      %v4837 = vsel %vm1614, %v4628, %v4836
      %4838 = vst [vmem:[%s1605 + $0x80] sm:$0x1] %v4837
      %v4839 = vld [vmem:[%s1605 + $0x84] sm:$0xf]
      %v4840 = vsel %vm1608, %v4635, %v4839
      %4841 = vst [vmem:[%s1605 + $0x84] sm:$0xf] %v4840
      %4842 = vst.msk [vmem:[%s1605 + $0x88] sm:$0xf] %vm191, %v4644
      %v4843 = vld [vmem:[%s1605 + $0x8c] sm:$0x1]
      %v4844 = vsel %vm1614, %v4645, %v4843
      %4845 = vst [vmem:[%s1605 + $0x8c] sm:$0x1] %v4844
      %v4846 = vld [vmem:[%s1605 + $0x90] sm:$0xf]
      %v4847 = vsel %vm1608, %v4652, %v4846
      %4848 = vst [vmem:[%s1605 + $0x90] sm:$0xf] %v4847
      %4849 = vst.msk [vmem:[%s1605 + $0x94] sm:$0xf] %vm191, %v4661
      %v4850 = vld [vmem:[%s1605 + $0x98] sm:$0x1]
      %v4851 = vsel %vm1614, %v4662, %v4850
      %4852 = vst [vmem:[%s1605 + $0x98] sm:$0x1] %v4851
      %v4853 = vld [vmem:[%s1605 + $0x9c] sm:$0xf]
      %v4854 = vsel %vm1608, %v4669, %v4853
      %4855 = vst [vmem:[%s1605 + $0x9c] sm:$0xf] %v4854
      %4856 = vst.msk [vmem:[%s1605 + $0xa0] sm:$0xf] %vm191, %v4678
      %v4857 = vld [vmem:[%s1605 + $0xa4] sm:$0x1]
      %v4858 = vsel %vm1614, %v4679, %v4857
      %4859 = vst [vmem:[%s1605 + $0xa4] sm:$0x1] %v4858
      %v4860 = vld [vmem:[%s1605 + $0xa8] sm:$0xf]
      %v4861 = vsel %vm1608, %v4686, %v4860
      %4862 = vst [vmem:[%s1605 + $0xa8] sm:$0xf] %v4861
      %4863 = vst.msk [vmem:[%s1605 + $0xac] sm:$0xf] %vm191, %v4695
      %v4864 = vld [vmem:[%s1605 + $0xb0] sm:$0x1]
      %v4865 = vsel %vm1614, %v4696, %v4864
      %4866 = vst [vmem:[%s1605 + $0xb0] sm:$0x1] %v4865
      %v4867 = vld [vmem:[%s1605 + $0xb4] sm:$0xf]
      %v4868 = vsel %vm1608, %v4703, %v4867
      %4869 = vst [vmem:[%s1605 + $0xb4] sm:$0xf] %v4868
      %4870 = vst.msk [vmem:[%s1605 + $0xb8] sm:$0xf] %vm191, %v4712
      %v4871 = vld [vmem:[%s1605 + $0xbc] sm:$0x1]
      %v4872 = vsel %vm1614, %v4713, %v4871
      %4873 = vst [vmem:[%s1605 + $0xbc] sm:$0x1] %v4872
      %v4874 = vld [vmem:[%s1605] sm:$0x2]
      %v4875 = vld [vmem:[%s1605 + $0xc] sm:$0x2]
      %v4876 = vld [vmem:[%s1605 + $0x18] sm:$0x2]
      %v4877 = vld [vmem:[%s1605 + $0x24] sm:$0x2]
      %v4878 = vld [vmem:[%s1605 + $0x30] sm:$0x2]
      %v4879 = vld [vmem:[%s1605 + $0x3c] sm:$0x2]
      %v4880 = vld [vmem:[%s1605 + $0x48] sm:$0x2]
      %v4881 = vld [vmem:[%s1605 + $0x54] sm:$0x2]
      %v4882 = vld [vmem:[%s1605 + $0x60] sm:$0x2]
      %v4883 = vld [vmem:[%s1605 + $0x6c] sm:$0x2]
      %v4884 = vld [vmem:[%s1605 + $0x78] sm:$0x2]
      %v4885 = vld [vmem:[%s1605 + $0x84] sm:$0x2]
      %v4886 = vld [vmem:[%s1605 + $0x90] sm:$0x2]
      %v4887 = vld [vmem:[%s1605 + $0x9c] sm:$0x2]
      %v4888 = vld [vmem:[%s1605 + $0xa8] sm:$0x2]
      %v4889 = vld [vmem:[%s1605 + $0xb4] sm:$0x2]
      %v4906 = vrot.slane %v4874, 5
      %v4907 = vrot.slane %v4906, 4
      %v4908 = vrot.slane %v4875, 5
      %v4909 = vrot.slane %v4908, 4
      %v4910 = vrot.slane %v4876, 5
      %v4911 = vrot.slane %v4910, 4
      %v4912 = vrot.slane %v4877, 5
      %v4913 = vrot.slane %v4912, 4
      %v4914 = vrot.slane %v4878, 5
      %v4915 = vrot.slane %v4914, 4
      %v4916 = vrot.slane %v4879, 5
      %v4917 = vrot.slane %v4916, 4
      %v4918 = vrot.slane %v4880, 5
      %v4919 = vrot.slane %v4918, 4
      %v4920 = vrot.slane %v4881, 5
      %v4921 = vrot.slane %v4920, 4
      %v4922 = vrot.slane %v4882, 5
      %v4923 = vrot.slane %v4922, 4
      %v4924 = vrot.slane %v4883, 5
      %v4925 = vrot.slane %v4924, 4
      %v4926 = vrot.slane %v4884, 5
      %v4927 = vrot.slane %v4926, 4
      %v4928 = vrot.slane %v4885, 5
      %v4929 = vrot.slane %v4928, 4
      %v4930 = vrot.slane %v4886, 5
      %v4931 = vrot.slane %v4930, 4
      %v4932 = vrot.slane %v4887, 5
      %v4933 = vrot.slane %v4932, 4
      %v4934 = vrot.slane %v4888, 5
      %v4935 = vrot.slane %v4934, 4
      %v4936 = vrot.slane %v4889, 5
      %v4937 = vrot.slane %v4936, 4
      %v4954 = vld [vmem:[%s1605] sm:$0x1]
      %v4955 = vsel %vm1614, %v4907, %v4954
      %4956 = vst [vmem:[%s1605] sm:$0x1] %v4955
      %v4957 = vld [vmem:[%s1605 + $0xc] sm:$0x1]
      %v4958 = vsel %vm1614, %v4909, %v4957
      %4959 = vst [vmem:[%s1605 + $0xc] sm:$0x1] %v4958
      %v4960 = vld [vmem:[%s1605 + $0x18] sm:$0x1]
      %v4961 = vsel %vm1614, %v4911, %v4960
      %4962 = vst [vmem:[%s1605 + $0x18] sm:$0x1] %v4961
      %v4963 = vld [vmem:[%s1605 + $0x24] sm:$0x1]
      %v4964 = vsel %vm1614, %v4913, %v4963
      %4965 = vst [vmem:[%s1605 + $0x24] sm:$0x1] %v4964
      %v4966 = vld [vmem:[%s1605 + $0x30] sm:$0x1]
      %v4967 = vsel %vm1614, %v4915, %v4966
      %4968 = vst [vmem:[%s1605 + $0x30] sm:$0x1] %v4967
      %v4969 = vld [vmem:[%s1605 + $0x3c] sm:$0x1]
      %v4970 = vsel %vm1614, %v4917, %v4969
      %4971 = vst [vmem:[%s1605 + $0x3c] sm:$0x1] %v4970
      %v4972 = vld [vmem:[%s1605 + $0x48] sm:$0x1]
      %v4973 = vsel %vm1614, %v4919, %v4972
      %4974 = vst [vmem:[%s1605 + $0x48] sm:$0x1] %v4973
      %v4975 = vld [vmem:[%s1605 + $0x54] sm:$0x1]
      %v4976 = vsel %vm1614, %v4921, %v4975
      %4977 = vst [vmem:[%s1605 + $0x54] sm:$0x1] %v4976
      %v4978 = vld [vmem:[%s1605 + $0x60] sm:$0x1]
      %v4979 = vsel %vm1614, %v4923, %v4978
      %4980 = vst [vmem:[%s1605 + $0x60] sm:$0x1] %v4979
      %v4981 = vld [vmem:[%s1605 + $0x6c] sm:$0x1]
      %v4982 = vsel %vm1614, %v4925, %v4981
      %4983 = vst [vmem:[%s1605 + $0x6c] sm:$0x1] %v4982
      %v4984 = vld [vmem:[%s1605 + $0x78] sm:$0x1]
      %v4985 = vsel %vm1614, %v4927, %v4984
      %4986 = vst [vmem:[%s1605 + $0x78] sm:$0x1] %v4985
      %v4987 = vld [vmem:[%s1605 + $0x84] sm:$0x1]
      %v4988 = vsel %vm1614, %v4929, %v4987
      %4989 = vst [vmem:[%s1605 + $0x84] sm:$0x1] %v4988
      %v4990 = vld [vmem:[%s1605 + $0x90] sm:$0x1]
      %v4991 = vsel %vm1614, %v4931, %v4990
      %4992 = vst [vmem:[%s1605 + $0x90] sm:$0x1] %v4991
      %v4993 = vld [vmem:[%s1605 + $0x9c] sm:$0x1]
      %v4994 = vsel %vm1614, %v4933, %v4993
      %4995 = vst [vmem:[%s1605 + $0x9c] sm:$0x1] %v4994
      %v4996 = vld [vmem:[%s1605 + $0xa8] sm:$0x1]
      %v4997 = vsel %vm1614, %v4935, %v4996
      %4998 = vst [vmem:[%s1605 + $0xa8] sm:$0x1] %v4997
      %v4999 = vld [vmem:[%s1605 + $0xb4] sm:$0x1]
      %v5000 = vsel %vm1614, %v4937, %v4999
      %5001 = vst [vmem:[%s1605 + $0xb4] sm:$0x1] %v5000
      %v5002 = vld [vmem:[%s1605 + $0x4] sm:$0x8]
      %v5003 = vld [vmem:[%s1605 + $0x10] sm:$0x8]
      %v5004 = vld [vmem:[%s1605 + $0x1c] sm:$0x8]
      %v5005 = vld [vmem:[%s1605 + $0x28] sm:$0x8]
      %v5006 = vld [vmem:[%s1605 + $0x34] sm:$0x8]
      %v5007 = vld [vmem:[%s1605 + $0x40] sm:$0x8]
      %v5008 = vld [vmem:[%s1605 + $0x4c] sm:$0x8]
      %v5009 = vld [vmem:[%s1605 + $0x58] sm:$0x8]
      %v5010 = vld [vmem:[%s1605 + $0x64] sm:$0x8]
      %v5011 = vld [vmem:[%s1605 + $0x70] sm:$0x8]
      %v5012 = vld [vmem:[%s1605 + $0x7c] sm:$0x8]
      %v5013 = vld [vmem:[%s1605 + $0x88] sm:$0x8]
      %v5014 = vld [vmem:[%s1605 + $0x94] sm:$0x8]
      %v5015 = vld [vmem:[%s1605 + $0xa0] sm:$0x8]
      %v5016 = vld [vmem:[%s1605 + $0xac] sm:$0x8]
      %v5017 = vld [vmem:[%s1605 + $0xb8] sm:$0x8]
      %v5034 = vrot.slane %v5002, 7
      %v5035 = vrot.slane %v5034, 4
      %v5036 = vrot.slane %v5003, 7
      %v5037 = vrot.slane %v5036, 4
      %v5038 = vrot.slane %v5004, 7
      %v5039 = vrot.slane %v5038, 4
      %v5040 = vrot.slane %v5005, 7
      %v5041 = vrot.slane %v5040, 4
      %v5042 = vrot.slane %v5006, 7
      %v5043 = vrot.slane %v5042, 4
      %v5044 = vrot.slane %v5007, 7
      %v5045 = vrot.slane %v5044, 4
      %v5046 = vrot.slane %v5008, 7
      %v5047 = vrot.slane %v5046, 4
      %v5048 = vrot.slane %v5009, 7
      %v5049 = vrot.slane %v5048, 4
      %v5050 = vrot.slane %v5010, 7
      %v5051 = vrot.slane %v5050, 4
      %v5052 = vrot.slane %v5011, 7
      %v5053 = vrot.slane %v5052, 4
      %v5054 = vrot.slane %v5012, 7
      %v5055 = vrot.slane %v5054, 4
      %v5056 = vrot.slane %v5013, 7
      %v5057 = vrot.slane %v5056, 4
      %v5058 = vrot.slane %v5014, 7
      %v5059 = vrot.slane %v5058, 4
      %v5060 = vrot.slane %v5015, 7
      %v5061 = vrot.slane %v5060, 4
      %v5062 = vrot.slane %v5016, 7
      %v5063 = vrot.slane %v5062, 4
      %v5064 = vrot.slane %v5017, 7
      %v5065 = vrot.slane %v5064, 4
      %v5082 = vld [vmem:[%s1605 + $0x8] sm:$0x1]
      %v5083 = vsel %vm1931, %v5035, %v5082
      %5084 = vst [vmem:[%s1605 + $0x8] sm:$0x1] %v5083
      %v5085 = vld [vmem:[%s1605 + $0x14] sm:$0x1]
      %v5086 = vsel %vm1931, %v5037, %v5085
      %5087 = vst [vmem:[%s1605 + $0x14] sm:$0x1] %v5086
      %v5088 = vld [vmem:[%s1605 + $0x20] sm:$0x1]
      %v5089 = vsel %vm1931, %v5039, %v5088
      %5090 = vst [vmem:[%s1605 + $0x20] sm:$0x1] %v5089
      %v5091 = vld [vmem:[%s1605 + $0x2c] sm:$0x1]
      %v5092 = vsel %vm1931, %v5041, %v5091
      %5093 = vst [vmem:[%s1605 + $0x2c] sm:$0x1] %v5092
      %v5094 = vld [vmem:[%s1605 + $0x38] sm:$0x1]
      %v5095 = vsel %vm1931, %v5043, %v5094
      %5096 = vst [vmem:[%s1605 + $0x38] sm:$0x1] %v5095
      %v5097 = vld [vmem:[%s1605 + $0x44] sm:$0x1]
      %v5098 = vsel %vm1931, %v5045, %v5097
      %5099 = vst [vmem:[%s1605 + $0x44] sm:$0x1] %v5098
      %v5100 = vld [vmem:[%s1605 + $0x50] sm:$0x1]
      %v5101 = vsel %vm1931, %v5047, %v5100
      %5102 = vst [vmem:[%s1605 + $0x50] sm:$0x1] %v5101
      %v5103 = vld [vmem:[%s1605 + $0x5c] sm:$0x1]
      %v5104 = vsel %vm1931, %v5049, %v5103
      %5105 = vst [vmem:[%s1605 + $0x5c] sm:$0x1] %v5104
      %v5106 = vld [vmem:[%s1605 + $0x68] sm:$0x1]
      %v5107 = vsel %vm1931, %v5051, %v5106
      %5108 = vst [vmem:[%s1605 + $0x68] sm:$0x1] %v5107
      %v5109 = vld [vmem:[%s1605 + $0x74] sm:$0x1]
      %v5110 = vsel %vm1931, %v5053, %v5109
      %5111 = vst [vmem:[%s1605 + $0x74] sm:$0x1] %v5110
      %v5112 = vld [vmem:[%s1605 + $0x80] sm:$0x1]
      %v5113 = vsel %vm1931, %v5055, %v5112
      %5114 = vst [vmem:[%s1605 + $0x80] sm:$0x1] %v5113
      %v5115 = vld [vmem:[%s1605 + $0x8c] sm:$0x1]
      %v5116 = vsel %vm1931, %v5057, %v5115
      %5117 = vst [vmem:[%s1605 + $0x8c] sm:$0x1] %v5116
      %v5118 = vld [vmem:[%s1605 + $0x98] sm:$0x1]
      %v5119 = vsel %vm1931, %v5059, %v5118
      %5120 = vst [vmem:[%s1605 + $0x98] sm:$0x1] %v5119
      %v5121 = vld [vmem:[%s1605 + $0xa4] sm:$0x1]
      %v5122 = vsel %vm1931, %v5061, %v5121
      %5123 = vst [vmem:[%s1605 + $0xa4] sm:$0x1] %v5122
      %v5124 = vld [vmem:[%s1605 + $0xb0] sm:$0x1]
      %v5125 = vsel %vm1931, %v5063, %v5124
      %5126 = vst [vmem:[%s1605 + $0xb0] sm:$0x1] %v5125
      %v5127 = vld [vmem:[%s1605 + $0xbc] sm:$0x1]
      %v5128 = vsel %vm1931, %v5065, %v5127
      %5129 = vst [vmem:[%s1605 + $0xbc] sm:$0x1] %v5128
      %v5130 = vld [vmem:[%s1980] sm:$0xf]
      %v5131 = vld [vmem:[%s1980 + $0x4] sm:$0xf]
      %v5132 = vld [vmem:[%s1980 + $0x8] sm:$0xf]
      %5133 = vst.msk [vmem:[#allocation2] sm:$0xf] %vm191, %v5130
      %5134 = vst.msk [vmem:[#allocation2 + $0x4] sm:$0xf] %vm191, %v5131
      %5135 = vst.msk [vmem:[#allocation2 + $0x8] sm:$0xf] %vm191, %v5132
      %v5136 = vld [vmem:[%s1987] sm:$0xf]
      %v5137 = vld [vmem:[%s1987 + $0x4] sm:$0xf]
      %v5138 = vld [vmem:[%s1987 + $0x8] sm:$0xf]
      %5139 = vst.msk [vmem:[%s1991] sm:$0xf] %vm191, %v5136
      %5140 = vst.msk [vmem:[%s1991 + $0x4] sm:$0xf] %vm191, %v5137
      %5141 = vst.msk [vmem:[%s1991 + $0x8] sm:$0xf] %vm191, %v5138
      %v5142 = vld [vmem:[#allocation2] sm:$0xf]
      %v5143 = vld [vmem:[#allocation2 + $0x4] sm:$0xf]
      %v5144 = vld [vmem:[#allocation2 + $0x8] sm:$0xf]
      %v5145 = vld [vmem:[#allocation2 + $0xc] sm:$0xf]
      %v5146 = vld [vmem:[#allocation2 + $0x10] sm:$0xf]
      %v5147 = vld [vmem:[#allocation2 + $0x14] sm:$0xf]
      %v5148 = vld [vmem:[#allocation2 + $0x18] sm:$0xf]
      %v5149 = vld [vmem:[#allocation2 + $0x1c] sm:$0xf]
      %v5150 = vld [vmem:[#allocation2 + $0x20] sm:$0xf]
      %v5151 = vld [vmem:[#allocation2 + $0x24] sm:$0xf]
      %v5152 = vld [vmem:[#allocation2 + $0x28] sm:$0xf]
      %v5153 = vld [vmem:[#allocation2 + $0x2c] sm:$0xf]
      %v5154 = vld [vmem:[#allocation2 + $0x30] sm:$0xf]
      %v5155 = vld [vmem:[#allocation2 + $0x34] sm:$0xf]
      %v5156 = vld [vmem:[#allocation2 + $0x38] sm:$0xf]
      %v5157 = vld [vmem:[#allocation2 + $0x3c] sm:$0xf]
      %v5158 = vld [vmem:[#allocation2 + $0x40] sm:$0xf]
      %v5159 = vld [vmem:[#allocation2 + $0x44] sm:$0xf]
      %v5160 = vld [vmem:[#allocation2 + $0x48] sm:$0xf]
      %v5161 = vld [vmem:[#allocation2 + $0x4c] sm:$0xf]
      %v5162 = vld [vmem:[#allocation2 + $0x50] sm:$0xf]
      %v5163 = vld [vmem:[#allocation2 + $0x54] sm:$0xf]
      %v5164 = vld [vmem:[#allocation2 + $0x58] sm:$0xf]
      %v5165 = vld [vmem:[#allocation2 + $0x5c] sm:$0xf]
      %v5166 = vld [vmem:[#allocation2 + $0x60] sm:$0xf]
      %v5167 = vld [vmem:[#allocation2 + $0x64] sm:$0xf]
      %v5168 = vld [vmem:[#allocation2 + $0x68] sm:$0xf]
      %v5169 = vld [vmem:[#allocation2 + $0x6c] sm:$0xf]
      %v5170 = vld [vmem:[#allocation2 + $0x70] sm:$0xf]
      %v5171 = vld [vmem:[#allocation2 + $0x74] sm:$0xf]
      %v5172 = vld [vmem:[#allocation2 + $0x78] sm:$0xf]
      %v5173 = vld [vmem:[#allocation2 + $0x7c] sm:$0xf]
      %v5174 = vld [vmem:[#allocation2 + $0x80] sm:$0xf]
      %v5175 = vld [vmem:[#allocation2 + $0x84] sm:$0xf]
      %v5176 = vld [vmem:[#allocation2 + $0x88] sm:$0xf]
      %v5177 = vld [vmem:[#allocation2 + $0x8c] sm:$0xf]
      %v5178 = vld [vmem:[#allocation2 + $0x90] sm:$0xf]
      %v5179 = vld [vmem:[#allocation2 + $0x94] sm:$0xf]
      %v5180 = vld [vmem:[#allocation2 + $0x98] sm:$0xf]
      %v5181 = vld [vmem:[#allocation2 + $0x9c] sm:$0xf]
      %v5182 = vld [vmem:[#allocation2 + $0xa0] sm:$0xf]
      %v5183 = vld [vmem:[#allocation2 + $0xa4] sm:$0xf]
      %v5184 = vld [vmem:[#allocation2 + $0xa8] sm:$0xf]
      %v5185 = vld [vmem:[#allocation2 + $0xac] sm:$0xf]
      %v5186 = vld [vmem:[#allocation2 + $0xb0] sm:$0xf]
      %v5187 = vld [vmem:[#allocation2 + $0xb4] sm:$0xf]
      %v5188 = vld [vmem:[#allocation2 + $0xb8] sm:$0xf]
      %v5189 = vld [vmem:[#allocation2 + $0xbc] sm:$0xf]
      %v5190 = vld [vmem:[#allocation2 + $0xc0] sm:$0xf]
      %v5191 = vld [vmem:[#allocation2 + $0xc4] sm:$0xf]
      %v5192 = vld [vmem:[#allocation2 + $0xc8] sm:$0xf]
      %v5193 = vld [vmem:[#allocation2 + $0xcc] sm:$0xf]
      %v5194 = vld [vmem:[#allocation2 + $0xd0] sm:$0xf]
      %v5195 = vld [vmem:[#allocation2 + $0xd4] sm:$0xf]
      %5196 = vst.msk [vmem:[#allocation3] sm:$0xf] %vm191, %v5142
      %5197 = vst.msk [vmem:[#allocation3 + $0x4] sm:$0xf] %vm191, %v5143
      %5198 = vst.msk [vmem:[#allocation3 + $0x8] sm:$0xf] %vm191, %v5144
      %5199 = vst.msk [vmem:[#allocation3 + $0xc] sm:$0xf] %vm191, %v5145
      %5200 = vst.msk [vmem:[#allocation3 + $0x10] sm:$0xf] %vm191, %v5146
      %5201 = vst.msk [vmem:[#allocation3 + $0x14] sm:$0xf] %vm191, %v5147
      %5202 = vst.msk [vmem:[#allocation3 + $0x18] sm:$0xf] %vm191, %v5148
      %5203 = vst.msk [vmem:[#allocation3 + $0x1c] sm:$0xf] %vm191, %v5149
      %5204 = vst.msk [vmem:[#allocation3 + $0x20] sm:$0xf] %vm191, %v5150
      %5205 = vst.msk [vmem:[#allocation3 + $0x24] sm:$0xf] %vm191, %v5151
      %5206 = vst.msk [vmem:[#allocation3 + $0x28] sm:$0xf] %vm191, %v5152
      %5207 = vst.msk [vmem:[#allocation3 + $0x2c] sm:$0xf] %vm191, %v5153
      %5208 = vst.msk [vmem:[#allocation3 + $0x30] sm:$0xf] %vm191, %v5154
      %5209 = vst.msk [vmem:[#allocation3 + $0x34] sm:$0xf] %vm191, %v5155
      %5210 = vst.msk [vmem:[#allocation3 + $0x38] sm:$0xf] %vm191, %v5156
      %5211 = vst.msk [vmem:[#allocation3 + $0x3c] sm:$0xf] %vm191, %v5157
      %5212 = vst.msk [vmem:[#allocation3 + $0x40] sm:$0xf] %vm191, %v5158
      %5213 = vst.msk [vmem:[#allocation3 + $0x44] sm:$0xf] %vm191, %v5159
      %5214 = vst.msk [vmem:[#allocation3 + $0x48] sm:$0xf] %vm191, %v5160
      %5215 = vst.msk [vmem:[#allocation3 + $0x4c] sm:$0xf] %vm191, %v5161
      %5216 = vst.msk [vmem:[#allocation3 + $0x50] sm:$0xf] %vm191, %v5162
      %5217 = vst.msk [vmem:[#allocation3 + $0x54] sm:$0xf] %vm191, %v5163
      %5218 = vst.msk [vmem:[#allocation3 + $0x58] sm:$0xf] %vm191, %v5164
      %5219 = vst.msk [vmem:[#allocation3 + $0x5c] sm:$0xf] %vm191, %v5165
      %5220 = vst.msk [vmem:[#allocation3 + $0x60] sm:$0xf] %vm191, %v5166
      %5221 = vst.msk [vmem:[#allocation3 + $0x64] sm:$0xf] %vm191, %v5167
      %5222 = vst.msk [vmem:[#allocation3 + $0x68] sm:$0xf] %vm191, %v5168
      %5223 = vst.msk [vmem:[#allocation3 + $0x6c] sm:$0xf] %vm191, %v5169
      %5224 = vst.msk [vmem:[#allocation3 + $0x70] sm:$0xf] %vm191, %v5170
      %5225 = vst.msk [vmem:[#allocation3 + $0x74] sm:$0xf] %vm191, %v5171
      %5226 = vst.msk [vmem:[#allocation3 + $0x78] sm:$0xf] %vm191, %v5172
      %5227 = vst.msk [vmem:[#allocation3 + $0x7c] sm:$0xf] %vm191, %v5173
      %5228 = vst.msk [vmem:[#allocation3 + $0x80] sm:$0xf] %vm191, %v5174
      %5229 = vst.msk [vmem:[#allocation3 + $0x84] sm:$0xf] %vm191, %v5175
      %5230 = vst.msk [vmem:[#allocation3 + $0x88] sm:$0xf] %vm191, %v5176
      %5231 = vst.msk [vmem:[#allocation3 + $0x8c] sm:$0xf] %vm191, %v5177
      %5232 = vst.msk [vmem:[#allocation3 + $0x90] sm:$0xf] %vm191, %v5178
      %5233 = vst.msk [vmem:[#allocation3 + $0x94] sm:$0xf] %vm191, %v5179
      %5234 = vst.msk [vmem:[#allocation3 + $0x98] sm:$0xf] %vm191, %v5180
      %5235 = vst.msk [vmem:[#allocation3 + $0x9c] sm:$0xf] %vm191, %v5181
      %5236 = vst.msk [vmem:[#allocation3 + $0xa0] sm:$0xf] %vm191, %v5182
      %5237 = vst.msk [vmem:[#allocation3 + $0xa4] sm:$0xf] %vm191, %v5183
      %5238 = vst.msk [vmem:[#allocation3 + $0xa8] sm:$0xf] %vm191, %v5184
      %5239 = vst.msk [vmem:[#allocation3 + $0xac] sm:$0xf] %vm191, %v5185
      %5240 = vst.msk [vmem:[#allocation3 + $0xb0] sm:$0xf] %vm191, %v5186
      %5241 = vst.msk [vmem:[#allocation3 + $0xb4] sm:$0xf] %vm191, %v5187
      %5242 = vst.msk [vmem:[#allocation3 + $0xb8] sm:$0xf] %vm191, %v5188
      %5243 = vst.msk [vmem:[#allocation3 + $0xbc] sm:$0xf] %vm191, %v5189
      %5244 = vst.msk [vmem:[#allocation3 + $0xc0] sm:$0xf] %vm191, %v5190
      %5245 = vst.msk [vmem:[#allocation3 + $0xc4] sm:$0xf] %vm191, %v5191
      %5246 = vst.msk [vmem:[#allocation3 + $0xc8] sm:$0xf] %vm191, %v5192
      %5247 = vst.msk [vmem:[#allocation3 + $0xcc] sm:$0xf] %vm191, %v5193
      %5248 = vst.msk [vmem:[#allocation3 + $0xd0] sm:$0xf] %vm191, %v5194
      %5249 = vst.msk [vmem:[#allocation3 + $0xd4] sm:$0xf] %vm191, %v5195
      %v5250 = vld [vmem:[#allocation3] sm:$0xf]
      %v5251 = vld [vmem:[#allocation3 + $0x4] sm:$0xf]
      %v5252 = vld [vmem:[#allocation3 + $0x8] sm:$0xf]
      %v5253 = vld [vmem:[#allocation3 + $0xc] sm:$0xf]
      %v5254 = vld [vmem:[#allocation3 + $0x10] sm:$0xf]
      %v5255 = vld [vmem:[#allocation3 + $0x14] sm:$0xf]
      %v5256 = vld [vmem:[#allocation3 + $0x18] sm:$0xf]
      %v5257 = vld [vmem:[#allocation3 + $0x1c] sm:$0xf]
      %v5258 = vld [vmem:[#allocation3 + $0x20] sm:$0xf]
      %v5259 = vld [vmem:[#allocation3 + $0x24] sm:$0xf]
      %v5260 = vld [vmem:[#allocation3 + $0x28] sm:$0xf]
      %v5261 = vld [vmem:[#allocation3 + $0x2c] sm:$0xf]
      %v5262 = vld [vmem:[#allocation3 + $0x30] sm:$0xf]
      %v5263 = vld [vmem:[#allocation3 + $0x34] sm:$0xf]
      %v5264 = vld [vmem:[#allocation3 + $0x38] sm:$0xf]
      %v5265 = vld [vmem:[#allocation3 + $0x3c] sm:$0xf]
      %v5266 = vld [vmem:[#allocation3 + $0x40] sm:$0xf]
      %v5267 = vld [vmem:[#allocation3 + $0x44] sm:$0xf]
      %v5268 = vld [vmem:[#allocation3 + $0x48] sm:$0xf]
      %v5269 = vld [vmem:[#allocation3 + $0x4c] sm:$0xf]
      %v5270 = vld [vmem:[#allocation3 + $0x50] sm:$0xf]
      %v5271 = vld [vmem:[#allocation3 + $0x54] sm:$0xf]
      %v5272 = vld [vmem:[#allocation3 + $0x58] sm:$0xf]
      %v5273 = vld [vmem:[#allocation3 + $0x5c] sm:$0xf]
      %v5274 = vld [vmem:[#allocation3 + $0x60] sm:$0xf]
      %v5275 = vld [vmem:[#allocation3 + $0x64] sm:$0xf]
      %v5276 = vld [vmem:[#allocation3 + $0x68] sm:$0xf]
      %v5277 = vld [vmem:[#allocation3 + $0x6c] sm:$0xf]
      %v5278 = vld [vmem:[#allocation3 + $0x70] sm:$0xf]
      %v5279 = vld [vmem:[#allocation3 + $0x74] sm:$0xf]
      %v5280 = vld [vmem:[#allocation3 + $0x78] sm:$0xf]
      %v5281 = vld [vmem:[#allocation3 + $0x7c] sm:$0xf]
      %v5282 = vld [vmem:[#allocation3 + $0x80] sm:$0xf]
      %v5283 = vld [vmem:[#allocation3 + $0x84] sm:$0xf]
      %v5284 = vld [vmem:[#allocation3 + $0x88] sm:$0xf]
      %v5285 = vld [vmem:[#allocation3 + $0x8c] sm:$0xf]
      %v5286 = vld [vmem:[#allocation3 + $0x90] sm:$0xf]
      %v5287 = vld [vmem:[#allocation3 + $0x94] sm:$0xf]
      %v5288 = vld [vmem:[#allocation3 + $0x98] sm:$0xf]
      %v5289 = vld [vmem:[#allocation3 + $0x9c] sm:$0xf]
      %v5290 = vld [vmem:[#allocation3 + $0xa0] sm:$0xf]
      %v5291 = vld [vmem:[#allocation3 + $0xa4] sm:$0xf]
      %v5292 = vld [vmem:[#allocation3 + $0xa8] sm:$0xf]
      %v5293 = vld [vmem:[#allocation3 + $0xac] sm:$0xf]
      %v5294 = vld [vmem:[#allocation3 + $0xb0] sm:$0xf]
      %v5295 = vld [vmem:[#allocation3 + $0xb4] sm:$0xf]
      %v5296 = vld [vmem:[#allocation3 + $0xb8] sm:$0xf]
      %v5297 = vld [vmem:[#allocation3 + $0xbc] sm:$0xf]
      %v5298 = vld [vmem:[#allocation3 + $0xc0] sm:$0x1]
      %v5299 = vld [vmem:[#allocation3] sm:$0xe]
      %v5300 = vld [vmem:[#allocation3 + $0xc0] sm:$0xf]
      %v5301 = vld [vmem:[#allocation3 + $0xc4] sm:$0xf]
      %v5302 = vld [vmem:[#allocation3 + $0xc8] sm:$0xf]
      %v5303 = vld [vmem:[#allocation3 + $0xcc] sm:$0x1]
      %v5304 = vld [vmem:[#allocation3 + $0xc] sm:$0xe]
      %v5305 = vld [vmem:[#allocation3 + $0xcc] sm:$0xf]
      %v5306 = vld [vmem:[#allocation3 + $0xd0] sm:$0xf]
      %v5307 = vld [vmem:[#allocation3 + $0xd4] sm:$0xf]
      %v5308 = vld [vmem:[#allocation3 + $0xd8] sm:$0x1]
      %v5309 = vld [vmem:[#allocation3 + $0x18] sm:$0xe]
      %v5358 = vunpack.c.l.b16 %v5250
      %v5359 = vunpack.c.l.b16 %v5251
      %v5360 = vunpack.c.l.b16 %v5252
      %v5361 = vunpack.c.l.b16 %v5253
      %v5362 = vunpack.c.l.b16 %v5254
      %v5363 = vunpack.c.l.b16 %v5255
      %v5364 = vunpack.c.l.b16 %v5256
      %v5365 = vunpack.c.l.b16 %v5257
      %v5366 = vunpack.c.l.b16 %v5258
      %v5367 = vunpack.c.l.b16 %v5259
      %v5368 = vunpack.c.l.b16 %v5260
      %v5369 = vunpack.c.l.b16 %v5261
      %v5370 = vunpack.c.l.b16 %v5262
      %v5371 = vunpack.c.l.b16 %v5263
      %v5372 = vunpack.c.l.b16 %v5264
      %v5373 = vunpack.c.l.b16 %v5265
      %v5374 = vunpack.c.l.b16 %v5266
      %v5375 = vunpack.c.l.b16 %v5267
      %v5376 = vunpack.c.l.b16 %v5268
      %v5377 = vunpack.c.l.b16 %v5269
      %v5378 = vunpack.c.l.b16 %v5270
      %v5379 = vunpack.c.l.b16 %v5271
      %v5380 = vunpack.c.l.b16 %v5272
      %v5381 = vunpack.c.l.b16 %v5273
      %v5382 = vunpack.c.l.b16 %v5274
      %v5383 = vunpack.c.l.b16 %v5275
      %v5384 = vunpack.c.l.b16 %v5276
      %v5385 = vunpack.c.l.b16 %v5277
      %v5386 = vunpack.c.l.b16 %v5278
      %v5387 = vunpack.c.l.b16 %v5279
      %v5388 = vunpack.c.l.b16 %v5280
      %v5389 = vunpack.c.l.b16 %v5281
      %v5390 = vunpack.c.l.b16 %v5282
      %v5391 = vunpack.c.l.b16 %v5283
      %v5392 = vunpack.c.l.b16 %v5284
      %v5393 = vunpack.c.l.b16 %v5285
      %v5394 = vunpack.c.l.b16 %v5286
      %v5395 = vunpack.c.l.b16 %v5287
      %v5396 = vunpack.c.l.b16 %v5288
      %v5397 = vunpack.c.l.b16 %v5289
      %v5398 = vunpack.c.l.b16 %v5290
      %v5399 = vunpack.c.l.b16 %v5291
      %v5400 = vunpack.c.l.b16 %v5292
      %v5401 = vunpack.c.l.b16 %v5293
      %v5402 = vunpack.c.l.b16 %v5294
      %v5403 = vunpack.c.l.b16 %v5295
      %v5404 = vunpack.c.l.b16 %v5296
      %v5405 = vunpack.c.l.b16 %v5297
      %v5406 = vpack.c.b16 %v5359, %v5358
      %v5407 = vpack.c.b16 %v5361, %v5360
      %v5408 = vpack.c.b16 %v5363, %v5362
      %v5409 = vpack.c.b16 %v5365, %v5364
      %v5410 = vpack.c.b16 %v5367, %v5366
      %v5411 = vpack.c.b16 %v5369, %v5368
      %v5412 = vpack.c.b16 %v5371, %v5370
      %v5413 = vpack.c.b16 %v5373, %v5372
      %v5414 = vpack.c.b16 %v5375, %v5374
      %v5415 = vpack.c.b16 %v5377, %v5376
      %v5416 = vpack.c.b16 %v5379, %v5378
      %v5417 = vpack.c.b16 %v5381, %v5380
      %v5418 = vpack.c.b16 %v5383, %v5382
      %v5419 = vpack.c.b16 %v5385, %v5384
      %v5420 = vpack.c.b16 %v5387, %v5386
      %v5421 = vpack.c.b16 %v5389, %v5388
      %v5422 = vpack.c.b16 %v5391, %v5390
      %v5423 = vpack.c.b16 %v5393, %v5392
      %v5424 = vpack.c.b16 %v5395, %v5394
      %v5425 = vpack.c.b16 %v5397, %v5396
      %v5426 = vpack.c.b16 %v5399, %v5398
      %v5427 = vpack.c.b16 %v5401, %v5400
      %v5428 = vpack.c.b16 %v5403, %v5402
      %v5429 = vpack.c.b16 %v5405, %v5404
      %v5431 = vunpack.c.l.b16 %v5298
      %v5432 = vpack.c.b16 %v5431, %v5431
      %v5434 = vshrl.u32 %v5406, 16
      %v5436 = vshll.u32 %v5406, 16
      %v5438 = vrot.slane %v5436, 1
      %v5439 = vor.u32 %v5434, %v5438
      %v5441 = vshll.u32 %v5407, 16
      %v5443 = vrot.slane %v5441, 1
      %v5444 = vsel %vm2286, %v5439, %v5443
      %v5445 = vshrl.u32 %v5407, 16
      %v5447 = vor.u32 %v5445, %v5443
      %v5449 = vshll.u32 %v5408, 16
      %v5451 = vrot.slane %v5449, 1
      %v5452 = vsel %vm2286, %v5447, %v5451
      %v5453 = vshrl.u32 %v5408, 16
      %v5455 = vor.u32 %v5453, %v5451
      %v5457 = vshll.u32 %v5409, 16
      %v5459 = vrot.slane %v5457, 1
      %v5460 = vsel %vm2286, %v5455, %v5459
      %v5461 = vshrl.u32 %v5409, 16
      %v5463 = vor.u32 %v5461, %v5459
      %v5465 = vshll.u32 %v5410, 16
      %v5467 = vrot.slane %v5465, 1
      %v5468 = vsel %vm2286, %v5463, %v5467
      %v5469 = vshrl.u32 %v5410, 16
      %v5471 = vor.u32 %v5469, %v5467
      %v5473 = vshll.u32 %v5411, 16
      %v5475 = vrot.slane %v5473, 1
      %v5476 = vsel %vm2286, %v5471, %v5475
      %v5477 = vshrl.u32 %v5411, 16
      %v5479 = vor.u32 %v5477, %v5475
      %v5481 = vshll.u32 %v5412, 16
      %v5483 = vrot.slane %v5481, 1
      %v5484 = vsel %vm2286, %v5479, %v5483
      %v5485 = vshrl.u32 %v5412, 16
      %v5487 = vor.u32 %v5485, %v5483
      %v5489 = vshll.u32 %v5413, 16
      %v5491 = vrot.slane %v5489, 1
      %v5492 = vsel %vm2286, %v5487, %v5491
      %v5493 = vshrl.u32 %v5413, 16
      %v5495 = vor.u32 %v5493, %v5491
      %v5497 = vshll.u32 %v5414, 16
      %v5499 = vrot.slane %v5497, 1
      %v5500 = vsel %vm2286, %v5495, %v5499
      %v5501 = vshrl.u32 %v5414, 16
      %v5503 = vor.u32 %v5501, %v5499
      %v5505 = vshll.u32 %v5415, 16
      %v5507 = vrot.slane %v5505, 1
      %v5508 = vsel %vm2286, %v5503, %v5507
      %v5509 = vshrl.u32 %v5415, 16
      %v5511 = vor.u32 %v5509, %v5507
      %v5513 = vshll.u32 %v5416, 16
      %v5515 = vrot.slane %v5513, 1
      %v5516 = vsel %vm2286, %v5511, %v5515
      %v5517 = vshrl.u32 %v5416, 16
      %v5519 = vor.u32 %v5517, %v5515
      %v5521 = vshll.u32 %v5417, 16
      %v5523 = vrot.slane %v5521, 1
      %v5524 = vsel %vm2286, %v5519, %v5523
      %v5525 = vshrl.u32 %v5417, 16
      %v5527 = vor.u32 %v5525, %v5523
      %v5529 = vshll.u32 %v5418, 16
      %v5531 = vrot.slane %v5529, 1
      %v5532 = vsel %vm2286, %v5527, %v5531
      %v5533 = vshrl.u32 %v5418, 16
      %v5535 = vor.u32 %v5533, %v5531
      %v5537 = vshll.u32 %v5419, 16
      %v5539 = vrot.slane %v5537, 1
      %v5540 = vsel %vm2286, %v5535, %v5539
      %v5541 = vshrl.u32 %v5419, 16
      %v5543 = vor.u32 %v5541, %v5539
      %v5545 = vshll.u32 %v5420, 16
      %v5547 = vrot.slane %v5545, 1
      %v5548 = vsel %vm2286, %v5543, %v5547
      %v5549 = vshrl.u32 %v5420, 16
      %v5551 = vor.u32 %v5549, %v5547
      %v5553 = vshll.u32 %v5421, 16
      %v5555 = vrot.slane %v5553, 1
      %v5556 = vsel %vm2286, %v5551, %v5555
      %v5557 = vshrl.u32 %v5421, 16
      %v5559 = vor.u32 %v5557, %v5555
      %v5561 = vshll.u32 %v5422, 16
      %v5563 = vrot.slane %v5561, 1
      %v5564 = vsel %vm2286, %v5559, %v5563
      %v5565 = vshrl.u32 %v5422, 16
      %v5567 = vor.u32 %v5565, %v5563
      %v5569 = vshll.u32 %v5423, 16
      %v5571 = vrot.slane %v5569, 1
      %v5572 = vsel %vm2286, %v5567, %v5571
      %v5573 = vshrl.u32 %v5423, 16
      %v5575 = vor.u32 %v5573, %v5571
      %v5577 = vshll.u32 %v5424, 16
      %v5579 = vrot.slane %v5577, 1
      %v5580 = vsel %vm2286, %v5575, %v5579
      %v5581 = vshrl.u32 %v5424, 16
      %v5583 = vor.u32 %v5581, %v5579
      %v5585 = vshll.u32 %v5425, 16
      %v5587 = vrot.slane %v5585, 1
      %v5588 = vsel %vm2286, %v5583, %v5587
      %v5589 = vshrl.u32 %v5425, 16
      %v5591 = vor.u32 %v5589, %v5587
      %v5593 = vshll.u32 %v5426, 16
      %v5595 = vrot.slane %v5593, 1
      %v5596 = vsel %vm2286, %v5591, %v5595
      %v5597 = vshrl.u32 %v5426, 16
      %v5599 = vor.u32 %v5597, %v5595
      %v5601 = vshll.u32 %v5427, 16
      %v5603 = vrot.slane %v5601, 1
      %v5604 = vsel %vm2286, %v5599, %v5603
      %v5605 = vshrl.u32 %v5427, 16
      %v5607 = vor.u32 %v5605, %v5603
      %v5609 = vshll.u32 %v5428, 16
      %v5611 = vrot.slane %v5609, 1
      %v5612 = vsel %vm2286, %v5607, %v5611
      %v5613 = vshrl.u32 %v5428, 16
      %v5615 = vor.u32 %v5613, %v5611
      %v5617 = vshll.u32 %v5429, 16
      %v5619 = vrot.slane %v5617, 1
      %v5620 = vsel %vm2286, %v5615, %v5619
      %v5621 = vshrl.u32 %v5429, 16
      %v5623 = vor.u32 %v5621, %v5619
      %v5625 = vshll.u32 %v5432, 16
      %v5627 = vrot.slane %v5625, 1
      %v5628 = vsel %vm2286, %v5623, %v5627
      %5629 = vrot.lane.b32.xlu0 %v5444, 4
      %v5630 = vpop.permute.xlu0 %5629
      %5631 = vrot.lane.b32.xlu0 %v5452, 4
      %v5632 = vpop.permute.xlu0 %5631
      %5633 = vrot.lane.b32.xlu0 %v5460, 4
      %v5634 = vpop.permute.xlu0 %5633
      %5635 = vrot.lane.b32.xlu0 %v5468, 4
      %v5636 = vpop.permute.xlu0 %5635
      %5637 = vrot.lane.b32.xlu0 %v5476, 4
      %v5638 = vpop.permute.xlu0 %5637
      %5639 = vrot.lane.b32.xlu0 %v5484, 4
      %v5640 = vpop.permute.xlu0 %5639
      %5641 = vrot.lane.b32.xlu0 %v5492, 4
      %v5642 = vpop.permute.xlu0 %5641
      %5643 = vrot.lane.b32.xlu0 %v5500, 4
      %v5644 = vpop.permute.xlu0 %5643
      %5645 = vrot.lane.b32.xlu0 %v5508, 4
      %v5646 = vpop.permute.xlu0 %5645
      %5647 = vrot.lane.b32.xlu0 %v5516, 4
      %v5648 = vpop.permute.xlu0 %5647
      %5649 = vrot.lane.b32.xlu0 %v5524, 4
      %v5650 = vpop.permute.xlu0 %5649
      %5651 = vrot.lane.b32.xlu0 %v5532, 4
      %v5652 = vpop.permute.xlu0 %5651
      %5653 = vrot.lane.b32.xlu0 %v5540, 4
      %v5654 = vpop.permute.xlu0 %5653
      %5655 = vrot.lane.b32.xlu0 %v5548, 4
      %v5656 = vpop.permute.xlu0 %5655
      %5657 = vrot.lane.b32.xlu0 %v5556, 4
      %v5658 = vpop.permute.xlu0 %5657
      %5659 = vrot.lane.b32.xlu0 %v5564, 4
      %v5660 = vpop.permute.xlu0 %5659
      %5661 = vrot.lane.b32.xlu0 %v5572, 4
      %v5662 = vpop.permute.xlu0 %5661
      %5663 = vrot.lane.b32.xlu0 %v5580, 4
      %v5664 = vpop.permute.xlu0 %5663
      %5665 = vrot.lane.b32.xlu0 %v5588, 4
      %v5666 = vpop.permute.xlu0 %5665
      %5667 = vrot.lane.b32.xlu0 %v5596, 4
      %v5668 = vpop.permute.xlu0 %5667
      %5669 = vrot.lane.b32.xlu0 %v5604, 4
      %v5670 = vpop.permute.xlu0 %5669
      %5671 = vrot.lane.b32.xlu0 %v5612, 4
      %v5672 = vpop.permute.xlu0 %5671
      %5673 = vrot.lane.b32.xlu0 %v5620, 4
      %v5674 = vpop.permute.xlu0 %5673
      %5675 = vrot.lane.b32.xlu0 %v5628, 4
      %v5676 = vpop.permute.xlu0 %5675
      %v5678 = vunpack.c.l.b16 %v5299
      %v5679 = vpack.c.b16 %v5359, %v5678
      %v5680 = vrot.slane %v5679, 1
      %v5681 = vrot.slane %v5407, 1
      %v5682 = vsel %vm2534, %v5680, %v5681
      %v5683 = vrot.slane %v5408, 1
      %v5684 = vsel %vm2534, %v5681, %v5683
      %v5685 = vrot.slane %v5409, 1
      %v5686 = vsel %vm2534, %v5683, %v5685
      %v5687 = vrot.slane %v5410, 1
      %v5688 = vsel %vm2534, %v5685, %v5687
      %v5689 = vrot.slane %v5411, 1
      %v5690 = vsel %vm2534, %v5687, %v5689
      %v5691 = vrot.slane %v5412, 1
      %v5692 = vsel %vm2534, %v5689, %v5691
      %v5693 = vrot.slane %v5413, 1
      %v5694 = vsel %vm2534, %v5691, %v5693
      %v5695 = vrot.slane %v5414, 1
      %v5696 = vsel %vm2534, %v5693, %v5695
      %v5697 = vrot.slane %v5415, 1
      %v5698 = vsel %vm2534, %v5695, %v5697
      %v5699 = vrot.slane %v5416, 1
      %v5700 = vsel %vm2534, %v5697, %v5699
      %v5701 = vrot.slane %v5417, 1
      %v5702 = vsel %vm2534, %v5699, %v5701
      %v5703 = vrot.slane %v5418, 1
      %v5704 = vsel %vm2534, %v5701, %v5703
      %v5705 = vrot.slane %v5419, 1
      %v5706 = vsel %vm2534, %v5703, %v5705
      %v5707 = vrot.slane %v5420, 1
      %v5708 = vsel %vm2534, %v5705, %v5707
      %v5709 = vrot.slane %v5421, 1
      %v5710 = vsel %vm2534, %v5707, %v5709
      %v5711 = vrot.slane %v5422, 1
      %v5712 = vsel %vm2534, %v5709, %v5711
      %v5713 = vrot.slane %v5423, 1
      %v5714 = vsel %vm2534, %v5711, %v5713
      %v5715 = vrot.slane %v5424, 1
      %v5716 = vsel %vm2534, %v5713, %v5715
      %v5717 = vrot.slane %v5425, 1
      %v5718 = vsel %vm2534, %v5715, %v5717
      %v5719 = vrot.slane %v5426, 1
      %v5720 = vsel %vm2534, %v5717, %v5719
      %v5721 = vrot.slane %v5427, 1
      %v5722 = vsel %vm2534, %v5719, %v5721
      %v5723 = vrot.slane %v5428, 1
      %v5724 = vsel %vm2534, %v5721, %v5723
      %v5725 = vrot.slane %v5429, 1
      %v5726 = vsel %vm2534, %v5723, %v5725
      %v5727 = vrot.slane %v5432, 1
      %v5728 = vsel %vm2534, %v5725, %v5727
      %5729 = vrot.lane.b32.xlu0 %v5682, 8
      %v5730 = vpop.permute.xlu0 %5729
      %5731 = vrot.lane.b32.xlu0 %v5684, 8
      %v5732 = vpop.permute.xlu0 %5731
      %5733 = vrot.lane.b32.xlu0 %v5686, 8
      %v5734 = vpop.permute.xlu0 %5733
      %5735 = vrot.lane.b32.xlu0 %v5688, 8
      %v5736 = vpop.permute.xlu0 %5735
      %5737 = vrot.lane.b32.xlu0 %v5690, 8
      %v5738 = vpop.permute.xlu0 %5737
      %5739 = vrot.lane.b32.xlu0 %v5692, 8
      %v5740 = vpop.permute.xlu0 %5739
      %5741 = vrot.lane.b32.xlu0 %v5694, 8
      %v5742 = vpop.permute.xlu0 %5741
      %5743 = vrot.lane.b32.xlu0 %v5696, 8
      %v5744 = vpop.permute.xlu0 %5743
      %5745 = vrot.lane.b32.xlu0 %v5698, 8
      %v5746 = vpop.permute.xlu0 %5745
      %5747 = vrot.lane.b32.xlu0 %v5700, 8
      %v5748 = vpop.permute.xlu0 %5747
      %5749 = vrot.lane.b32.xlu0 %v5702, 8
      %v5750 = vpop.permute.xlu0 %5749
      %5751 = vrot.lane.b32.xlu0 %v5704, 8
      %v5752 = vpop.permute.xlu0 %5751
      %5753 = vrot.lane.b32.xlu0 %v5706, 8
      %v5754 = vpop.permute.xlu0 %5753
      %5755 = vrot.lane.b32.xlu0 %v5708, 8
      %v5756 = vpop.permute.xlu0 %5755
      %5757 = vrot.lane.b32.xlu0 %v5710, 8
      %v5758 = vpop.permute.xlu0 %5757
      %5759 = vrot.lane.b32.xlu0 %v5712, 8
      %v5760 = vpop.permute.xlu0 %5759
      %5761 = vrot.lane.b32.xlu0 %v5714, 8
      %v5762 = vpop.permute.xlu0 %5761
      %5763 = vrot.lane.b32.xlu0 %v5716, 8
      %v5764 = vpop.permute.xlu0 %5763
      %5765 = vrot.lane.b32.xlu0 %v5718, 8
      %v5766 = vpop.permute.xlu0 %5765
      %5767 = vrot.lane.b32.xlu0 %v5720, 8
      %v5768 = vpop.permute.xlu0 %5767
      %5769 = vrot.lane.b32.xlu0 %v5722, 8
      %v5770 = vpop.permute.xlu0 %5769
      %5771 = vrot.lane.b32.xlu0 %v5724, 8
      %v5772 = vpop.permute.xlu0 %5771
      %5773 = vrot.lane.b32.xlu0 %v5726, 8
      %v5774 = vpop.permute.xlu0 %5773
      %5775 = vrot.lane.b32.xlu0 %v5728, 8
      %v5776 = vpop.permute.xlu0 %5775
      %v5780 = vunpack.c.l.b16 %v5300
      %v5781 = vunpack.c.l.b16 %v5301
      %v5782 = vunpack.c.l.b16 %v5302
      %v5783 = vpack.c.b16 %v5362, %v5361
      %v5784 = vpack.c.b16 %v5364, %v5363
      %v5785 = vpack.c.b16 %v5366, %v5365
      %v5786 = vpack.c.b16 %v5368, %v5367
      %v5787 = vpack.c.b16 %v5370, %v5369
      %v5788 = vpack.c.b16 %v5372, %v5371
      %v5789 = vpack.c.b16 %v5374, %v5373
      %v5790 = vpack.c.b16 %v5376, %v5375
      %v5791 = vpack.c.b16 %v5378, %v5377
      %v5792 = vpack.c.b16 %v5380, %v5379
      %v5793 = vpack.c.b16 %v5382, %v5381
      %v5794 = vpack.c.b16 %v5384, %v5383
      %v5795 = vpack.c.b16 %v5386, %v5385
      %v5796 = vpack.c.b16 %v5388, %v5387
      %v5797 = vpack.c.b16 %v5390, %v5389
      %v5798 = vpack.c.b16 %v5392, %v5391
      %v5799 = vpack.c.b16 %v5394, %v5393
      %v5800 = vpack.c.b16 %v5396, %v5395
      %v5801 = vpack.c.b16 %v5398, %v5397
      %v5802 = vpack.c.b16 %v5400, %v5399
      %v5803 = vpack.c.b16 %v5402, %v5401
      %v5804 = vpack.c.b16 %v5404, %v5403
      %v5805 = vpack.c.b16 %v5780, %v5405
      %v5806 = vpack.c.b16 %v5782, %v5781
      %5807 = vrot.lane.b32.xlu0 %v5783, 12
      %v5808 = vpop.permute.xlu0 %5807
      %5809 = vrot.lane.b32.xlu0 %v5784, 12
      %v5810 = vpop.permute.xlu0 %5809
      %5811 = vrot.lane.b32.xlu0 %v5785, 12
      %v5812 = vpop.permute.xlu0 %5811
      %5813 = vrot.lane.b32.xlu0 %v5786, 12
      %v5814 = vpop.permute.xlu0 %5813
      %5815 = vrot.lane.b32.xlu0 %v5787, 12
      %v5816 = vpop.permute.xlu0 %5815
      %5817 = vrot.lane.b32.xlu0 %v5788, 12
      %v5818 = vpop.permute.xlu0 %5817
      %5819 = vrot.lane.b32.xlu0 %v5789, 12
      %v5820 = vpop.permute.xlu0 %5819
      %5821 = vrot.lane.b32.xlu0 %v5790, 12
      %v5822 = vpop.permute.xlu0 %5821
      %5823 = vrot.lane.b32.xlu0 %v5791, 12
      %v5824 = vpop.permute.xlu0 %5823
      %5825 = vrot.lane.b32.xlu0 %v5792, 12
      %v5826 = vpop.permute.xlu0 %5825
      %5827 = vrot.lane.b32.xlu0 %v5793, 12
      %v5828 = vpop.permute.xlu0 %5827
      %5829 = vrot.lane.b32.xlu0 %v5794, 12
      %v5830 = vpop.permute.xlu0 %5829
      %5831 = vrot.lane.b32.xlu0 %v5795, 12
      %v5832 = vpop.permute.xlu0 %5831
      %5833 = vrot.lane.b32.xlu0 %v5796, 12
      %v5834 = vpop.permute.xlu0 %5833
      %5835 = vrot.lane.b32.xlu0 %v5797, 12
      %v5836 = vpop.permute.xlu0 %5835
      %5837 = vrot.lane.b32.xlu0 %v5798, 12
      %v5838 = vpop.permute.xlu0 %5837
      %5839 = vrot.lane.b32.xlu0 %v5799, 12
      %v5840 = vpop.permute.xlu0 %5839
      %5841 = vrot.lane.b32.xlu0 %v5800, 12
      %v5842 = vpop.permute.xlu0 %5841
      %5843 = vrot.lane.b32.xlu0 %v5801, 12
      %v5844 = vpop.permute.xlu0 %5843
      %5845 = vrot.lane.b32.xlu0 %v5802, 12
      %v5846 = vpop.permute.xlu0 %5845
      %5847 = vrot.lane.b32.xlu0 %v5803, 12
      %v5848 = vpop.permute.xlu0 %5847
      %5849 = vrot.lane.b32.xlu0 %v5804, 12
      %v5850 = vpop.permute.xlu0 %5849
      %5851 = vrot.lane.b32.xlu0 %v5805, 12
      %v5852 = vpop.permute.xlu0 %5851
      %5853 = vrot.lane.b32.xlu0 %v5806, 12
      %v5854 = vpop.permute.xlu0 %5853
      %v5856 = vunpack.c.l.b16 %v5303
      %v5857 = vpack.c.b16 %v5856, %v5856
      %v5859 = vshrl.u32 %v5783, 16
      %v5861 = vshll.u32 %v5783, 16
      %v5863 = vrot.slane %v5861, 1
      %v5864 = vor.u32 %v5859, %v5863
      %v5866 = vshll.u32 %v5784, 16
      %v5868 = vrot.slane %v5866, 1
      %v5869 = vsel %vm2286, %v5864, %v5868
      %v5870 = vshrl.u32 %v5784, 16
      %v5872 = vor.u32 %v5870, %v5868
      %v5874 = vshll.u32 %v5785, 16
      %v5876 = vrot.slane %v5874, 1
      %v5877 = vsel %vm2286, %v5872, %v5876
      %v5878 = vshrl.u32 %v5785, 16
      %v5880 = vor.u32 %v5878, %v5876
      %v5882 = vshll.u32 %v5786, 16
      %v5884 = vrot.slane %v5882, 1
      %v5885 = vsel %vm2286, %v5880, %v5884
      %v5886 = vshrl.u32 %v5786, 16
      %v5888 = vor.u32 %v5886, %v5884
      %v5890 = vshll.u32 %v5787, 16
      %v5892 = vrot.slane %v5890, 1
      %v5893 = vsel %vm2286, %v5888, %v5892
      %v5894 = vshrl.u32 %v5787, 16
      %v5896 = vor.u32 %v5894, %v5892
      %v5898 = vshll.u32 %v5788, 16
      %v5900 = vrot.slane %v5898, 1
      %v5901 = vsel %vm2286, %v5896, %v5900
      %v5902 = vshrl.u32 %v5788, 16
      %v5904 = vor.u32 %v5902, %v5900
      %v5906 = vshll.u32 %v5789, 16
      %v5908 = vrot.slane %v5906, 1
      %v5909 = vsel %vm2286, %v5904, %v5908
      %v5910 = vshrl.u32 %v5789, 16
      %v5912 = vor.u32 %v5910, %v5908
      %v5914 = vshll.u32 %v5790, 16
      %v5916 = vrot.slane %v5914, 1
      %v5917 = vsel %vm2286, %v5912, %v5916
      %v5918 = vshrl.u32 %v5790, 16
      %v5920 = vor.u32 %v5918, %v5916
      %v5922 = vshll.u32 %v5791, 16
      %v5924 = vrot.slane %v5922, 1
      %v5925 = vsel %vm2286, %v5920, %v5924
      %v5926 = vshrl.u32 %v5791, 16
      %v5928 = vor.u32 %v5926, %v5924
      %v5930 = vshll.u32 %v5792, 16
      %v5932 = vrot.slane %v5930, 1
      %v5933 = vsel %vm2286, %v5928, %v5932
      %v5934 = vshrl.u32 %v5792, 16
      %v5936 = vor.u32 %v5934, %v5932
      %v5938 = vshll.u32 %v5793, 16
      %v5940 = vrot.slane %v5938, 1
      %v5941 = vsel %vm2286, %v5936, %v5940
      %v5942 = vshrl.u32 %v5793, 16
      %v5944 = vor.u32 %v5942, %v5940
      %v5946 = vshll.u32 %v5794, 16
      %v5948 = vrot.slane %v5946, 1
      %v5949 = vsel %vm2286, %v5944, %v5948
      %v5950 = vshrl.u32 %v5794, 16
      %v5952 = vor.u32 %v5950, %v5948
      %v5954 = vshll.u32 %v5795, 16
      %v5956 = vrot.slane %v5954, 1
      %v5957 = vsel %vm2286, %v5952, %v5956
      %v5958 = vshrl.u32 %v5795, 16
      %v5960 = vor.u32 %v5958, %v5956
      %v5962 = vshll.u32 %v5796, 16
      %v5964 = vrot.slane %v5962, 1
      %v5965 = vsel %vm2286, %v5960, %v5964
      %v5966 = vshrl.u32 %v5796, 16
      %v5968 = vor.u32 %v5966, %v5964
      %v5970 = vshll.u32 %v5797, 16
      %v5972 = vrot.slane %v5970, 1
      %v5973 = vsel %vm2286, %v5968, %v5972
      %v5974 = vshrl.u32 %v5797, 16
      %v5976 = vor.u32 %v5974, %v5972
      %v5978 = vshll.u32 %v5798, 16
      %v5980 = vrot.slane %v5978, 1
      %v5981 = vsel %vm2286, %v5976, %v5980
      %v5982 = vshrl.u32 %v5798, 16
      %v5984 = vor.u32 %v5982, %v5980
      %v5986 = vshll.u32 %v5799, 16
      %v5988 = vrot.slane %v5986, 1
      %v5989 = vsel %vm2286, %v5984, %v5988
      %v5990 = vshrl.u32 %v5799, 16
      %v5992 = vor.u32 %v5990, %v5988
      %v5994 = vshll.u32 %v5800, 16
      %v5996 = vrot.slane %v5994, 1
      %v5997 = vsel %vm2286, %v5992, %v5996
      %v5998 = vshrl.u32 %v5800, 16
      %v6000 = vor.u32 %v5998, %v5996
      %v6002 = vshll.u32 %v5801, 16
      %v6004 = vrot.slane %v6002, 1
      %v6005 = vsel %vm2286, %v6000, %v6004
      %v6006 = vshrl.u32 %v5801, 16
      %v6008 = vor.u32 %v6006, %v6004
      %v6010 = vshll.u32 %v5802, 16
      %v6012 = vrot.slane %v6010, 1
      %v6013 = vsel %vm2286, %v6008, %v6012
      %v6014 = vshrl.u32 %v5802, 16
      %v6016 = vor.u32 %v6014, %v6012
      %v6018 = vshll.u32 %v5803, 16
      %v6020 = vrot.slane %v6018, 1
      %v6021 = vsel %vm2286, %v6016, %v6020
      %v6022 = vshrl.u32 %v5803, 16
      %v6024 = vor.u32 %v6022, %v6020
      %v6026 = vshll.u32 %v5804, 16
      %v6028 = vrot.slane %v6026, 1
      %v6029 = vsel %vm2286, %v6024, %v6028
      %v6030 = vshrl.u32 %v5804, 16
      %v6032 = vor.u32 %v6030, %v6028
      %v6034 = vshll.u32 %v5805, 16
      %v6036 = vrot.slane %v6034, 1
      %v6037 = vsel %vm2286, %v6032, %v6036
      %v6038 = vshrl.u32 %v5805, 16
      %v6040 = vor.u32 %v6038, %v6036
      %v6042 = vshll.u32 %v5806, 16
      %v6044 = vrot.slane %v6042, 1
      %v6045 = vsel %vm2286, %v6040, %v6044
      %v6046 = vshrl.u32 %v5806, 16
      %v6048 = vor.u32 %v6046, %v6044
      %v6050 = vshll.u32 %v5857, 16
      %v6052 = vrot.slane %v6050, 1
      %v6053 = vsel %vm2286, %v6048, %v6052
      %6054 = vrot.lane.b32.xlu0 %v5869, 16
      %v6055 = vpop.permute.xlu0 %6054
      %6056 = vrot.lane.b32.xlu0 %v5877, 16
      %v6057 = vpop.permute.xlu0 %6056
      %6058 = vrot.lane.b32.xlu0 %v5885, 16
      %v6059 = vpop.permute.xlu0 %6058
      %6060 = vrot.lane.b32.xlu0 %v5893, 16
      %v6061 = vpop.permute.xlu0 %6060
      %6062 = vrot.lane.b32.xlu0 %v5901, 16
      %v6063 = vpop.permute.xlu0 %6062
      %6064 = vrot.lane.b32.xlu0 %v5909, 16
      %v6065 = vpop.permute.xlu0 %6064
      %6066 = vrot.lane.b32.xlu0 %v5917, 16
      %v6067 = vpop.permute.xlu0 %6066
      %6068 = vrot.lane.b32.xlu0 %v5925, 16
      %v6069 = vpop.permute.xlu0 %6068
      %6070 = vrot.lane.b32.xlu0 %v5933, 16
      %v6071 = vpop.permute.xlu0 %6070
      %6072 = vrot.lane.b32.xlu0 %v5941, 16
      %v6073 = vpop.permute.xlu0 %6072
      %6074 = vrot.lane.b32.xlu0 %v5949, 16
      %v6075 = vpop.permute.xlu0 %6074
      %6076 = vrot.lane.b32.xlu0 %v5957, 16
      %v6077 = vpop.permute.xlu0 %6076
      %6078 = vrot.lane.b32.xlu0 %v5965, 16
      %v6079 = vpop.permute.xlu0 %6078
      %6080 = vrot.lane.b32.xlu0 %v5973, 16
      %v6081 = vpop.permute.xlu0 %6080
      %6082 = vrot.lane.b32.xlu0 %v5981, 16
      %v6083 = vpop.permute.xlu0 %6082
      %6084 = vrot.lane.b32.xlu0 %v5989, 16
      %v6085 = vpop.permute.xlu0 %6084
      %6086 = vrot.lane.b32.xlu0 %v5997, 16
      %v6087 = vpop.permute.xlu0 %6086
      %6088 = vrot.lane.b32.xlu0 %v6005, 16
      %v6089 = vpop.permute.xlu0 %6088
      %6090 = vrot.lane.b32.xlu0 %v6013, 16
      %v6091 = vpop.permute.xlu0 %6090
      %6092 = vrot.lane.b32.xlu0 %v6021, 16
      %v6093 = vpop.permute.xlu0 %6092
      %6094 = vrot.lane.b32.xlu0 %v6029, 16
      %v6095 = vpop.permute.xlu0 %6094
      %6096 = vrot.lane.b32.xlu0 %v6037, 16
      %v6097 = vpop.permute.xlu0 %6096
      %6098 = vrot.lane.b32.xlu0 %v6045, 16
      %v6099 = vpop.permute.xlu0 %6098
      %6100 = vrot.lane.b32.xlu0 %v6053, 16
      %v6101 = vpop.permute.xlu0 %6100
      %v6103 = vunpack.c.l.b16 %v5304
      %v6104 = vpack.c.b16 %v5362, %v6103
      %v6105 = vrot.slane %v6104, 1
      %v6106 = vrot.slane %v5784, 1
      %v6107 = vsel %vm2534, %v6105, %v6106
      %v6108 = vrot.slane %v5785, 1
      %v6109 = vsel %vm2534, %v6106, %v6108
      %v6110 = vrot.slane %v5786, 1
      %v6111 = vsel %vm2534, %v6108, %v6110
      %v6112 = vrot.slane %v5787, 1
      %v6113 = vsel %vm2534, %v6110, %v6112
      %v6114 = vrot.slane %v5788, 1
      %v6115 = vsel %vm2534, %v6112, %v6114
      %v6116 = vrot.slane %v5789, 1
      %v6117 = vsel %vm2534, %v6114, %v6116
      %v6118 = vrot.slane %v5790, 1
      %v6119 = vsel %vm2534, %v6116, %v6118
      %v6120 = vrot.slane %v5791, 1
      %v6121 = vsel %vm2534, %v6118, %v6120
      %v6122 = vrot.slane %v5792, 1
      %v6123 = vsel %vm2534, %v6120, %v6122
      %v6124 = vrot.slane %v5793, 1
      %v6125 = vsel %vm2534, %v6122, %v6124
      %v6126 = vrot.slane %v5794, 1
      %v6127 = vsel %vm2534, %v6124, %v6126
      %v6128 = vrot.slane %v5795, 1
      %v6129 = vsel %vm2534, %v6126, %v6128
      %v6130 = vrot.slane %v5796, 1
      %v6131 = vsel %vm2534, %v6128, %v6130
      %v6132 = vrot.slane %v5797, 1
      %v6133 = vsel %vm2534, %v6130, %v6132
      %v6134 = vrot.slane %v5798, 1
      %v6135 = vsel %vm2534, %v6132, %v6134
      %v6136 = vrot.slane %v5799, 1
      %v6137 = vsel %vm2534, %v6134, %v6136
      %v6138 = vrot.slane %v5800, 1
      %v6139 = vsel %vm2534, %v6136, %v6138
      %v6140 = vrot.slane %v5801, 1
      %v6141 = vsel %vm2534, %v6138, %v6140
      %v6142 = vrot.slane %v5802, 1
      %v6143 = vsel %vm2534, %v6140, %v6142
      %v6144 = vrot.slane %v5803, 1
      %v6145 = vsel %vm2534, %v6142, %v6144
      %v6146 = vrot.slane %v5804, 1
      %v6147 = vsel %vm2534, %v6144, %v6146
      %v6148 = vrot.slane %v5805, 1
      %v6149 = vsel %vm2534, %v6146, %v6148
      %v6150 = vrot.slane %v5806, 1
      %v6151 = vsel %vm2534, %v6148, %v6150
      %v6152 = vrot.slane %v5857, 1
      %v6153 = vsel %vm2534, %v6150, %v6152
      %6154 = vrot.lane.b32.xlu0 %v6107, 20
      %v6155 = vpop.permute.xlu0 %6154
      %6156 = vrot.lane.b32.xlu0 %v6109, 20
      %v6157 = vpop.permute.xlu0 %6156
      %6158 = vrot.lane.b32.xlu0 %v6111, 20
      %v6159 = vpop.permute.xlu0 %6158
      %6160 = vrot.lane.b32.xlu0 %v6113, 20
      %v6161 = vpop.permute.xlu0 %6160
      %6162 = vrot.lane.b32.xlu0 %v6115, 20
      %v6163 = vpop.permute.xlu0 %6162
      %6164 = vrot.lane.b32.xlu0 %v6117, 20
      %v6165 = vpop.permute.xlu0 %6164
      %6166 = vrot.lane.b32.xlu0 %v6119, 20
      %v6167 = vpop.permute.xlu0 %6166
      %6168 = vrot.lane.b32.xlu0 %v6121, 20
      %v6169 = vpop.permute.xlu0 %6168
      %6170 = vrot.lane.b32.xlu0 %v6123, 20
      %v6171 = vpop.permute.xlu0 %6170
      %6172 = vrot.lane.b32.xlu0 %v6125, 20
      %v6173 = vpop.permute.xlu0 %6172
      %6174 = vrot.lane.b32.xlu0 %v6127, 20
      %v6175 = vpop.permute.xlu0 %6174
      %6176 = vrot.lane.b32.xlu0 %v6129, 20
      %v6177 = vpop.permute.xlu0 %6176
      %6178 = vrot.lane.b32.xlu0 %v6131, 20
      %v6179 = vpop.permute.xlu0 %6178
      %6180 = vrot.lane.b32.xlu0 %v6133, 20
      %v6181 = vpop.permute.xlu0 %6180
      %6182 = vrot.lane.b32.xlu0 %v6135, 20
      %v6183 = vpop.permute.xlu0 %6182
      %6184 = vrot.lane.b32.xlu0 %v6137, 20
      %v6185 = vpop.permute.xlu0 %6184
      %6186 = vrot.lane.b32.xlu0 %v6139, 20
      %v6187 = vpop.permute.xlu0 %6186
      %6188 = vrot.lane.b32.xlu0 %v6141, 20
      %v6189 = vpop.permute.xlu0 %6188
      %6190 = vrot.lane.b32.xlu0 %v6143, 20
      %v6191 = vpop.permute.xlu0 %6190
      %6192 = vrot.lane.b32.xlu0 %v6145, 20
      %v6193 = vpop.permute.xlu0 %6192
      %6194 = vrot.lane.b32.xlu0 %v6147, 20
      %v6195 = vpop.permute.xlu0 %6194
      %6196 = vrot.lane.b32.xlu0 %v6149, 20
      %v6197 = vpop.permute.xlu0 %6196
      %6198 = vrot.lane.b32.xlu0 %v6151, 20
      %v6199 = vpop.permute.xlu0 %6198
      %6200 = vrot.lane.b32.xlu0 %v6153, 20
      %v6201 = vpop.permute.xlu0 %6200
      %v6205 = vunpack.c.l.b16 %v5305
      %v6206 = vunpack.c.l.b16 %v5306
      %v6207 = vunpack.c.l.b16 %v5307
      %v6208 = vpack.c.b16 %v5781, %v5780
      %v6209 = vpack.c.b16 %v6205, %v5782
      %v6210 = vpack.c.b16 %v6207, %v6206
      %6211 = vrot.lane.b32.xlu0 %v5409, 24
      %v6212 = vpop.permute.xlu0 %6211
      %6213 = vrot.lane.b32.xlu0 %v5410, 24
      %v6214 = vpop.permute.xlu0 %6213
      %6215 = vrot.lane.b32.xlu0 %v5411, 24
      %v6216 = vpop.permute.xlu0 %6215
      %6217 = vrot.lane.b32.xlu0 %v5412, 24
      %v6218 = vpop.permute.xlu0 %6217
      %6219 = vrot.lane.b32.xlu0 %v5413, 24
      %v6220 = vpop.permute.xlu0 %6219
      %6221 = vrot.lane.b32.xlu0 %v5414, 24
      %v6222 = vpop.permute.xlu0 %6221
      %6223 = vrot.lane.b32.xlu0 %v5415, 24
      %v6224 = vpop.permute.xlu0 %6223
      %6225 = vrot.lane.b32.xlu0 %v5416, 24
      %v6226 = vpop.permute.xlu0 %6225
      %6227 = vrot.lane.b32.xlu0 %v5417, 24
      %v6228 = vpop.permute.xlu0 %6227
      %6229 = vrot.lane.b32.xlu0 %v5418, 24
      %v6230 = vpop.permute.xlu0 %6229
      %6231 = vrot.lane.b32.xlu0 %v5419, 24
      %v6232 = vpop.permute.xlu0 %6231
      %6233 = vrot.lane.b32.xlu0 %v5420, 24
      %v6234 = vpop.permute.xlu0 %6233
      %6235 = vrot.lane.b32.xlu0 %v5421, 24
      %v6236 = vpop.permute.xlu0 %6235
      %6237 = vrot.lane.b32.xlu0 %v5422, 24
      %v6238 = vpop.permute.xlu0 %6237
      %6239 = vrot.lane.b32.xlu0 %v5423, 24
      %v6240 = vpop.permute.xlu0 %6239
      %6241 = vrot.lane.b32.xlu0 %v5424, 24
      %v6242 = vpop.permute.xlu0 %6241
      %6243 = vrot.lane.b32.xlu0 %v5425, 24
      %v6244 = vpop.permute.xlu0 %6243
      %6245 = vrot.lane.b32.xlu0 %v5426, 24
      %v6246 = vpop.permute.xlu0 %6245
      %6247 = vrot.lane.b32.xlu0 %v5427, 24
      %v6248 = vpop.permute.xlu0 %6247
      %6249 = vrot.lane.b32.xlu0 %v5428, 24
      %v6250 = vpop.permute.xlu0 %6249
      %6251 = vrot.lane.b32.xlu0 %v5429, 24
      %v6252 = vpop.permute.xlu0 %6251
      %6253 = vrot.lane.b32.xlu0 %v6208, 24
      %v6254 = vpop.permute.xlu0 %6253
      %6255 = vrot.lane.b32.xlu0 %v6209, 24
      %v6256 = vpop.permute.xlu0 %6255
      %6257 = vrot.lane.b32.xlu0 %v6210, 24
      %v6258 = vpop.permute.xlu0 %6257
      %v6260 = vunpack.c.l.b16 %v5308
      %v6261 = vpack.c.b16 %v6260, %v6260
      %v6263 = vshll.u32 %v6208, 16
      %v6265 = vrot.slane %v6263, 1
      %v6266 = vsel %vm2286, %v5623, %v6265
      %v6267 = vshrl.u32 %v6208, 16
      %v6269 = vor.u32 %v6267, %v6265
      %v6271 = vshll.u32 %v6209, 16
      %v6273 = vrot.slane %v6271, 1
      %v6274 = vsel %vm2286, %v6269, %v6273
      %v6275 = vshrl.u32 %v6209, 16
      %v6277 = vor.u32 %v6275, %v6273
      %v6279 = vshll.u32 %v6210, 16
      %v6281 = vrot.slane %v6279, 1
      %v6282 = vsel %vm2286, %v6277, %v6281
      %v6283 = vshrl.u32 %v6210, 16
      %v6285 = vor.u32 %v6283, %v6281
      %v6287 = vshll.u32 %v6261, 16
      %v6289 = vrot.slane %v6287, 1
      %v6290 = vsel %vm2286, %v6285, %v6289
      %6291 = vrot.lane.b32.xlu0 %v5468, 28
      %v6292 = vpop.permute.xlu0 %6291
      %6293 = vrot.lane.b32.xlu0 %v5476, 28
      %v6294 = vpop.permute.xlu0 %6293
      %6295 = vrot.lane.b32.xlu0 %v5484, 28
      %v6296 = vpop.permute.xlu0 %6295
      %6297 = vrot.lane.b32.xlu0 %v5492, 28
      %v6298 = vpop.permute.xlu0 %6297
      %6299 = vrot.lane.b32.xlu0 %v5500, 28
      %v6300 = vpop.permute.xlu0 %6299
      %6301 = vrot.lane.b32.xlu0 %v5508, 28
      %v6302 = vpop.permute.xlu0 %6301
      %6303 = vrot.lane.b32.xlu0 %v5516, 28
      %v6304 = vpop.permute.xlu0 %6303
      %6305 = vrot.lane.b32.xlu0 %v5524, 28
      %v6306 = vpop.permute.xlu0 %6305
      %6307 = vrot.lane.b32.xlu0 %v5532, 28
      %v6308 = vpop.permute.xlu0 %6307
      %6309 = vrot.lane.b32.xlu0 %v5540, 28
      %v6310 = vpop.permute.xlu0 %6309
      %6311 = vrot.lane.b32.xlu0 %v5548, 28
      %v6312 = vpop.permute.xlu0 %6311
      %6313 = vrot.lane.b32.xlu0 %v5556, 28
      %v6314 = vpop.permute.xlu0 %6313
      %6315 = vrot.lane.b32.xlu0 %v5564, 28
      %v6316 = vpop.permute.xlu0 %6315
      %6317 = vrot.lane.b32.xlu0 %v5572, 28
      %v6318 = vpop.permute.xlu0 %6317
      %6319 = vrot.lane.b32.xlu0 %v5580, 28
      %v6320 = vpop.permute.xlu0 %6319
      %6321 = vrot.lane.b32.xlu0 %v5588, 28
      %v6322 = vpop.permute.xlu0 %6321
      %6323 = vrot.lane.b32.xlu0 %v5596, 28
      %v6324 = vpop.permute.xlu0 %6323
      %6325 = vrot.lane.b32.xlu0 %v5604, 28
      %v6326 = vpop.permute.xlu0 %6325
      %6327 = vrot.lane.b32.xlu0 %v5612, 28
      %v6328 = vpop.permute.xlu0 %6327
      %6329 = vrot.lane.b32.xlu0 %v5620, 28
      %v6330 = vpop.permute.xlu0 %6329
      %6331 = vrot.lane.b32.xlu0 %v6266, 28
      %v6332 = vpop.permute.xlu0 %6331
      %6333 = vrot.lane.b32.xlu0 %v6274, 28
      %v6334 = vpop.permute.xlu0 %6333
      %6335 = vrot.lane.b32.xlu0 %v6282, 28
      %v6336 = vpop.permute.xlu0 %6335
      %6337 = vrot.lane.b32.xlu0 %v6290, 28
      %v6338 = vpop.permute.xlu0 %6337
      %v6340 = vunpack.c.l.b16 %v5309
      %v6341 = vpack.c.b16 %v5365, %v6340
      %v6342 = vrot.slane %v6341, 1
      %v6343 = vsel %vm2534, %v6342, %v5687
      %v6344 = vrot.slane %v6208, 1
      %v6345 = vsel %vm2534, %v5725, %v6344
      %v6346 = vrot.slane %v6209, 1
      %v6347 = vsel %vm2534, %v6344, %v6346
      %v6348 = vrot.slane %v6210, 1
      %v6349 = vsel %vm2534, %v6346, %v6348
      %v6350 = vrot.slane %v6261, 1
      %v6351 = vsel %vm2534, %v6348, %v6350
      %6352 = vrot.lane.b32.xlu0 %v6343, 32
      %v6353 = vpop.permute.xlu0 %6352
      %6354 = vrot.lane.b32.xlu0 %v5690, 32
      %v6355 = vpop.permute.xlu0 %6354
      %6356 = vrot.lane.b32.xlu0 %v5692, 32
      %v6357 = vpop.permute.xlu0 %6356
      %6358 = vrot.lane.b32.xlu0 %v5694, 32
      %v6359 = vpop.permute.xlu0 %6358
      %6360 = vrot.lane.b32.xlu0 %v5696, 32
      %v6361 = vpop.permute.xlu0 %6360
      %6362 = vrot.lane.b32.xlu0 %v5698, 32
      %v6363 = vpop.permute.xlu0 %6362
      %6364 = vrot.lane.b32.xlu0 %v5700, 32
      %v6365 = vpop.permute.xlu0 %6364
      %6366 = vrot.lane.b32.xlu0 %v5702, 32
      %v6367 = vpop.permute.xlu0 %6366
      %6368 = vrot.lane.b32.xlu0 %v5704, 32
      %v6369 = vpop.permute.xlu0 %6368
      %6370 = vrot.lane.b32.xlu0 %v5706, 32
      %v6371 = vpop.permute.xlu0 %6370
      %6372 = vrot.lane.b32.xlu0 %v5708, 32
      %v6373 = vpop.permute.xlu0 %6372
      %6374 = vrot.lane.b32.xlu0 %v5710, 32
      %v6375 = vpop.permute.xlu0 %6374
      %6376 = vrot.lane.b32.xlu0 %v5712, 32
      %v6377 = vpop.permute.xlu0 %6376
      %6378 = vrot.lane.b32.xlu0 %v5714, 32
      %v6379 = vpop.permute.xlu0 %6378
      %6380 = vrot.lane.b32.xlu0 %v5716, 32
      %v6381 = vpop.permute.xlu0 %6380
      %6382 = vrot.lane.b32.xlu0 %v5718, 32
      %v6383 = vpop.permute.xlu0 %6382
      %6384 = vrot.lane.b32.xlu0 %v5720, 32
      %v6385 = vpop.permute.xlu0 %6384
      %6386 = vrot.lane.b32.xlu0 %v5722, 32
      %v6387 = vpop.permute.xlu0 %6386
      %6388 = vrot.lane.b32.xlu0 %v5724, 32
      %v6389 = vpop.permute.xlu0 %6388
      %6390 = vrot.lane.b32.xlu0 %v5726, 32
      %v6391 = vpop.permute.xlu0 %6390
      %6392 = vrot.lane.b32.xlu0 %v6345, 32
      %v6393 = vpop.permute.xlu0 %6392
      %6394 = vrot.lane.b32.xlu0 %v6347, 32
      %v6395 = vpop.permute.xlu0 %6394
      %6396 = vrot.lane.b32.xlu0 %v6349, 32
      %v6397 = vpop.permute.xlu0 %6396
      %6398 = vrot.lane.b32.xlu0 %v6351, 32
      %v6399 = vpop.permute.xlu0 %6398
      %v6401 = vsel %vm3255, %v5406, %v5630
      %v6403 = vsel %vm3255, %v5407, %v5632
      %v6405 = vsel %vm3255, %v5408, %v5634
      %v6407 = vsel %vm3255, %v5409, %v5636
      %v6409 = vsel %vm3255, %v5410, %v5638
      %v6411 = vsel %vm3255, %v5411, %v5640
      %v6413 = vsel %vm3255, %v5412, %v5642
      %v6415 = vsel %vm3255, %v5413, %v5644
      %v6417 = vsel %vm3255, %v5414, %v5646
      %v6419 = vsel %vm3255, %v5415, %v5648
      %v6421 = vsel %vm3255, %v5416, %v5650
      %v6423 = vsel %vm3255, %v5417, %v5652
      %v6425 = vsel %vm3255, %v5418, %v5654
      %v6427 = vsel %vm3255, %v5419, %v5656
      %v6429 = vsel %vm3255, %v5420, %v5658
      %v6431 = vsel %vm3255, %v5421, %v5660
      %v6433 = vsel %vm3255, %v5422, %v5662
      %v6435 = vsel %vm3255, %v5423, %v5664
      %v6437 = vsel %vm3255, %v5424, %v5666
      %v6439 = vsel %vm3255, %v5425, %v5668
      %v6441 = vsel %vm3255, %v5426, %v5670
      %v6443 = vsel %vm3255, %v5427, %v5672
      %v6445 = vsel %vm3255, %v5428, %v5674
      %v6447 = vsel %vm3255, %v5429, %v5676
      %v6449 = vsel %vm3304, %v6401, %v5730
      %v6451 = vsel %vm3304, %v6403, %v5732
      %v6453 = vsel %vm3304, %v6405, %v5734
      %v6455 = vsel %vm3304, %v6407, %v5736
      %v6457 = vsel %vm3304, %v6409, %v5738
      %v6459 = vsel %vm3304, %v6411, %v5740
      %v6461 = vsel %vm3304, %v6413, %v5742
      %v6463 = vsel %vm3304, %v6415, %v5744
      %v6465 = vsel %vm3304, %v6417, %v5746
      %v6467 = vsel %vm3304, %v6419, %v5748
      %v6469 = vsel %vm3304, %v6421, %v5750
      %v6471 = vsel %vm3304, %v6423, %v5752
      %v6473 = vsel %vm3304, %v6425, %v5754
      %v6475 = vsel %vm3304, %v6427, %v5756
      %v6477 = vsel %vm3304, %v6429, %v5758
      %v6479 = vsel %vm3304, %v6431, %v5760
      %v6481 = vsel %vm3304, %v6433, %v5762
      %v6483 = vsel %vm3304, %v6435, %v5764
      %v6485 = vsel %vm3304, %v6437, %v5766
      %v6487 = vsel %vm3304, %v6439, %v5768
      %v6489 = vsel %vm3304, %v6441, %v5770
      %v6491 = vsel %vm3304, %v6443, %v5772
      %v6493 = vsel %vm3304, %v6445, %v5774
      %v6495 = vsel %vm3304, %v6447, %v5776
      %v6497 = vsel %vm3353, %v6449, %v5808
      %v6499 = vsel %vm3353, %v6451, %v5810
      %v6501 = vsel %vm3353, %v6453, %v5812
      %v6503 = vsel %vm3353, %v6455, %v5814
      %v6505 = vsel %vm3353, %v6457, %v5816
      %v6507 = vsel %vm3353, %v6459, %v5818
      %v6509 = vsel %vm3353, %v6461, %v5820
      %v6511 = vsel %vm3353, %v6463, %v5822
      %v6513 = vsel %vm3353, %v6465, %v5824
      %v6515 = vsel %vm3353, %v6467, %v5826
      %v6517 = vsel %vm3353, %v6469, %v5828
      %v6519 = vsel %vm3353, %v6471, %v5830
      %v6521 = vsel %vm3353, %v6473, %v5832
      %v6523 = vsel %vm3353, %v6475, %v5834
      %v6525 = vsel %vm3353, %v6477, %v5836
      %v6527 = vsel %vm3353, %v6479, %v5838
      %v6529 = vsel %vm3353, %v6481, %v5840
      %v6531 = vsel %vm3353, %v6483, %v5842
      %v6533 = vsel %vm3353, %v6485, %v5844
      %v6535 = vsel %vm3353, %v6487, %v5846
      %v6537 = vsel %vm3353, %v6489, %v5848
      %v6539 = vsel %vm3353, %v6491, %v5850
      %v6541 = vsel %vm3353, %v6493, %v5852
      %v6543 = vsel %vm3353, %v6495, %v5854
      %v6545 = vsel %vm3402, %v6497, %v6055
      %v6547 = vsel %vm3402, %v6499, %v6057
      %v6549 = vsel %vm3402, %v6501, %v6059
      %v6551 = vsel %vm3402, %v6503, %v6061
      %v6553 = vsel %vm3402, %v6505, %v6063
      %v6555 = vsel %vm3402, %v6507, %v6065
      %v6557 = vsel %vm3402, %v6509, %v6067
      %v6559 = vsel %vm3402, %v6511, %v6069
      %v6561 = vsel %vm3402, %v6513, %v6071
      %v6563 = vsel %vm3402, %v6515, %v6073
      %v6565 = vsel %vm3402, %v6517, %v6075
      %v6567 = vsel %vm3402, %v6519, %v6077
      %v6569 = vsel %vm3402, %v6521, %v6079
      %v6571 = vsel %vm3402, %v6523, %v6081
      %v6573 = vsel %vm3402, %v6525, %v6083
      %v6575 = vsel %vm3402, %v6527, %v6085
      %v6577 = vsel %vm3402, %v6529, %v6087
      %v6579 = vsel %vm3402, %v6531, %v6089
      %v6581 = vsel %vm3402, %v6533, %v6091
      %v6583 = vsel %vm3402, %v6535, %v6093
      %v6585 = vsel %vm3402, %v6537, %v6095
      %v6587 = vsel %vm3402, %v6539, %v6097
      %v6589 = vsel %vm3402, %v6541, %v6099
      %v6591 = vsel %vm3402, %v6543, %v6101
      %v6593 = vsel %vm3451, %v6545, %v6155
      %v6595 = vsel %vm3451, %v6547, %v6157
      %v6597 = vsel %vm3451, %v6549, %v6159
      %v6599 = vsel %vm3451, %v6551, %v6161
      %v6601 = vsel %vm3451, %v6553, %v6163
      %v6603 = vsel %vm3451, %v6555, %v6165
      %v6605 = vsel %vm3451, %v6557, %v6167
      %v6607 = vsel %vm3451, %v6559, %v6169
      %v6609 = vsel %vm3451, %v6561, %v6171
      %v6611 = vsel %vm3451, %v6563, %v6173
      %v6613 = vsel %vm3451, %v6565, %v6175
      %v6615 = vsel %vm3451, %v6567, %v6177
      %v6617 = vsel %vm3451, %v6569, %v6179
      %v6619 = vsel %vm3451, %v6571, %v6181
      %v6621 = vsel %vm3451, %v6573, %v6183
      %v6623 = vsel %vm3451, %v6575, %v6185
      %v6625 = vsel %vm3451, %v6577, %v6187
      %v6627 = vsel %vm3451, %v6579, %v6189
      %v6629 = vsel %vm3451, %v6581, %v6191
      %v6631 = vsel %vm3451, %v6583, %v6193
      %v6633 = vsel %vm3451, %v6585, %v6195
      %v6635 = vsel %vm3451, %v6587, %v6197
      %v6637 = vsel %vm3451, %v6589, %v6199
      %v6639 = vsel %vm3451, %v6591, %v6201
      %v6641 = vsel %vm3500, %v6593, %v6212
      %v6643 = vsel %vm3500, %v6595, %v6214
      %v6645 = vsel %vm3500, %v6597, %v6216
      %v6647 = vsel %vm3500, %v6599, %v6218
      %v6649 = vsel %vm3500, %v6601, %v6220
      %v6651 = vsel %vm3500, %v6603, %v6222
      %v6653 = vsel %vm3500, %v6605, %v6224
      %v6655 = vsel %vm3500, %v6607, %v6226
      %v6657 = vsel %vm3500, %v6609, %v6228
      %v6659 = vsel %vm3500, %v6611, %v6230
      %v6661 = vsel %vm3500, %v6613, %v6232
      %v6663 = vsel %vm3500, %v6615, %v6234
      %v6665 = vsel %vm3500, %v6617, %v6236
      %v6667 = vsel %vm3500, %v6619, %v6238
      %v6669 = vsel %vm3500, %v6621, %v6240
      %v6671 = vsel %vm3500, %v6623, %v6242
      %v6673 = vsel %vm3500, %v6625, %v6244
      %v6675 = vsel %vm3500, %v6627, %v6246
      %v6677 = vsel %vm3500, %v6629, %v6248
      %v6679 = vsel %vm3500, %v6631, %v6250
      %v6681 = vsel %vm3500, %v6633, %v6252
      %v6683 = vsel %vm3500, %v6635, %v6254
      %v6685 = vsel %vm3500, %v6637, %v6256
      %v6687 = vsel %vm3500, %v6639, %v6258
      %v6689 = vsel %vm3549, %v6641, %v6292
      %v6691 = vsel %vm3549, %v6643, %v6294
      %v6693 = vsel %vm3549, %v6645, %v6296
      %v6695 = vsel %vm3549, %v6647, %v6298
      %v6697 = vsel %vm3549, %v6649, %v6300
      %v6699 = vsel %vm3549, %v6651, %v6302
      %v6701 = vsel %vm3549, %v6653, %v6304
      %v6703 = vsel %vm3549, %v6655, %v6306
      %v6705 = vsel %vm3549, %v6657, %v6308
      %v6707 = vsel %vm3549, %v6659, %v6310
      %v6709 = vsel %vm3549, %v6661, %v6312
      %v6711 = vsel %vm3549, %v6663, %v6314
      %v6713 = vsel %vm3549, %v6665, %v6316
      %v6715 = vsel %vm3549, %v6667, %v6318
      %v6717 = vsel %vm3549, %v6669, %v6320
      %v6719 = vsel %vm3549, %v6671, %v6322
      %v6721 = vsel %vm3549, %v6673, %v6324
      %v6723 = vsel %vm3549, %v6675, %v6326
      %v6725 = vsel %vm3549, %v6677, %v6328
      %v6727 = vsel %vm3549, %v6679, %v6330
      %v6729 = vsel %vm3549, %v6681, %v6332
      %v6731 = vsel %vm3549, %v6683, %v6334
      %v6733 = vsel %vm3549, %v6685, %v6336
      %v6735 = vsel %vm3549, %v6687, %v6338
      %v6737 = vsel %vm3598, %v6689, %v6353
      %v6739 = vsel %vm3598, %v6691, %v6355
      %v6741 = vsel %vm3598, %v6693, %v6357
      %v6743 = vsel %vm3598, %v6695, %v6359
      %v6745 = vsel %vm3598, %v6697, %v6361
      %v6747 = vsel %vm3598, %v6699, %v6363
      %v6749 = vsel %vm3598, %v6701, %v6365
      %v6751 = vsel %vm3598, %v6703, %v6367
      %v6753 = vsel %vm3598, %v6705, %v6369
      %v6755 = vsel %vm3598, %v6707, %v6371
      %v6757 = vsel %vm3598, %v6709, %v6373
      %v6759 = vsel %vm3598, %v6711, %v6375
      %v6761 = vsel %vm3598, %v6713, %v6377
      %v6763 = vsel %vm3598, %v6715, %v6379
      %v6765 = vsel %vm3598, %v6717, %v6381
      %v6767 = vsel %vm3598, %v6719, %v6383
      %v6769 = vsel %vm3598, %v6721, %v6385
      %v6771 = vsel %vm3598, %v6723, %v6387
      %v6773 = vsel %vm3598, %v6725, %v6389
      %v6775 = vsel %vm3598, %v6727, %v6391
      %v6777 = vsel %vm3598, %v6729, %v6393
      %v6779 = vsel %vm3598, %v6731, %v6395
      %v6781 = vsel %vm3598, %v6733, %v6397
      %v6783 = vsel %vm3598, %v6735, %v6399
      %v6784 = vld [vmem:[%s2] sm:$0xf]
      %v6785 = vld [vmem:[%s2 + $0x4] sm:$0xf]
      %v6786 = vld [vmem:[%s2 + $0x8] sm:$0xf]
      %v6787 = vld [vmem:[%s2 + $0xc] sm:$0xf]
      %v6788 = vld [vmem:[%s2 + $0x10] sm:$0x3]
      %v6794 = vunpack.c.l.b16 %v6784
      %v6795 = vunpack.c.l.b16 %v6785
      %v6796 = vunpack.c.l.b16 %v6786
      %v6797 = vunpack.c.l.b16 %v6787
      %v6798 = vunpack.c.l.b16 %v6788
      %v6799 = vpack.c.b16 %v6795, %v6794
      %v6800 = vpack.c.b16 %v6797, %v6796
      %v6801 = vpack.c.b16 %v6798, %v6798
      %v6804 = vsel %vm3667, %v6737, 0
      %v6806 = vsel %vm3667, %v6739, 0
      %v6808 = vsel %vm3667, %v6741, 0
      %v6810 = vsel %vm3667, %v6743, 0
      %v6812 = vsel %vm3667, %v6745, 0
      %v6814 = vsel %vm3667, %v6747, 0
      %v6816 = vsel %vm3667, %v6749, 0
      %v6818 = vsel %vm3667, %v6751, 0
      %v6820 = vsel %vm3667, %v6753, 0
      %v6822 = vsel %vm3667, %v6755, 0
      %v6824 = vsel %vm3667, %v6757, 0
      %v6826 = vsel %vm3667, %v6759, 0
      %v6828 = vsel %vm3667, %v6761, 0
      %v6830 = vsel %vm3667, %v6763, 0
      %v6832 = vsel %vm3667, %v6765, 0
      %v6834 = vsel %vm3667, %v6767, 0
      %v6836 = vsel %vm3667, %v6769, 0
      %v6838 = vsel %vm3667, %v6771, 0
      %v6840 = vsel %vm3667, %v6773, 0
      %v6842 = vsel %vm3667, %v6775, 0
      %v6844 = vsel %vm3667, %v6777, 0
      %v6846 = vsel %vm3667, %v6779, 0
      %v6848 = vsel %vm3667, %v6781, 0
      %v6850 = vsel %vm3667, %v6783, 0
      %v6853 = vsel %vm3716, %v6801, 0
      %6855 = vmatprep.subr.bf16.mxu0 0
      %6856 = vmatpush1.bf16.msra.mxu0 %v6799
      %6857 = vmatprep.subr.bf16.mxu0 0
      %6858 = vmatpush1.bf16.msra.mxu0 %v6800
      %6859 = vmatprep.subr.bf16.mxu0 0
      %6860 = vmatpush1.bf16.msra.mxu0 %v6853
      %6861 = vmatprep.subr.bf16.mxu0 0
      %6862 = vmatpush1.bf16.msra.mxu0 0
      %6863 = vmatprep.subr.bf16.mxu0 0
      %6864 = vmatpush1.bf16.msra.mxu0 0
      %6865 = vmatprep.subr.bf16.mxu0 0
      %6866 = vmatpush1.bf16.msra.mxu0 0
      %6867 = vmatprep.subr.bf16.mxu0 0
      %6868 = vmatpush1.bf16.msra.mxu0 0
      %6869 = vmatprep.subr.bf16.mxu0 0
      %6870 = vmatpush1.bf16.msra.mxu0 0
      %6871 = vmatprep.subr.bf16.mxu0 0
      %6872 = vmatpush1.bf16.msra.mxu0 0
      %6873 = vmatprep.subr.bf16.mxu0 0
      %6874 = vmatpush1.bf16.msra.mxu0 0
      %6875 = vmatprep.subr.bf16.mxu0 0
      %6876 = vmatpush1.bf16.msra.mxu0 0
      %6877 = vmatprep.subr.bf16.mxu0 0
      %6878 = vmatpush1.bf16.msra.mxu0 0
      %6879 = vmatprep.subr.bf16.mxu0 0
      %6880 = vmatpush1.bf16.msra.mxu0 0
      %6881 = vmatprep.subr.bf16.mxu0 0
      %6882 = vmatpush1.bf16.msra.mxu0 0
      %6883 = vmatprep.subr.bf16.mxu0 0
      %6884 = vmatpush1.bf16.msra.mxu0 0
      %6885 = vmatprep.subr.bf16.mxu0 0
      %6886 = vmatpush1.bf16.msra.mxu0 0
      %6887 = vmatprep.mubr.bf16.mxu0 0
      %6888 = vmatmul.mubr.bf16.gmra.mrb[0].mxu0 %v6804
      %v6889 = vpop.f32.mrb[0].mxu0
      %v6890 = vadd.f32 0.0, %v6889
      %v6891 = vpop.f32.mrb[0].mxu0
      %v6892 = vpop.f32.mrb[0].mxu0
      %v6893 = vadd.f32 0.0, %v6892
      %v6894 = vpop.f32.mrb[0].mxu0
      %6895 = vmatprep.mubr.bf16.mxu0 0
      %6896 = vmatmul.mubr.bf16.gmra.mrb[0].mxu0 %v6806
      %v6897 = vpop.f32.mrb[0].mxu0
      %v6898 = vadd.f32 0.0, %v6897
      %v6899 = vpop.f32.mrb[0].mxu0
      %v6900 = vpop.f32.mrb[0].mxu0
      %v6901 = vadd.f32 0.0, %v6900
      %v6902 = vpop.f32.mrb[0].mxu0
      %6903 = vmatprep.mubr.bf16.mxu0 0
      %6904 = vmatmul.mubr.bf16.gmra.mrb[0].mxu0 %v6808
      %v6905 = vpop.f32.mrb[0].mxu0
      %v6906 = vadd.f32 0.0, %v6905
      %v6907 = vpop.f32.mrb[0].mxu0
      %v6908 = vpop.f32.mrb[0].mxu0
      %v6909 = vadd.f32 0.0, %v6908
      %v6910 = vpop.f32.mrb[0].mxu0
      %6911 = vmatprep.mubr.bf16.mxu0 0
      %6912 = vmatmul.mubr.bf16.gmra.mrb[0].mxu0 %v6810
      %v6913 = vpop.f32.mrb[0].mxu0
      %v6914 = vadd.f32 0.0, %v6913
      %v6915 = vpop.f32.mrb[0].mxu0
      %v6916 = vpop.f32.mrb[0].mxu0
      %v6917 = vadd.f32 0.0, %v6916
      %v6918 = vpop.f32.mrb[0].mxu0
      %6919 = vmatprep.mubr.bf16.mxu0 0
      %6920 = vmatmul.mubr.bf16.gmra.mrb[0].mxu0 %v6812
      %v6921 = vpop.f32.mrb[0].mxu0
      %v6922 = vadd.f32 0.0, %v6921
      %v6923 = vpop.f32.mrb[0].mxu0
      %v6924 = vpop.f32.mrb[0].mxu0
      %v6925 = vadd.f32 0.0, %v6924
      %v6926 = vpop.f32.mrb[0].mxu0
      %6927 = vmatprep.mubr.bf16.mxu0 0
      %6928 = vmatmul.mubr.bf16.gmra.mrb[0].mxu0 %v6814
      %v6929 = vpop.f32.mrb[0].mxu0
      %v6930 = vadd.f32 0.0, %v6929
      %v6931 = vpop.f32.mrb[0].mxu0
      %v6932 = vpop.f32.mrb[0].mxu0
      %v6933 = vadd.f32 0.0, %v6932
      %v6934 = vpop.f32.mrb[0].mxu0
      %6935 = vmatprep.mubr.bf16.mxu0 0
      %6936 = vmatmul.mubr.bf16.gmra.mrb[0].mxu0 %v6816
      %v6937 = vpop.f32.mrb[0].mxu0
      %v6938 = vadd.f32 0.0, %v6937
      %v6939 = vpop.f32.mrb[0].mxu0
      %v6940 = vpop.f32.mrb[0].mxu0
      %v6941 = vadd.f32 0.0, %v6940
      %v6942 = vpop.f32.mrb[0].mxu0
      %6943 = vmatprep.mubr.bf16.mxu0 0
      %6944 = vmatmul.mubr.bf16.gmra.mrb[0].mxu0 %v6818
      %v6945 = vpop.f32.mrb[0].mxu0
      %v6946 = vadd.f32 0.0, %v6945
      %v6947 = vpop.f32.mrb[0].mxu0
      %v6948 = vpop.f32.mrb[0].mxu0
      %v6949 = vadd.f32 0.0, %v6948
      %v6950 = vpop.f32.mrb[0].mxu0
      %6951 = vmatprep.mubr.bf16.mxu0 0
      %6952 = vmatmul.mubr.bf16.gmra.mrb[0].mxu0 %v6820
      %v6953 = vpop.f32.mrb[0].mxu0
      %v6954 = vadd.f32 0.0, %v6953
      %v6955 = vpop.f32.mrb[0].mxu0
      %v6956 = vpop.f32.mrb[0].mxu0
      %v6957 = vadd.f32 0.0, %v6956
      %v6958 = vpop.f32.mrb[0].mxu0
      %6959 = vmatprep.mubr.bf16.mxu0 0
      %6960 = vmatmul.mubr.bf16.gmra.mrb[0].mxu0 %v6822
      %v6961 = vpop.f32.mrb[0].mxu0
      %v6962 = vadd.f32 0.0, %v6961
      %v6963 = vpop.f32.mrb[0].mxu0
      %v6964 = vpop.f32.mrb[0].mxu0
      %v6965 = vadd.f32 0.0, %v6964
      %v6966 = vpop.f32.mrb[0].mxu0
      %6967 = vmatprep.mubr.bf16.mxu0 0
      %6968 = vmatmul.mubr.bf16.gmra.mrb[0].mxu0 %v6824
      %v6969 = vpop.f32.mrb[0].mxu0
      %v6970 = vadd.f32 0.0, %v6969
      %v6971 = vpop.f32.mrb[0].mxu0
      %v6972 = vpop.f32.mrb[0].mxu0
      %v6973 = vadd.f32 0.0, %v6972
      %v6974 = vpop.f32.mrb[0].mxu0
      %6975 = vmatprep.mubr.bf16.mxu0 0
      %6976 = vmatmul.mubr.bf16.gmra.mrb[0].mxu0 %v6826
      %v6977 = vpop.f32.mrb[0].mxu0
      %v6978 = vadd.f32 0.0, %v6977
      %v6979 = vpop.f32.mrb[0].mxu0
      %v6980 = vpop.f32.mrb[0].mxu0
      %v6981 = vadd.f32 0.0, %v6980
      %v6982 = vpop.f32.mrb[0].mxu0
      %6983 = vmatprep.mubr.bf16.mxu0 0
      %6984 = vmatmul.mubr.bf16.gmra.mrb[0].mxu0 %v6828
      %v6985 = vpop.f32.mrb[0].mxu0
      %v6986 = vadd.f32 0.0, %v6985
      %v6987 = vpop.f32.mrb[0].mxu0
      %v6988 = vpop.f32.mrb[0].mxu0
      %v6989 = vadd.f32 0.0, %v6988
      %v6990 = vpop.f32.mrb[0].mxu0
      %6991 = vmatprep.mubr.bf16.mxu0 0
      %6992 = vmatmul.mubr.bf16.gmra.mrb[0].mxu0 %v6830
      %v6993 = vpop.f32.mrb[0].mxu0
      %v6994 = vadd.f32 0.0, %v6993
      %v6995 = vpop.f32.mrb[0].mxu0
      %v6996 = vpop.f32.mrb[0].mxu0
      %v6997 = vadd.f32 0.0, %v6996
      %v6998 = vpop.f32.mrb[0].mxu0
      %6999 = vmatprep.mubr.bf16.mxu0 0
      %7000 = vmatmul.mubr.bf16.gmra.mrb[0].mxu0 %v6832
      %v7001 = vpop.f32.mrb[0].mxu0
      %v7002 = vadd.f32 0.0, %v7001
      %v7003 = vpop.f32.mrb[0].mxu0
      %v7004 = vpop.f32.mrb[0].mxu0
      %v7005 = vadd.f32 0.0, %v7004
      %v7006 = vpop.f32.mrb[0].mxu0
      %7007 = vmatprep.mubr.bf16.mxu0 0
      %7008 = vmatmul.mubr.bf16.gmra.mrb[0].mxu0 %v6834
      %v7009 = vpop.f32.mrb[0].mxu0
      %v7010 = vadd.f32 0.0, %v7009
      %v7011 = vpop.f32.mrb[0].mxu0
      %v7012 = vpop.f32.mrb[0].mxu0
      %v7013 = vadd.f32 0.0, %v7012
      %v7014 = vpop.f32.mrb[0].mxu0
      %7015 = vmatprep.mubr.bf16.mxu0 0
      %7016 = vmatmul.mubr.bf16.gmra.mrb[0].mxu0 %v6836
      %v7017 = vpop.f32.mrb[0].mxu0
      %v7018 = vadd.f32 0.0, %v7017
      %v7019 = vpop.f32.mrb[0].mxu0
      %v7020 = vpop.f32.mrb[0].mxu0
      %v7021 = vadd.f32 0.0, %v7020
      %v7022 = vpop.f32.mrb[0].mxu0
      %7023 = vmatprep.mubr.bf16.mxu0 0
      %7024 = vmatmul.mubr.bf16.gmra.mrb[0].mxu0 %v6838
      %v7025 = vpop.f32.mrb[0].mxu0
      %v7026 = vadd.f32 0.0, %v7025
      %v7027 = vpop.f32.mrb[0].mxu0
      %v7028 = vpop.f32.mrb[0].mxu0
      %v7029 = vadd.f32 0.0, %v7028
      %v7030 = vpop.f32.mrb[0].mxu0
      %7031 = vmatprep.mubr.bf16.mxu0 0
      %7032 = vmatmul.mubr.bf16.gmra.mrb[0].mxu0 %v6840
      %v7033 = vpop.f32.mrb[0].mxu0
      %v7034 = vadd.f32 0.0, %v7033
      %v7035 = vpop.f32.mrb[0].mxu0
      %v7036 = vpop.f32.mrb[0].mxu0
      %v7037 = vadd.f32 0.0, %v7036
      %v7038 = vpop.f32.mrb[0].mxu0
      %7039 = vmatprep.mubr.bf16.mxu0 0
      %7040 = vmatmul.mubr.bf16.gmra.mrb[0].mxu0 %v6842
      %v7041 = vpop.f32.mrb[0].mxu0
      %v7042 = vadd.f32 0.0, %v7041
      %v7043 = vpop.f32.mrb[0].mxu0
      %v7044 = vpop.f32.mrb[0].mxu0
      %v7045 = vadd.f32 0.0, %v7044
      %v7046 = vpop.f32.mrb[0].mxu0
      %7047 = vmatprep.mubr.bf16.mxu0 0
      %7048 = vmatmul.mubr.bf16.gmra.mrb[0].mxu0 %v6844
      %v7049 = vpop.f32.mrb[0].mxu0
      %v7050 = vadd.f32 0.0, %v7049
      %v7051 = vpop.f32.mrb[0].mxu0
      %v7052 = vpop.f32.mrb[0].mxu0
      %v7053 = vadd.f32 0.0, %v7052
      %v7054 = vpop.f32.mrb[0].mxu0
      %7055 = vmatprep.mubr.bf16.mxu0 0
      %7056 = vmatmul.mubr.bf16.gmra.mrb[0].mxu0 %v6846
      %v7057 = vpop.f32.mrb[0].mxu0
      %v7058 = vadd.f32 0.0, %v7057
      %v7059 = vpop.f32.mrb[0].mxu0
      %v7060 = vpop.f32.mrb[0].mxu0
      %v7061 = vadd.f32 0.0, %v7060
      %v7062 = vpop.f32.mrb[0].mxu0
      %7063 = vmatprep.mubr.bf16.mxu0 0
      %7064 = vmatmul.mubr.bf16.gmra.mrb[0].mxu0 %v6848
      %v7065 = vpop.f32.mrb[0].mxu0
      %v7066 = vadd.f32 0.0, %v7065
      %v7067 = vpop.f32.mrb[0].mxu0
      %v7068 = vpop.f32.mrb[0].mxu0
      %v7069 = vadd.f32 0.0, %v7068
      %v7070 = vpop.f32.mrb[0].mxu0
      %7071 = vmatprep.mubr.bf16.mxu0 0
      %7072 = vmatmul.mubr.bf16.gmra.mrb[0].mxu0 %v6850
      %v7073 = vpop.f32.mrb[0].mxu0
      %v7074 = vadd.f32 0.0, %v7073
      %v7075 = vpop.f32.mrb[0].mxu0
      %v7076 = vpop.f32.mrb[0].mxu0
      %v7077 = vadd.f32 0.0, %v7076
      %v7078 = vpop.f32.mrb[0].mxu0
      %7079 = vdwg.mxu0
      %v7080 = vmul.f32 %v6890, %v1106
      %v7081 = vmul.f32 %v6893, %v1107
      %v7082 = vmul.f32 %v6898, %v1108
      %v7083 = vmul.f32 %v6901, %v1109
      %v7084 = vmul.f32 %v6906, %v1110
      %v7085 = vmul.f32 %v6909, %v1111
      %v7086 = vmul.f32 %v6914, %v1112
      %v7087 = vmul.f32 %v6917, %v1113
      %v7088 = vmul.f32 %v6922, %v1114
      %v7089 = vmul.f32 %v6925, %v1115
      %v7090 = vmul.f32 %v6930, %v1116
      %v7091 = vmul.f32 %v6933, %v1117
      %v7092 = vmul.f32 %v6938, %v1118
      %v7093 = vmul.f32 %v6941, %v1119
      %v7094 = vmul.f32 %v6946, %v1120
      %v7095 = vmul.f32 %v6949, %v1121
      %v7096 = vmul.f32 %v6954, %v1122
      %v7097 = vmul.f32 %v6957, %v1123
      %v7098 = vmul.f32 %v6962, %v1124
      %v7099 = vmul.f32 %v6965, %v1125
      %v7100 = vmul.f32 %v6970, %v1126
      %v7101 = vmul.f32 %v6973, %v1127
      %v7102 = vmul.f32 %v6978, %v1128
      %v7103 = vmul.f32 %v6981, %v1129
      %v7104 = vmul.f32 %v6986, %v1130
      %v7105 = vmul.f32 %v6989, %v1131
      %v7106 = vmul.f32 %v6994, %v1132
      %v7107 = vmul.f32 %v6997, %v1133
      %v7108 = vmul.f32 %v7002, %v1134
      %v7109 = vmul.f32 %v7005, %v1135
      %v7110 = vmul.f32 %v7010, %v1136
      %v7111 = vmul.f32 %v7013, %v1137
      %v7112 = vmul.f32 %v7018, %v1138
      %v7113 = vmul.f32 %v7021, %v1139
      %v7114 = vmul.f32 %v7026, %v1140
      %v7115 = vmul.f32 %v7029, %v1141
      %v7116 = vmul.f32 %v7034, %v1142
      %v7117 = vmul.f32 %v7037, %v1143
      %v7118 = vmul.f32 %v7042, %v1144
      %v7119 = vmul.f32 %v7045, %v1145
      %v7120 = vmul.f32 %v7050, %v1146
      %v7121 = vmul.f32 %v7053, %v1147
      %v7122 = vmul.f32 %v7058, %v1148
      %v7123 = vmul.f32 %v7061, %v1149
      %v7124 = vmul.f32 %v7066, %v1150
      %v7125 = vmul.f32 %v7069, %v1151
      %v7126 = vmul.f32 %v7074, %v1152
      %v7127 = vmul.f32 %v7077, %v1153
      %v7128 = vsel %vm3255, %v7080, 0.0
      %v7129 = vsel %vm3255, %v7081, 0.0
      %v7130 = vadd.f32 %v7128, %v7129
      %v7131 = vsel %vm3255, %v7082, 0.0
      %v7132 = vadd.f32 %v7130, %v7131
      %v7133 = vsel %vm3255, %v7083, 0.0
      %v7134 = vadd.f32 %v7132, %v7133
      %v7135 = vsel %vm3255, %v7084, 0.0
      %v7136 = vadd.f32 %v7134, %v7135
      %v7137 = vsel %vm3255, %v7085, 0.0
      %v7138 = vadd.f32 %v7136, %v7137
      %v7139 = vsel %vm3255, %v7086, 0.0
      %v7140 = vadd.f32 %v7138, %v7139
      %v7141 = vsel %vm3255, %v7087, 0.0
      %v7142 = vadd.f32 %v7140, %v7141
      %v7143 = vsel %vm3255, %v7088, 0.0
      %v7144 = vadd.f32 %v7142, %v7143
      %v7145 = vsel %vm3255, %v7089, 0.0
      %v7146 = vadd.f32 %v7144, %v7145
      %v7147 = vsel %vm3255, %v7090, 0.0
      %v7148 = vadd.f32 %v7146, %v7147
      %v7149 = vsel %vm3255, %v7091, 0.0
      %v7150 = vadd.f32 %v7148, %v7149
      %v7151 = vsel %vm3255, %v7092, 0.0
      %v7152 = vadd.f32 %v7150, %v7151
      %v7153 = vsel %vm3255, %v7093, 0.0
      %v7154 = vadd.f32 %v7152, %v7153
      %v7155 = vsel %vm3255, %v7094, 0.0
      %v7156 = vadd.f32 %v7154, %v7155
      %v7157 = vsel %vm3255, %v7095, 0.0
      %v7158 = vadd.f32 %v7156, %v7157
      %v7159 = vsel %vm3255, %v7096, 0.0
      %v7160 = vadd.f32 %v7158, %v7159
      %v7161 = vsel %vm3255, %v7097, 0.0
      %v7162 = vadd.f32 %v7160, %v7161
      %v7163 = vsel %vm3255, %v7098, 0.0
      %v7164 = vadd.f32 %v7162, %v7163
      %v7165 = vsel %vm3255, %v7099, 0.0
      %v7166 = vadd.f32 %v7164, %v7165
      %v7167 = vsel %vm3255, %v7100, 0.0
      %v7168 = vadd.f32 %v7166, %v7167
      %v7169 = vsel %vm3255, %v7101, 0.0
      %v7170 = vadd.f32 %v7168, %v7169
      %v7171 = vsel %vm3255, %v7102, 0.0
      %v7172 = vadd.f32 %v7170, %v7171
      %v7173 = vsel %vm3255, %v7103, 0.0
      %v7174 = vadd.f32 %v7172, %v7173
      %v7175 = vsel %vm3255, %v7104, 0.0
      %v7176 = vadd.f32 %v7174, %v7175
      %v7177 = vsel %vm3255, %v7105, 0.0
      %v7178 = vadd.f32 %v7176, %v7177
      %v7179 = vsel %vm3255, %v7106, 0.0
      %v7180 = vadd.f32 %v7178, %v7179
      %v7181 = vsel %vm3255, %v7107, 0.0
      %v7182 = vadd.f32 %v7180, %v7181
      %v7183 = vsel %vm3255, %v7108, 0.0
      %v7184 = vadd.f32 %v7182, %v7183
      %v7185 = vsel %vm3255, %v7109, 0.0
      %v7186 = vadd.f32 %v7184, %v7185
      %v7187 = vsel %vm3255, %v7110, 0.0
      %v7188 = vadd.f32 %v7186, %v7187
      %v7189 = vsel %vm3255, %v7111, 0.0
      %v7190 = vadd.f32 %v7188, %v7189
      %v7191 = vsel %vm3255, %v7112, 0.0
      %v7192 = vadd.f32 %v7190, %v7191
      %v7193 = vsel %vm3255, %v7113, 0.0
      %v7194 = vadd.f32 %v7192, %v7193
      %v7195 = vsel %vm3255, %v7114, 0.0
      %v7196 = vadd.f32 %v7194, %v7195
      %v7197 = vsel %vm3255, %v7115, 0.0
      %v7198 = vadd.f32 %v7196, %v7197
      %v7199 = vsel %vm3255, %v7116, 0.0
      %v7200 = vadd.f32 %v7198, %v7199
      %v7201 = vsel %vm3255, %v7117, 0.0
      %v7202 = vadd.f32 %v7200, %v7201
      %v7203 = vsel %vm3255, %v7118, 0.0
      %v7204 = vadd.f32 %v7202, %v7203
      %v7205 = vsel %vm3255, %v7119, 0.0
      %v7206 = vadd.f32 %v7204, %v7205
      %v7207 = vsel %vm3255, %v7120, 0.0
      %v7208 = vadd.f32 %v7206, %v7207
      %v7209 = vsel %vm3255, %v7121, 0.0
      %v7210 = vadd.f32 %v7208, %v7209
      %v7211 = vsel %vm3255, %v7122, 0.0
      %v7212 = vadd.f32 %v7210, %v7211
      %v7213 = vsel %vm3255, %v7123, 0.0
      %v7214 = vadd.f32 %v7212, %v7213
      %v7215 = vsel %vm3255, %v7124, 0.0
      %v7216 = vadd.f32 %v7214, %v7215
      %v7217 = vsel %vm3255, %v7125, 0.0
      %v7218 = vadd.f32 %v7216, %v7217
      %v7219 = vsel %vm3255, %v7126, 0.0
      %v7220 = vadd.f32 %v7218, %v7219
      %v7221 = vsel %vm3255, %v7127, 0.0
      %v7222 = vadd.f32 %v7220, %v7221
      %v7223 = vrot.slane %v7222, 4
      %v7224 = vadd.f32 %v7222, %v7223
      %v7225 = vrot.slane %v7224, 2
      %v7226 = vadd.f32 %v7224, %v7225
      %v7227 = vrot.slane %v7226, 1
      %v7228 = vadd.f32 %v7226, %v7227
      %v7229 = vmul.f32 %v7080, %v6890
      %v7230 = vmul.f32 %v7081, %v6893
      %v7231 = vmul.f32 %v7082, %v6898
      %v7232 = vmul.f32 %v7083, %v6901
      %v7233 = vmul.f32 %v7084, %v6906
      %v7234 = vmul.f32 %v7085, %v6909
      %v7235 = vmul.f32 %v7086, %v6914
      %v7236 = vmul.f32 %v7087, %v6917
      %v7237 = vmul.f32 %v7088, %v6922
      %v7238 = vmul.f32 %v7089, %v6925
      %v7239 = vmul.f32 %v7090, %v6930
      %v7240 = vmul.f32 %v7091, %v6933
      %v7241 = vmul.f32 %v7092, %v6938
      %v7242 = vmul.f32 %v7093, %v6941
      %v7243 = vmul.f32 %v7094, %v6946
      %v7244 = vmul.f32 %v7095, %v6949
      %v7245 = vmul.f32 %v7096, %v6954
      %v7246 = vmul.f32 %v7097, %v6957
      %v7247 = vmul.f32 %v7098, %v6962
      %v7248 = vmul.f32 %v7099, %v6965
      %v7249 = vmul.f32 %v7100, %v6970
      %v7250 = vmul.f32 %v7101, %v6973
      %v7251 = vmul.f32 %v7102, %v6978
      %v7252 = vmul.f32 %v7103, %v6981
      %v7253 = vmul.f32 %v7104, %v6986
      %v7254 = vmul.f32 %v7105, %v6989
      %v7255 = vmul.f32 %v7106, %v6994
      %v7256 = vmul.f32 %v7107, %v6997
      %v7257 = vmul.f32 %v7108, %v7002
      %v7258 = vmul.f32 %v7109, %v7005
      %v7259 = vmul.f32 %v7110, %v7010
      %v7260 = vmul.f32 %v7111, %v7013
      %v7261 = vmul.f32 %v7112, %v7018
      %v7262 = vmul.f32 %v7113, %v7021
      %v7263 = vmul.f32 %v7114, %v7026
      %v7264 = vmul.f32 %v7115, %v7029
      %v7265 = vmul.f32 %v7116, %v7034
      %v7266 = vmul.f32 %v7117, %v7037
      %v7267 = vmul.f32 %v7118, %v7042
      %v7268 = vmul.f32 %v7119, %v7045
      %v7269 = vmul.f32 %v7120, %v7050
      %v7270 = vmul.f32 %v7121, %v7053
      %v7271 = vmul.f32 %v7122, %v7058
      %v7272 = vmul.f32 %v7123, %v7061
      %v7273 = vmul.f32 %v7124, %v7066
      %v7274 = vmul.f32 %v7125, %v7069
      %v7275 = vmul.f32 %v7126, %v7074
      %v7276 = vmul.f32 %v7127, %v7077
      %v7277 = vsel %vm3255, %v7229, 0.0
      %v7278 = vsel %vm3255, %v7230, 0.0
      %v7279 = vadd.f32 %v7277, %v7278
      %v7280 = vsel %vm3255, %v7231, 0.0
      %v7281 = vadd.f32 %v7279, %v7280
      %v7282 = vsel %vm3255, %v7232, 0.0
      %v7283 = vadd.f32 %v7281, %v7282
      %v7284 = vsel %vm3255, %v7233, 0.0
      %v7285 = vadd.f32 %v7283, %v7284
      %v7286 = vsel %vm3255, %v7234, 0.0
      %v7287 = vadd.f32 %v7285, %v7286
      %v7288 = vsel %vm3255, %v7235, 0.0
      %v7289 = vadd.f32 %v7287, %v7288
      %v7290 = vsel %vm3255, %v7236, 0.0
      %v7291 = vadd.f32 %v7289, %v7290
      %v7292 = vsel %vm3255, %v7237, 0.0
      %v7293 = vadd.f32 %v7291, %v7292
      %v7294 = vsel %vm3255, %v7238, 0.0
      %v7295 = vadd.f32 %v7293, %v7294
      %v7296 = vsel %vm3255, %v7239, 0.0
      %v7297 = vadd.f32 %v7295, %v7296
      %v7298 = vsel %vm3255, %v7240, 0.0
      %v7299 = vadd.f32 %v7297, %v7298
      %v7300 = vsel %vm3255, %v7241, 0.0
      %v7301 = vadd.f32 %v7299, %v7300
      %v7302 = vsel %vm3255, %v7242, 0.0
      %v7303 = vadd.f32 %v7301, %v7302
      %v7304 = vsel %vm3255, %v7243, 0.0
      %v7305 = vadd.f32 %v7303, %v7304
      %v7306 = vsel %vm3255, %v7244, 0.0
      %v7307 = vadd.f32 %v7305, %v7306
      %v7308 = vsel %vm3255, %v7245, 0.0
      %v7309 = vadd.f32 %v7307, %v7308
      %v7310 = vsel %vm3255, %v7246, 0.0
      %v7311 = vadd.f32 %v7309, %v7310
      %v7312 = vsel %vm3255, %v7247, 0.0
      %v7313 = vadd.f32 %v7311, %v7312
      %v7314 = vsel %vm3255, %v7248, 0.0
      %v7315 = vadd.f32 %v7313, %v7314
      %v7316 = vsel %vm3255, %v7249, 0.0
      %v7317 = vadd.f32 %v7315, %v7316
      %v7318 = vsel %vm3255, %v7250, 0.0
      %v7319 = vadd.f32 %v7317, %v7318
      %v7320 = vsel %vm3255, %v7251, 0.0
      %v7321 = vadd.f32 %v7319, %v7320
      %v7322 = vsel %vm3255, %v7252, 0.0
      %v7323 = vadd.f32 %v7321, %v7322
      %v7324 = vsel %vm3255, %v7253, 0.0
      %v7325 = vadd.f32 %v7323, %v7324
      %v7326 = vsel %vm3255, %v7254, 0.0
      %v7327 = vadd.f32 %v7325, %v7326
      %v7328 = vsel %vm3255, %v7255, 0.0
      %v7329 = vadd.f32 %v7327, %v7328
      %v7330 = vsel %vm3255, %v7256, 0.0
      %v7331 = vadd.f32 %v7329, %v7330
      %v7332 = vsel %vm3255, %v7257, 0.0
      %v7333 = vadd.f32 %v7331, %v7332
      %v7334 = vsel %vm3255, %v7258, 0.0
      %v7335 = vadd.f32 %v7333, %v7334
      %v7336 = vsel %vm3255, %v7259, 0.0
      %v7337 = vadd.f32 %v7335, %v7336
      %v7338 = vsel %vm3255, %v7260, 0.0
      %v7339 = vadd.f32 %v7337, %v7338
      %v7340 = vsel %vm3255, %v7261, 0.0
      %v7341 = vadd.f32 %v7339, %v7340
      %v7342 = vsel %vm3255, %v7262, 0.0
      %v7343 = vadd.f32 %v7341, %v7342
      %v7344 = vsel %vm3255, %v7263, 0.0
      %v7345 = vadd.f32 %v7343, %v7344
      %v7346 = vsel %vm3255, %v7264, 0.0
      %v7347 = vadd.f32 %v7345, %v7346
      %v7348 = vsel %vm3255, %v7265, 0.0
      %v7349 = vadd.f32 %v7347, %v7348
      %v7350 = vsel %vm3255, %v7266, 0.0
      %v7351 = vadd.f32 %v7349, %v7350
      %v7352 = vsel %vm3255, %v7267, 0.0
      %v7353 = vadd.f32 %v7351, %v7352
      %v7354 = vsel %vm3255, %v7268, 0.0
      %v7355 = vadd.f32 %v7353, %v7354
      %v7356 = vsel %vm3255, %v7269, 0.0
      %v7357 = vadd.f32 %v7355, %v7356
      %v7358 = vsel %vm3255, %v7270, 0.0
      %v7359 = vadd.f32 %v7357, %v7358
      %v7360 = vsel %vm3255, %v7271, 0.0
      %v7361 = vadd.f32 %v7359, %v7360
      %v7362 = vsel %vm3255, %v7272, 0.0
      %v7363 = vadd.f32 %v7361, %v7362
      %v7364 = vsel %vm3255, %v7273, 0.0
      %v7365 = vadd.f32 %v7363, %v7364
      %v7366 = vsel %vm3255, %v7274, 0.0
      %v7367 = vadd.f32 %v7365, %v7366
      %v7368 = vsel %vm3255, %v7275, 0.0
      %v7369 = vadd.f32 %v7367, %v7368
      %v7370 = vsel %vm3255, %v7276, 0.0
      %v7371 = vadd.f32 %v7369, %v7370
      %v7372 = vrot.slane %v7371, 4
      %v7373 = vadd.f32 %v7371, %v7372
      %v7374 = vrot.slane %v7373, 2
      %v7375 = vadd.f32 %v7373, %v7374
      %v7376 = vrot.slane %v7375, 1
      %v7377 = vadd.f32 %v7375, %v7376
      %v7378 = vmul.f32 %v7228, 0.00390625
      %v7379 = vmul.f32 %v7377, 0.00390625
      %v7380 = vmul.f32 %v7378, %v7378
      %v7381 = vsub.f32 %v7379, %v7380
      %v7382 = vmax.f32 %v7381, 0.0
      %v7383 = vsub.f32 %v6890, %v7378
      %v7384 = vsub.f32 %v6893, %v7378
      %v7385 = vsub.f32 %v6901, %v7378
      %v7386 = vsub.f32 %v6906, %v7378
      %v7387 = vsub.f32 %v6914, %v7378
      %v7388 = vsub.f32 %v6917, %v7378
      %v7389 = vsub.f32 %v6925, %v7378
      %v7390 = vsub.f32 %v6930, %v7378
      %v7391 = vsub.f32 %v6938, %v7378
      %v7392 = vsub.f32 %v6941, %v7378
      %v7393 = vsub.f32 %v6949, %v7378
      %v7394 = vsub.f32 %v6954, %v7378
      %v7395 = vsub.f32 %v6962, %v7378
      %v7396 = vsub.f32 %v6965, %v7378
      %v7397 = vsub.f32 %v6973, %v7378
      %v7398 = vsub.f32 %v6978, %v7378
      %v7399 = vsub.f32 %v6986, %v7378
      %v7400 = vsub.f32 %v6989, %v7378
      %v7401 = vsub.f32 %v6997, %v7378
      %v7402 = vsub.f32 %v7002, %v7378
      %v7403 = vsub.f32 %v7010, %v7378
      %v7404 = vsub.f32 %v7013, %v7378
      %v7405 = vsub.f32 %v7021, %v7378
      %v7406 = vsub.f32 %v7026, %v7378
      %v7407 = vsub.f32 %v7034, %v7378
      %v7408 = vsub.f32 %v7037, %v7378
      %v7409 = vsub.f32 %v7045, %v7378
      %v7410 = vsub.f32 %v7050, %v7378
      %v7411 = vsub.f32 %v7058, %v7378
      %v7412 = vsub.f32 %v7061, %v7378
      %v7413 = vsub.f32 %v7069, %v7378
      %v7414 = vsub.f32 %v7074, %v7378
      %v7415 = vadd.f32 %v7382, 1e-05
      %v7416 = vrsqrt.pop %v7415
      %v7417 = vmul.f32 %v7383, %v7416
      %v7418 = vmul.f32 %v7384, %v7416
      %v7419 = vmul.f32 %v7385, %v7416
      %v7420 = vmul.f32 %v7386, %v7416
      %v7421 = vmul.f32 %v7387, %v7416
      %v7422 = vmul.f32 %v7388, %v7416
      %v7423 = vmul.f32 %v7389, %v7416
      %v7424 = vmul.f32 %v7390, %v7416
      %v7425 = vmul.f32 %v7391, %v7416
      %v7426 = vmul.f32 %v7392, %v7416
      %v7427 = vmul.f32 %v7393, %v7416
      %v7428 = vmul.f32 %v7394, %v7416
      %v7429 = vmul.f32 %v7395, %v7416
      %v7430 = vmul.f32 %v7396, %v7416
      %v7431 = vmul.f32 %v7397, %v7416
      %v7432 = vmul.f32 %v7398, %v7416
      %v7433 = vmul.f32 %v7399, %v7416
      %v7434 = vmul.f32 %v7400, %v7416
      %v7435 = vmul.f32 %v7401, %v7416
      %v7436 = vmul.f32 %v7402, %v7416
      %v7437 = vmul.f32 %v7403, %v7416
      %v7438 = vmul.f32 %v7404, %v7416
      %v7439 = vmul.f32 %v7405, %v7416
      %v7440 = vmul.f32 %v7406, %v7416
      %v7441 = vmul.f32 %v7407, %v7416
      %v7442 = vmul.f32 %v7408, %v7416
      %v7443 = vmul.f32 %v7409, %v7416
      %v7444 = vmul.f32 %v7410, %v7416
      %v7445 = vmul.f32 %v7411, %v7416
      %v7446 = vmul.f32 %v7412, %v7416
      %v7447 = vmul.f32 %v7413, %v7416
      %v7448 = vmul.f32 %v7414, %v7416
      %v7449 = vld [vmem:[%s165] sm:$0xff]
      %v7450 = vld [vmem:[%s165 + $0x8] sm:$0xff]
      %v7451 = vld [vmem:[%s165 + $0x10] sm:$0xff]
      %v7452 = vld [vmem:[%s165 + $0x18] sm:$0xff]
      %v7453 = vld [vmem:[%s165 + $0x20] sm:$0xff]
      %v7454 = vld [vmem:[%s165 + $0x28] sm:$0xff]
      %v7455 = vld [vmem:[%s165 + $0x30] sm:$0xff]
      %v7456 = vld [vmem:[%s165 + $0x38] sm:$0xff]
      %v7457 = vld [vmem:[%s165 + $0x40] sm:$0xff]
      %v7458 = vld [vmem:[%s165 + $0x48] sm:$0xff]
      %v7459 = vld [vmem:[%s165 + $0x50] sm:$0xff]
      %v7460 = vld [vmem:[%s165 + $0x58] sm:$0xff]
      %v7461 = vld [vmem:[%s165 + $0x60] sm:$0xff]
      %v7462 = vld [vmem:[%s165 + $0x68] sm:$0xff]
      %v7463 = vld [vmem:[%s165 + $0x70] sm:$0xff]
      %v7464 = vld [vmem:[%s165 + $0x78] sm:$0xff]
      %v7465 = vld [vmem:[%s165 + $0x80] sm:$0xff]
      %v7466 = vld [vmem:[%s165 + $0x88] sm:$0xff]
      %v7467 = vld [vmem:[%s165 + $0x90] sm:$0xff]
      %v7468 = vld [vmem:[%s165 + $0x98] sm:$0xff]
      %v7469 = vld [vmem:[%s165 + $0xa0] sm:$0xff]
      %v7470 = vld [vmem:[%s165 + $0xa8] sm:$0xff]
      %v7471 = vld [vmem:[%s165 + $0xb0] sm:$0xff]
      %v7472 = vld [vmem:[%s165 + $0xb8] sm:$0xff]
      %v7473 = vld [vmem:[%s165 + $0xc0] sm:$0xff]
      %v7474 = vld [vmem:[%s165 + $0xc8] sm:$0xff]
      %v7475 = vld [vmem:[%s165 + $0xd0] sm:$0xff]
      %v7476 = vld [vmem:[%s165 + $0xd8] sm:$0xff]
      %v7477 = vld [vmem:[%s165 + $0xe0] sm:$0xff]
      %v7478 = vld [vmem:[%s165 + $0xe8] sm:$0xff]
      %v7479 = vld [vmem:[%s165 + $0xf0] sm:$0xff]
      %v7480 = vld [vmem:[%s165 + $0xf8] sm:$0xff]
      %v7481 = vadd.f32 %v7449, %v7417
      %v7482 = vadd.f32 %v7450, %v7418
      %v7483 = vadd.f32 %v7451, %v7419
      %v7484 = vadd.f32 %v7452, %v7420
      %v7485 = vadd.f32 %v7453, %v7421
      %v7486 = vadd.f32 %v7454, %v7422
      %v7487 = vadd.f32 %v7455, %v7423
      %v7488 = vadd.f32 %v7456, %v7424
      %v7489 = vadd.f32 %v7457, %v7425
      %v7490 = vadd.f32 %v7458, %v7426
      %v7491 = vadd.f32 %v7459, %v7427
      %v7492 = vadd.f32 %v7460, %v7428
      %v7493 = vadd.f32 %v7461, %v7429
      %v7494 = vadd.f32 %v7462, %v7430
      %v7495 = vadd.f32 %v7463, %v7431
      %v7496 = vadd.f32 %v7464, %v7432
      %v7497 = vadd.f32 %v7465, %v7433
      %v7498 = vadd.f32 %v7466, %v7434
      %v7499 = vadd.f32 %v7467, %v7435
      %v7500 = vadd.f32 %v7468, %v7436
      %v7501 = vadd.f32 %v7469, %v7437
      %v7502 = vadd.f32 %v7470, %v7438
      %v7503 = vadd.f32 %v7471, %v7439
      %v7504 = vadd.f32 %v7472, %v7440
      %v7505 = vadd.f32 %v7473, %v7441
      %v7506 = vadd.f32 %v7474, %v7442
      %v7507 = vadd.f32 %v7475, %v7443
      %v7508 = vadd.f32 %v7476, %v7444
      %v7509 = vadd.f32 %v7477, %v7445
      %v7510 = vadd.f32 %v7478, %v7446
      %v7511 = vadd.f32 %v7479, %v7447
      %v7512 = vadd.f32 %v7480, %v7448
      %7513 = vst.msk [vmem:[%s170] sm:$0xff] %vm3255, %v7481
      %7514 = vst.msk [vmem:[%s170 + $0x8] sm:$0xff] %vm3255, %v7482
      %7515 = vst.msk [vmem:[%s170 + $0x10] sm:$0xff] %vm3255, %v7483
      %7516 = vst.msk [vmem:[%s170 + $0x18] sm:$0xff] %vm3255, %v7484
      %7517 = vst.msk [vmem:[%s170 + $0x20] sm:$0xff] %vm3255, %v7485
      %7518 = vst.msk [vmem:[%s170 + $0x28] sm:$0xff] %vm3255, %v7486
      %7519 = vst.msk [vmem:[%s170 + $0x30] sm:$0xff] %vm3255, %v7487
      %7520 = vst.msk [vmem:[%s170 + $0x38] sm:$0xff] %vm3255, %v7488
      %7521 = vst.msk [vmem:[%s170 + $0x40] sm:$0xff] %vm3255, %v7489
      %7522 = vst.msk [vmem:[%s170 + $0x48] sm:$0xff] %vm3255, %v7490
      %7523 = vst.msk [vmem:[%s170 + $0x50] sm:$0xff] %vm3255, %v7491
      %7524 = vst.msk [vmem:[%s170 + $0x58] sm:$0xff] %vm3255, %v7492
      %7525 = vst.msk [vmem:[%s170 + $0x60] sm:$0xff] %vm3255, %v7493
      %7526 = vst.msk [vmem:[%s170 + $0x68] sm:$0xff] %vm3255, %v7494
      %7527 = vst.msk [vmem:[%s170 + $0x70] sm:$0xff] %vm3255, %v7495
      %7528 = vst.msk [vmem:[%s170 + $0x78] sm:$0xff] %vm3255, %v7496
      %7529 = vst.msk [vmem:[%s170 + $0x80] sm:$0xff] %vm3255, %v7497
      %7530 = vst.msk [vmem:[%s170 + $0x88] sm:$0xff] %vm3255, %v7498
      %7531 = vst.msk [vmem:[%s170 + $0x90] sm:$0xff] %vm3255, %v7499
      %7532 = vst.msk [vmem:[%s170 + $0x98] sm:$0xff] %vm3255, %v7500
      %7533 = vst.msk [vmem:[%s170 + $0xa0] sm:$0xff] %vm3255, %v7501
      %7534 = vst.msk [vmem:[%s170 + $0xa8] sm:$0xff] %vm3255, %v7502
      %7535 = vst.msk [vmem:[%s170 + $0xb0] sm:$0xff] %vm3255, %v7503
      %7536 = vst.msk [vmem:[%s170 + $0xb8] sm:$0xff] %vm3255, %v7504
      %7537 = vst.msk [vmem:[%s170 + $0xc0] sm:$0xff] %vm3255, %v7505
      %7538 = vst.msk [vmem:[%s170 + $0xc8] sm:$0xff] %vm3255, %v7506
      %7539 = vst.msk [vmem:[%s170 + $0xd0] sm:$0xff] %vm3255, %v7507
      %7540 = vst.msk [vmem:[%s170 + $0xd8] sm:$0xff] %vm3255, %v7508
      %7541 = vst.msk [vmem:[%s170 + $0xe0] sm:$0xff] %vm3255, %v7509
      %7542 = vst.msk [vmem:[%s170 + $0xe8] sm:$0xff] %vm3255, %v7510
      %7543 = vst.msk [vmem:[%s170 + $0xf0] sm:$0xff] %vm3255, %v7511
      %7544 = vst.msk [vmem:[%s170 + $0xf8] sm:$0xff] %vm3255, %v7512
      %p7545 = scmp.lt.s32.totalorder %s14, 1
      %s7546 = scalar_select %p7545, %s14, 1
      %s7547 = smul.addr %s7546, 32
      %s7548 = smul.addr %s7547, 8
      %s7549 = scalar_lea.vmem %s3, %s7548
      // Predicated region
      $region33: #{resnet_block_forward.1} parent=31 // pred_check
        %p7550 = pneg %p100
      $region34: #{resnet_block_forward.1} parent=31 // pred_check_branch
        %7552 = sbr.rel (%p7550) target = $region36
      $region35: #{resnet_block_forward.1} parent=31 // pred_region
        _
      $region36: #{resnet_block_forward.1} parent=31 // pred_fallthru
        _
    $region32: #{resnet_block_forward.1} parent=5 // pred_fallthru
      _
    %p7553 = scmp.le.s32.totalorder 2, %s9
    // Predicated region
    $region37: #{resnet_block_forward.1} parent=5 // pred_check
      %p7554 = pneg %p7553
    $region38: #{resnet_block_forward.1} parent=5 // pred_check_branch
      %7556 = sbr.rel (%p7554) target = $region40
    $region39: #{resnet_block_forward.1} parent=5 // pred_region
      %s7557 = ssub.s32 %s9, 2
      // Predicated region
      $region41: #{resnet_block_forward.1} parent=39 // pred_check
        %p7558 = pneg %p106
      $region42: #{resnet_block_forward.1} parent=39 // pred_check_branch
        %7560 = sbr.rel (%p7558) target = $region44
      $region43: #{resnet_block_forward.1} parent=39 // pred_region
        %p7561 = scmp.lt.s32.totalorder %s15, 1
        %s7562 = scalar_select %p7561, %s15, 1
        %s7563 = smul.addr %s7562, 32
        %s7564 = smul.addr %s7563, 8
        %s7565 = scalar_lea.vmem %s3, %s7564
      $region44: #{resnet_block_forward.1} parent=39 // pred_fallthru
        _
    $region40: #{resnet_block_forward.1} parent=5 // pred_fallthru
      _
  $region6: #{resnet_block_forward.1} parent=0 // loop_footer
    %s13 = sadd.s32 1, %s9
  $region7: #{resnet_block_forward.1} parent=0 // loop_footer_branch
    %8 = sbr.rel target = $region3
  $region8: #{resnet_block_forward.1} parent=0 // loop_exit
    _

</llo_original>
